<compile_context>
chip_gen: v5e
topology: v5e:2x2
jax: 0.10.0
libtpu: 0.0.40
codegen_flags: <defaults>
</compile_context>

<pallas_src>
import jax
import jax.numpy as jnp
from jax.experimental import pallas as pl
from jax.experimental.pallas import tpu as pltpu

BN_EPS = 1e-5
F32 = jnp.float32
BF16 = jnp.bfloat16


# ----------------------------- the fused kernel -----------------------------

def _backbone_kernel(x_ref, wt_ref,
                     d1w_ref, d1b_ref, p1w_ref, p1b_ref,
                     d2w_ref, d2b_ref, p2w_ref, p2b_ref,
                     d3w_ref, d3b_ref, p3w_ref, p3b_ref,
                     o_ref,
                     pad1_ref, pad2_ref, pad3_ref):
    tb = x_ref.shape[0]                                  # images per grid step

    # Zero the padded scratch borders.  Interiors are fully rewritten below.
    pad1_ref[...] = jnp.zeros_like(pad1_ref)
    pad2_ref[...] = jnp.zeros_like(pad2_ref)
    pad3_ref[...] = jnp.zeros_like(pad3_ref)

    # ---- Stage 1: 5x5 valid conv (3 -> 32) + ReLU, on the MXU ---------------
    # x_ref is (tb, 24, 72) with lane index c*24+w.  conv[b, oy, ox*32+f] =
    # sum_dy  x[b, oy+dy, :] @ wt[dy]   (block-Toeplitz weight, built in wrapper)
    acc = jnp.zeros((tb * 20, 640), F32)
    for dy in range(5):
        xs = x_ref[:, dy:dy + 20, :].reshape(tb * 20, 72).astype(BF16)
        acc = acc + jnp.dot(xs, wt_ref[dy], preferred_element_type=F32)
    conv = jnp.maximum(acc, 0.0).reshape(tb, 20, 640)     # [b, oy, ox*32+f]

    # ---- Stage 2: 3x3 / stride-2 max pool -> (tb, 9, 9, 32) -----------------
    rmax = jnp.maximum(jnp.maximum(conv[:, 0:18], conv[:, 1:19]), conv[:, 2:20])
    rsub = rmax.reshape(tb, 9, 2, 640)[:, :, 0, :]        # rows 0,2,...,16
    cols = []
    for j in range(9):                                    # pooled column j uses ox = 2j..2j+2
        g0 = rsub[:, :, (2 * j) * 32:(2 * j) * 32 + 32]
        g1 = rsub[:, :, (2 * j + 1) * 32:(2 * j + 1) * 32 + 32]
        g2 = rsub[:, :, (2 * j + 2) * 32:(2 * j + 2) * 32 + 32]
        cols.append(jnp.maximum(jnp.maximum(g0, g1), g2))  # (tb, 9, 32) over rows i
    # W-major spatial layout [b, x, y, ch]; depthwise weights are spatially
    # transposed in the wrapper so the math matches the NHWC reference.
    mp = jnp.stack(cols, axis=1)                           # (tb, 9, 9, 32)
    pad1_ref[:, 1:10, 1:10, :] = mp

    # ---- Block 1: depthwise 3x3 s1 (32) + BN + ReLU; pointwise 32->64 -------
    acc1 = jnp.zeros((tb, 9, 9, 32), F32)
    for u in range(3):
        for v in range(3):
            acc1 = acc1 + (pad1_ref[:, u:u + 9, v:v + 9, :]
                           * d1w_ref[3 * u + v:3 * u + v + 1, :])
    h1 = jnp.maximum(acc1 + d1b_ref[...], 0.0)             # (tb, 9, 9, 32)

    h1f = h1.reshape(tb * 81, 32).astype(BF16)             # one flattened matmul
    r1 = jnp.dot(h1f, p1w_ref[...], preferred_element_type=F32)
    r1 = jnp.maximum(r1 + p1b_ref[...], 0.0)
    pad2_ref[:, 1:10, 1:10, :] = r1.reshape(tb, 9, 9, 64)  # one bulk store

    # ---- Block 2: depthwise 3x3 STRIDE 2 (64) + BN + ReLU; pointwise 64->128.
    # Regular stride-1 pass over the padded input, subsampled once afterwards.
    acc2 = jnp.zeros((tb, 9, 9, 64), F32)
    for u in range(3):
        for v in range(3):
            acc2 = acc2 + (pad2_ref[:, u:u + 9, v:v + 9, :]
                           * d2w_ref[3 * u + v:3 * u + v + 1, :])
    h2full = jnp.maximum(acc2 + d2b_ref[...], 0.0)          # (tb, 9, 9, 64)
    h2r = jnp.concatenate([h2full[:, a:a + 1] for a in range(0, 9, 2)], axis=1)
    h2 = jnp.concatenate([h2r[:, :, c:c + 1] for c in range(0, 9, 2)], axis=2)  # (tb,5,5,64)

    h2f = h2.reshape(tb * 25, 64).astype(BF16)
    r2 = jnp.dot(h2f, p2w_ref[...], preferred_element_type=F32)
    r2 = jnp.maximum(r2 + p2b_ref[...], 0.0)
    pad3_ref[:, 1:6, 1:6, :] = r2.reshape(tb, 5, 5, 128)

    # ---- Block 3: depthwise 3x3 s1 (128) + pointwise 128->128 + global avg --
    acc3 = jnp.zeros((tb, 5, 5, 128), F32)
    for u in range(3):
        for v in range(3):
            acc3 = acc3 + (pad3_ref[:, u:u + 5, v:v + 5, :]
                           * d3w_ref[3 * u + v:3 * u + v + 1, :])
    h3 = jnp.maximum(acc3 + d3b_ref[...], 0.0)              # (tb, 5, 5, 128)

    h3f = h3.reshape(tb * 25, 128).astype(BF16)
    r3 = jnp.dot(h3f, p3w_ref[...], preferred_element_type=F32)
    r3 = jnp.maximum(r3 + p3b_ref[...], 0.0).reshape(tb, 25, 128)
    o_ref[:, 0, :] = jnp.sum(r3, axis=1) * (1.0 / 25.0)     # fused global avg pool


# ----------------------------- parameters -----------------------------------

def _fold_bn(key, c):
    k1, k2, k3, k4 = jax.random.split(key, 4)
    gamma = 1.0 + 0.1 * jax.random.normal(k1, (c,), F32)
    beta = 0.1 * jax.random.normal(k2, (c,), F32)
    mean = 0.1 * jax.random.normal(k3, (c,), F32)
    var = 0.5 + jax.random.uniform(k4, (c,), F32)
    scale = gamma / jnp.sqrt(var + BN_EPS)
    bias = beta - mean * scale
    return scale, bias


def _make_dwblock(key, cin, cout):
    k1, k2, k3, k4 = jax.random.split(key, 4)
    dw_w = 0.1 * jax.random.normal(k1, (3, 3, cin), F32)
    dw_scale, dw_bias = _fold_bn(k2, cin)
    pw_w = 0.1 * jax.random.normal(k3, (cin, cout), F32)
    pw_scale, pw_bias = _fold_bn(k4, cout)
    return dict(
        dw=(dw_w * dw_scale).astype(F32),              # BN scale folded into weights
        db=dw_bias.reshape(1, cin),
        pw=(pw_w * pw_scale[None, :]).astype(BF16),    # folded + bf16 for the MXU
        pb=pw_bias.reshape(1, cout),
    )


def init_params(key):
    k0, k1, k2, k3 = jax.random.split(key, 4)
    return dict(
        conv1_w=0.1 * jax.random.normal(k0, (5, 5, 3, 32), F32),
        dw1=_make_dwblock(k1, 32, 64),
        dw2=_make_dwblock(k2, 64, 128),
        dw3=_make_dwblock(k3, 128, 128),
    )


# ----------------------------- forward --------------------------------------

def _prep_dw(w_folded):
    """(3,3,C) depthwise weights -> (9,C), spatially transposed for the
    kernel's W-major layout (row index = 3*u + v maps to w[v, u, :])."""
    return jnp.transpose(w_folded, (1, 0, 2)).reshape(9, w_folded.shape[-1])


def backbone_forward(params, x_nchw, tb=None):
    B = x_nchw.shape[0]
    assert x_nchw.shape[1:] == (3, 24, 24), "kernel is specialized to 3x24x24 inputs"
    if tb is None:                              # largest divisor of B that is <= 8
        tb = max(d for d in range(1, min(B, 8) + 1) if B % d == 0)
    assert B % tb == 0

    # Pack the input as (B, H, C*W=72): lane-dense DMA tile (~4.6 KB/image
    # instead of a 3-wide, 128-lane-padded NHWC tile) and the exact layout the
    # shifted-row Toeplitz matmul needs.
    x_pack = jnp.transpose(x_nchw.astype(F32), (0, 2, 1, 3)).reshape(B, 24, 72)

    # Block-Toeplitz form of the 5x5x3->32 conv:
    #   wt[dy, c*24+w, ox*32+f] = w1[dy, w-ox, c, f]  for 0 <= w-ox <= 4, else 0
    w1 = params["conv1_w"]                                          # (5,5,3,32)
    shift = jnp.stack([jnp.pad(jnp.eye(20, dtype=F32), ((dx, 4 - dx), (0, 0)))
                       for dx in range(5)])                          # (5, 24, 20)
    wt = jnp.einsum("dwo,ydcf->ycwof", shift, w1).reshape(5, 72, 640).astype(BF16)

    dw1, dw2, dw3 = params["dw1"], params["dw2"], params["dw3"]
    weights = [
        wt,
        _prep_dw(dw1["dw"]), dw1["db"], dw1["pw"], dw1["pb"],
        _prep_dw(dw2["dw"]), dw2["db"], dw2["pw"], dw2["pb"],
        _prep_dw(dw3["dw"]), dw3["db"], dw3["pw"], dw3["pb"],
    ]

    def _full_spec(a):
        nd = a.ndim
        return pl.BlockSpec(a.shape, lambda b, _nd=nd: (0,) * _nd)

    out = pl.pallas_call(
        _backbone_kernel,
        out_shape=jax.ShapeDtypeStruct((B, 1, 128), F32),
        grid=(B // tb,),
        in_specs=[pl.BlockSpec((tb, 24, 72), lambda b: (b, 0, 0))]
                + [_full_spec(w) for w in weights],
        out_specs=pl.BlockSpec((tb, 1, 128), lambda b: (b, 0, 0)),
        scratch_shapes=[
            pltpu.VMEM((tb, 11, 11, 32), F32),   # zero-padded input of DW block 1
            pltpu.VMEM((tb, 11, 11, 64), F32),   # zero-padded input of DW block 2
            pltpu.VMEM((tb, 7, 7, 128), F32),    # zero-padded input of DW block 3
        ],
        compiler_params=pltpu.CompilerParams(dimension_semantics=("parallel",)),
    )(x_pack, *weights)
    return out[:, 0, :]                                             # (B, 128)


if __name__ == "__main__":
    key = jax.random.PRNGKey(0)
    kx, kp = jax.random.split(key)
    x = jax.random.normal(kx, (2, 3, 24, 24), F32)                  # NCHW like PyTorch
    params = init_params(kp)

    fwd = jax.jit(backbone_forward)
    out = jax.block_until_ready(fwd(params, x))

    assert out.shape == (2, 128), out.shape
    assert bool(jnp.all(jnp.isfinite(out)))
    print("KERNEL_OK")
</pallas_src>

<mosaic_0001>
module attributes {stable_mosaic.version = 11 : i64} {
  func.func @_backbone_kernel(%arg0: i32, %arg1: memref<2x24x72xf32, #tpu.memory_space<vmem>>, %arg2: memref<5x72x640xbf16, #tpu.memory_space<vmem>>, %arg3: memref<9x32xf32, #tpu.memory_space<vmem>>, %arg4: memref<1x32xf32, #tpu.memory_space<vmem>>, %arg5: memref<32x64xbf16, #tpu.memory_space<vmem>>, %arg6: memref<1x64xf32, #tpu.memory_space<vmem>>, %arg7: memref<9x64xf32, #tpu.memory_space<vmem>>, %arg8: memref<1x64xf32, #tpu.memory_space<vmem>>, %arg9: memref<64x128xbf16, #tpu.memory_space<vmem>>, %arg10: memref<1x128xf32, #tpu.memory_space<vmem>>, %arg11: memref<9x128xf32, #tpu.memory_space<vmem>>, %arg12: memref<1x128xf32, #tpu.memory_space<vmem>>, %arg13: memref<128x128xbf16, #tpu.memory_space<vmem>>, %arg14: memref<1x128xf32, #tpu.memory_space<vmem>>, %arg15: memref<2x1x128xf32, #tpu.memory_space<vmem>>, %arg16: memref<2x11x11x32xf32, #tpu.memory_space<vmem>>, %arg17: memref<2x11x11x64xf32, #tpu.memory_space<vmem>>, %arg18: memref<2x7x7x128xf32, #tpu.memory_space<vmem>>) attributes {dimension_semantics = [#tpu.dimension_semantics<parallel>], iteration_bounds = array<i64: 1>, scalar_prefetch = 0 : i64, scratch_operands = 3 : i64, tpu.core_type = #tpu.core_type<tc>, window_params = [{transform_indices = @transform_0, window_bounds = array<i64: 2, 24, 72>}, {pipeline_mode = #tpu.pipeline_mode<synchronous>, transform_indices = @transform_1, window_bounds = array<i64: 5, 72, 640>}, {pipeline_mode = #tpu.pipeline_mode<synchronous>, transform_indices = @transform_2, window_bounds = array<i64: 9, 32>}, {pipeline_mode = #tpu.pipeline_mode<synchronous>, transform_indices = @transform_3, window_bounds = array<i64: 1, 32>}, {pipeline_mode = #tpu.pipeline_mode<synchronous>, transform_indices = @transform_4, window_bounds = array<i64: 32, 64>}, {pipeline_mode = #tpu.pipeline_mode<synchronous>, transform_indices = @transform_5, window_bounds = array<i64: 1, 64>}, {pipeline_mode = #tpu.pipeline_mode<synchronous>, transform_indices = @transform_6, window_bounds = array<i64: 9, 64>}, {pipeline_mode = #tpu.pipeline_mode<synchronous>, transform_indices = @transform_7, window_bounds = array<i64: 1, 64>}, {pipeline_mode = #tpu.pipeline_mode<synchronous>, transform_indices = @transform_8, window_bounds = array<i64: 64, 128>}, {pipeline_mode = #tpu.pipeline_mode<synchronous>, transform_indices = @transform_9, window_bounds = array<i64: 1, 128>}, {pipeline_mode = #tpu.pipeline_mode<synchronous>, transform_indices = @transform_10, window_bounds = array<i64: 9, 128>}, {pipeline_mode = #tpu.pipeline_mode<synchronous>, transform_indices = @transform_11, window_bounds = array<i64: 1, 128>}, {pipeline_mode = #tpu.pipeline_mode<synchronous>, transform_indices = @transform_12, window_bounds = array<i64: 128, 128>}, {pipeline_mode = #tpu.pipeline_mode<synchronous>, transform_indices = @transform_13, window_bounds = array<i64: 1, 128>}, {transform_indices = @transform_14, window_bounds = array<i64: 2, 1, 128>}]} {
    %cst = arith.constant 0.000000e+00 : f32
    %0 = vector.broadcast %cst : f32 to vector<2x11x11x32xf32>
    %c0 = arith.constant 0 : index
    %c0_0 = arith.constant 0 : index
    %c0_1 = arith.constant 0 : index
    %c0_2 = arith.constant 0 : index
    %1 = vector.load %arg16[%c0, %c0_0, %c0_1, %c0_2] : memref<2x11x11x32xf32, #tpu.memory_space<vmem>>, vector<2x11x11x32xf32>
    tpu.vector_store %arg16[%c0, %c0_0, %c0_1, %c0_2], %0 {strides = array<i32>} : memref<2x11x11x32xf32, #tpu.memory_space<vmem>>, vector<2x11x11x32xf32>,
    %cst_3 = arith.constant 0.000000e+00 : f32
    %2 = vector.broadcast %cst_3 : f32 to vector<2x11x11x64xf32>
    %c0_4 = arith.constant 0 : index
    %c0_5 = arith.constant 0 : index
    %c0_6 = arith.constant 0 : index
    %c0_7 = arith.constant 0 : index
    %3 = vector.load %arg17[%c0_4, %c0_5, %c0_6, %c0_7] : memref<2x11x11x64xf32, #tpu.memory_space<vmem>>, vector<2x11x11x64xf32>
    tpu.vector_store %arg17[%c0_4, %c0_5, %c0_6, %c0_7], %2 {strides = array<i32>} : memref<2x11x11x64xf32, #tpu.memory_space<vmem>>, vector<2x11x11x64xf32>,
    %cst_8 = arith.constant 0.000000e+00 : f32
    %4 = vector.broadcast %cst_8 : f32 to vector<2x7x7x128xf32>
    %c0_9 = arith.constant 0 : index
    %c0_10 = arith.constant 0 : index
    %c0_11 = arith.constant 0 : index
    %c0_12 = arith.constant 0 : index
    %5 = vector.load %arg18[%c0_9, %c0_10, %c0_11, %c0_12] : memref<2x7x7x128xf32, #tpu.memory_space<vmem>>, vector<2x7x7x128xf32>
    tpu.vector_store %arg18[%c0_9, %c0_10, %c0_11, %c0_12], %4 {strides = array<i32>} : memref<2x7x7x128xf32, #tpu.memory_space<vmem>>, vector<2x7x7x128xf32>,
    %cst_13 = arith.constant 0.000000e+00 : f32
    %6 = vector.broadcast %cst_13 : f32 to vector<40x640xf32>
    %c0_14 = arith.constant 0 : index
    %c0_15 = arith.constant 0 : index
    %c0_16 = arith.constant 0 : index
    %7 = vector.load %arg1[%c0_14, %c0_15, %c0_16] : memref<2x24x72xf32, #tpu.memory_space<vmem>>, vector<2x20x72xf32>
    %8 = vector.shape_cast %7 : vector<2x20x72xf32> to vector<40x72xf32>
    %9 = arith.truncf %8 : vector<40x72xf32> to vector<40x72xbf16>
    %c0_17 = arith.constant 0 : index
    %c0_18 = arith.constant 0 : index
    %c0_19 = arith.constant 0 : index
    %10 = vector.load %arg2[%c0_17, %c0_18, %c0_19] : memref<5x72x640xbf16, #tpu.memory_space<vmem>>, vector<1x72x640xbf16>
    %11 = vector.shape_cast %10 : vector<1x72x640xbf16> to vector<72x640xbf16>
    %cst_20 = arith.constant dense<0.000000e+00> : vector<40x640xf32>
    %12 = tpu.matmul %9, %11, %cst_20 {dimension_numbers = #tpu.dot_dimension_numbers<[1], [0], [0], [1], [0, 0, 1, 1], [], []>} : vector<40x72xbf16>, vector<72x640xbf16>, vector<40x640xf32> -> vector<40x640xf32>
    %13 = arith.addf %6, %12 : vector<40x640xf32>
    %c0_21 = arith.constant 0 : index
    %c1 = arith.constant 1 : index
    %c0_22 = arith.constant 0 : index
    %14 = vector.load %arg1[%c0_21, %c1, %c0_22] : memref<2x24x72xf32, #tpu.memory_space<vmem>>, vector<2x20x72xf32>
    %15 = vector.shape_cast %14 : vector<2x20x72xf32> to vector<40x72xf32>
    %16 = arith.truncf %15 : vector<40x72xf32> to vector<40x72xbf16>
    %c1_23 = arith.constant 1 : index
    %c0_24 = arith.constant 0 : index
    %c0_25 = arith.constant 0 : index
    %17 = vector.load %arg2[%c1_23, %c0_24, %c0_25] : memref<5x72x640xbf16, #tpu.memory_space<vmem>>, vector<1x72x640xbf16>
    %18 = vector.shape_cast %17 : vector<1x72x640xbf16> to vector<72x640xbf16>
    %cst_26 = arith.constant dense<0.000000e+00> : vector<40x640xf32>
    %19 = tpu.matmul %16, %18, %cst_26 {dimension_numbers = #tpu.dot_dimension_numbers<[1], [0], [0], [1], [0, 0, 1, 1], [], []>} : vector<40x72xbf16>, vector<72x640xbf16>, vector<40x640xf32> -> vector<40x640xf32>
    %20 = arith.addf %13, %19 : vector<40x640xf32>
    %c0_27 = arith.constant 0 : index
    %c2 = arith.constant 2 : index
    %c0_28 = arith.constant 0 : index
    %21 = vector.load %arg1[%c0_27, %c2, %c0_28] : memref<2x24x72xf32, #tpu.memory_space<vmem>>, vector<2x20x72xf32>
    %22 = vector.shape_cast %21 : vector<2x20x72xf32> to vector<40x72xf32>
    %23 = arith.truncf %22 : vector<40x72xf32> to vector<40x72xbf16>
    %c2_29 = arith.constant 2 : index
    %c0_30 = arith.constant 0 : index
    %c0_31 = arith.constant 0 : index
    %24 = vector.load %arg2[%c2_29, %c0_30, %c0_31] : memref<5x72x640xbf16, #tpu.memory_space<vmem>>, vector<1x72x640xbf16>
    %25 = vector.shape_cast %24 : vector<1x72x640xbf16> to vector<72x640xbf16>
    %cst_32 = arith.constant dense<0.000000e+00> : vector<40x640xf32>
    %26 = tpu.matmul %23, %25, %cst_32 {dimension_numbers = #tpu.dot_dimension_numbers<[1], [0], [0], [1], [0, 0, 1, 1], [], []>} : vector<40x72xbf16>, vector<72x640xbf16>, vector<40x640xf32> -> vector<40x640xf32>
    %27 = arith.addf %20, %26 : vector<40x640xf32>
    %c0_33 = arith.constant 0 : index
    %c3 = arith.constant 3 : index
    %c0_34 = arith.constant 0 : index
    %28 = vector.load %arg1[%c0_33, %c3, %c0_34] : memref<2x24x72xf32, #tpu.memory_space<vmem>>, vector<2x20x72xf32>
    %29 = vector.shape_cast %28 : vector<2x20x72xf32> to vector<40x72xf32>
    %30 = arith.truncf %29 : vector<40x72xf32> to vector<40x72xbf16>
    %c3_35 = arith.constant 3 : index
    %c0_36 = arith.constant 0 : index
    %c0_37 = arith.constant 0 : index
    %31 = vector.load %arg2[%c3_35, %c0_36, %c0_37] : memref<5x72x640xbf16, #tpu.memory_space<vmem>>, vector<1x72x640xbf16>
    %32 = vector.shape_cast %31 : vector<1x72x640xbf16> to vector<72x640xbf16>
    %cst_38 = arith.constant dense<0.000000e+00> : vector<40x640xf32>
    %33 = tpu.matmul %30, %32, %cst_38 {dimension_numbers = #tpu.dot_dimension_numbers<[1], [0], [0], [1], [0, 0, 1, 1], [], []>} : vector<40x72xbf16>, vector<72x640xbf16>, vector<40x640xf32> -> vector<40x640xf32>
    %34 = arith.addf %27, %33 : vector<40x640xf32>
    %c0_39 = arith.constant 0 : index
    %c4 = arith.constant 4 : index
    %c0_40 = arith.constant 0 : index
    %35 = vector.load %arg1[%c0_39, %c4, %c0_40] : memref<2x24x72xf32, #tpu.memory_space<vmem>>, vector<2x20x72xf32>
    %36 = vector.shape_cast %35 : vector<2x20x72xf32> to vector<40x72xf32>
    %37 = arith.truncf %36 : vector<40x72xf32> to vector<40x72xbf16>
    %c4_41 = arith.constant 4 : index
    %c0_42 = arith.constant 0 : index
    %c0_43 = arith.constant 0 : index
    %38 = vector.load %arg2[%c4_41, %c0_42, %c0_43] : memref<5x72x640xbf16, #tpu.memory_space<vmem>>, vector<1x72x640xbf16>
    %39 = vector.shape_cast %38 : vector<1x72x640xbf16> to vector<72x640xbf16>
    %cst_44 = arith.constant dense<0.000000e+00> : vector<40x640xf32>
    %40 = tpu.matmul %37, %39, %cst_44 {dimension_numbers = #tpu.dot_dimension_numbers<[1], [0], [0], [1], [0, 0, 1, 1], [], []>} : vector<40x72xbf16>, vector<72x640xbf16>, vector<40x640xf32> -> vector<40x640xf32>
    %41 = arith.addf %34, %40 : vector<40x640xf32>
    %cst_45 = arith.constant 0.000000e+00 : f32
    %42 = vector.broadcast %cst_45 : f32 to vector<40x640xf32>
    %43 = arith.maximumf %41, %42 : vector<40x640xf32>
    %44 = vector.shape_cast %43 : vector<40x640xf32> to vector<2x20x640xf32>
    %45 = vector.extract_strided_slice %44 {offsets = [0, 0, 0], sizes = [2, 18, 640], strides = [1, 1, 1]} : vector<2x20x640xf32> to vector<2x18x640xf32>
    %46 = vector.extract_strided_slice %44 {offsets = [0, 1, 0], sizes = [2, 18, 640], strides = [1, 1, 1]} : vector<2x20x640xf32> to vector<2x18x640xf32>
    %47 = arith.maximumf %45, %46 : vector<2x18x640xf32>
    %48 = vector.extract_strided_slice %44 {offsets = [0, 2, 0], sizes = [2, 18, 640], strides = [1, 1, 1]} : vector<2x20x640xf32> to vector<2x18x640xf32>
    %49 = arith.maximumf %47, %48 : vector<2x18x640xf32>
    %50 = vector.shape_cast %49 : vector<2x18x640xf32> to vector<2x9x2x640xf32>
    %51 = vector.extract_strided_slice %50 {offsets = [0, 0, 0, 0], sizes = [2, 9, 1, 640], strides = [1, 1, 1, 1]} : vector<2x9x2x640xf32> to vector<2x9x1x640xf32>
    %52 = vector.shape_cast %51 : vector<2x9x1x640xf32> to vector<2x9x640xf32>
    %53 = vector.extract_strided_slice %52 {offsets = [0, 0, 0], sizes = [2, 9, 32], strides = [1, 1, 1]} : vector<2x9x640xf32> to vector<2x9x32xf32>
    %54 = vector.extract_strided_slice %52 {offsets = [0, 0, 32], sizes = [2, 9, 32], strides = [1, 1, 1]} : vector<2x9x640xf32> to vector<2x9x32xf32>
    %55 = vector.extract_strided_slice %52 {offsets = [0, 0, 64], sizes = [2, 9, 32], strides = [1, 1, 1]} : vector<2x9x640xf32> to vector<2x9x32xf32>
    %56 = arith.maximumf %53, %54 : vector<2x9x32xf32>
    %57 = arith.maximumf %56, %55 : vector<2x9x32xf32>
    %58 = vector.extract_strided_slice %52 {offsets = [0, 0, 64], sizes = [2, 9, 32], strides = [1, 1, 1]} : vector<2x9x640xf32> to vector<2x9x32xf32>
    %59 = vector.extract_strided_slice %52 {offsets = [0, 0, 96], sizes = [2, 9, 32], strides = [1, 1, 1]} : vector<2x9x640xf32> to vector<2x9x32xf32>
    %60 = vector.extract_strided_slice %52 {offsets = [0, 0, 128], sizes = [2, 9, 32], strides = [1, 1, 1]} : vector<2x9x640xf32> to vector<2x9x32xf32>
    %61 = arith.maximumf %58, %59 : vector<2x9x32xf32>
    %62 = arith.maximumf %61, %60 : vector<2x9x32xf32>
    %63 = vector.extract_strided_slice %52 {offsets = [0, 0, 128], sizes = [2, 9, 32], strides = [1, 1, 1]} : vector<2x9x640xf32> to vector<2x9x32xf32>
    %64 = vector.extract_strided_slice %52 {offsets = [0, 0, 160], sizes = [2, 9, 32], strides = [1, 1, 1]} : vector<2x9x640xf32> to vector<2x9x32xf32>
    %65 = vector.extract_strided_slice %52 {offsets = [0, 0, 192], sizes = [2, 9, 32], strides = [1, 1, 1]} : vector<2x9x640xf32> to vector<2x9x32xf32>
    %66 = arith.maximumf %63, %64 : vector<2x9x32xf32>
    %67 = arith.maximumf %66, %65 : vector<2x9x32xf32>
    %68 = vector.extract_strided_slice %52 {offsets = [0, 0, 192], sizes = [2, 9, 32], strides = [1, 1, 1]} : vector<2x9x640xf32> to vector<2x9x32xf32>
    %69 = vector.extract_strided_slice %52 {offsets = [0, 0, 224], sizes = [2, 9, 32], strides = [1, 1, 1]} : vector<2x9x640xf32> to vector<2x9x32xf32>
    %70 = vector.extract_strided_slice %52 {offsets = [0, 0, 256], sizes = [2, 9, 32], strides = [1, 1, 1]} : vector<2x9x640xf32> to vector<2x9x32xf32>
    %71 = arith.maximumf %68, %69 : vector<2x9x32xf32>
    %72 = arith.maximumf %71, %70 : vector<2x9x32xf32>
    %73 = vector.extract_strided_slice %52 {offsets = [0, 0, 256], sizes = [2, 9, 32], strides = [1, 1, 1]} : vector<2x9x640xf32> to vector<2x9x32xf32>
    %74 = vector.extract_strided_slice %52 {offsets = [0, 0, 288], sizes = [2, 9, 32], strides = [1, 1, 1]} : vector<2x9x640xf32> to vector<2x9x32xf32>
    %75 = vector.extract_strided_slice %52 {offsets = [0, 0, 320], sizes = [2, 9, 32], strides = [1, 1, 1]} : vector<2x9x640xf32> to vector<2x9x32xf32>
    %76 = arith.maximumf %73, %74 : vector<2x9x32xf32>
    %77 = arith.maximumf %76, %75 : vector<2x9x32xf32>
    %78 = vector.extract_strided_slice %52 {offsets = [0, 0, 320], sizes = [2, 9, 32], strides = [1, 1, 1]} : vector<2x9x640xf32> to vector<2x9x32xf32>
    %79 = vector.extract_strided_slice %52 {offsets = [0, 0, 352], sizes = [2, 9, 32], strides = [1, 1, 1]} : vector<2x9x640xf32> to vector<2x9x32xf32>
    %80 = vector.extract_strided_slice %52 {offsets = [0, 0, 384], sizes = [2, 9, 32], strides = [1, 1, 1]} : vector<2x9x640xf32> to vector<2x9x32xf32>
    %81 = arith.maximumf %78, %79 : vector<2x9x32xf32>
    %82 = arith.maximumf %81, %80 : vector<2x9x32xf32>
    %83 = vector.extract_strided_slice %52 {offsets = [0, 0, 384], sizes = [2, 9, 32], strides = [1, 1, 1]} : vector<2x9x640xf32> to vector<2x9x32xf32>
    %84 = vector.extract_strided_slice %52 {offsets = [0, 0, 416], sizes = [2, 9, 32], strides = [1, 1, 1]} : vector<2x9x640xf32> to vector<2x9x32xf32>
    %85 = vector.extract_strided_slice %52 {offsets = [0, 0, 448], sizes = [2, 9, 32], strides = [1, 1, 1]} : vector<2x9x640xf32> to vector<2x9x32xf32>
    %86 = arith.maximumf %83, %84 : vector<2x9x32xf32>
    %87 = arith.maximumf %86, %85 : vector<2x9x32xf32>
    %88 = vector.extract_strided_slice %52 {offsets = [0, 0, 448], sizes = [2, 9, 32], strides = [1, 1, 1]} : vector<2x9x640xf32> to vector<2x9x32xf32>
    %89 = vector.extract_strided_slice %52 {offsets = [0, 0, 480], sizes = [2, 9, 32], strides = [1, 1, 1]} : vector<2x9x640xf32> to vector<2x9x32xf32>
    %90 = vector.extract_strided_slice %52 {offsets = [0, 0, 512], sizes = [2, 9, 32], strides = [1, 1, 1]} : vector<2x9x640xf32> to vector<2x9x32xf32>
    %91 = arith.maximumf %88, %89 : vector<2x9x32xf32>
    %92 = arith.maximumf %91, %90 : vector<2x9x32xf32>
    %93 = vector.extract_strided_slice %52 {offsets = [0, 0, 512], sizes = [2, 9, 32], strides = [1, 1, 1]} : vector<2x9x640xf32> to vector<2x9x32xf32>
    %94 = vector.extract_strided_slice %52 {offsets = [0, 0, 544], sizes = [2, 9, 32], strides = [1, 1, 1]} : vector<2x9x640xf32> to vector<2x9x32xf32>
    %95 = vector.extract_strided_slice %52 {offsets = [0, 0, 576], sizes = [2, 9, 32], strides = [1, 1, 1]} : vector<2x9x640xf32> to vector<2x9x32xf32>
    %96 = arith.maximumf %93, %94 : vector<2x9x32xf32>
    %97 = arith.maximumf %96, %95 : vector<2x9x32xf32>
    %98 = vector.shape_cast %57 : vector<2x9x32xf32> to vector<2x1x9x32xf32>
    %99 = vector.shape_cast %62 : vector<2x9x32xf32> to vector<2x1x9x32xf32>
    %100 = vector.shape_cast %67 : vector<2x9x32xf32> to vector<2x1x9x32xf32>
    %101 = vector.shape_cast %72 : vector<2x9x32xf32> to vector<2x1x9x32xf32>
    %102 = vector.shape_cast %77 : vector<2x9x32xf32> to vector<2x1x9x32xf32>
    %103 = vector.shape_cast %82 : vector<2x9x32xf32> to vector<2x1x9x32xf32>
    %104 = vector.shape_cast %87 : vector<2x9x32xf32> to vector<2x1x9x32xf32>
    %105 = vector.shape_cast %92 : vector<2x9x32xf32> to vector<2x1x9x32xf32>
    %106 = vector.shape_cast %97 : vector<2x9x32xf32> to vector<2x1x9x32xf32>
    %107 = tpu.concatenate %98, %99, %100, %101, %102, %103, %104, %105, %106 in 1 : vector<2x1x9x32xf32>, vector<2x1x9x32xf32>, vector<2x1x9x32xf32>, vector<2x1x9x32xf32>, vector<2x1x9x32xf32>, vector<2x1x9x32xf32>, vector<2x1x9x32xf32>, vector<2x1x9x32xf32>, vector<2x1x9x32xf32> -> vector<2x9x9x32xf32>
    %c0_46 = arith.constant 0 : index
    %c1_47 = arith.constant 1 : index
    %c1_48 = arith.constant 1 : index
    %c0_49 = arith.constant 0 : index
    %108 = vector.load %arg16[%c0_46, %c1_47, %c1_48, %c0_49] : memref<2x11x11x32xf32, #tpu.memory_space<vmem>>, vector<2x9x9x32xf32>
    tpu.vector_store %arg16[%c0_46, %c1_47, %c1_48, %c0_49], %107 {strides = array<i32>} : memref<2x11x11x32xf32, #tpu.memory_space<vmem>>, vector<2x9x9x32xf32>,
    %cst_50 = arith.constant 0.000000e+00 : f32
    %109 = vector.broadcast %cst_50 : f32 to vector<2x9x9x32xf32>
    %c0_51 = arith.constant 0 : index
    %c0_52 = arith.constant 0 : index
    %c0_53 = arith.constant 0 : index
    %c0_54 = arith.constant 0 : index
    %110 = vector.load %arg16[%c0_51, %c0_52, %c0_53, %c0_54] : memref<2x11x11x32xf32, #tpu.memory_space<vmem>>, vector<2x9x9x32xf32>
    %c0_55 = arith.constant 0 : index
    %c0_56 = arith.constant 0 : index
    %111 = vector.load %arg3[%c0_55, %c0_56] : memref<9x32xf32, #tpu.memory_space<vmem>>, vector<1x32xf32>
    %112 = vector.shape_cast %111 : vector<1x32xf32> to vector<1x1x1x32xf32>
    %113 = vector.broadcast %112 : vector<1x1x1x32xf32> to vector<2x9x9x32xf32>
    %114 = arith.mulf %110, %113 : vector<2x9x9x32xf32>
    %115 = arith.addf %109, %114 : vector<2x9x9x32xf32>
    %c0_57 = arith.constant 0 : index
    %c0_58 = arith.constant 0 : index
    %c1_59 = arith.constant 1 : index
    %c0_60 = arith.constant 0 : index
    %116 = vector.load %arg16[%c0_57, %c0_58, %c1_59, %c0_60] : memref<2x11x11x32xf32, #tpu.memory_space<vmem>>, vector<2x9x9x32xf32>
    %c1_61 = arith.constant 1 : index
    %c0_62 = arith.constant 0 : index
    %117 = vector.load %arg3[%c1_61, %c0_62] : memref<9x32xf32, #tpu.memory_space<vmem>>, vector<1x32xf32>
    %118 = vector.shape_cast %117 : vector<1x32xf32> to vector<1x1x1x32xf32>
    %119 = vector.broadcast %118 : vector<1x1x1x32xf32> to vector<2x9x9x32xf32>
    %120 = arith.mulf %116, %119 : vector<2x9x9x32xf32>
    %121 = arith.addf %115, %120 : vector<2x9x9x32xf32>
    %c0_63 = arith.constant 0 : index
    %c0_64 = arith.constant 0 : index
    %c2_65 = arith.constant 2 : index
    %c0_66 = arith.constant 0 : index
    %122 = vector.load %arg16[%c0_63, %c0_64, %c2_65, %c0_66] : memref<2x11x11x32xf32, #tpu.memory_space<vmem>>, vector<2x9x9x32xf32>
    %c2_67 = arith.constant 2 : index
    %c0_68 = arith.constant 0 : index
    %123 = vector.load %arg3[%c2_67, %c0_68] : memref<9x32xf32, #tpu.memory_space<vmem>>, vector<1x32xf32>
    %124 = vector.shape_cast %123 : vector<1x32xf32> to vector<1x1x1x32xf32>
    %125 = vector.broadcast %124 : vector<1x1x1x32xf32> to vector<2x9x9x32xf32>
    %126 = arith.mulf %122, %125 : vector<2x9x9x32xf32>
    %127 = arith.addf %121, %126 : vector<2x9x9x32xf32>
    %c0_69 = arith.constant 0 : index
    %c1_70 = arith.constant 1 : index
    %c0_71 = arith.constant 0 : index
    %c0_72 = arith.constant 0 : index
    %128 = vector.load %arg16[%c0_69, %c1_70, %c0_71, %c0_72] : memref<2x11x11x32xf32, #tpu.memory_space<vmem>>, vector<2x9x9x32xf32>
    %c3_73 = arith.constant 3 : index
    %c0_74 = arith.constant 0 : index
    %129 = vector.load %arg3[%c3_73, %c0_74] : memref<9x32xf32, #tpu.memory_space<vmem>>, vector<1x32xf32>
    %130 = vector.shape_cast %129 : vector<1x32xf32> to vector<1x1x1x32xf32>
    %131 = vector.broadcast %130 : vector<1x1x1x32xf32> to vector<2x9x9x32xf32>
    %132 = arith.mulf %128, %131 : vector<2x9x9x32xf32>
    %133 = arith.addf %127, %132 : vector<2x9x9x32xf32>
    %c0_75 = arith.constant 0 : index
    %c1_76 = arith.constant 1 : index
    %c1_77 = arith.constant 1 : index
    %c0_78 = arith.constant 0 : index
    %134 = vector.load %arg16[%c0_75, %c1_76, %c1_77, %c0_78] : memref<2x11x11x32xf32, #tpu.memory_space<vmem>>, vector<2x9x9x32xf32>
    %c4_79 = arith.constant 4 : index
    %c0_80 = arith.constant 0 : index
    %135 = vector.load %arg3[%c4_79, %c0_80] : memref<9x32xf32, #tpu.memory_space<vmem>>, vector<1x32xf32>
    %136 = vector.shape_cast %135 : vector<1x32xf32> to vector<1x1x1x32xf32>
    %137 = vector.broadcast %136 : vector<1x1x1x32xf32> to vector<2x9x9x32xf32>
    %138 = arith.mulf %134, %137 : vector<2x9x9x32xf32>
    %139 = arith.addf %133, %138 : vector<2x9x9x32xf32>
    %c0_81 = arith.constant 0 : index
    %c1_82 = arith.constant 1 : index
    %c2_83 = arith.constant 2 : index
    %c0_84 = arith.constant 0 : index
    %140 = vector.load %arg16[%c0_81, %c1_82, %c2_83, %c0_84] : memref<2x11x11x32xf32, #tpu.memory_space<vmem>>, vector<2x9x9x32xf32>
    %c5 = arith.constant 5 : index
    %c0_85 = arith.constant 0 : index
    %141 = vector.load %arg3[%c5, %c0_85] : memref<9x32xf32, #tpu.memory_space<vmem>>, vector<1x32xf32>
    %142 = vector.shape_cast %141 : vector<1x32xf32> to vector<1x1x1x32xf32>
    %143 = vector.broadcast %142 : vector<1x1x1x32xf32> to vector<2x9x9x32xf32>
    %144 = arith.mulf %140, %143 : vector<2x9x9x32xf32>
    %145 = arith.addf %139, %144 : vector<2x9x9x32xf32>
    %c0_86 = arith.constant 0 : index
    %c2_87 = arith.constant 2 : index
    %c0_88 = arith.constant 0 : index
    %c0_89 = arith.constant 0 : index
    %146 = vector.load %arg16[%c0_86, %c2_87, %c0_88, %c0_89] : memref<2x11x11x32xf32, #tpu.memory_space<vmem>>, vector<2x9x9x32xf32>
    %c6 = arith.constant 6 : index
    %c0_90 = arith.constant 0 : index
    %147 = vector.load %arg3[%c6, %c0_90] : memref<9x32xf32, #tpu.memory_space<vmem>>, vector<1x32xf32>
    %148 = vector.shape_cast %147 : vector<1x32xf32> to vector<1x1x1x32xf32>
    %149 = vector.broadcast %148 : vector<1x1x1x32xf32> to vector<2x9x9x32xf32>
    %150 = arith.mulf %146, %149 : vector<2x9x9x32xf32>
    %151 = arith.addf %145, %150 : vector<2x9x9x32xf32>
    %c0_91 = arith.constant 0 : index
    %c2_92 = arith.constant 2 : index
    %c1_93 = arith.constant 1 : index
    %c0_94 = arith.constant 0 : index
    %152 = vector.load %arg16[%c0_91, %c2_92, %c1_93, %c0_94] : memref<2x11x11x32xf32, #tpu.memory_space<vmem>>, vector<2x9x9x32xf32>
    %c7 = arith.constant 7 : index
    %c0_95 = arith.constant 0 : index
    %153 = vector.load %arg3[%c7, %c0_95] : memref<9x32xf32, #tpu.memory_space<vmem>>, vector<1x32xf32>
    %154 = vector.shape_cast %153 : vector<1x32xf32> to vector<1x1x1x32xf32>
    %155 = vector.broadcast %154 : vector<1x1x1x32xf32> to vector<2x9x9x32xf32>
    %156 = arith.mulf %152, %155 : vector<2x9x9x32xf32>
    %157 = arith.addf %151, %156 : vector<2x9x9x32xf32>
    %c0_96 = arith.constant 0 : index
    %c2_97 = arith.constant 2 : index
    %c2_98 = arith.constant 2 : index
    %c0_99 = arith.constant 0 : index
    %158 = vector.load %arg16[%c0_96, %c2_97, %c2_98, %c0_99] : memref<2x11x11x32xf32, #tpu.memory_space<vmem>>, vector<2x9x9x32xf32>
    %c8 = arith.constant 8 : index
    %c0_100 = arith.constant 0 : index
    %159 = vector.load %arg3[%c8, %c0_100] : memref<9x32xf32, #tpu.memory_space<vmem>>, vector<1x32xf32>
    %160 = vector.shape_cast %159 : vector<1x32xf32> to vector<1x1x1x32xf32>
    %161 = vector.broadcast %160 : vector<1x1x1x32xf32> to vector<2x9x9x32xf32>
    %162 = arith.mulf %158, %161 : vector<2x9x9x32xf32>
    %163 = arith.addf %157, %162 : vector<2x9x9x32xf32>
    %c0_101 = arith.constant 0 : index
    %c0_102 = arith.constant 0 : index
    %164 = vector.load %arg4[%c0_101, %c0_102] : memref<1x32xf32, #tpu.memory_space<vmem>>, vector<1x32xf32>
    %165 = vector.shape_cast %164 : vector<1x32xf32> to vector<1x1x1x32xf32>
    %166 = vector.broadcast %165 : vector<1x1x1x32xf32> to vector<2x9x9x32xf32>
    %167 = arith.addf %163, %166 : vector<2x9x9x32xf32>
    %cst_103 = arith.constant 0.000000e+00 : f32
    %168 = vector.broadcast %cst_103 : f32 to vector<2x9x9x32xf32>
    %169 = arith.maximumf %167, %168 : vector<2x9x9x32xf32>
    %170 = vector.shape_cast %169 : vector<2x9x9x32xf32> to vector<162x32xf32>
    %171 = arith.truncf %170 : vector<162x32xf32> to vector<162x32xbf16>
    %c0_104 = arith.constant 0 : index
    %c0_105 = arith.constant 0 : index
    %172 = vector.load %arg5[%c0_104, %c0_105] : memref<32x64xbf16, #tpu.memory_space<vmem>>, vector<32x64xbf16>
    %cst_106 = arith.constant dense<0.000000e+00> : vector<162x64xf32>
    %173 = tpu.matmul %171, %172, %cst_106 {dimension_numbers = #tpu.dot_dimension_numbers<[1], [0], [0], [1], [0, 0, 1, 1], [], []>} : vector<162x32xbf16>, vector<32x64xbf16>, vector<162x64xf32> -> vector<162x64xf32>
    %c0_107 = arith.constant 0 : index
    %c0_108 = arith.constant 0 : index
    %174 = vector.load %arg6[%c0_107, %c0_108] : memref<1x64xf32, #tpu.memory_space<vmem>>, vector<1x64xf32>
    %175 = vector.broadcast %174 : vector<1x64xf32> to vector<162x64xf32>
    %176 = arith.addf %173, %175 : vector<162x64xf32>
    %cst_109 = arith.constant 0.000000e+00 : f32
    %177 = vector.broadcast %cst_109 : f32 to vector<162x64xf32>
    %178 = arith.maximumf %176, %177 : vector<162x64xf32>
    %179 = vector.shape_cast %178 : vector<162x64xf32> to vector<2x9x9x64xf32>
    %c0_110 = arith.constant 0 : index
    %c1_111 = arith.constant 1 : index
    %c1_112 = arith.constant 1 : index
    %c0_113 = arith.constant 0 : index
    %180 = vector.load %arg17[%c0_110, %c1_111, %c1_112, %c0_113] : memref<2x11x11x64xf32, #tpu.memory_space<vmem>>, vector<2x9x9x64xf32>
    tpu.vector_store %arg17[%c0_110, %c1_111, %c1_112, %c0_113], %179 {strides = array<i32>} : memref<2x11x11x64xf32, #tpu.memory_space<vmem>>, vector<2x9x9x64xf32>,
    %cst_114 = arith.constant 0.000000e+00 : f32
    %181 = vector.broadcast %cst_114 : f32 to vector<2x9x9x64xf32>
    %c0_115 = arith.constant 0 : index
    %c0_116 = arith.constant 0 : index
    %c0_117 = arith.constant 0 : index
    %c0_118 = arith.constant 0 : index
    %182 = vector.load %arg17[%c0_115, %c0_116, %c0_117, %c0_118] : memref<2x11x11x64xf32, #tpu.memory_space<vmem>>, vector<2x9x9x64xf32>
    %c0_119 = arith.constant 0 : index
    %c0_120 = arith.constant 0 : index
    %183 = vector.load %arg7[%c0_119, %c0_120] : memref<9x64xf32, #tpu.memory_space<vmem>>, vector<1x64xf32>
    %184 = vector.shape_cast %183 : vector<1x64xf32> to vector<1x1x1x64xf32>
    %185 = vector.broadcast %184 : vector<1x1x1x64xf32> to vector<2x9x9x64xf32>
    %186 = arith.mulf %182, %185 : vector<2x9x9x64xf32>
    %187 = arith.addf %181, %186 : vector<2x9x9x64xf32>
    %c0_121 = arith.constant 0 : index
    %c0_122 = arith.constant 0 : index
    %c1_123 = arith.constant 1 : index
    %c0_124 = arith.constant 0 : index
    %188 = vector.load %arg17[%c0_121, %c0_122, %c1_123, %c0_124] : memref<2x11x11x64xf32, #tpu.memory_space<vmem>>, vector<2x9x9x64xf32>
    %c1_125 = arith.constant 1 : index
    %c0_126 = arith.constant 0 : index
    %189 = vector.load %arg7[%c1_125, %c0_126] : memref<9x64xf32, #tpu.memory_space<vmem>>, vector<1x64xf32>
    %190 = vector.shape_cast %189 : vector<1x64xf32> to vector<1x1x1x64xf32>
    %191 = vector.broadcast %190 : vector<1x1x1x64xf32> to vector<2x9x9x64xf32>
    %192 = arith.mulf %188, %191 : vector<2x9x9x64xf32>
    %193 = arith.addf %187, %192 : vector<2x9x9x64xf32>
    %c0_127 = arith.constant 0 : index
    %c0_128 = arith.constant 0 : index
    %c2_129 = arith.constant 2 : index
    %c0_130 = arith.constant 0 : index
    %194 = vector.load %arg17[%c0_127, %c0_128, %c2_129, %c0_130] : memref<2x11x11x64xf32, #tpu.memory_space<vmem>>, vector<2x9x9x64xf32>
    %c2_131 = arith.constant 2 : index
    %c0_132 = arith.constant 0 : index
    %195 = vector.load %arg7[%c2_131, %c0_132] : memref<9x64xf32, #tpu.memory_space<vmem>>, vector<1x64xf32>
    %196 = vector.shape_cast %195 : vector<1x64xf32> to vector<1x1x1x64xf32>
    %197 = vector.broadcast %196 : vector<1x1x1x64xf32> to vector<2x9x9x64xf32>
    %198 = arith.mulf %194, %197 : vector<2x9x9x64xf32>
    %199 = arith.addf %193, %198 : vector<2x9x9x64xf32>
    %c0_133 = arith.constant 0 : index
    %c1_134 = arith.constant 1 : index
    %c0_135 = arith.constant 0 : index
    %c0_136 = arith.constant 0 : index
    %200 = vector.load %arg17[%c0_133, %c1_134, %c0_135, %c0_136] : memref<2x11x11x64xf32, #tpu.memory_space<vmem>>, vector<2x9x9x64xf32>
    %c3_137 = arith.constant 3 : index
    %c0_138 = arith.constant 0 : index
    %201 = vector.load %arg7[%c3_137, %c0_138] : memref<9x64xf32, #tpu.memory_space<vmem>>, vector<1x64xf32>
    %202 = vector.shape_cast %201 : vector<1x64xf32> to vector<1x1x1x64xf32>
    %203 = vector.broadcast %202 : vector<1x1x1x64xf32> to vector<2x9x9x64xf32>
    %204 = arith.mulf %200, %203 : vector<2x9x9x64xf32>
    %205 = arith.addf %199, %204 : vector<2x9x9x64xf32>
    %c0_139 = arith.constant 0 : index
    %c1_140 = arith.constant 1 : index
    %c1_141 = arith.constant 1 : index
    %c0_142 = arith.constant 0 : index
    %206 = vector.load %arg17[%c0_139, %c1_140, %c1_141, %c0_142] : memref<2x11x11x64xf32, #tpu.memory_space<vmem>>, vector<2x9x9x64xf32>
    %c4_143 = arith.constant 4 : index
    %c0_144 = arith.constant 0 : index
    %207 = vector.load %arg7[%c4_143, %c0_144] : memref<9x64xf32, #tpu.memory_space<vmem>>, vector<1x64xf32>
    %208 = vector.shape_cast %207 : vector<1x64xf32> to vector<1x1x1x64xf32>
    %209 = vector.broadcast %208 : vector<1x1x1x64xf32> to vector<2x9x9x64xf32>
    %210 = arith.mulf %206, %209 : vector<2x9x9x64xf32>
    %211 = arith.addf %205, %210 : vector<2x9x9x64xf32>
    %c0_145 = arith.constant 0 : index
    %c1_146 = arith.constant 1 : index
    %c2_147 = arith.constant 2 : index
    %c0_148 = arith.constant 0 : index
    %212 = vector.load %arg17[%c0_145, %c1_146, %c2_147, %c0_148] : memref<2x11x11x64xf32, #tpu.memory_space<vmem>>, vector<2x9x9x64xf32>
    %c5_149 = arith.constant 5 : index
    %c0_150 = arith.constant 0 : index
    %213 = vector.load %arg7[%c5_149, %c0_150] : memref<9x64xf32, #tpu.memory_space<vmem>>, vector<1x64xf32>
    %214 = vector.shape_cast %213 : vector<1x64xf32> to vector<1x1x1x64xf32>
    %215 = vector.broadcast %214 : vector<1x1x1x64xf32> to vector<2x9x9x64xf32>
    %216 = arith.mulf %212, %215 : vector<2x9x9x64xf32>
    %217 = arith.addf %211, %216 : vector<2x9x9x64xf32>
    %c0_151 = arith.constant 0 : index
    %c2_152 = arith.constant 2 : index
    %c0_153 = arith.constant 0 : index
    %c0_154 = arith.constant 0 : index
    %218 = vector.load %arg17[%c0_151, %c2_152, %c0_153, %c0_154] : memref<2x11x11x64xf32, #tpu.memory_space<vmem>>, vector<2x9x9x64xf32>
    %c6_155 = arith.constant 6 : index
    %c0_156 = arith.constant 0 : index
    %219 = vector.load %arg7[%c6_155, %c0_156] : memref<9x64xf32, #tpu.memory_space<vmem>>, vector<1x64xf32>
    %220 = vector.shape_cast %219 : vector<1x64xf32> to vector<1x1x1x64xf32>
    %221 = vector.broadcast %220 : vector<1x1x1x64xf32> to vector<2x9x9x64xf32>
    %222 = arith.mulf %218, %221 : vector<2x9x9x64xf32>
    %223 = arith.addf %217, %222 : vector<2x9x9x64xf32>
    %c0_157 = arith.constant 0 : index
    %c2_158 = arith.constant 2 : index
    %c1_159 = arith.constant 1 : index
    %c0_160 = arith.constant 0 : index
    %224 = vector.load %arg17[%c0_157, %c2_158, %c1_159, %c0_160] : memref<2x11x11x64xf32, #tpu.memory_space<vmem>>, vector<2x9x9x64xf32>
    %c7_161 = arith.constant 7 : index
    %c0_162 = arith.constant 0 : index
    %225 = vector.load %arg7[%c7_161, %c0_162] : memref<9x64xf32, #tpu.memory_space<vmem>>, vector<1x64xf32>
    %226 = vector.shape_cast %225 : vector<1x64xf32> to vector<1x1x1x64xf32>
    %227 = vector.broadcast %226 : vector<1x1x1x64xf32> to vector<2x9x9x64xf32>
    %228 = arith.mulf %224, %227 : vector<2x9x9x64xf32>
    %229 = arith.addf %223, %228 : vector<2x9x9x64xf32>
    %c0_163 = arith.constant 0 : index
    %c2_164 = arith.constant 2 : index
    %c2_165 = arith.constant 2 : index
    %c0_166 = arith.constant 0 : index
    %230 = vector.load %arg17[%c0_163, %c2_164, %c2_165, %c0_166] : memref<2x11x11x64xf32, #tpu.memory_space<vmem>>, vector<2x9x9x64xf32>
    %c8_167 = arith.constant 8 : index
    %c0_168 = arith.constant 0 : index
    %231 = vector.load %arg7[%c8_167, %c0_168] : memref<9x64xf32, #tpu.memory_space<vmem>>, vector<1x64xf32>
    %232 = vector.shape_cast %231 : vector<1x64xf32> to vector<1x1x1x64xf32>
    %233 = vector.broadcast %232 : vector<1x1x1x64xf32> to vector<2x9x9x64xf32>
    %234 = arith.mulf %230, %233 : vector<2x9x9x64xf32>
    %235 = arith.addf %229, %234 : vector<2x9x9x64xf32>
    %c0_169 = arith.constant 0 : index
    %c0_170 = arith.constant 0 : index
    %236 = vector.load %arg8[%c0_169, %c0_170] : memref<1x64xf32, #tpu.memory_space<vmem>>, vector<1x64xf32>
    %237 = vector.shape_cast %236 : vector<1x64xf32> to vector<1x1x1x64xf32>
    %238 = vector.broadcast %237 : vector<1x1x1x64xf32> to vector<2x9x9x64xf32>
    %239 = arith.addf %235, %238 : vector<2x9x9x64xf32>
    %cst_171 = arith.constant 0.000000e+00 : f32
    %240 = vector.broadcast %cst_171 : f32 to vector<2x9x9x64xf32>
    %241 = arith.maximumf %239, %240 : vector<2x9x9x64xf32>
    %242 = vector.extract_strided_slice %241 {offsets = [0, 0, 0, 0], sizes = [2, 1, 9, 64], strides = [1, 1, 1, 1]} : vector<2x9x9x64xf32> to vector<2x1x9x64xf32>
    %243 = vector.extract_strided_slice %241 {offsets = [0, 2, 0, 0], sizes = [2, 1, 9, 64], strides = [1, 1, 1, 1]} : vector<2x9x9x64xf32> to vector<2x1x9x64xf32>
    %244 = vector.extract_strided_slice %241 {offsets = [0, 4, 0, 0], sizes = [2, 1, 9, 64], strides = [1, 1, 1, 1]} : vector<2x9x9x64xf32> to vector<2x1x9x64xf32>
    %245 = vector.extract_strided_slice %241 {offsets = [0, 6, 0, 0], sizes = [2, 1, 9, 64], strides = [1, 1, 1, 1]} : vector<2x9x9x64xf32> to vector<2x1x9x64xf32>
    %246 = vector.extract_strided_slice %241 {offsets = [0, 8, 0, 0], sizes = [2, 1, 9, 64], strides = [1, 1, 1, 1]} : vector<2x9x9x64xf32> to vector<2x1x9x64xf32>
    %247 = tpu.concatenate %242, %243, %244, %245, %246 in 1 : vector<2x1x9x64xf32>, vector<2x1x9x64xf32>, vector<2x1x9x64xf32>, vector<2x1x9x64xf32>, vector<2x1x9x64xf32> -> vector<2x5x9x64xf32>
    %248 = vector.extract_strided_slice %247 {offsets = [0, 0, 0, 0], sizes = [2, 5, 1, 64], strides = [1, 1, 1, 1]} : vector<2x5x9x64xf32> to vector<2x5x1x64xf32>
    %249 = vector.extract_strided_slice %247 {offsets = [0, 0, 2, 0], sizes = [2, 5, 1, 64], strides = [1, 1, 1, 1]} : vector<2x5x9x64xf32> to vector<2x5x1x64xf32>
    %250 = vector.extract_strided_slice %247 {offsets = [0, 0, 4, 0], sizes = [2, 5, 1, 64], strides = [1, 1, 1, 1]} : vector<2x5x9x64xf32> to vector<2x5x1x64xf32>
    %251 = vector.extract_strided_slice %247 {offsets = [0, 0, 6, 0], sizes = [2, 5, 1, 64], strides = [1, 1, 1, 1]} : vector<2x5x9x64xf32> to vector<2x5x1x64xf32>
    %252 = vector.extract_strided_slice %247 {offsets = [0, 0, 8, 0], sizes = [2, 5, 1, 64], strides = [1, 1, 1, 1]} : vector<2x5x9x64xf32> to vector<2x5x1x64xf32>
    %253 = tpu.concatenate %248, %249, %250, %251, %252 in 2 : vector<2x5x1x64xf32>, vector<2x5x1x64xf32>, vector<2x5x1x64xf32>, vector<2x5x1x64xf32>, vector<2x5x1x64xf32> -> vector<2x5x5x64xf32>
    %254 = vector.shape_cast %253 : vector<2x5x5x64xf32> to vector<50x64xf32>
    %255 = arith.truncf %254 : vector<50x64xf32> to vector<50x64xbf16>
    %c0_172 = arith.constant 0 : index
    %c0_173 = arith.constant 0 : index
    %256 = vector.load %arg9[%c0_172, %c0_173] : memref<64x128xbf16, #tpu.memory_space<vmem>>, vector<64x128xbf16>
    %cst_174 = arith.constant dense<0.000000e+00> : vector<50x128xf32>
    %257 = tpu.matmul %255, %256, %cst_174 {dimension_numbers = #tpu.dot_dimension_numbers<[1], [0], [0], [1], [0, 0, 1, 1], [], []>} : vector<50x64xbf16>, vector<64x128xbf16>, vector<50x128xf32> -> vector<50x128xf32>
    %c0_175 = arith.constant 0 : index
    %c0_176 = arith.constant 0 : index
    %258 = vector.load %arg10[%c0_175, %c0_176] : memref<1x128xf32, #tpu.memory_space<vmem>>, vector<1x128xf32>
    %259 = vector.broadcast %258 : vector<1x128xf32> to vector<50x128xf32>
    %260 = arith.addf %257, %259 : vector<50x128xf32>
    %cst_177 = arith.constant 0.000000e+00 : f32
    %261 = vector.broadcast %cst_177 : f32 to vector<50x128xf32>
    %262 = arith.maximumf %260, %261 : vector<50x128xf32>
    %263 = vector.shape_cast %262 : vector<50x128xf32> to vector<2x5x5x128xf32>
    %c0_178 = arith.constant 0 : index
    %c1_179 = arith.constant 1 : index
    %c1_180 = arith.constant 1 : index
    %c0_181 = arith.constant 0 : index
    %264 = vector.load %arg18[%c0_178, %c1_179, %c1_180, %c0_181] : memref<2x7x7x128xf32, #tpu.memory_space<vmem>>, vector<2x5x5x128xf32>
    tpu.vector_store %arg18[%c0_178, %c1_179, %c1_180, %c0_181], %263 {strides = array<i32>} : memref<2x7x7x128xf32, #tpu.memory_space<vmem>>, vector<2x5x5x128xf32>,
    %cst_182 = arith.constant 0.000000e+00 : f32
    %265 = vector.broadcast %cst_182 : f32 to vector<2x5x5x128xf32>
    %c0_183 = arith.constant 0 : index
    %c0_184 = arith.constant 0 : index
    %c0_185 = arith.constant 0 : index
    %c0_186 = arith.constant 0 : index
    %266 = vector.load %arg18[%c0_183, %c0_184, %c0_185, %c0_186] : memref<2x7x7x128xf32, #tpu.memory_space<vmem>>, vector<2x5x5x128xf32>
    %c0_187 = arith.constant 0 : index
    %c0_188 = arith.constant 0 : index
    %267 = vector.load %arg11[%c0_187, %c0_188] : memref<9x128xf32, #tpu.memory_space<vmem>>, vector<1x128xf32>
    %268 = vector.shape_cast %267 : vector<1x128xf32> to vector<1x1x1x128xf32>
    %269 = vector.broadcast %268 : vector<1x1x1x128xf32> to vector<2x5x5x128xf32>
    %270 = arith.mulf %266, %269 : vector<2x5x5x128xf32>
    %271 = arith.addf %265, %270 : vector<2x5x5x128xf32>
    %c0_189 = arith.constant 0 : index
    %c0_190 = arith.constant 0 : index
    %c1_191 = arith.constant 1 : index
    %c0_192 = arith.constant 0 : index
    %272 = vector.load %arg18[%c0_189, %c0_190, %c1_191, %c0_192] : memref<2x7x7x128xf32, #tpu.memory_space<vmem>>, vector<2x5x5x128xf32>
    %c1_193 = arith.constant 1 : index
    %c0_194 = arith.constant 0 : index
    %273 = vector.load %arg11[%c1_193, %c0_194] : memref<9x128xf32, #tpu.memory_space<vmem>>, vector<1x128xf32>
    %274 = vector.shape_cast %273 : vector<1x128xf32> to vector<1x1x1x128xf32>
    %275 = vector.broadcast %274 : vector<1x1x1x128xf32> to vector<2x5x5x128xf32>
    %276 = arith.mulf %272, %275 : vector<2x5x5x128xf32>
    %277 = arith.addf %271, %276 : vector<2x5x5x128xf32>
    %c0_195 = arith.constant 0 : index
    %c0_196 = arith.constant 0 : index
    %c2_197 = arith.constant 2 : index
    %c0_198 = arith.constant 0 : index
    %278 = vector.load %arg18[%c0_195, %c0_196, %c2_197, %c0_198] : memref<2x7x7x128xf32, #tpu.memory_space<vmem>>, vector<2x5x5x128xf32>
    %c2_199 = arith.constant 2 : index
    %c0_200 = arith.constant 0 : index
    %279 = vector.load %arg11[%c2_199, %c0_200] : memref<9x128xf32, #tpu.memory_space<vmem>>, vector<1x128xf32>
    %280 = vector.shape_cast %279 : vector<1x128xf32> to vector<1x1x1x128xf32>
    %281 = vector.broadcast %280 : vector<1x1x1x128xf32> to vector<2x5x5x128xf32>
    %282 = arith.mulf %278, %281 : vector<2x5x5x128xf32>
    %283 = arith.addf %277, %282 : vector<2x5x5x128xf32>
    %c0_201 = arith.constant 0 : index
    %c1_202 = arith.constant 1 : index
    %c0_203 = arith.constant 0 : index
    %c0_204 = arith.constant 0 : index
    %284 = vector.load %arg18[%c0_201, %c1_202, %c0_203, %c0_204] : memref<2x7x7x128xf32, #tpu.memory_space<vmem>>, vector<2x5x5x128xf32>
    %c3_205 = arith.constant 3 : index
    %c0_206 = arith.constant 0 : index
    %285 = vector.load %arg11[%c3_205, %c0_206] : memref<9x128xf32, #tpu.memory_space<vmem>>, vector<1x128xf32>
    %286 = vector.shape_cast %285 : vector<1x128xf32> to vector<1x1x1x128xf32>
    %287 = vector.broadcast %286 : vector<1x1x1x128xf32> to vector<2x5x5x128xf32>
    %288 = arith.mulf %284, %287 : vector<2x5x5x128xf32>
    %289 = arith.addf %283, %288 : vector<2x5x5x128xf32>
    %c0_207 = arith.constant 0 : index
    %c1_208 = arith.constant 1 : index
    %c1_209 = arith.constant 1 : index
    %c0_210 = arith.constant 0 : index
    %290 = vector.load %arg18[%c0_207, %c1_208, %c1_209, %c0_210] : memref<2x7x7x128xf32, #tpu.memory_space<vmem>>, vector<2x5x5x128xf32>
    %c4_211 = arith.constant 4 : index
    %c0_212 = arith.constant 0 : index
    %291 = vector.load %arg11[%c4_211, %c0_212] : memref<9x128xf32, #tpu.memory_space<vmem>>, vector<1x128xf32>
    %292 = vector.shape_cast %291 : vector<1x128xf32> to vector<1x1x1x128xf32>
    %293 = vector.broadcast %292 : vector<1x1x1x128xf32> to vector<2x5x5x128xf32>
    %294 = arith.mulf %290, %293 : vector<2x5x5x128xf32>
    %295 = arith.addf %289, %294 : vector<2x5x5x128xf32>
    %c0_213 = arith.constant 0 : index
    %c1_214 = arith.constant 1 : index
    %c2_215 = arith.constant 2 : index
    %c0_216 = arith.constant 0 : index
    %296 = vector.load %arg18[%c0_213, %c1_214, %c2_215, %c0_216] : memref<2x7x7x128xf32, #tpu.memory_space<vmem>>, vector<2x5x5x128xf32>
    %c5_217 = arith.constant 5 : index
    %c0_218 = arith.constant 0 : index
    %297 = vector.load %arg11[%c5_217, %c0_218] : memref<9x128xf32, #tpu.memory_space<vmem>>, vector<1x128xf32>
    %298 = vector.shape_cast %297 : vector<1x128xf32> to vector<1x1x1x128xf32>
    %299 = vector.broadcast %298 : vector<1x1x1x128xf32> to vector<2x5x5x128xf32>
    %300 = arith.mulf %296, %299 : vector<2x5x5x128xf32>
    %301 = arith.addf %295, %300 : vector<2x5x5x128xf32>
    %c0_219 = arith.constant 0 : index
    %c2_220 = arith.constant 2 : index
    %c0_221 = arith.constant 0 : index
    %c0_222 = arith.constant 0 : index
    %302 = vector.load %arg18[%c0_219, %c2_220, %c0_221, %c0_222] : memref<2x7x7x128xf32, #tpu.memory_space<vmem>>, vector<2x5x5x128xf32>
    %c6_223 = arith.constant 6 : index
    %c0_224 = arith.constant 0 : index
    %303 = vector.load %arg11[%c6_223, %c0_224] : memref<9x128xf32, #tpu.memory_space<vmem>>, vector<1x128xf32>
    %304 = vector.shape_cast %303 : vector<1x128xf32> to vector<1x1x1x128xf32>
    %305 = vector.broadcast %304 : vector<1x1x1x128xf32> to vector<2x5x5x128xf32>
    %306 = arith.mulf %302, %305 : vector<2x5x5x128xf32>
    %307 = arith.addf %301, %306 : vector<2x5x5x128xf32>
    %c0_225 = arith.constant 0 : index
    %c2_226 = arith.constant 2 : index
    %c1_227 = arith.constant 1 : index
    %c0_228 = arith.constant 0 : index
    %308 = vector.load %arg18[%c0_225, %c2_226, %c1_227, %c0_228] : memref<2x7x7x128xf32, #tpu.memory_space<vmem>>, vector<2x5x5x128xf32>
    %c7_229 = arith.constant 7 : index
    %c0_230 = arith.constant 0 : index
    %309 = vector.load %arg11[%c7_229, %c0_230] : memref<9x128xf32, #tpu.memory_space<vmem>>, vector<1x128xf32>
    %310 = vector.shape_cast %309 : vector<1x128xf32> to vector<1x1x1x128xf32>
    %311 = vector.broadcast %310 : vector<1x1x1x128xf32> to vector<2x5x5x128xf32>
    %312 = arith.mulf %308, %311 : vector<2x5x5x128xf32>
    %313 = arith.addf %307, %312 : vector<2x5x5x128xf32>
    %c0_231 = arith.constant 0 : index
    %c2_232 = arith.constant 2 : index
    %c2_233 = arith.constant 2 : index
    %c0_234 = arith.constant 0 : index
    %314 = vector.load %arg18[%c0_231, %c2_232, %c2_233, %c0_234] : memref<2x7x7x128xf32, #tpu.memory_space<vmem>>, vector<2x5x5x128xf32>
    %c8_235 = arith.constant 8 : index
    %c0_236 = arith.constant 0 : index
    %315 = vector.load %arg11[%c8_235, %c0_236] : memref<9x128xf32, #tpu.memory_space<vmem>>, vector<1x128xf32>
    %316 = vector.shape_cast %315 : vector<1x128xf32> to vector<1x1x1x128xf32>
    %317 = vector.broadcast %316 : vector<1x1x1x128xf32> to vector<2x5x5x128xf32>
    %318 = arith.mulf %314, %317 : vector<2x5x5x128xf32>
    %319 = arith.addf %313, %318 : vector<2x5x5x128xf32>
    %c0_237 = arith.constant 0 : index
    %c0_238 = arith.constant 0 : index
    %320 = vector.load %arg12[%c0_237, %c0_238] : memref<1x128xf32, #tpu.memory_space<vmem>>, vector<1x128xf32>
    %321 = vector.shape_cast %320 : vector<1x128xf32> to vector<1x1x1x128xf32>
    %322 = vector.broadcast %321 : vector<1x1x1x128xf32> to vector<2x5x5x128xf32>
    %323 = arith.addf %319, %322 : vector<2x5x5x128xf32>
    %cst_239 = arith.constant 0.000000e+00 : f32
    %324 = vector.broadcast %cst_239 : f32 to vector<2x5x5x128xf32>
    %325 = arith.maximumf %323, %324 : vector<2x5x5x128xf32>
    %326 = vector.shape_cast %325 : vector<2x5x5x128xf32> to vector<50x128xf32>
    %327 = arith.truncf %326 : vector<50x128xf32> to vector<50x128xbf16>
    %c0_240 = arith.constant 0 : index
    %c0_241 = arith.constant 0 : index
    %328 = vector.load %arg13[%c0_240, %c0_241] : memref<128x128xbf16, #tpu.memory_space<vmem>>, vector<128x128xbf16>
    %cst_242 = arith.constant dense<0.000000e+00> : vector<50x128xf32>
    %329 = tpu.matmul %327, %328, %cst_242 {dimension_numbers = #tpu.dot_dimension_numbers<[1], [0], [0], [1], [0, 0, 1, 1], [], []>} : vector<50x128xbf16>, vector<128x128xbf16>, vector<50x128xf32> -> vector<50x128xf32>
    %c0_243 = arith.constant 0 : index
    %c0_244 = arith.constant 0 : index
    %330 = vector.load %arg14[%c0_243, %c0_244] : memref<1x128xf32, #tpu.memory_space<vmem>>, vector<1x128xf32>
    %331 = vector.broadcast %330 : vector<1x128xf32> to vector<50x128xf32>
    %332 = arith.addf %329, %331 : vector<50x128xf32>
    %cst_245 = arith.constant 0.000000e+00 : f32
    %333 = vector.broadcast %cst_245 : f32 to vector<50x128xf32>
    %334 = arith.maximumf %332, %333 : vector<50x128xf32>
    %335 = vector.shape_cast %334 : vector<50x128xf32> to vector<2x25x128xf32>
    %cst_246 = arith.constant dense<0.000000e+00> : vector<2x128xf32>
    %336 = vector.multi_reduction <add>, %335, %cst_246 [1] : vector<2x25x128xf32> to vector<2x128xf32>
    %cst_247 = arith.constant 4.000000e-02 : f32
    %337 = vector.broadcast %cst_247 : f32 to vector<2x128xf32>
    %338 = arith.mulf %336, %337 : vector<2x128xf32>
    %c0_248 = arith.constant 0 : index
    %c0_249 = arith.constant 0 : index
    %c0_250 = arith.constant 0 : index
    %339 = vector.load %arg15[%c0_248, %c0_249, %c0_250] : memref<2x1x128xf32, #tpu.memory_space<vmem>>, vector<2x1x128xf32>
    %340 = vector.shape_cast %339 : vector<2x1x128xf32> to vector<2x128xf32>
    %341 = vector.shape_cast %338 : vector<2x128xf32> to vector<2x1x128xf32>
    tpu.vector_store %arg15[%c0_248, %c0_249, %c0_250], %341 {strides = array<i32>} : memref<2x1x128xf32, #tpu.memory_space<vmem>>, vector<2x1x128xf32>,
    return
  }
  func.func @transform_0(%arg0: i32) -> (i32, i32, i32) {
    %c0_i32 = arith.constant 0 : i32
    %c0_i32_0 = arith.constant 0 : i32
    %c0_i32_1 = arith.constant 0 : i32
    return %arg0, %c0_i32, %c0_i32_0 : i32, i32, i32
  }
  func.func @transform_1(%arg0: i32) -> (i32, i32, i32) {
    %c0_i32 = arith.constant 0 : i32
    %c0_i32_0 = arith.constant 0 : i32
    %c0_i32_1 = arith.constant 0 : i32
    %c0_i32_2 = arith.constant 0 : i32
    return %c0_i32, %c0_i32_0, %c0_i32_1 : i32, i32, i32
  }
  func.func @transform_2(%arg0: i32) -> (i32, i32) {
    %c0_i32 = arith.constant 0 : i32
    %c0_i32_0 = arith.constant 0 : i32
    %c0_i32_1 = arith.constant 0 : i32
    return %c0_i32, %c0_i32_0 : i32, i32
  }
  func.func @transform_3(%arg0: i32) -> (i32, i32) {
    %c0_i32 = arith.constant 0 : i32
    %c0_i32_0 = arith.constant 0 : i32
    %c0_i32_1 = arith.constant 0 : i32
    return %c0_i32, %c0_i32_0 : i32, i32
  }
  func.func @transform_4(%arg0: i32) -> (i32, i32) {
    %c0_i32 = arith.constant 0 : i32
    %c0_i32_0 = arith.constant 0 : i32
    %c0_i32_1 = arith.constant 0 : i32
    return %c0_i32, %c0_i32_0 : i32, i32
  }
  func.func @transform_5(%arg0: i32) -> (i32, i32) {
    %c0_i32 = arith.constant 0 : i32
    %c0_i32_0 = arith.constant 0 : i32
    %c0_i32_1 = arith.constant 0 : i32
    return %c0_i32, %c0_i32_0 : i32, i32
  }
  func.func @transform_6(%arg0: i32) -> (i32, i32) {
    %c0_i32 = arith.constant 0 : i32
    %c0_i32_0 = arith.constant 0 : i32
    %c0_i32_1 = arith.constant 0 : i32
    return %c0_i32, %c0_i32_0 : i32, i32
  }
  func.func @transform_7(%arg0: i32) -> (i32, i32) {
    %c0_i32 = arith.constant 0 : i32
    %c0_i32_0 = arith.constant 0 : i32
    %c0_i32_1 = arith.constant 0 : i32
    return %c0_i32, %c0_i32_0 : i32, i32
  }
  func.func @transform_8(%arg0: i32) -> (i32, i32) {
    %c0_i32 = arith.constant 0 : i32
    %c0_i32_0 = arith.constant 0 : i32
    %c0_i32_1 = arith.constant 0 : i32
    return %c0_i32, %c0_i32_0 : i32, i32
  }
  func.func @transform_9(%arg0: i32) -> (i32, i32) {
    %c0_i32 = arith.constant 0 : i32
    %c0_i32_0 = arith.constant 0 : i32
    %c0_i32_1 = arith.constant 0 : i32
    return %c0_i32, %c0_i32_0 : i32, i32
  }
  func.func @transform_10(%arg0: i32) -> (i32, i32) {
    %c0_i32 = arith.constant 0 : i32
    %c0_i32_0 = arith.constant 0 : i32
    %c0_i32_1 = arith.constant 0 : i32
    return %c0_i32, %c0_i32_0 : i32, i32
  }
  func.func @transform_11(%arg0: i32) -> (i32, i32) {
    %c0_i32 = arith.constant 0 : i32
    %c0_i32_0 = arith.constant 0 : i32
    %c0_i32_1 = arith.constant 0 : i32
    return %c0_i32, %c0_i32_0 : i32, i32
  }
  func.func @transform_12(%arg0: i32) -> (i32, i32) {
    %c0_i32 = arith.constant 0 : i32
    %c0_i32_0 = arith.constant 0 : i32
    %c0_i32_1 = arith.constant 0 : i32
    return %c0_i32, %c0_i32_0 : i32, i32
  }
  func.func @transform_13(%arg0: i32) -> (i32, i32) {
    %c0_i32 = arith.constant 0 : i32
    %c0_i32_0 = arith.constant 0 : i32
    %c0_i32_1 = arith.constant 0 : i32
    return %c0_i32, %c0_i32_0 : i32, i32
  }
  func.func @transform_14(%arg0: i32) -> (i32, i32, i32) {
    %c0_i32 = arith.constant 0 : i32
    %c0_i32_0 = arith.constant 0 : i32
    %c0_i32_1 = arith.constant 0 : i32
    return %arg0, %c0_i32, %c0_i32_0 : i32, i32, i32
  }
}

</mosaic_0001>

<llo_original>
// kernel: backbone_forward.1
$region0: #{backbone_forward.1}
  #allocation0 [shape = 'u32[]', space=smem, size = 0x4, offset = 0x4, fixed_abs, tag = 'smem constant byte address 0x4 - core index']
  #allocation1 [shape = 'u32[72,128]{1,0:T(1,128)}', space=vmem, size = 0x9000, scoped, tag = 'internal scratch']
  #allocation2 [shape = 'f32[2,11,11,32]{3,2,1,0:T(8,128)}', space=vmem, size = 0x2c000, scoped, tag = 'scratch operand']
  #allocation3 [shape = 'f32[2,11,11,64]{3,2,1,0:T(8,128)}', space=vmem, size = 0x2c000, scoped, tag = 'scratch operand']
  #allocation4 [shape = 'f32[2,7,7,128]{3,2,1,0:T(8,128)}', space=vmem, size = 0xe000, scoped, tag = 'scratch operand']
  %s0 = inlined_call_operand.vmem [shape: f32[2,24,72], index: 0, kind: input, shape index: {}]
  %s1 = inlined_call_operand.vmem [shape: bf16[5,72,640], index: 1, kind: input, shape index: {}]
  %s2 = inlined_call_operand.vmem [shape: f32[9,32], index: 2, kind: input, shape index: {}]
  %s3 = inlined_call_operand.vmem [shape: f32[1,32], index: 3, kind: input, shape index: {}]
  %s4 = inlined_call_operand.vmem [shape: bf16[32,64], index: 4, kind: input, shape index: {}]
  %s5 = inlined_call_operand.vmem [shape: f32[1,64], index: 5, kind: input, shape index: {}]
  %s6 = inlined_call_operand.vmem [shape: f32[9,64], index: 6, kind: input, shape index: {}]
  %s7 = inlined_call_operand.vmem [shape: f32[1,64], index: 7, kind: input, shape index: {}]
  %s8 = inlined_call_operand.vmem [shape: bf16[64,128], index: 8, kind: input, shape index: {}]
  %s9 = inlined_call_operand.vmem [shape: f32[1,128], index: 9, kind: input, shape index: {}]
  %s10 = inlined_call_operand.vmem [shape: f32[9,128], index: 10, kind: input, shape index: {}]
  %s11 = inlined_call_operand.vmem [shape: f32[1,128], index: 11, kind: input, shape index: {}]
  %s12 = inlined_call_operand.vmem [shape: bf16[128,128], index: 12, kind: input, shape index: {}]
  %s13 = inlined_call_operand.vmem [shape: f32[1,128], index: 13, kind: input, shape index: {}]
  %s14 = inlined_call_operand.hbm [shape: f32[2,1,128], index: 14, kind: output, shape index: {}]
  %s15 = sld [smem:[#allocation0]]
  $region66: #{backbone_forward.1} parent=0
    _
  %s17 = ssub.s32 1, %s15
  %s18 = scalar_select 0, %s17, %s15
  $region1: #{backbone_forward.1} parent=0
    #allocation5 [shape = 'u8[1024]{0}', space=vmem, size = 0x400, scoped, tag = 'output window, operand 0, single buffered']
    #allocation6 [shape = 's32[1]{0}', space=sflag, size = 0x4, scoped, tag = 'scoped memory for backbone_forward.1']
    %19 = vsyncpa [#allocation6], 0
    // Predicated region
    $region2: #{backbone_forward.1} parent=1 // pred_check
      _
    $region3: #{backbone_forward.1} parent=1 // pred_check_branch
      %21 = sbr.rel (0) target = $region5
    $region4: #{backbone_forward.1} parent=1 // pred_region
      _
    $region5: #{backbone_forward.1} parent=1 // pred_fallthru
      _
    // Predicated region
    $region6: #{backbone_forward.1} parent=1 // pred_check
      _
    $region7: #{backbone_forward.1} parent=1 // pred_check_branch
      %23 = sbr.rel (0) target = $region9
    $region8: #{backbone_forward.1} parent=1 // pred_region
      _
    $region9: #{backbone_forward.1} parent=1 // pred_fallthru
      _
    // Predicated region
    $region10: #{backbone_forward.1} parent=1 // pred_check
      _
    $region11: #{backbone_forward.1} parent=1 // pred_check_branch
      %25 = sbr.rel (0) target = $region13
    $region12: #{backbone_forward.1} parent=1 // pred_region
      _
    $region13: #{backbone_forward.1} parent=1 // pred_fallthru
      _
    // Predicated region
    $region14: #{backbone_forward.1} parent=1 // pred_check
      _
    $region15: #{backbone_forward.1} parent=1 // pred_check_branch
      %27 = sbr.rel (0) target = $region17
    $region16: #{backbone_forward.1} parent=1 // pred_region
      _
    $region17: #{backbone_forward.1} parent=1 // pred_fallthru
      _
    // Predicated region
    $region18: #{backbone_forward.1} parent=1 // pred_check
      _
    $region19: #{backbone_forward.1} parent=1 // pred_check_branch
      %29 = sbr.rel (0) target = $region21
    $region20: #{backbone_forward.1} parent=1 // pred_region
      _
    $region21: #{backbone_forward.1} parent=1 // pred_fallthru
      _
    // Predicated region
    $region22: #{backbone_forward.1} parent=1 // pred_check
      _
    $region23: #{backbone_forward.1} parent=1 // pred_check_branch
      %31 = sbr.rel (0) target = $region25
    $region24: #{backbone_forward.1} parent=1 // pred_region
      _
    $region25: #{backbone_forward.1} parent=1 // pred_fallthru
      _
    // Predicated region
    $region26: #{backbone_forward.1} parent=1 // pred_check
      _
    $region27: #{backbone_forward.1} parent=1 // pred_check_branch
      %33 = sbr.rel (0) target = $region29
    $region28: #{backbone_forward.1} parent=1 // pred_region
      _
    $region29: #{backbone_forward.1} parent=1 // pred_fallthru
      _
    // Predicated region
    $region30: #{backbone_forward.1} parent=1 // pred_check
      _
    $region31: #{backbone_forward.1} parent=1 // pred_check_branch
      %35 = sbr.rel (0) target = $region33
    $region32: #{backbone_forward.1} parent=1 // pred_region
      _
    $region33: #{backbone_forward.1} parent=1 // pred_fallthru
      _
    // Predicated region
    $region34: #{backbone_forward.1} parent=1 // pred_check
      _
    $region35: #{backbone_forward.1} parent=1 // pred_check_branch
      %37 = sbr.rel (0) target = $region37
    $region36: #{backbone_forward.1} parent=1 // pred_region
      _
    $region37: #{backbone_forward.1} parent=1 // pred_fallthru
      _
    // Predicated region
    $region38: #{backbone_forward.1} parent=1 // pred_check
      _
    $region39: #{backbone_forward.1} parent=1 // pred_check_branch
      %39 = sbr.rel (0) target = $region41
    $region40: #{backbone_forward.1} parent=1 // pred_region
      _
    $region41: #{backbone_forward.1} parent=1 // pred_fallthru
      _
    // Predicated region
    $region42: #{backbone_forward.1} parent=1 // pred_check
      _
    $region43: #{backbone_forward.1} parent=1 // pred_check_branch
      %41 = sbr.rel (0) target = $region45
    $region44: #{backbone_forward.1} parent=1 // pred_region
      _
    $region45: #{backbone_forward.1} parent=1 // pred_fallthru
      _
    // Predicated region
    $region46: #{backbone_forward.1} parent=1 // pred_check
      _
    $region47: #{backbone_forward.1} parent=1 // pred_check_branch
      %43 = sbr.rel (0) target = $region49
    $region48: #{backbone_forward.1} parent=1 // pred_region
      _
    $region49: #{backbone_forward.1} parent=1 // pred_fallthru
      _
    // Predicated region
    $region50: #{backbone_forward.1} parent=1 // pred_check
      _
    $region51: #{backbone_forward.1} parent=1 // pred_check_branch
      %45 = sbr.rel (0) target = $region53
    $region52: #{backbone_forward.1} parent=1 // pred_region
      _
    $region53: #{backbone_forward.1} parent=1 // pred_fallthru
      _
    // Predicated region
    $region54: #{backbone_forward.1} parent=1 // pred_check
      _
    $region55: #{backbone_forward.1} parent=1 // pred_check_branch
      %47 = sbr.rel (0) target = $region57
    $region56: #{backbone_forward.1} parent=1 // pred_region
      _
    $region57: #{backbone_forward.1} parent=1 // pred_fallthru
      _
    %vm49 = vcmask 261120
    %50 = vst.msk [vmem:[#allocation2] sm:$0xff] %vm49, 0.0
    %vm51 = vcmask 256000
    %52 = vst.msk [vmem:[#allocation2 + $0x8] sm:$0x7] %vm51, 0.0
    %53 = vst.msk [vmem:[#allocation2 + $0x10] sm:$0xff] %vm49, 0.0
    %54 = vst.msk [vmem:[#allocation2 + $0x18] sm:$0x7] %vm51, 0.0
    %55 = vst.msk [vmem:[#allocation2 + $0x20] sm:$0xff] %vm49, 0.0
    %56 = vst.msk [vmem:[#allocation2 + $0x28] sm:$0x7] %vm51, 0.0
    %57 = vst.msk [vmem:[#allocation2 + $0x30] sm:$0xff] %vm49, 0.0
    %58 = vst.msk [vmem:[#allocation2 + $0x38] sm:$0x7] %vm51, 0.0
    %59 = vst.msk [vmem:[#allocation2 + $0x40] sm:$0xff] %vm49, 0.0
    %60 = vst.msk [vmem:[#allocation2 + $0x48] sm:$0x7] %vm51, 0.0
    %61 = vst.msk [vmem:[#allocation2 + $0x50] sm:$0xff] %vm49, 0.0
    %62 = vst.msk [vmem:[#allocation2 + $0x58] sm:$0x7] %vm51, 0.0
    %63 = vst.msk [vmem:[#allocation2 + $0x60] sm:$0xff] %vm49, 0.0
    %64 = vst.msk [vmem:[#allocation2 + $0x68] sm:$0x7] %vm51, 0.0
    %65 = vst.msk [vmem:[#allocation2 + $0x70] sm:$0xff] %vm49, 0.0
    %66 = vst.msk [vmem:[#allocation2 + $0x78] sm:$0x7] %vm51, 0.0
    %67 = vst.msk [vmem:[#allocation2 + $0x80] sm:$0xff] %vm49, 0.0
    %68 = vst.msk [vmem:[#allocation2 + $0x88] sm:$0x7] %vm51, 0.0
    %69 = vst.msk [vmem:[#allocation2 + $0x90] sm:$0xff] %vm49, 0.0
    %70 = vst.msk [vmem:[#allocation2 + $0x98] sm:$0x7] %vm51, 0.0
    %71 = vst.msk [vmem:[#allocation2 + $0xa0] sm:$0xff] %vm49, 0.0
    %72 = vst.msk [vmem:[#allocation2 + $0xa8] sm:$0x7] %vm51, 0.0
    %73 = vst.msk [vmem:[#allocation2 + $0xb0] sm:$0xff] %vm49, 0.0
    %74 = vst.msk [vmem:[#allocation2 + $0xb8] sm:$0x7] %vm51, 0.0
    %75 = vst.msk [vmem:[#allocation2 + $0xc0] sm:$0xff] %vm49, 0.0
    %76 = vst.msk [vmem:[#allocation2 + $0xc8] sm:$0x7] %vm51, 0.0
    %77 = vst.msk [vmem:[#allocation2 + $0xd0] sm:$0xff] %vm49, 0.0
    %78 = vst.msk [vmem:[#allocation2 + $0xd8] sm:$0x7] %vm51, 0.0
    %79 = vst.msk [vmem:[#allocation2 + $0xe0] sm:$0xff] %vm49, 0.0
    %80 = vst.msk [vmem:[#allocation2 + $0xe8] sm:$0x7] %vm51, 0.0
    %81 = vst.msk [vmem:[#allocation2 + $0xf0] sm:$0xff] %vm49, 0.0
    %82 = vst.msk [vmem:[#allocation2 + $0xf8] sm:$0x7] %vm51, 0.0
    %83 = vst.msk [vmem:[#allocation2 + $0x100] sm:$0xff] %vm49, 0.0
    %84 = vst.msk [vmem:[#allocation2 + $0x108] sm:$0x7] %vm51, 0.0
    %85 = vst.msk [vmem:[#allocation2 + $0x110] sm:$0xff] %vm49, 0.0
    %86 = vst.msk [vmem:[#allocation2 + $0x118] sm:$0x7] %vm51, 0.0
    %87 = vst.msk [vmem:[#allocation2 + $0x120] sm:$0xff] %vm49, 0.0
    %88 = vst.msk [vmem:[#allocation2 + $0x128] sm:$0x7] %vm51, 0.0
    %89 = vst.msk [vmem:[#allocation2 + $0x130] sm:$0xff] %vm49, 0.0
    %90 = vst.msk [vmem:[#allocation2 + $0x138] sm:$0x7] %vm51, 0.0
    %91 = vst.msk [vmem:[#allocation2 + $0x140] sm:$0xff] %vm49, 0.0
    %92 = vst.msk [vmem:[#allocation2 + $0x148] sm:$0x7] %vm51, 0.0
    %93 = vst.msk [vmem:[#allocation2 + $0x150] sm:$0xff] %vm49, 0.0
    %94 = vst.msk [vmem:[#allocation2 + $0x158] sm:$0x7] %vm51, 0.0
    %vm95 = vcmask 523264
    %96 = vst.msk [vmem:[#allocation3] sm:$0xff] %vm95, 0.0
    %vm97 = vcmask 518144
    %98 = vst.msk [vmem:[#allocation3 + $0x8] sm:$0x7] %vm97, 0.0
    %99 = vst.msk [vmem:[#allocation3 + $0x10] sm:$0xff] %vm95, 0.0
    %100 = vst.msk [vmem:[#allocation3 + $0x18] sm:$0x7] %vm97, 0.0
    %101 = vst.msk [vmem:[#allocation3 + $0x20] sm:$0xff] %vm95, 0.0
    %102 = vst.msk [vmem:[#allocation3 + $0x28] sm:$0x7] %vm97, 0.0
    %103 = vst.msk [vmem:[#allocation3 + $0x30] sm:$0xff] %vm95, 0.0
    %104 = vst.msk [vmem:[#allocation3 + $0x38] sm:$0x7] %vm97, 0.0
    %105 = vst.msk [vmem:[#allocation3 + $0x40] sm:$0xff] %vm95, 0.0
    %106 = vst.msk [vmem:[#allocation3 + $0x48] sm:$0x7] %vm97, 0.0
    %107 = vst.msk [vmem:[#allocation3 + $0x50] sm:$0xff] %vm95, 0.0
    %108 = vst.msk [vmem:[#allocation3 + $0x58] sm:$0x7] %vm97, 0.0
    %109 = vst.msk [vmem:[#allocation3 + $0x60] sm:$0xff] %vm95, 0.0
    %110 = vst.msk [vmem:[#allocation3 + $0x68] sm:$0x7] %vm97, 0.0
    %111 = vst.msk [vmem:[#allocation3 + $0x70] sm:$0xff] %vm95, 0.0
    %112 = vst.msk [vmem:[#allocation3 + $0x78] sm:$0x7] %vm97, 0.0
    %113 = vst.msk [vmem:[#allocation3 + $0x80] sm:$0xff] %vm95, 0.0
    %114 = vst.msk [vmem:[#allocation3 + $0x88] sm:$0x7] %vm97, 0.0
    %115 = vst.msk [vmem:[#allocation3 + $0x90] sm:$0xff] %vm95, 0.0
    %116 = vst.msk [vmem:[#allocation3 + $0x98] sm:$0x7] %vm97, 0.0
    %117 = vst.msk [vmem:[#allocation3 + $0xa0] sm:$0xff] %vm95, 0.0
    %118 = vst.msk [vmem:[#allocation3 + $0xa8] sm:$0x7] %vm97, 0.0
    %119 = vst.msk [vmem:[#allocation3 + $0xb0] sm:$0xff] %vm95, 0.0
    %120 = vst.msk [vmem:[#allocation3 + $0xb8] sm:$0x7] %vm97, 0.0
    %121 = vst.msk [vmem:[#allocation3 + $0xc0] sm:$0xff] %vm95, 0.0
    %122 = vst.msk [vmem:[#allocation3 + $0xc8] sm:$0x7] %vm97, 0.0
    %123 = vst.msk [vmem:[#allocation3 + $0xd0] sm:$0xff] %vm95, 0.0
    %124 = vst.msk [vmem:[#allocation3 + $0xd8] sm:$0x7] %vm97, 0.0
    %125 = vst.msk [vmem:[#allocation3 + $0xe0] sm:$0xff] %vm95, 0.0
    %126 = vst.msk [vmem:[#allocation3 + $0xe8] sm:$0x7] %vm97, 0.0
    %127 = vst.msk [vmem:[#allocation3 + $0xf0] sm:$0xff] %vm95, 0.0
    %128 = vst.msk [vmem:[#allocation3 + $0xf8] sm:$0x7] %vm97, 0.0
    %129 = vst.msk [vmem:[#allocation3 + $0x100] sm:$0xff] %vm95, 0.0
    %130 = vst.msk [vmem:[#allocation3 + $0x108] sm:$0x7] %vm97, 0.0
    %131 = vst.msk [vmem:[#allocation3 + $0x110] sm:$0xff] %vm95, 0.0
    %132 = vst.msk [vmem:[#allocation3 + $0x118] sm:$0x7] %vm97, 0.0
    %133 = vst.msk [vmem:[#allocation3 + $0x120] sm:$0xff] %vm95, 0.0
    %134 = vst.msk [vmem:[#allocation3 + $0x128] sm:$0x7] %vm97, 0.0
    %135 = vst.msk [vmem:[#allocation3 + $0x130] sm:$0xff] %vm95, 0.0
    %136 = vst.msk [vmem:[#allocation3 + $0x138] sm:$0x7] %vm97, 0.0
    %137 = vst.msk [vmem:[#allocation3 + $0x140] sm:$0xff] %vm95, 0.0
    %138 = vst.msk [vmem:[#allocation3 + $0x148] sm:$0x7] %vm97, 0.0
    %139 = vst.msk [vmem:[#allocation3 + $0x150] sm:$0xff] %vm95, 0.0
    %140 = vst.msk [vmem:[#allocation3 + $0x158] sm:$0x7] %vm97, 0.0
    %141 = vst [vmem:[#allocation4] sm:$0x7f] 0.0
    %142 = vst [vmem:[#allocation4 + $0x8] sm:$0x7f] 0.0
    %143 = vst [vmem:[#allocation4 + $0x10] sm:$0x7f] 0.0
    %144 = vst [vmem:[#allocation4 + $0x18] sm:$0x7f] 0.0
    %145 = vst [vmem:[#allocation4 + $0x20] sm:$0x7f] 0.0
    %146 = vst [vmem:[#allocation4 + $0x28] sm:$0x7f] 0.0
    %147 = vst [vmem:[#allocation4 + $0x30] sm:$0x7f] 0.0
    %148 = vst [vmem:[#allocation4 + $0x38] sm:$0x7f] 0.0
    %149 = vst [vmem:[#allocation4 + $0x40] sm:$0x7f] 0.0
    %150 = vst [vmem:[#allocation4 + $0x48] sm:$0x7f] 0.0
    %151 = vst [vmem:[#allocation4 + $0x50] sm:$0x7f] 0.0
    %152 = vst [vmem:[#allocation4 + $0x58] sm:$0x7f] 0.0
    %153 = vst [vmem:[#allocation4 + $0x60] sm:$0x7f] 0.0
    %154 = vst [vmem:[#allocation4 + $0x68] sm:$0x7f] 0.0
    %v155 = vld [vmem:[%s0] sm:$0xff]
    %v156 = vld [vmem:[%s0 + $0x8] sm:$0xff]
    %v157 = vld [vmem:[%s0 + $0x10] sm:$0xf]
    %v158 = vld [vmem:[%s0 + $0x18] sm:$0xff]
    %v159 = vld [vmem:[%s0 + $0x20] sm:$0xff]
    %v160 = vld [vmem:[%s0 + $0x28] sm:$0xf]
    %v167 = vrot.slane %v155, 4
    %v168 = vrot.slane %v156, 4
    %v169 = vrot.slane %v158, 4
    %v170 = vrot.slane %v159, 4
    %171 = vst [vmem:[#allocation1] ss:$2 sm:$0xff] %v155
    %s172 = scalar_lea.vmem [#allocation1], 1
    %173 = vst [vmem:[%s172] ss:$2 sm:$0xff] %v167
    %s174 = scalar_lea.vmem [#allocation1], 16
    %175 = vst [vmem:[%s174] ss:$2 sm:$0xff] %v156
    %s176 = scalar_lea.vmem [#allocation1], 17
    %177 = vst [vmem:[%s176] ss:$2 sm:$0xff] %v168
    %s178 = scalar_lea.vmem [#allocation1], 32
    %179 = vst [vmem:[%s178] ss:$2 sm:$0xff] %v157
    %s180 = scalar_lea.vmem [#allocation1], 33
    %181 = vst [vmem:[%s180] ss:$2 sm:$0xff] %v158
    %s182 = scalar_lea.vmem [#allocation1], 48
    %183 = vst [vmem:[%s182] ss:$2 sm:$0xff] %v169
    %s184 = scalar_lea.vmem [#allocation1], 49
    %185 = vst [vmem:[%s184] ss:$2 sm:$0xff] %v159
    %v186 = vld.sshfl [vmem:[#allocation1] sm:$0xff pattern:$0x75316420]
    %v187 = vld.sshfl [vmem:[#allocation1 + $0x10] sm:$0xff pattern:$0x75316420]
    %v188 = vld.sshfl [vmem:[#allocation1 + $0x20] sm:$0xff pattern:$0x75316420]
    %v189 = vld.sshfl [vmem:[#allocation1 + $0x30] sm:$0xff pattern:$0x75316420]
    %190 = vst [vmem:[#allocation1] ss:$2 sm:$0xff] %v170
    %191 = vst [vmem:[%s172] ss:$2 sm:$0xff] %v160
    %v192 = vld.sshfl [vmem:[#allocation1] sm:$0xff pattern:$0x75316420]
    %v198 = vpack.c.bf16 %v187, %v186
    %v199 = vpack.c.bf16 %v189, %v188
    %v200 = vpack.c.bf16 %v192, %v192
    %v201 = vld [vmem:[%s1] sm:$0xff]
    %v202 = vld [vmem:[%s1 + $0x8] sm:$0xff]
    %v203 = vld [vmem:[%s1 + $0x10] sm:$0xf]
    %v204 = vld [vmem:[%s1 + $0x14] sm:$0xff]
    %v205 = vld [vmem:[%s1 + $0x1c] sm:$0xff]
    %v206 = vld [vmem:[%s1 + $0x24] sm:$0xf]
    %v207 = vld [vmem:[%s1 + $0x28] sm:$0xff]
    %v208 = vld [vmem:[%s1 + $0x30] sm:$0xff]
    %v209 = vld [vmem:[%s1 + $0x38] sm:$0xf]
    %v210 = vld [vmem:[%s1 + $0x3c] sm:$0xff]
    %v211 = vld [vmem:[%s1 + $0x44] sm:$0xff]
    %v212 = vld [vmem:[%s1 + $0x4c] sm:$0xf]
    %v213 = vld [vmem:[%s1 + $0x50] sm:$0xff]
    %v214 = vld [vmem:[%s1 + $0x58] sm:$0xff]
    %v215 = vld [vmem:[%s1 + $0x60] sm:$0xf]
    %v216 = vld [vmem:[%s1 + $0x64] sm:$0xff]
    %v217 = vld [vmem:[%s1 + $0x6c] sm:$0xff]
    %v218 = vld [vmem:[%s1 + $0x74] sm:$0xf]
    %v219 = vld [vmem:[%s1 + $0x78] sm:$0xff]
    %v220 = vld [vmem:[%s1 + $0x80] sm:$0xff]
    %v221 = vld [vmem:[%s1 + $0x88] sm:$0xf]
    %v222 = vld [vmem:[%s1 + $0x8c] sm:$0xff]
    %v223 = vld [vmem:[%s1 + $0x94] sm:$0xff]
    %v224 = vld [vmem:[%s1 + $0x9c] sm:$0xf]
    %v225 = vld [vmem:[%s1 + $0xa0] sm:$0xff]
    %v226 = vld [vmem:[%s1 + $0xa8] sm:$0xff]
    %v227 = vld [vmem:[%s1 + $0xb0] sm:$0xf]
    %v228 = vld [vmem:[%s0 + $0x1] sm:$0xff]
    %v229 = vld [vmem:[%s0 + $0x9] sm:$0xff]
    %v230 = vld [vmem:[%s0 + $0x11] sm:$0xf]
    %v231 = vld [vmem:[%s0 + $0x19] sm:$0xff]
    %v232 = vld [vmem:[%s0 + $0x21] sm:$0xff]
    %v233 = vld [vmem:[%s0 + $0x29] sm:$0xf]
    %v240 = vrot.slane %v228, 4
    %v241 = vrot.slane %v229, 4
    %v242 = vrot.slane %v231, 4
    %v243 = vrot.slane %v232, 4
    %244 = vst [vmem:[#allocation1] ss:$2 sm:$0xff] %v228
    %s245 = scalar_lea.vmem [#allocation1], 1
    %246 = vst [vmem:[%s245] ss:$2 sm:$0xff] %v240
    %s247 = scalar_lea.vmem [#allocation1], 16
    %248 = vst [vmem:[%s247] ss:$2 sm:$0xff] %v229
    %s249 = scalar_lea.vmem [#allocation1], 17
    %250 = vst [vmem:[%s249] ss:$2 sm:$0xff] %v241
    %s251 = scalar_lea.vmem [#allocation1], 32
    %252 = vst [vmem:[%s251] ss:$2 sm:$0xff] %v230
    %s253 = scalar_lea.vmem [#allocation1], 33
    %254 = vst [vmem:[%s253] ss:$2 sm:$0xff] %v231
    %s255 = scalar_lea.vmem [#allocation1], 48
    %256 = vst [vmem:[%s255] ss:$2 sm:$0xff] %v242
    %s257 = scalar_lea.vmem [#allocation1], 49
    %258 = vst [vmem:[%s257] ss:$2 sm:$0xff] %v232
    %v259 = vld.sshfl [vmem:[#allocation1] sm:$0xff pattern:$0x75316420]
    %v260 = vld.sshfl [vmem:[#allocation1 + $0x10] sm:$0xff pattern:$0x75316420]
    %v261 = vld.sshfl [vmem:[#allocation1 + $0x20] sm:$0xff pattern:$0x75316420]
    %v262 = vld.sshfl [vmem:[#allocation1 + $0x30] sm:$0xff pattern:$0x75316420]
    %263 = vst [vmem:[#allocation1] ss:$2 sm:$0xff] %v243
    %264 = vst [vmem:[%s245] ss:$2 sm:$0xff] %v233
    %v265 = vld.sshfl [vmem:[#allocation1] sm:$0xff pattern:$0x75316420]
    %v271 = vpack.c.bf16 %v260, %v259
    %v272 = vpack.c.bf16 %v262, %v261
    %v273 = vpack.c.bf16 %v265, %v265
    %s274 = scalar_lea.vmem %s1, 180
    %v275 = vld [vmem:[%s274] sm:$0xff]
    %v276 = vld [vmem:[%s274 + $0x8] sm:$0xff]
    %v277 = vld [vmem:[%s274 + $0x10] sm:$0xf]
    %v278 = vld [vmem:[%s274 + $0x14] sm:$0xff]
    %v279 = vld [vmem:[%s274 + $0x1c] sm:$0xff]
    %v280 = vld [vmem:[%s274 + $0x24] sm:$0xf]
    %v281 = vld [vmem:[%s274 + $0x28] sm:$0xff]
    %v282 = vld [vmem:[%s274 + $0x30] sm:$0xff]
    %v283 = vld [vmem:[%s274 + $0x38] sm:$0xf]
    %v284 = vld [vmem:[%s274 + $0x3c] sm:$0xff]
    %v285 = vld [vmem:[%s274 + $0x44] sm:$0xff]
    %v286 = vld [vmem:[%s274 + $0x4c] sm:$0xf]
    %v287 = vld [vmem:[%s274 + $0x50] sm:$0xff]
    %v288 = vld [vmem:[%s274 + $0x58] sm:$0xff]
    %v289 = vld [vmem:[%s274 + $0x60] sm:$0xf]
    %v290 = vld [vmem:[%s274 + $0x64] sm:$0xff]
    %v291 = vld [vmem:[%s274 + $0x6c] sm:$0xff]
    %v292 = vld [vmem:[%s274 + $0x74] sm:$0xf]
    %v293 = vld [vmem:[%s274 + $0x78] sm:$0xff]
    %v294 = vld [vmem:[%s274 + $0x80] sm:$0xff]
    %v295 = vld [vmem:[%s274 + $0x88] sm:$0xf]
    %v296 = vld [vmem:[%s274 + $0x8c] sm:$0xff]
    %v297 = vld [vmem:[%s274 + $0x94] sm:$0xff]
    %v298 = vld [vmem:[%s274 + $0x9c] sm:$0xf]
    %v299 = vld [vmem:[%s274 + $0xa0] sm:$0xff]
    %v300 = vld [vmem:[%s274 + $0xa8] sm:$0xff]
    %v301 = vld [vmem:[%s274 + $0xb0] sm:$0xf]
    %v329 = vunpack.c.l.b16 %v275
    %v330 = vunpack.c.h.b16 %v275
    %v331 = vunpack.c.l.b16 %v276
    %v332 = vunpack.c.h.b16 %v276
    %v333 = vunpack.c.l.b16 %v277
    %v334 = vunpack.c.l.b16 %v278
    %v335 = vunpack.c.h.b16 %v278
    %v336 = vunpack.c.l.b16 %v279
    %v337 = vunpack.c.h.b16 %v279
    %v338 = vunpack.c.l.b16 %v280
    %v339 = vunpack.c.l.b16 %v281
    %v340 = vunpack.c.h.b16 %v281
    %v341 = vunpack.c.l.b16 %v282
    %v342 = vunpack.c.h.b16 %v282
    %v343 = vunpack.c.l.b16 %v283
    %v344 = vunpack.c.l.b16 %v284
    %v345 = vunpack.c.h.b16 %v284
    %v346 = vunpack.c.l.b16 %v285
    %v347 = vunpack.c.h.b16 %v285
    %v348 = vunpack.c.l.b16 %v286
    %v349 = vunpack.c.l.b16 %v287
    %v350 = vunpack.c.h.b16 %v287
    %v351 = vunpack.c.l.b16 %v288
    %v352 = vunpack.c.h.b16 %v288
    %v353 = vunpack.c.l.b16 %v289
    %v354 = vunpack.c.l.b16 %v290
    %v355 = vunpack.c.h.b16 %v290
    %v356 = vunpack.c.l.b16 %v291
    %v357 = vunpack.c.h.b16 %v291
    %v358 = vunpack.c.l.b16 %v292
    %v359 = vunpack.c.l.b16 %v293
    %v360 = vunpack.c.h.b16 %v293
    %v361 = vunpack.c.l.b16 %v294
    %v362 = vunpack.c.h.b16 %v294
    %v363 = vunpack.c.l.b16 %v295
    %v364 = vunpack.c.l.b16 %v296
    %v365 = vunpack.c.h.b16 %v296
    %v366 = vunpack.c.l.b16 %v297
    %v367 = vunpack.c.h.b16 %v297
    %v368 = vunpack.c.l.b16 %v298
    %v369 = vunpack.c.l.b16 %v299
    %v370 = vunpack.c.h.b16 %v299
    %v371 = vunpack.c.l.b16 %v300
    %v372 = vunpack.c.h.b16 %v300
    %v373 = vunpack.c.l.b16 %v301
    %v374 = vpack.c.b16 %v334, %v329
    %v375 = vpack.c.b16 %v335, %v330
    %v376 = vpack.c.b16 %v336, %v331
    %v377 = vpack.c.b16 %v337, %v332
    %v378 = vpack.c.b16 %v338, %v333
    %v379 = vpack.c.b16 %v344, %v339
    %v380 = vpack.c.b16 %v345, %v340
    %v381 = vpack.c.b16 %v346, %v341
    %v382 = vpack.c.b16 %v347, %v342
    %v383 = vpack.c.b16 %v348, %v343
    %v384 = vpack.c.b16 %v354, %v349
    %v385 = vpack.c.b16 %v355, %v350
    %v386 = vpack.c.b16 %v356, %v351
    %v387 = vpack.c.b16 %v357, %v352
    %v388 = vpack.c.b16 %v358, %v353
    %v389 = vpack.c.b16 %v364, %v359
    %v390 = vpack.c.b16 %v365, %v360
    %v391 = vpack.c.b16 %v366, %v361
    %v392 = vpack.c.b16 %v367, %v362
    %v393 = vpack.c.b16 %v368, %v363
    %v394 = vpack.c.b16 %v369, %v369
    %v395 = vpack.c.b16 %v370, %v370
    %v396 = vpack.c.b16 %v371, %v371
    %v397 = vpack.c.b16 %v372, %v372
    %v398 = vpack.c.b16 %v373, %v373
    %vm419 = vcmask 588800
    %v421 = vsel %vm419, %v271, 0
    %v424 = vsel %vm419, %v272, 0
    %v427 = vsel %vm419, %v273, 0
    %vm429 = vcmask 1043456
    %v431 = vsel %vm429, %v394, 0
    %v434 = vsel %vm429, %v395, 0
    %v437 = vsel %vm429, %v396, 0
    %v440 = vsel %vm429, %v397, 0
    %v443 = vsel %vm429, %v398, 0
    %445 = vmatpush.bf16.msra.mxu0 0
    %446 = vmatpush.bf16.msra.mxu0 0
    %447 = vmatpush.bf16.msra.mxu0 0
    %448 = vmatpush.bf16.msra.mxu0 %v431
    %449 = vmatpush.bf16.msra.mxu0 %v389
    %450 = vmatpush.bf16.msra.mxu0 %v384
    %451 = vmatpush.bf16.msra.mxu0 %v379
    %452 = vmatpush.bf16.msra.mxu0 %v374
    %453 = vmatmul.bf16.gmra.mxu0 %v421
    %v454 = vpop.f32.mrf.mxu0
    %v455 = vadd.f32 0.0, %v454
    %v456 = vpop.f32.mrf.mxu0
    %v457 = vadd.f32 0.0, %v456
    %458 = vmatmul.bf16.gmra.mxu0 %v424
    %v459 = vpop.f32.mrf.mxu0
    %v460 = vadd.f32 0.0, %v459
    %v461 = vpop.f32.mrf.mxu0
    %v462 = vadd.f32 0.0, %v461
    %463 = vmatmul.bf16.gmra.mxu0 %v427
    %v464 = vpop.f32.mrf.mxu0
    %v465 = vadd.f32 0.0, %v464
    %v466 = vpop.f32.mrf.mxu0
    %467 = vdwg.mxu0
    %468 = vmatpush.bf16.msra.mxu0 0
    %469 = vmatpush.bf16.msra.mxu0 0
    %470 = vmatpush.bf16.msra.mxu0 0
    %471 = vmatpush.bf16.msra.mxu0 %v434
    %472 = vmatpush.bf16.msra.mxu0 %v390
    %473 = vmatpush.bf16.msra.mxu0 %v385
    %474 = vmatpush.bf16.msra.mxu0 %v380
    %475 = vmatpush.bf16.msra.mxu0 %v375
    %476 = vmatmul.bf16.gmra.mxu0 %v421
    %v477 = vpop.f32.mrf.mxu0
    %v478 = vadd.f32 0.0, %v477
    %v479 = vpop.f32.mrf.mxu0
    %v480 = vadd.f32 0.0, %v479
    %481 = vmatmul.bf16.gmra.mxu0 %v424
    %v482 = vpop.f32.mrf.mxu0
    %v483 = vadd.f32 0.0, %v482
    %v484 = vpop.f32.mrf.mxu0
    %v485 = vadd.f32 0.0, %v484
    %486 = vmatmul.bf16.gmra.mxu0 %v427
    %v487 = vpop.f32.mrf.mxu0
    %v488 = vadd.f32 0.0, %v487
    %v489 = vpop.f32.mrf.mxu0
    %490 = vdwg.mxu0
    %491 = vmatpush.bf16.msra.mxu0 0
    %492 = vmatpush.bf16.msra.mxu0 0
    %493 = vmatpush.bf16.msra.mxu0 0
    %494 = vmatpush.bf16.msra.mxu0 %v437
    %495 = vmatpush.bf16.msra.mxu0 %v391
    %496 = vmatpush.bf16.msra.mxu0 %v386
    %497 = vmatpush.bf16.msra.mxu0 %v381
    %498 = vmatpush.bf16.msra.mxu0 %v376
    %499 = vmatmul.bf16.gmra.mxu0 %v421
    %v500 = vpop.f32.mrf.mxu0
    %v501 = vadd.f32 0.0, %v500
    %v502 = vpop.f32.mrf.mxu0
    %v503 = vadd.f32 0.0, %v502
    %504 = vmatmul.bf16.gmra.mxu0 %v424
    %v505 = vpop.f32.mrf.mxu0
    %v506 = vadd.f32 0.0, %v505
    %v507 = vpop.f32.mrf.mxu0
    %v508 = vadd.f32 0.0, %v507
    %509 = vmatmul.bf16.gmra.mxu0 %v427
    %v510 = vpop.f32.mrf.mxu0
    %v511 = vadd.f32 0.0, %v510
    %v512 = vpop.f32.mrf.mxu0
    %513 = vdwg.mxu0
    %514 = vmatpush.bf16.msra.mxu0 0
    %515 = vmatpush.bf16.msra.mxu0 0
    %516 = vmatpush.bf16.msra.mxu0 0
    %517 = vmatpush.bf16.msra.mxu0 %v440
    %518 = vmatpush.bf16.msra.mxu0 %v392
    %519 = vmatpush.bf16.msra.mxu0 %v387
    %520 = vmatpush.bf16.msra.mxu0 %v382
    %521 = vmatpush.bf16.msra.mxu0 %v377
    %522 = vmatmul.bf16.gmra.mxu0 %v421
    %v523 = vpop.f32.mrf.mxu0
    %v524 = vadd.f32 0.0, %v523
    %v525 = vpop.f32.mrf.mxu0
    %v526 = vadd.f32 0.0, %v525
    %527 = vmatmul.bf16.gmra.mxu0 %v424
    %v528 = vpop.f32.mrf.mxu0
    %v529 = vadd.f32 0.0, %v528
    %v530 = vpop.f32.mrf.mxu0
    %v531 = vadd.f32 0.0, %v530
    %532 = vmatmul.bf16.gmra.mxu0 %v427
    %v533 = vpop.f32.mrf.mxu0
    %v534 = vadd.f32 0.0, %v533
    %v535 = vpop.f32.mrf.mxu0
    %536 = vdwg.mxu0
    %537 = vmatpush.bf16.msra.mxu0 0
    %538 = vmatpush.bf16.msra.mxu0 0
    %539 = vmatpush.bf16.msra.mxu0 0
    %540 = vmatpush.bf16.msra.mxu0 %v443
    %541 = vmatpush.bf16.msra.mxu0 %v393
    %542 = vmatpush.bf16.msra.mxu0 %v388
    %543 = vmatpush.bf16.msra.mxu0 %v383
    %544 = vmatpush.bf16.msra.mxu0 %v378
    %545 = vmatmul.bf16.gmra.mxu0 %v421
    %v546 = vpop.f32.mrf.mxu0
    %v547 = vadd.f32 0.0, %v546
    %v548 = vpop.f32.mrf.mxu0
    %v549 = vadd.f32 0.0, %v548
    %550 = vmatmul.bf16.gmra.mxu0 %v424
    %v551 = vpop.f32.mrf.mxu0
    %v552 = vadd.f32 0.0, %v551
    %v553 = vpop.f32.mrf.mxu0
    %v554 = vadd.f32 0.0, %v553
    %555 = vmatmul.bf16.gmra.mxu0 %v427
    %v556 = vpop.f32.mrf.mxu0
    %v557 = vadd.f32 0.0, %v556
    %v558 = vpop.f32.mrf.mxu0
    %559 = vdwg.mxu0
    %v587 = vunpack.c.l.b16 %v201
    %v588 = vunpack.c.h.b16 %v201
    %v589 = vunpack.c.l.b16 %v202
    %v590 = vunpack.c.h.b16 %v202
    %v591 = vunpack.c.l.b16 %v203
    %v592 = vunpack.c.l.b16 %v204
    %v593 = vunpack.c.h.b16 %v204
    %v594 = vunpack.c.l.b16 %v205
    %v595 = vunpack.c.h.b16 %v205
    %v596 = vunpack.c.l.b16 %v206
    %v597 = vunpack.c.l.b16 %v207
    %v598 = vunpack.c.h.b16 %v207
    %v599 = vunpack.c.l.b16 %v208
    %v600 = vunpack.c.h.b16 %v208
    %v601 = vunpack.c.l.b16 %v209
    %v602 = vunpack.c.l.b16 %v210
    %v603 = vunpack.c.h.b16 %v210
    %v604 = vunpack.c.l.b16 %v211
    %v605 = vunpack.c.h.b16 %v211
    %v606 = vunpack.c.l.b16 %v212
    %v607 = vunpack.c.l.b16 %v213
    %v608 = vunpack.c.h.b16 %v213
    %v609 = vunpack.c.l.b16 %v214
    %v610 = vunpack.c.h.b16 %v214
    %v611 = vunpack.c.l.b16 %v215
    %v612 = vunpack.c.l.b16 %v216
    %v613 = vunpack.c.h.b16 %v216
    %v614 = vunpack.c.l.b16 %v217
    %v615 = vunpack.c.h.b16 %v217
    %v616 = vunpack.c.l.b16 %v218
    %v617 = vunpack.c.l.b16 %v219
    %v618 = vunpack.c.h.b16 %v219
    %v619 = vunpack.c.l.b16 %v220
    %v620 = vunpack.c.h.b16 %v220
    %v621 = vunpack.c.l.b16 %v221
    %v622 = vunpack.c.l.b16 %v222
    %v623 = vunpack.c.h.b16 %v222
    %v624 = vunpack.c.l.b16 %v223
    %v625 = vunpack.c.h.b16 %v223
    %v626 = vunpack.c.l.b16 %v224
    %v627 = vunpack.c.l.b16 %v225
    %v628 = vunpack.c.h.b16 %v225
    %v629 = vunpack.c.l.b16 %v226
    %v630 = vunpack.c.h.b16 %v226
    %v631 = vunpack.c.l.b16 %v227
    %v632 = vpack.c.b16 %v592, %v587
    %v633 = vpack.c.b16 %v593, %v588
    %v634 = vpack.c.b16 %v594, %v589
    %v635 = vpack.c.b16 %v595, %v590
    %v636 = vpack.c.b16 %v596, %v591
    %v637 = vpack.c.b16 %v602, %v597
    %v638 = vpack.c.b16 %v603, %v598
    %v639 = vpack.c.b16 %v604, %v599
    %v640 = vpack.c.b16 %v605, %v600
    %v641 = vpack.c.b16 %v606, %v601
    %v642 = vpack.c.b16 %v612, %v607
    %v643 = vpack.c.b16 %v613, %v608
    %v644 = vpack.c.b16 %v614, %v609
    %v645 = vpack.c.b16 %v615, %v610
    %v646 = vpack.c.b16 %v616, %v611
    %v647 = vpack.c.b16 %v622, %v617
    %v648 = vpack.c.b16 %v623, %v618
    %v649 = vpack.c.b16 %v624, %v619
    %v650 = vpack.c.b16 %v625, %v620
    %v651 = vpack.c.b16 %v626, %v621
    %v652 = vpack.c.b16 %v627, %v627
    %v653 = vpack.c.b16 %v628, %v628
    %v654 = vpack.c.b16 %v629, %v629
    %v655 = vpack.c.b16 %v630, %v630
    %v656 = vpack.c.b16 %v631, %v631
    %v678 = vsel %vm419, %v198, 0
    %v681 = vsel %vm419, %v199, 0
    %v684 = vsel %vm419, %v200, 0
    %v687 = vsel %vm429, %v652, 0
    %v690 = vsel %vm429, %v653, 0
    %v693 = vsel %vm429, %v654, 0
    %v696 = vsel %vm429, %v655, 0
    %v699 = vsel %vm429, %v656, 0
    %701 = vmatpush.bf16.msra.mxu0 0
    %702 = vmatpush.bf16.msra.mxu0 0
    %703 = vmatpush.bf16.msra.mxu0 0
    %704 = vmatpush.bf16.msra.mxu0 %v687
    %705 = vmatpush.bf16.msra.mxu0 %v647
    %706 = vmatpush.bf16.msra.mxu0 %v642
    %707 = vmatpush.bf16.msra.mxu0 %v637
    %708 = vmatpush.bf16.msra.mxu0 %v632
    %709 = vmatmul.bf16.gmra.mxu0 %v678
    %v710 = vpop.f32.mrf.mxu0
    %v711 = vadd.f32 %v455, %v710
    %v712 = vpop.f32.mrf.mxu0
    %v713 = vadd.f32 %v457, %v712
    %714 = vmatmul.bf16.gmra.mxu0 %v681
    %v715 = vpop.f32.mrf.mxu0
    %v716 = vadd.f32 %v460, %v715
    %v717 = vpop.f32.mrf.mxu0
    %v718 = vadd.f32 %v462, %v717
    %719 = vmatmul.bf16.gmra.mxu0 %v684
    %v720 = vpop.f32.mrf.mxu0
    %v721 = vadd.f32 %v465, %v720
    %v722 = vpop.f32.mrf.mxu0
    %723 = vdwg.mxu0
    %724 = vmatpush.bf16.msra.mxu0 0
    %725 = vmatpush.bf16.msra.mxu0 0
    %726 = vmatpush.bf16.msra.mxu0 0
    %727 = vmatpush.bf16.msra.mxu0 %v690
    %728 = vmatpush.bf16.msra.mxu0 %v648
    %729 = vmatpush.bf16.msra.mxu0 %v643
    %730 = vmatpush.bf16.msra.mxu0 %v638
    %731 = vmatpush.bf16.msra.mxu0 %v633
    %732 = vmatmul.bf16.gmra.mxu0 %v678
    %v733 = vpop.f32.mrf.mxu0
    %v734 = vadd.f32 %v478, %v733
    %v735 = vpop.f32.mrf.mxu0
    %v736 = vadd.f32 %v480, %v735
    %737 = vmatmul.bf16.gmra.mxu0 %v681
    %v738 = vpop.f32.mrf.mxu0
    %v739 = vadd.f32 %v483, %v738
    %v740 = vpop.f32.mrf.mxu0
    %v741 = vadd.f32 %v485, %v740
    %742 = vmatmul.bf16.gmra.mxu0 %v684
    %v743 = vpop.f32.mrf.mxu0
    %v744 = vadd.f32 %v488, %v743
    %v745 = vpop.f32.mrf.mxu0
    %746 = vdwg.mxu0
    %747 = vmatpush.bf16.msra.mxu0 0
    %748 = vmatpush.bf16.msra.mxu0 0
    %749 = vmatpush.bf16.msra.mxu0 0
    %750 = vmatpush.bf16.msra.mxu0 %v693
    %751 = vmatpush.bf16.msra.mxu0 %v649
    %752 = vmatpush.bf16.msra.mxu0 %v644
    %753 = vmatpush.bf16.msra.mxu0 %v639
    %754 = vmatpush.bf16.msra.mxu0 %v634
    %755 = vmatmul.bf16.gmra.mxu0 %v678
    %v756 = vpop.f32.mrf.mxu0
    %v757 = vadd.f32 %v501, %v756
    %v758 = vpop.f32.mrf.mxu0
    %v759 = vadd.f32 %v503, %v758
    %760 = vmatmul.bf16.gmra.mxu0 %v681
    %v761 = vpop.f32.mrf.mxu0
    %v762 = vadd.f32 %v506, %v761
    %v763 = vpop.f32.mrf.mxu0
    %v764 = vadd.f32 %v508, %v763
    %765 = vmatmul.bf16.gmra.mxu0 %v684
    %v766 = vpop.f32.mrf.mxu0
    %v767 = vadd.f32 %v511, %v766
    %v768 = vpop.f32.mrf.mxu0
    %769 = vdwg.mxu0
    %770 = vmatpush.bf16.msra.mxu0 0
    %771 = vmatpush.bf16.msra.mxu0 0
    %772 = vmatpush.bf16.msra.mxu0 0
    %773 = vmatpush.bf16.msra.mxu0 %v696
    %774 = vmatpush.bf16.msra.mxu0 %v650
    %775 = vmatpush.bf16.msra.mxu0 %v645
    %776 = vmatpush.bf16.msra.mxu0 %v640
    %777 = vmatpush.bf16.msra.mxu0 %v635
    %778 = vmatmul.bf16.gmra.mxu0 %v678
    %v779 = vpop.f32.mrf.mxu0
    %v780 = vadd.f32 %v524, %v779
    %v781 = vpop.f32.mrf.mxu0
    %v782 = vadd.f32 %v526, %v781
    %783 = vmatmul.bf16.gmra.mxu0 %v681
    %v784 = vpop.f32.mrf.mxu0
    %v785 = vadd.f32 %v529, %v784
    %v786 = vpop.f32.mrf.mxu0
    %v787 = vadd.f32 %v531, %v786
    %788 = vmatmul.bf16.gmra.mxu0 %v684
    %v789 = vpop.f32.mrf.mxu0
    %v790 = vadd.f32 %v534, %v789
    %v791 = vpop.f32.mrf.mxu0
    %792 = vdwg.mxu0
    %793 = vmatpush.bf16.msra.mxu0 0
    %794 = vmatpush.bf16.msra.mxu0 0
    %795 = vmatpush.bf16.msra.mxu0 0
    %796 = vmatpush.bf16.msra.mxu0 %v699
    %797 = vmatpush.bf16.msra.mxu0 %v651
    %798 = vmatpush.bf16.msra.mxu0 %v646
    %799 = vmatpush.bf16.msra.mxu0 %v641
    %800 = vmatpush.bf16.msra.mxu0 %v636
    %801 = vmatmul.bf16.gmra.mxu0 %v678
    %v802 = vpop.f32.mrf.mxu0
    %v803 = vadd.f32 %v547, %v802
    %v804 = vpop.f32.mrf.mxu0
    %v805 = vadd.f32 %v549, %v804
    %806 = vmatmul.bf16.gmra.mxu0 %v681
    %v807 = vpop.f32.mrf.mxu0
    %v808 = vadd.f32 %v552, %v807
    %v809 = vpop.f32.mrf.mxu0
    %v810 = vadd.f32 %v554, %v809
    %811 = vmatmul.bf16.gmra.mxu0 %v684
    %v812 = vpop.f32.mrf.mxu0
    %v813 = vadd.f32 %v557, %v812
    %v814 = vpop.f32.mrf.mxu0
    %815 = vdwg.mxu0
    %v816 = vld [vmem:[%s0 + $0x2] sm:$0xff]
    %v817 = vld [vmem:[%s0 + $0xa] sm:$0xff]
    %v818 = vld [vmem:[%s0 + $0x12] sm:$0xf]
    %v819 = vld [vmem:[%s0 + $0x1a] sm:$0xff]
    %v820 = vld [vmem:[%s0 + $0x22] sm:$0xff]
    %v821 = vld [vmem:[%s0 + $0x2a] sm:$0xf]
    %v828 = vrot.slane %v816, 4
    %v829 = vrot.slane %v817, 4
    %v830 = vrot.slane %v819, 4
    %v831 = vrot.slane %v820, 4
    %832 = vst [vmem:[#allocation1] ss:$2 sm:$0xff] %v816
    %s833 = scalar_lea.vmem [#allocation1], 1
    %834 = vst [vmem:[%s833] ss:$2 sm:$0xff] %v828
    %s835 = scalar_lea.vmem [#allocation1], 16
    %836 = vst [vmem:[%s835] ss:$2 sm:$0xff] %v817
    %s837 = scalar_lea.vmem [#allocation1], 17
    %838 = vst [vmem:[%s837] ss:$2 sm:$0xff] %v829
    %s839 = scalar_lea.vmem [#allocation1], 32
    %840 = vst [vmem:[%s839] ss:$2 sm:$0xff] %v818
    %s841 = scalar_lea.vmem [#allocation1], 33
    %842 = vst [vmem:[%s841] ss:$2 sm:$0xff] %v819
    %s843 = scalar_lea.vmem [#allocation1], 48
    %844 = vst [vmem:[%s843] ss:$2 sm:$0xff] %v830
    %s845 = scalar_lea.vmem [#allocation1], 49
    %846 = vst [vmem:[%s845] ss:$2 sm:$0xff] %v820
    %v847 = vld.sshfl [vmem:[#allocation1] sm:$0xff pattern:$0x75316420]
    %v848 = vld.sshfl [vmem:[#allocation1 + $0x10] sm:$0xff pattern:$0x75316420]
    %v849 = vld.sshfl [vmem:[#allocation1 + $0x20] sm:$0xff pattern:$0x75316420]
    %v850 = vld.sshfl [vmem:[#allocation1 + $0x30] sm:$0xff pattern:$0x75316420]
    %851 = vst [vmem:[#allocation1] ss:$2 sm:$0xff] %v831
    %852 = vst [vmem:[%s833] ss:$2 sm:$0xff] %v821
    %v853 = vld.sshfl [vmem:[#allocation1] sm:$0xff pattern:$0x75316420]
    %v859 = vpack.c.bf16 %v848, %v847
    %v860 = vpack.c.bf16 %v850, %v849
    %v861 = vpack.c.bf16 %v853, %v853
    %s862 = scalar_lea.vmem %s1, 360
    %v863 = vld [vmem:[%s862] sm:$0xff]
    %v864 = vld [vmem:[%s862 + $0x8] sm:$0xff]
    %v865 = vld [vmem:[%s862 + $0x10] sm:$0xf]
    %v866 = vld [vmem:[%s862 + $0x14] sm:$0xff]
    %v867 = vld [vmem:[%s862 + $0x1c] sm:$0xff]
    %v868 = vld [vmem:[%s862 + $0x24] sm:$0xf]
    %v869 = vld [vmem:[%s862 + $0x28] sm:$0xff]
    %v870 = vld [vmem:[%s862 + $0x30] sm:$0xff]
    %v871 = vld [vmem:[%s862 + $0x38] sm:$0xf]
    %v872 = vld [vmem:[%s862 + $0x3c] sm:$0xff]
    %v873 = vld [vmem:[%s862 + $0x44] sm:$0xff]
    %v874 = vld [vmem:[%s862 + $0x4c] sm:$0xf]
    %v875 = vld [vmem:[%s862 + $0x50] sm:$0xff]
    %v876 = vld [vmem:[%s862 + $0x58] sm:$0xff]
    %v877 = vld [vmem:[%s862 + $0x60] sm:$0xf]
    %v878 = vld [vmem:[%s862 + $0x64] sm:$0xff]
    %v879 = vld [vmem:[%s862 + $0x6c] sm:$0xff]
    %v880 = vld [vmem:[%s862 + $0x74] sm:$0xf]
    %v881 = vld [vmem:[%s862 + $0x78] sm:$0xff]
    %v882 = vld [vmem:[%s862 + $0x80] sm:$0xff]
    %v883 = vld [vmem:[%s862 + $0x88] sm:$0xf]
    %v884 = vld [vmem:[%s862 + $0x8c] sm:$0xff]
    %v885 = vld [vmem:[%s862 + $0x94] sm:$0xff]
    %v886 = vld [vmem:[%s862 + $0x9c] sm:$0xf]
    %v887 = vld [vmem:[%s862 + $0xa0] sm:$0xff]
    %v888 = vld [vmem:[%s862 + $0xa8] sm:$0xff]
    %v889 = vld [vmem:[%s862 + $0xb0] sm:$0xf]
    %v917 = vunpack.c.l.b16 %v863
    %v918 = vunpack.c.h.b16 %v863
    %v919 = vunpack.c.l.b16 %v864
    %v920 = vunpack.c.h.b16 %v864
    %v921 = vunpack.c.l.b16 %v865
    %v922 = vunpack.c.l.b16 %v866
    %v923 = vunpack.c.h.b16 %v866
    %v924 = vunpack.c.l.b16 %v867
    %v925 = vunpack.c.h.b16 %v867
    %v926 = vunpack.c.l.b16 %v868
    %v927 = vunpack.c.l.b16 %v869
    %v928 = vunpack.c.h.b16 %v869
    %v929 = vunpack.c.l.b16 %v870
    %v930 = vunpack.c.h.b16 %v870
    %v931 = vunpack.c.l.b16 %v871
    %v932 = vunpack.c.l.b16 %v872
    %v933 = vunpack.c.h.b16 %v872
    %v934 = vunpack.c.l.b16 %v873
    %v935 = vunpack.c.h.b16 %v873
    %v936 = vunpack.c.l.b16 %v874
    %v937 = vunpack.c.l.b16 %v875
    %v938 = vunpack.c.h.b16 %v875
    %v939 = vunpack.c.l.b16 %v876
    %v940 = vunpack.c.h.b16 %v876
    %v941 = vunpack.c.l.b16 %v877
    %v942 = vunpack.c.l.b16 %v878
    %v943 = vunpack.c.h.b16 %v878
    %v944 = vunpack.c.l.b16 %v879
    %v945 = vunpack.c.h.b16 %v879
    %v946 = vunpack.c.l.b16 %v880
    %v947 = vunpack.c.l.b16 %v881
    %v948 = vunpack.c.h.b16 %v881
    %v949 = vunpack.c.l.b16 %v882
    %v950 = vunpack.c.h.b16 %v882
    %v951 = vunpack.c.l.b16 %v883
    %v952 = vunpack.c.l.b16 %v884
    %v953 = vunpack.c.h.b16 %v884
    %v954 = vunpack.c.l.b16 %v885
    %v955 = vunpack.c.h.b16 %v885
    %v956 = vunpack.c.l.b16 %v886
    %v957 = vunpack.c.l.b16 %v887
    %v958 = vunpack.c.h.b16 %v887
    %v959 = vunpack.c.l.b16 %v888
    %v960 = vunpack.c.h.b16 %v888
    %v961 = vunpack.c.l.b16 %v889
    %v962 = vpack.c.b16 %v922, %v917
    %v963 = vpack.c.b16 %v923, %v918
    %v964 = vpack.c.b16 %v924, %v919
    %v965 = vpack.c.b16 %v925, %v920
    %v966 = vpack.c.b16 %v926, %v921
    %v967 = vpack.c.b16 %v932, %v927
    %v968 = vpack.c.b16 %v933, %v928
    %v969 = vpack.c.b16 %v934, %v929
    %v970 = vpack.c.b16 %v935, %v930
    %v971 = vpack.c.b16 %v936, %v931
    %v972 = vpack.c.b16 %v942, %v937
    %v973 = vpack.c.b16 %v943, %v938
    %v974 = vpack.c.b16 %v944, %v939
    %v975 = vpack.c.b16 %v945, %v940
    %v976 = vpack.c.b16 %v946, %v941
    %v977 = vpack.c.b16 %v952, %v947
    %v978 = vpack.c.b16 %v953, %v948
    %v979 = vpack.c.b16 %v954, %v949
    %v980 = vpack.c.b16 %v955, %v950
    %v981 = vpack.c.b16 %v956, %v951
    %v982 = vpack.c.b16 %v957, %v957
    %v983 = vpack.c.b16 %v958, %v958
    %v984 = vpack.c.b16 %v959, %v959
    %v985 = vpack.c.b16 %v960, %v960
    %v986 = vpack.c.b16 %v961, %v961
    %v1008 = vsel %vm419, %v859, 0
    %v1011 = vsel %vm419, %v860, 0
    %v1014 = vsel %vm419, %v861, 0
    %v1017 = vsel %vm429, %v982, 0
    %v1020 = vsel %vm429, %v983, 0
    %v1023 = vsel %vm429, %v984, 0
    %v1026 = vsel %vm429, %v985, 0
    %v1029 = vsel %vm429, %v986, 0
    %1031 = vmatpush.bf16.msra.mxu0 0
    %1032 = vmatpush.bf16.msra.mxu0 0
    %1033 = vmatpush.bf16.msra.mxu0 0
    %1034 = vmatpush.bf16.msra.mxu0 %v1017
    %1035 = vmatpush.bf16.msra.mxu0 %v977
    %1036 = vmatpush.bf16.msra.mxu0 %v972
    %1037 = vmatpush.bf16.msra.mxu0 %v967
    %1038 = vmatpush.bf16.msra.mxu0 %v962
    %1039 = vmatmul.bf16.gmra.mxu0 %v1008
    %v1040 = vpop.f32.mrf.mxu0
    %v1041 = vadd.f32 0.0, %v1040
    %v1042 = vpop.f32.mrf.mxu0
    %v1043 = vadd.f32 0.0, %v1042
    %1044 = vmatmul.bf16.gmra.mxu0 %v1011
    %v1045 = vpop.f32.mrf.mxu0
    %v1046 = vadd.f32 0.0, %v1045
    %v1047 = vpop.f32.mrf.mxu0
    %v1048 = vadd.f32 0.0, %v1047
    %1049 = vmatmul.bf16.gmra.mxu0 %v1014
    %v1050 = vpop.f32.mrf.mxu0
    %v1051 = vadd.f32 0.0, %v1050
    %v1052 = vpop.f32.mrf.mxu0
    %1053 = vdwg.mxu0
    %1054 = vmatpush.bf16.msra.mxu0 0
    %1055 = vmatpush.bf16.msra.mxu0 0
    %1056 = vmatpush.bf16.msra.mxu0 0
    %1057 = vmatpush.bf16.msra.mxu0 %v1020
    %1058 = vmatpush.bf16.msra.mxu0 %v978
    %1059 = vmatpush.bf16.msra.mxu0 %v973
    %1060 = vmatpush.bf16.msra.mxu0 %v968
    %1061 = vmatpush.bf16.msra.mxu0 %v963
    %1062 = vmatmul.bf16.gmra.mxu0 %v1008
    %v1063 = vpop.f32.mrf.mxu0
    %v1064 = vadd.f32 0.0, %v1063
    %v1065 = vpop.f32.mrf.mxu0
    %v1066 = vadd.f32 0.0, %v1065
    %1067 = vmatmul.bf16.gmra.mxu0 %v1011
    %v1068 = vpop.f32.mrf.mxu0
    %v1069 = vadd.f32 0.0, %v1068
    %v1070 = vpop.f32.mrf.mxu0
    %v1071 = vadd.f32 0.0, %v1070
    %1072 = vmatmul.bf16.gmra.mxu0 %v1014
    %v1073 = vpop.f32.mrf.mxu0
    %v1074 = vadd.f32 0.0, %v1073
    %v1075 = vpop.f32.mrf.mxu0
    %1076 = vdwg.mxu0
    %1077 = vmatpush.bf16.msra.mxu0 0
    %1078 = vmatpush.bf16.msra.mxu0 0
    %1079 = vmatpush.bf16.msra.mxu0 0
    %1080 = vmatpush.bf16.msra.mxu0 %v1023
    %1081 = vmatpush.bf16.msra.mxu0 %v979
    %1082 = vmatpush.bf16.msra.mxu0 %v974
    %1083 = vmatpush.bf16.msra.mxu0 %v969
    %1084 = vmatpush.bf16.msra.mxu0 %v964
    %1085 = vmatmul.bf16.gmra.mxu0 %v1008
    %v1086 = vpop.f32.mrf.mxu0
    %v1087 = vadd.f32 0.0, %v1086
    %v1088 = vpop.f32.mrf.mxu0
    %v1089 = vadd.f32 0.0, %v1088
    %1090 = vmatmul.bf16.gmra.mxu0 %v1011
    %v1091 = vpop.f32.mrf.mxu0
    %v1092 = vadd.f32 0.0, %v1091
    %v1093 = vpop.f32.mrf.mxu0
    %v1094 = vadd.f32 0.0, %v1093
    %1095 = vmatmul.bf16.gmra.mxu0 %v1014
    %v1096 = vpop.f32.mrf.mxu0
    %v1097 = vadd.f32 0.0, %v1096
    %v1098 = vpop.f32.mrf.mxu0
    %1099 = vdwg.mxu0
    %1100 = vmatpush.bf16.msra.mxu0 0
    %1101 = vmatpush.bf16.msra.mxu0 0
    %1102 = vmatpush.bf16.msra.mxu0 0
    %1103 = vmatpush.bf16.msra.mxu0 %v1026
    %1104 = vmatpush.bf16.msra.mxu0 %v980
    %1105 = vmatpush.bf16.msra.mxu0 %v975
    %1106 = vmatpush.bf16.msra.mxu0 %v970
    %1107 = vmatpush.bf16.msra.mxu0 %v965
    %1108 = vmatmul.bf16.gmra.mxu0 %v1008
    %v1109 = vpop.f32.mrf.mxu0
    %v1110 = vadd.f32 0.0, %v1109
    %v1111 = vpop.f32.mrf.mxu0
    %v1112 = vadd.f32 0.0, %v1111
    %1113 = vmatmul.bf16.gmra.mxu0 %v1011
    %v1114 = vpop.f32.mrf.mxu0
    %v1115 = vadd.f32 0.0, %v1114
    %v1116 = vpop.f32.mrf.mxu0
    %v1117 = vadd.f32 0.0, %v1116
    %1118 = vmatmul.bf16.gmra.mxu0 %v1014
    %v1119 = vpop.f32.mrf.mxu0
    %v1120 = vadd.f32 0.0, %v1119
    %v1121 = vpop.f32.mrf.mxu0
    %1122 = vdwg.mxu0
    %1123 = vmatpush.bf16.msra.mxu0 0
    %1124 = vmatpush.bf16.msra.mxu0 0
    %1125 = vmatpush.bf16.msra.mxu0 0
    %1126 = vmatpush.bf16.msra.mxu0 %v1029
    %1127 = vmatpush.bf16.msra.mxu0 %v981
    %1128 = vmatpush.bf16.msra.mxu0 %v976
    %1129 = vmatpush.bf16.msra.mxu0 %v971
    %1130 = vmatpush.bf16.msra.mxu0 %v966
    %1131 = vmatmul.bf16.gmra.mxu0 %v1008
    %v1132 = vpop.f32.mrf.mxu0
    %v1133 = vadd.f32 0.0, %v1132
    %v1134 = vpop.f32.mrf.mxu0
    %v1135 = vadd.f32 0.0, %v1134
    %1136 = vmatmul.bf16.gmra.mxu0 %v1011
    %v1137 = vpop.f32.mrf.mxu0
    %v1138 = vadd.f32 0.0, %v1137
    %v1139 = vpop.f32.mrf.mxu0
    %v1140 = vadd.f32 0.0, %v1139
    %1141 = vmatmul.bf16.gmra.mxu0 %v1014
    %v1142 = vpop.f32.mrf.mxu0
    %v1143 = vadd.f32 0.0, %v1142
    %v1144 = vpop.f32.mrf.mxu0
    %1145 = vdwg.mxu0
    %v1146 = vadd.f32 %v711, %v1041
    %v1147 = vadd.f32 %v734, %v1064
    %v1148 = vadd.f32 %v757, %v1087
    %v1149 = vadd.f32 %v780, %v1110
    %v1150 = vadd.f32 %v803, %v1133
    %v1151 = vadd.f32 %v713, %v1043
    %v1152 = vadd.f32 %v736, %v1066
    %v1153 = vadd.f32 %v759, %v1089
    %v1154 = vadd.f32 %v782, %v1112
    %v1155 = vadd.f32 %v805, %v1135
    %v1156 = vadd.f32 %v716, %v1046
    %v1157 = vadd.f32 %v739, %v1069
    %v1158 = vadd.f32 %v762, %v1092
    %v1159 = vadd.f32 %v785, %v1115
    %v1160 = vadd.f32 %v808, %v1138
    %v1161 = vadd.f32 %v718, %v1048
    %v1162 = vadd.f32 %v741, %v1071
    %v1163 = vadd.f32 %v764, %v1094
    %v1164 = vadd.f32 %v787, %v1117
    %v1165 = vadd.f32 %v810, %v1140
    %v1166 = vadd.f32 %v721, %v1051
    %v1167 = vadd.f32 %v744, %v1074
    %v1168 = vadd.f32 %v767, %v1097
    %v1169 = vadd.f32 %v790, %v1120
    %v1170 = vadd.f32 %v813, %v1143
    %v1171 = vld [vmem:[%s0 + $0x3] sm:$0xff]
    %v1172 = vld [vmem:[%s0 + $0xb] sm:$0xff]
    %v1173 = vld [vmem:[%s0 + $0x13] sm:$0xf]
    %v1174 = vld [vmem:[%s0 + $0x1b] sm:$0xff]
    %v1175 = vld [vmem:[%s0 + $0x23] sm:$0xff]
    %v1176 = vld [vmem:[%s0 + $0x2b] sm:$0xf]
    %v1183 = vrot.slane %v1171, 4
    %v1184 = vrot.slane %v1172, 4
    %v1185 = vrot.slane %v1174, 4
    %v1186 = vrot.slane %v1175, 4
    %1187 = vst [vmem:[#allocation1] ss:$2 sm:$0xff] %v1171
    %s1188 = scalar_lea.vmem [#allocation1], 1
    %1189 = vst [vmem:[%s1188] ss:$2 sm:$0xff] %v1183
    %s1190 = scalar_lea.vmem [#allocation1], 16
    %1191 = vst [vmem:[%s1190] ss:$2 sm:$0xff] %v1172
    %s1192 = scalar_lea.vmem [#allocation1], 17
    %1193 = vst [vmem:[%s1192] ss:$2 sm:$0xff] %v1184
    %s1194 = scalar_lea.vmem [#allocation1], 32
    %1195 = vst [vmem:[%s1194] ss:$2 sm:$0xff] %v1173
    %s1196 = scalar_lea.vmem [#allocation1], 33
    %1197 = vst [vmem:[%s1196] ss:$2 sm:$0xff] %v1174
    %s1198 = scalar_lea.vmem [#allocation1], 48
    %1199 = vst [vmem:[%s1198] ss:$2 sm:$0xff] %v1185
    %s1200 = scalar_lea.vmem [#allocation1], 49
    %1201 = vst [vmem:[%s1200] ss:$2 sm:$0xff] %v1175
    %v1202 = vld.sshfl [vmem:[#allocation1] sm:$0xff pattern:$0x75316420]
    %v1203 = vld.sshfl [vmem:[#allocation1 + $0x10] sm:$0xff pattern:$0x75316420]
    %v1204 = vld.sshfl [vmem:[#allocation1 + $0x20] sm:$0xff pattern:$0x75316420]
    %v1205 = vld.sshfl [vmem:[#allocation1 + $0x30] sm:$0xff pattern:$0x75316420]
    %1206 = vst [vmem:[#allocation1] ss:$2 sm:$0xff] %v1186
    %1207 = vst [vmem:[%s1188] ss:$2 sm:$0xff] %v1176
    %v1208 = vld.sshfl [vmem:[#allocation1] sm:$0xff pattern:$0x75316420]
    %v1214 = vpack.c.bf16 %v1203, %v1202
    %v1215 = vpack.c.bf16 %v1205, %v1204
    %v1216 = vpack.c.bf16 %v1208, %v1208
    %s1217 = scalar_lea.vmem %s1, 540
    %v1218 = vld [vmem:[%s1217] sm:$0xff]
    %v1219 = vld [vmem:[%s1217 + $0x8] sm:$0xff]
    %v1220 = vld [vmem:[%s1217 + $0x10] sm:$0xf]
    %v1221 = vld [vmem:[%s1217 + $0x14] sm:$0xff]
    %v1222 = vld [vmem:[%s1217 + $0x1c] sm:$0xff]
    %v1223 = vld [vmem:[%s1217 + $0x24] sm:$0xf]
    %v1224 = vld [vmem:[%s1217 + $0x28] sm:$0xff]
    %v1225 = vld [vmem:[%s1217 + $0x30] sm:$0xff]
    %v1226 = vld [vmem:[%s1217 + $0x38] sm:$0xf]
    %v1227 = vld [vmem:[%s1217 + $0x3c] sm:$0xff]
    %v1228 = vld [vmem:[%s1217 + $0x44] sm:$0xff]
    %v1229 = vld [vmem:[%s1217 + $0x4c] sm:$0xf]
    %v1230 = vld [vmem:[%s1217 + $0x50] sm:$0xff]
    %v1231 = vld [vmem:[%s1217 + $0x58] sm:$0xff]
    %v1232 = vld [vmem:[%s1217 + $0x60] sm:$0xf]
    %v1233 = vld [vmem:[%s1217 + $0x64] sm:$0xff]
    %v1234 = vld [vmem:[%s1217 + $0x6c] sm:$0xff]
    %v1235 = vld [vmem:[%s1217 + $0x74] sm:$0xf]
    %v1236 = vld [vmem:[%s1217 + $0x78] sm:$0xff]
    %v1237 = vld [vmem:[%s1217 + $0x80] sm:$0xff]
    %v1238 = vld [vmem:[%s1217 + $0x88] sm:$0xf]
    %v1239 = vld [vmem:[%s1217 + $0x8c] sm:$0xff]
    %v1240 = vld [vmem:[%s1217 + $0x94] sm:$0xff]
    %v1241 = vld [vmem:[%s1217 + $0x9c] sm:$0xf]
    %v1242 = vld [vmem:[%s1217 + $0xa0] sm:$0xff]
    %v1243 = vld [vmem:[%s1217 + $0xa8] sm:$0xff]
    %v1244 = vld [vmem:[%s1217 + $0xb0] sm:$0xf]
    %v1272 = vunpack.c.l.b16 %v1218
    %v1273 = vunpack.c.h.b16 %v1218
    %v1274 = vunpack.c.l.b16 %v1219
    %v1275 = vunpack.c.h.b16 %v1219
    %v1276 = vunpack.c.l.b16 %v1220
    %v1277 = vunpack.c.l.b16 %v1221
    %v1278 = vunpack.c.h.b16 %v1221
    %v1279 = vunpack.c.l.b16 %v1222
    %v1280 = vunpack.c.h.b16 %v1222
    %v1281 = vunpack.c.l.b16 %v1223
    %v1282 = vunpack.c.l.b16 %v1224
    %v1283 = vunpack.c.h.b16 %v1224
    %v1284 = vunpack.c.l.b16 %v1225
    %v1285 = vunpack.c.h.b16 %v1225
    %v1286 = vunpack.c.l.b16 %v1226
    %v1287 = vunpack.c.l.b16 %v1227
    %v1288 = vunpack.c.h.b16 %v1227
    %v1289 = vunpack.c.l.b16 %v1228
    %v1290 = vunpack.c.h.b16 %v1228
    %v1291 = vunpack.c.l.b16 %v1229
    %v1292 = vunpack.c.l.b16 %v1230
    %v1293 = vunpack.c.h.b16 %v1230
    %v1294 = vunpack.c.l.b16 %v1231
    %v1295 = vunpack.c.h.b16 %v1231
    %v1296 = vunpack.c.l.b16 %v1232
    %v1297 = vunpack.c.l.b16 %v1233
    %v1298 = vunpack.c.h.b16 %v1233
    %v1299 = vunpack.c.l.b16 %v1234
    %v1300 = vunpack.c.h.b16 %v1234
    %v1301 = vunpack.c.l.b16 %v1235
    %v1302 = vunpack.c.l.b16 %v1236
    %v1303 = vunpack.c.h.b16 %v1236
    %v1304 = vunpack.c.l.b16 %v1237
    %v1305 = vunpack.c.h.b16 %v1237
    %v1306 = vunpack.c.l.b16 %v1238
    %v1307 = vunpack.c.l.b16 %v1239
    %v1308 = vunpack.c.h.b16 %v1239
    %v1309 = vunpack.c.l.b16 %v1240
    %v1310 = vunpack.c.h.b16 %v1240
    %v1311 = vunpack.c.l.b16 %v1241
    %v1312 = vunpack.c.l.b16 %v1242
    %v1313 = vunpack.c.h.b16 %v1242
    %v1314 = vunpack.c.l.b16 %v1243
    %v1315 = vunpack.c.h.b16 %v1243
    %v1316 = vunpack.c.l.b16 %v1244
    %v1317 = vpack.c.b16 %v1277, %v1272
    %v1318 = vpack.c.b16 %v1278, %v1273
    %v1319 = vpack.c.b16 %v1279, %v1274
    %v1320 = vpack.c.b16 %v1280, %v1275
    %v1321 = vpack.c.b16 %v1281, %v1276
    %v1322 = vpack.c.b16 %v1287, %v1282
    %v1323 = vpack.c.b16 %v1288, %v1283
    %v1324 = vpack.c.b16 %v1289, %v1284
    %v1325 = vpack.c.b16 %v1290, %v1285
    %v1326 = vpack.c.b16 %v1291, %v1286
    %v1327 = vpack.c.b16 %v1297, %v1292
    %v1328 = vpack.c.b16 %v1298, %v1293
    %v1329 = vpack.c.b16 %v1299, %v1294
    %v1330 = vpack.c.b16 %v1300, %v1295
    %v1331 = vpack.c.b16 %v1301, %v1296
    %v1332 = vpack.c.b16 %v1307, %v1302
    %v1333 = vpack.c.b16 %v1308, %v1303
    %v1334 = vpack.c.b16 %v1309, %v1304
    %v1335 = vpack.c.b16 %v1310, %v1305
    %v1336 = vpack.c.b16 %v1311, %v1306
    %v1337 = vpack.c.b16 %v1312, %v1312
    %v1338 = vpack.c.b16 %v1313, %v1313
    %v1339 = vpack.c.b16 %v1314, %v1314
    %v1340 = vpack.c.b16 %v1315, %v1315
    %v1341 = vpack.c.b16 %v1316, %v1316
    %v1363 = vsel %vm419, %v1214, 0
    %v1366 = vsel %vm419, %v1215, 0
    %v1369 = vsel %vm419, %v1216, 0
    %v1372 = vsel %vm429, %v1337, 0
    %v1375 = vsel %vm429, %v1338, 0
    %v1378 = vsel %vm429, %v1339, 0
    %v1381 = vsel %vm429, %v1340, 0
    %v1384 = vsel %vm429, %v1341, 0
    %1386 = vmatpush.bf16.msra.mxu0 0
    %1387 = vmatpush.bf16.msra.mxu0 0
    %1388 = vmatpush.bf16.msra.mxu0 0
    %1389 = vmatpush.bf16.msra.mxu0 %v1372
    %1390 = vmatpush.bf16.msra.mxu0 %v1332
    %1391 = vmatpush.bf16.msra.mxu0 %v1327
    %1392 = vmatpush.bf16.msra.mxu0 %v1322
    %1393 = vmatpush.bf16.msra.mxu0 %v1317
    %1394 = vmatmul.bf16.gmra.mxu0 %v1363
    %v1395 = vpop.f32.mrf.mxu0
    %v1396 = vadd.f32 0.0, %v1395
    %v1397 = vpop.f32.mrf.mxu0
    %v1398 = vadd.f32 0.0, %v1397
    %1399 = vmatmul.bf16.gmra.mxu0 %v1366
    %v1400 = vpop.f32.mrf.mxu0
    %v1401 = vadd.f32 0.0, %v1400
    %v1402 = vpop.f32.mrf.mxu0
    %v1403 = vadd.f32 0.0, %v1402
    %1404 = vmatmul.bf16.gmra.mxu0 %v1369
    %v1405 = vpop.f32.mrf.mxu0
    %v1406 = vadd.f32 0.0, %v1405
    %v1407 = vpop.f32.mrf.mxu0
    %1408 = vdwg.mxu0
    %1409 = vmatpush.bf16.msra.mxu0 0
    %1410 = vmatpush.bf16.msra.mxu0 0
    %1411 = vmatpush.bf16.msra.mxu0 0
    %1412 = vmatpush.bf16.msra.mxu0 %v1375
    %1413 = vmatpush.bf16.msra.mxu0 %v1333
    %1414 = vmatpush.bf16.msra.mxu0 %v1328
    %1415 = vmatpush.bf16.msra.mxu0 %v1323
    %1416 = vmatpush.bf16.msra.mxu0 %v1318
    %1417 = vmatmul.bf16.gmra.mxu0 %v1363
    %v1418 = vpop.f32.mrf.mxu0
    %v1419 = vadd.f32 0.0, %v1418
    %v1420 = vpop.f32.mrf.mxu0
    %v1421 = vadd.f32 0.0, %v1420
    %1422 = vmatmul.bf16.gmra.mxu0 %v1366
    %v1423 = vpop.f32.mrf.mxu0
    %v1424 = vadd.f32 0.0, %v1423
    %v1425 = vpop.f32.mrf.mxu0
    %v1426 = vadd.f32 0.0, %v1425
    %1427 = vmatmul.bf16.gmra.mxu0 %v1369
    %v1428 = vpop.f32.mrf.mxu0
    %v1429 = vadd.f32 0.0, %v1428
    %v1430 = vpop.f32.mrf.mxu0
    %1431 = vdwg.mxu0
    %1432 = vmatpush.bf16.msra.mxu0 0
    %1433 = vmatpush.bf16.msra.mxu0 0
    %1434 = vmatpush.bf16.msra.mxu0 0
    %1435 = vmatpush.bf16.msra.mxu0 %v1378
    %1436 = vmatpush.bf16.msra.mxu0 %v1334
    %1437 = vmatpush.bf16.msra.mxu0 %v1329
    %1438 = vmatpush.bf16.msra.mxu0 %v1324
    %1439 = vmatpush.bf16.msra.mxu0 %v1319
    %1440 = vmatmul.bf16.gmra.mxu0 %v1363
    %v1441 = vpop.f32.mrf.mxu0
    %v1442 = vadd.f32 0.0, %v1441
    %v1443 = vpop.f32.mrf.mxu0
    %v1444 = vadd.f32 0.0, %v1443
    %1445 = vmatmul.bf16.gmra.mxu0 %v1366
    %v1446 = vpop.f32.mrf.mxu0
    %v1447 = vadd.f32 0.0, %v1446
    %v1448 = vpop.f32.mrf.mxu0
    %v1449 = vadd.f32 0.0, %v1448
    %1450 = vmatmul.bf16.gmra.mxu0 %v1369
    %v1451 = vpop.f32.mrf.mxu0
    %v1452 = vadd.f32 0.0, %v1451
    %v1453 = vpop.f32.mrf.mxu0
    %1454 = vdwg.mxu0
    %1455 = vmatpush.bf16.msra.mxu0 0
    %1456 = vmatpush.bf16.msra.mxu0 0
    %1457 = vmatpush.bf16.msra.mxu0 0
    %1458 = vmatpush.bf16.msra.mxu0 %v1381
    %1459 = vmatpush.bf16.msra.mxu0 %v1335
    %1460 = vmatpush.bf16.msra.mxu0 %v1330
    %1461 = vmatpush.bf16.msra.mxu0 %v1325
    %1462 = vmatpush.bf16.msra.mxu0 %v1320
    %1463 = vmatmul.bf16.gmra.mxu0 %v1363
    %v1464 = vpop.f32.mrf.mxu0
    %v1465 = vadd.f32 0.0, %v1464
    %v1466 = vpop.f32.mrf.mxu0
    %v1467 = vadd.f32 0.0, %v1466
    %1468 = vmatmul.bf16.gmra.mxu0 %v1366
    %v1469 = vpop.f32.mrf.mxu0
    %v1470 = vadd.f32 0.0, %v1469
    %v1471 = vpop.f32.mrf.mxu0
    %v1472 = vadd.f32 0.0, %v1471
    %1473 = vmatmul.bf16.gmra.mxu0 %v1369
    %v1474 = vpop.f32.mrf.mxu0
    %v1475 = vadd.f32 0.0, %v1474
    %v1476 = vpop.f32.mrf.mxu0
    %1477 = vdwg.mxu0
    %1478 = vmatpush.bf16.msra.mxu0 0
    %1479 = vmatpush.bf16.msra.mxu0 0
    %1480 = vmatpush.bf16.msra.mxu0 0
    %1481 = vmatpush.bf16.msra.mxu0 %v1384
    %1482 = vmatpush.bf16.msra.mxu0 %v1336
    %1483 = vmatpush.bf16.msra.mxu0 %v1331
    %1484 = vmatpush.bf16.msra.mxu0 %v1326
    %1485 = vmatpush.bf16.msra.mxu0 %v1321
    %1486 = vmatmul.bf16.gmra.mxu0 %v1363
    %v1487 = vpop.f32.mrf.mxu0
    %v1488 = vadd.f32 0.0, %v1487
    %v1489 = vpop.f32.mrf.mxu0
    %v1490 = vadd.f32 0.0, %v1489
    %1491 = vmatmul.bf16.gmra.mxu0 %v1366
    %v1492 = vpop.f32.mrf.mxu0
    %v1493 = vadd.f32 0.0, %v1492
    %v1494 = vpop.f32.mrf.mxu0
    %v1495 = vadd.f32 0.0, %v1494
    %1496 = vmatmul.bf16.gmra.mxu0 %v1369
    %v1497 = vpop.f32.mrf.mxu0
    %v1498 = vadd.f32 0.0, %v1497
    %v1499 = vpop.f32.mrf.mxu0
    %1500 = vdwg.mxu0
    %v1501 = vadd.f32 %v1146, %v1396
    %v1502 = vadd.f32 %v1147, %v1419
    %v1503 = vadd.f32 %v1148, %v1442
    %v1504 = vadd.f32 %v1149, %v1465
    %v1505 = vadd.f32 %v1150, %v1488
    %v1506 = vadd.f32 %v1151, %v1398
    %v1507 = vadd.f32 %v1152, %v1421
    %v1508 = vadd.f32 %v1153, %v1444
    %v1509 = vadd.f32 %v1154, %v1467
    %v1510 = vadd.f32 %v1155, %v1490
    %v1511 = vadd.f32 %v1156, %v1401
    %v1512 = vadd.f32 %v1157, %v1424
    %v1513 = vadd.f32 %v1158, %v1447
    %v1514 = vadd.f32 %v1159, %v1470
    %v1515 = vadd.f32 %v1160, %v1493
    %v1516 = vadd.f32 %v1161, %v1403
    %v1517 = vadd.f32 %v1162, %v1426
    %v1518 = vadd.f32 %v1163, %v1449
    %v1519 = vadd.f32 %v1164, %v1472
    %v1520 = vadd.f32 %v1165, %v1495
    %v1521 = vadd.f32 %v1166, %v1406
    %v1522 = vadd.f32 %v1167, %v1429
    %v1523 = vadd.f32 %v1168, %v1452
    %v1524 = vadd.f32 %v1169, %v1475
    %v1525 = vadd.f32 %v1170, %v1498
    %v1526 = vld [vmem:[%s0 + $0x4] sm:$0xff]
    %v1527 = vld [vmem:[%s0 + $0xc] sm:$0xff]
    %v1528 = vld [vmem:[%s0 + $0x14] sm:$0xf]
    %v1529 = vld [vmem:[%s0 + $0x1c] sm:$0xff]
    %v1530 = vld [vmem:[%s0 + $0x24] sm:$0xff]
    %v1531 = vld [vmem:[%s0 + $0x2c] sm:$0xf]
    %v1538 = vrot.slane %v1526, 4
    %v1539 = vrot.slane %v1527, 4
    %v1540 = vrot.slane %v1529, 4
    %v1541 = vrot.slane %v1530, 4
    %1542 = vst [vmem:[#allocation1] ss:$2 sm:$0xff] %v1526
    %s1543 = scalar_lea.vmem [#allocation1], 1
    %1544 = vst [vmem:[%s1543] ss:$2 sm:$0xff] %v1538
    %s1545 = scalar_lea.vmem [#allocation1], 16
    %1546 = vst [vmem:[%s1545] ss:$2 sm:$0xff] %v1527
    %s1547 = scalar_lea.vmem [#allocation1], 17
    %1548 = vst [vmem:[%s1547] ss:$2 sm:$0xff] %v1539
    %s1549 = scalar_lea.vmem [#allocation1], 32
    %1550 = vst [vmem:[%s1549] ss:$2 sm:$0xff] %v1528
    %s1551 = scalar_lea.vmem [#allocation1], 33
    %1552 = vst [vmem:[%s1551] ss:$2 sm:$0xff] %v1529
    %s1553 = scalar_lea.vmem [#allocation1], 48
    %1554 = vst [vmem:[%s1553] ss:$2 sm:$0xff] %v1540
    %s1555 = scalar_lea.vmem [#allocation1], 49
    %1556 = vst [vmem:[%s1555] ss:$2 sm:$0xff] %v1530
    %v1557 = vld.sshfl [vmem:[#allocation1] sm:$0xff pattern:$0x75316420]
    %v1558 = vld.sshfl [vmem:[#allocation1 + $0x10] sm:$0xff pattern:$0x75316420]
    %v1559 = vld.sshfl [vmem:[#allocation1 + $0x20] sm:$0xff pattern:$0x75316420]
    %v1560 = vld.sshfl [vmem:[#allocation1 + $0x30] sm:$0xff pattern:$0x75316420]
    %1561 = vst [vmem:[#allocation1] ss:$2 sm:$0xff] %v1541
    %1562 = vst [vmem:[%s1543] ss:$2 sm:$0xff] %v1531
    %v1563 = vld.sshfl [vmem:[#allocation1] sm:$0xff pattern:$0x75316420]
    %v1569 = vpack.c.bf16 %v1558, %v1557
    %v1570 = vpack.c.bf16 %v1560, %v1559
    %v1571 = vpack.c.bf16 %v1563, %v1563
    %s1572 = scalar_lea.vmem %s1, 720
    %v1573 = vld [vmem:[%s1572] sm:$0xff]
    %v1574 = vld [vmem:[%s1572 + $0x8] sm:$0xff]
    %v1575 = vld [vmem:[%s1572 + $0x10] sm:$0xf]
    %v1576 = vld [vmem:[%s1572 + $0x14] sm:$0xff]
    %v1577 = vld [vmem:[%s1572 + $0x1c] sm:$0xff]
    %v1578 = vld [vmem:[%s1572 + $0x24] sm:$0xf]
    %v1579 = vld [vmem:[%s1572 + $0x28] sm:$0xff]
    %v1580 = vld [vmem:[%s1572 + $0x30] sm:$0xff]
    %v1581 = vld [vmem:[%s1572 + $0x38] sm:$0xf]
    %v1582 = vld [vmem:[%s1572 + $0x3c] sm:$0xff]
    %v1583 = vld [vmem:[%s1572 + $0x44] sm:$0xff]
    %v1584 = vld [vmem:[%s1572 + $0x4c] sm:$0xf]
    %v1585 = vld [vmem:[%s1572 + $0x50] sm:$0xff]
    %v1586 = vld [vmem:[%s1572 + $0x58] sm:$0xff]
    %v1587 = vld [vmem:[%s1572 + $0x60] sm:$0xf]
    %v1588 = vld [vmem:[%s1572 + $0x64] sm:$0xff]
    %v1589 = vld [vmem:[%s1572 + $0x6c] sm:$0xff]
    %v1590 = vld [vmem:[%s1572 + $0x74] sm:$0xf]
    %v1591 = vld [vmem:[%s1572 + $0x78] sm:$0xff]
    %v1592 = vld [vmem:[%s1572 + $0x80] sm:$0xff]
    %v1593 = vld [vmem:[%s1572 + $0x88] sm:$0xf]
    %v1594 = vld [vmem:[%s1572 + $0x8c] sm:$0xff]
    %v1595 = vld [vmem:[%s1572 + $0x94] sm:$0xff]
    %v1596 = vld [vmem:[%s1572 + $0x9c] sm:$0xf]
    %v1597 = vld [vmem:[%s1572 + $0xa0] sm:$0xff]
    %v1598 = vld [vmem:[%s1572 + $0xa8] sm:$0xff]
    %v1599 = vld [vmem:[%s1572 + $0xb0] sm:$0xf]
    %v1627 = vunpack.c.l.b16 %v1573
    %v1628 = vunpack.c.h.b16 %v1573
    %v1629 = vunpack.c.l.b16 %v1574
    %v1630 = vunpack.c.h.b16 %v1574
    %v1631 = vunpack.c.l.b16 %v1575
    %v1632 = vunpack.c.l.b16 %v1576
    %v1633 = vunpack.c.h.b16 %v1576
    %v1634 = vunpack.c.l.b16 %v1577
    %v1635 = vunpack.c.h.b16 %v1577
    %v1636 = vunpack.c.l.b16 %v1578
    %v1637 = vunpack.c.l.b16 %v1579
    %v1638 = vunpack.c.h.b16 %v1579
    %v1639 = vunpack.c.l.b16 %v1580
    %v1640 = vunpack.c.h.b16 %v1580
    %v1641 = vunpack.c.l.b16 %v1581
    %v1642 = vunpack.c.l.b16 %v1582
    %v1643 = vunpack.c.h.b16 %v1582
    %v1644 = vunpack.c.l.b16 %v1583
    %v1645 = vunpack.c.h.b16 %v1583
    %v1646 = vunpack.c.l.b16 %v1584
    %v1647 = vunpack.c.l.b16 %v1585
    %v1648 = vunpack.c.h.b16 %v1585
    %v1649 = vunpack.c.l.b16 %v1586
    %v1650 = vunpack.c.h.b16 %v1586
    %v1651 = vunpack.c.l.b16 %v1587
    %v1652 = vunpack.c.l.b16 %v1588
    %v1653 = vunpack.c.h.b16 %v1588
    %v1654 = vunpack.c.l.b16 %v1589
    %v1655 = vunpack.c.h.b16 %v1589
    %v1656 = vunpack.c.l.b16 %v1590
    %v1657 = vunpack.c.l.b16 %v1591
    %v1658 = vunpack.c.h.b16 %v1591
    %v1659 = vunpack.c.l.b16 %v1592
    %v1660 = vunpack.c.h.b16 %v1592
    %v1661 = vunpack.c.l.b16 %v1593
    %v1662 = vunpack.c.l.b16 %v1594
    %v1663 = vunpack.c.h.b16 %v1594
    %v1664 = vunpack.c.l.b16 %v1595
    %v1665 = vunpack.c.h.b16 %v1595
    %v1666 = vunpack.c.l.b16 %v1596
    %v1667 = vunpack.c.l.b16 %v1597
    %v1668 = vunpack.c.h.b16 %v1597
    %v1669 = vunpack.c.l.b16 %v1598
    %v1670 = vunpack.c.h.b16 %v1598
    %v1671 = vunpack.c.l.b16 %v1599
    %v1672 = vpack.c.b16 %v1632, %v1627
    %v1673 = vpack.c.b16 %v1633, %v1628
    %v1674 = vpack.c.b16 %v1634, %v1629
    %v1675 = vpack.c.b16 %v1635, %v1630
    %v1676 = vpack.c.b16 %v1636, %v1631
    %v1677 = vpack.c.b16 %v1642, %v1637
    %v1678 = vpack.c.b16 %v1643, %v1638
    %v1679 = vpack.c.b16 %v1644, %v1639
    %v1680 = vpack.c.b16 %v1645, %v1640
    %v1681 = vpack.c.b16 %v1646, %v1641
    %v1682 = vpack.c.b16 %v1652, %v1647
    %v1683 = vpack.c.b16 %v1653, %v1648
    %v1684 = vpack.c.b16 %v1654, %v1649
    %v1685 = vpack.c.b16 %v1655, %v1650
    %v1686 = vpack.c.b16 %v1656, %v1651
    %v1687 = vpack.c.b16 %v1662, %v1657
    %v1688 = vpack.c.b16 %v1663, %v1658
    %v1689 = vpack.c.b16 %v1664, %v1659
    %v1690 = vpack.c.b16 %v1665, %v1660
    %v1691 = vpack.c.b16 %v1666, %v1661
    %v1692 = vpack.c.b16 %v1667, %v1667
    %v1693 = vpack.c.b16 %v1668, %v1668
    %v1694 = vpack.c.b16 %v1669, %v1669
    %v1695 = vpack.c.b16 %v1670, %v1670
    %v1696 = vpack.c.b16 %v1671, %v1671
    %v1718 = vsel %vm419, %v1569, 0
    %v1721 = vsel %vm419, %v1570, 0
    %v1724 = vsel %vm419, %v1571, 0
    %v1727 = vsel %vm429, %v1692, 0
    %v1730 = vsel %vm429, %v1693, 0
    %v1733 = vsel %vm429, %v1694, 0
    %v1736 = vsel %vm429, %v1695, 0
    %v1739 = vsel %vm429, %v1696, 0
    %1741 = vmatpush.bf16.msra.mxu0 0
    %1742 = vmatpush.bf16.msra.mxu0 0
    %1743 = vmatpush.bf16.msra.mxu0 0
    %1744 = vmatpush.bf16.msra.mxu0 %v1727
    %1745 = vmatpush.bf16.msra.mxu0 %v1687
    %1746 = vmatpush.bf16.msra.mxu0 %v1682
    %1747 = vmatpush.bf16.msra.mxu0 %v1677
    %1748 = vmatpush.bf16.msra.mxu0 %v1672
    %1749 = vmatmul.bf16.gmra.mxu0 %v1718
    %v1750 = vpop.f32.mrf.mxu0
    %v1751 = vadd.f32 0.0, %v1750
    %v1752 = vpop.f32.mrf.mxu0
    %v1753 = vadd.f32 0.0, %v1752
    %1754 = vmatmul.bf16.gmra.mxu0 %v1721
    %v1755 = vpop.f32.mrf.mxu0
    %v1756 = vadd.f32 0.0, %v1755
    %v1757 = vpop.f32.mrf.mxu0
    %v1758 = vadd.f32 0.0, %v1757
    %1759 = vmatmul.bf16.gmra.mxu0 %v1724
    %v1760 = vpop.f32.mrf.mxu0
    %v1761 = vadd.f32 0.0, %v1760
    %v1762 = vpop.f32.mrf.mxu0
    %1763 = vdwg.mxu0
    %1764 = vmatpush.bf16.msra.mxu0 0
    %1765 = vmatpush.bf16.msra.mxu0 0
    %1766 = vmatpush.bf16.msra.mxu0 0
    %1767 = vmatpush.bf16.msra.mxu0 %v1730
    %1768 = vmatpush.bf16.msra.mxu0 %v1688
    %1769 = vmatpush.bf16.msra.mxu0 %v1683
    %1770 = vmatpush.bf16.msra.mxu0 %v1678
    %1771 = vmatpush.bf16.msra.mxu0 %v1673
    %1772 = vmatmul.bf16.gmra.mxu0 %v1718
    %v1773 = vpop.f32.mrf.mxu0
    %v1774 = vadd.f32 0.0, %v1773
    %v1775 = vpop.f32.mrf.mxu0
    %v1776 = vadd.f32 0.0, %v1775
    %1777 = vmatmul.bf16.gmra.mxu0 %v1721
    %v1778 = vpop.f32.mrf.mxu0
    %v1779 = vadd.f32 0.0, %v1778
    %v1780 = vpop.f32.mrf.mxu0
    %v1781 = vadd.f32 0.0, %v1780
    %1782 = vmatmul.bf16.gmra.mxu0 %v1724
    %v1783 = vpop.f32.mrf.mxu0
    %v1784 = vadd.f32 0.0, %v1783
    %v1785 = vpop.f32.mrf.mxu0
    %1786 = vdwg.mxu0
    %1787 = vmatpush.bf16.msra.mxu0 0
    %1788 = vmatpush.bf16.msra.mxu0 0
    %1789 = vmatpush.bf16.msra.mxu0 0
    %1790 = vmatpush.bf16.msra.mxu0 %v1733
    %1791 = vmatpush.bf16.msra.mxu0 %v1689
    %1792 = vmatpush.bf16.msra.mxu0 %v1684
    %1793 = vmatpush.bf16.msra.mxu0 %v1679
    %1794 = vmatpush.bf16.msra.mxu0 %v1674
    %1795 = vmatmul.bf16.gmra.mxu0 %v1718
    %v1796 = vpop.f32.mrf.mxu0
    %v1797 = vadd.f32 0.0, %v1796
    %v1798 = vpop.f32.mrf.mxu0
    %v1799 = vadd.f32 0.0, %v1798
    %1800 = vmatmul.bf16.gmra.mxu0 %v1721
    %v1801 = vpop.f32.mrf.mxu0
    %v1802 = vadd.f32 0.0, %v1801
    %v1803 = vpop.f32.mrf.mxu0
    %v1804 = vadd.f32 0.0, %v1803
    %1805 = vmatmul.bf16.gmra.mxu0 %v1724
    %v1806 = vpop.f32.mrf.mxu0
    %v1807 = vadd.f32 0.0, %v1806
    %v1808 = vpop.f32.mrf.mxu0
    %1809 = vdwg.mxu0
    %1810 = vmatpush.bf16.msra.mxu0 0
    %1811 = vmatpush.bf16.msra.mxu0 0
    %1812 = vmatpush.bf16.msra.mxu0 0
    %1813 = vmatpush.bf16.msra.mxu0 %v1736
    %1814 = vmatpush.bf16.msra.mxu0 %v1690
    %1815 = vmatpush.bf16.msra.mxu0 %v1685
    %1816 = vmatpush.bf16.msra.mxu0 %v1680
    %1817 = vmatpush.bf16.msra.mxu0 %v1675
    %1818 = vmatmul.bf16.gmra.mxu0 %v1718
    %v1819 = vpop.f32.mrf.mxu0
    %v1820 = vadd.f32 0.0, %v1819
    %v1821 = vpop.f32.mrf.mxu0
    %v1822 = vadd.f32 0.0, %v1821
    %1823 = vmatmul.bf16.gmra.mxu0 %v1721
    %v1824 = vpop.f32.mrf.mxu0
    %v1825 = vadd.f32 0.0, %v1824
    %v1826 = vpop.f32.mrf.mxu0
    %v1827 = vadd.f32 0.0, %v1826
    %1828 = vmatmul.bf16.gmra.mxu0 %v1724
    %v1829 = vpop.f32.mrf.mxu0
    %v1830 = vadd.f32 0.0, %v1829
    %v1831 = vpop.f32.mrf.mxu0
    %1832 = vdwg.mxu0
    %1833 = vmatpush.bf16.msra.mxu0 0
    %1834 = vmatpush.bf16.msra.mxu0 0
    %1835 = vmatpush.bf16.msra.mxu0 0
    %1836 = vmatpush.bf16.msra.mxu0 %v1739
    %1837 = vmatpush.bf16.msra.mxu0 %v1691
    %1838 = vmatpush.bf16.msra.mxu0 %v1686
    %1839 = vmatpush.bf16.msra.mxu0 %v1681
    %1840 = vmatpush.bf16.msra.mxu0 %v1676
    %1841 = vmatmul.bf16.gmra.mxu0 %v1718
    %v1842 = vpop.f32.mrf.mxu0
    %v1843 = vadd.f32 0.0, %v1842
    %v1844 = vpop.f32.mrf.mxu0
    %v1845 = vadd.f32 0.0, %v1844
    %1846 = vmatmul.bf16.gmra.mxu0 %v1721
    %v1847 = vpop.f32.mrf.mxu0
    %v1848 = vadd.f32 0.0, %v1847
    %v1849 = vpop.f32.mrf.mxu0
    %v1850 = vadd.f32 0.0, %v1849
    %1851 = vmatmul.bf16.gmra.mxu0 %v1724
    %v1852 = vpop.f32.mrf.mxu0
    %v1853 = vadd.f32 0.0, %v1852
    %v1854 = vpop.f32.mrf.mxu0
    %1855 = vdwg.mxu0
    %v1856 = vadd.f32 %v1501, %v1751
    %v1857 = vadd.f32 %v1502, %v1774
    %v1858 = vadd.f32 %v1503, %v1797
    %v1859 = vadd.f32 %v1504, %v1820
    %v1860 = vadd.f32 %v1505, %v1843
    %v1861 = vadd.f32 %v1506, %v1753
    %v1862 = vadd.f32 %v1507, %v1776
    %v1863 = vadd.f32 %v1508, %v1799
    %v1864 = vadd.f32 %v1509, %v1822
    %v1865 = vadd.f32 %v1510, %v1845
    %v1866 = vadd.f32 %v1511, %v1756
    %v1867 = vadd.f32 %v1512, %v1779
    %v1868 = vadd.f32 %v1513, %v1802
    %v1869 = vadd.f32 %v1514, %v1825
    %v1870 = vadd.f32 %v1515, %v1848
    %v1871 = vadd.f32 %v1516, %v1758
    %v1872 = vadd.f32 %v1517, %v1781
    %v1873 = vadd.f32 %v1518, %v1804
    %v1874 = vadd.f32 %v1519, %v1827
    %v1875 = vadd.f32 %v1520, %v1850
    %v1876 = vadd.f32 %v1521, %v1761
    %v1877 = vadd.f32 %v1522, %v1784
    %v1878 = vadd.f32 %v1523, %v1807
    %v1879 = vadd.f32 %v1524, %v1830
    %v1880 = vadd.f32 %v1525, %v1853
    %v1881 = vmax.f32 %v1856, 0.0
    %v1882 = vmax.f32 %v1857, 0.0
    %v1883 = vmax.f32 %v1858, 0.0
    %v1884 = vmax.f32 %v1859, 0.0
    %v1885 = vmax.f32 %v1860, 0.0
    %v1886 = vmax.f32 %v1861, 0.0
    %v1887 = vmax.f32 %v1862, 0.0
    %v1888 = vmax.f32 %v1863, 0.0
    %v1889 = vmax.f32 %v1864, 0.0
    %v1890 = vmax.f32 %v1865, 0.0
    %v1891 = vmax.f32 %v1866, 0.0
    %v1892 = vmax.f32 %v1867, 0.0
    %v1893 = vmax.f32 %v1868, 0.0
    %v1894 = vmax.f32 %v1869, 0.0
    %v1895 = vmax.f32 %v1870, 0.0
    %v1896 = vmax.f32 %v1871, 0.0
    %v1897 = vmax.f32 %v1872, 0.0
    %v1898 = vmax.f32 %v1873, 0.0
    %v1899 = vmax.f32 %v1874, 0.0
    %v1900 = vmax.f32 %v1875, 0.0
    %v1901 = vmax.f32 %v1876, 0.0
    %v1902 = vmax.f32 %v1877, 0.0
    %v1903 = vmax.f32 %v1878, 0.0
    %v1904 = vmax.f32 %v1879, 0.0
    %v1905 = vmax.f32 %v1880, 0.0
    %v1931 = vrot.slane %v1882, 4
    %v1932 = vrot.slane %v1884, 4
    %v1933 = vrot.slane %v1887, 4
    %v1934 = vrot.slane %v1889, 4
    %v1935 = vrot.slane %v1892, 4
    %v1936 = vrot.slane %v1894, 4
    %v1937 = vrot.slane %v1897, 4
    %v1938 = vrot.slane %v1899, 4
    %v1939 = vrot.slane %v1902, 4
    %v1940 = vrot.slane %v1904, 4
    %v1941 = vsel %vm429, %v1881, %v1931
    %v1942 = vsel %vm429, %v1883, %v1932
    %v1943 = vsel %vm429, %v1931, %v1881
    %v1944 = vrot.slane %v1943, 4
    %v1945 = vsel %vm429, %v1932, %v1883
    %v1946 = vrot.slane %v1945, 4
    %v1947 = vrot.slane %v1885, 4
    %v1948 = vsel %vm429, %v1886, %v1933
    %v1949 = vsel %vm429, %v1888, %v1934
    %v1950 = vsel %vm429, %v1933, %v1886
    %v1951 = vrot.slane %v1950, 4
    %v1952 = vsel %vm429, %v1934, %v1888
    %v1953 = vrot.slane %v1952, 4
    %v1954 = vrot.slane %v1890, 4
    %v1955 = vsel %vm429, %v1891, %v1935
    %v1956 = vsel %vm429, %v1893, %v1936
    %v1957 = vsel %vm429, %v1935, %v1891
    %v1958 = vrot.slane %v1957, 4
    %v1959 = vsel %vm429, %v1936, %v1893
    %v1960 = vrot.slane %v1959, 4
    %v1961 = vrot.slane %v1895, 4
    %v1962 = vsel %vm429, %v1896, %v1937
    %v1963 = vsel %vm429, %v1898, %v1938
    %v1964 = vsel %vm429, %v1937, %v1896
    %v1965 = vrot.slane %v1964, 4
    %v1966 = vsel %vm429, %v1938, %v1898
    %v1967 = vrot.slane %v1966, 4
    %v1968 = vrot.slane %v1900, 4
    %v1969 = vsel %vm429, %v1901, %v1939
    %v1970 = vsel %vm429, %v1903, %v1940
    %v1971 = vsel %vm429, %v1939, %v1901
    %v1972 = vrot.slane %v1971, 4
    %v1973 = vsel %vm429, %v1940, %v1903
    %v1974 = vrot.slane %v1973, 4
    %v1975 = vrot.slane %v1905, 4
    %vm2001 = vcmask 1042432
    %vm2002 = vcmask 1046532
    %vm2003 = vmor %vm2001, %vm2002
    %v2004 = vrot.slane %v1941, 5
    %v2005 = vrot.slane %v2004, 4
    %v2006 = vrot.slane %v1944, 5
    %v2007 = vsel %vm2003, %v2005, %v2006
    %v2008 = vrot.slane %v1942, 5
    %v2009 = vrot.slane %v2008, 4
    %v2010 = vrot.slane %v1946, 5
    %v2011 = vsel %vm2003, %v2009, %v2010
    %v2012 = vrot.slane %v1885, 5
    %v2013 = vrot.slane %v2012, 4
    %v2014 = vrot.slane %v1947, 5
    %v2015 = vsel %vm2003, %v2013, %v2014
    %v2016 = vrot.slane %v2006, 4
    %v2017 = vrot.slane %v1948, 5
    %v2018 = vsel %vm2003, %v2016, %v2017
    %v2019 = vrot.slane %v2010, 4
    %v2020 = vrot.slane %v1949, 5
    %v2021 = vsel %vm2003, %v2019, %v2020
    %v2022 = vrot.slane %v2014, 4
    %v2023 = vrot.slane %v1890, 5
    %v2024 = vsel %vm2003, %v2022, %v2023
    %v2025 = vrot.slane %v2017, 4
    %v2026 = vrot.slane %v1951, 5
    %v2027 = vsel %vm2003, %v2025, %v2026
    %v2028 = vrot.slane %v2020, 4
    %v2029 = vrot.slane %v1953, 5
    %v2030 = vsel %vm2003, %v2028, %v2029
    %v2031 = vrot.slane %v2023, 4
    %v2032 = vrot.slane %v1954, 5
    %v2033 = vsel %vm2003, %v2031, %v2032
    %v2034 = vrot.slane %v2026, 4
    %v2035 = vrot.slane %v1955, 5
    %v2036 = vsel %vm2003, %v2034, %v2035
    %v2037 = vrot.slane %v2029, 4
    %v2038 = vrot.slane %v1956, 5
    %v2039 = vsel %vm2003, %v2037, %v2038
    %v2040 = vrot.slane %v2032, 4
    %v2041 = vrot.slane %v1895, 5
    %v2042 = vsel %vm2003, %v2040, %v2041
    %v2043 = vrot.slane %v2035, 4
    %v2044 = vrot.slane %v2038, 4
    %v2045 = vrot.slane %v2041, 4
    %v2046 = vrot.slane %v1958, 5
    %v2047 = vrot.slane %v2046, 4
    %v2048 = vrot.slane %v1962, 5
    %v2049 = vsel %vm2003, %v2047, %v2048
    %v2050 = vrot.slane %v1960, 5
    %v2051 = vrot.slane %v2050, 4
    %v2052 = vrot.slane %v1963, 5
    %v2053 = vsel %vm2003, %v2051, %v2052
    %v2054 = vrot.slane %v1961, 5
    %v2055 = vrot.slane %v2054, 4
    %v2056 = vrot.slane %v1900, 5
    %v2057 = vsel %vm2003, %v2055, %v2056
    %v2058 = vrot.slane %v2048, 4
    %v2059 = vrot.slane %v1965, 5
    %v2060 = vsel %vm2003, %v2058, %v2059
    %v2061 = vrot.slane %v2052, 4
    %v2062 = vrot.slane %v1967, 5
    %v2063 = vsel %vm2003, %v2061, %v2062
    %v2064 = vrot.slane %v2056, 4
    %v2065 = vrot.slane %v1968, 5
    %v2066 = vsel %vm2003, %v2064, %v2065
    %v2067 = vrot.slane %v2059, 4
    %v2068 = vrot.slane %v1969, 5
    %v2069 = vsel %vm2003, %v2067, %v2068
    %v2070 = vrot.slane %v2062, 4
    %v2071 = vrot.slane %v1970, 5
    %v2072 = vsel %vm2003, %v2070, %v2071
    %v2073 = vrot.slane %v2065, 4
    %v2074 = vrot.slane %v1905, 5
    %v2075 = vsel %vm2003, %v2073, %v2074
    %v2076 = vrot.slane %v2068, 4
    %v2077 = vrot.slane %v1972, 5
    %v2078 = vsel %vm2003, %v2076, %v2077
    %v2079 = vrot.slane %v2071, 4
    %v2080 = vrot.slane %v1974, 5
    %v2081 = vsel %vm2003, %v2079, %v2080
    %v2082 = vrot.slane %v2074, 4
    %v2083 = vrot.slane %v1975, 5
    %v2084 = vsel %vm2003, %v2082, %v2083
    %v2085 = vrot.slane %v2077, 4
    %v2086 = vrot.slane %v2080, 4
    %v2087 = vrot.slane %v2083, 4
    %v2118 = vmax.f32 %v1941, %v2007
    %v2119 = vmax.f32 %v1942, %v2011
    %v2120 = vmax.f32 %v1885, %v2015
    %v2121 = vmax.f32 %v1944, %v2018
    %v2122 = vmax.f32 %v1946, %v2021
    %v2123 = vmax.f32 %v1947, %v2024
    %v2124 = vmax.f32 %v1948, %v2027
    %v2125 = vmax.f32 %v1949, %v2030
    %v2126 = vmax.f32 %v1890, %v2033
    %v2127 = vmax.f32 %v1951, %v2036
    %v2128 = vmax.f32 %v1953, %v2039
    %v2129 = vmax.f32 %v1954, %v2042
    %v2130 = vmax.f32 %v1955, %v2043
    %v2131 = vmax.f32 %v1956, %v2044
    %v2132 = vmax.f32 %v1895, %v2045
    %v2133 = vmax.f32 %v1958, %v2049
    %v2134 = vmax.f32 %v1960, %v2053
    %v2135 = vmax.f32 %v1961, %v2057
    %v2136 = vmax.f32 %v1962, %v2060
    %v2137 = vmax.f32 %v1963, %v2063
    %v2138 = vmax.f32 %v1900, %v2066
    %v2139 = vmax.f32 %v1965, %v2069
    %v2140 = vmax.f32 %v1967, %v2072
    %v2141 = vmax.f32 %v1968, %v2075
    %v2142 = vmax.f32 %v1969, %v2078
    %v2143 = vmax.f32 %v1970, %v2081
    %v2144 = vmax.f32 %v1905, %v2084
    %v2145 = vmax.f32 %v1972, %v2085
    %v2146 = vmax.f32 %v1974, %v2086
    %v2147 = vmax.f32 %v1975, %v2087
    %vm2148 = vcmask 1041408
    %vm2149 = vcmask 1045508
    %vm2150 = vmor %vm2148, %vm2149
    %v2151 = vrot.slane %v1941, 6
    %v2152 = vrot.slane %v2151, 4
    %v2153 = vrot.slane %v1944, 6
    %v2154 = vsel %vm2150, %v2152, %v2153
    %v2155 = vrot.slane %v1942, 6
    %v2156 = vrot.slane %v2155, 4
    %v2157 = vrot.slane %v1946, 6
    %v2158 = vsel %vm2150, %v2156, %v2157
    %v2159 = vrot.slane %v1885, 6
    %v2160 = vrot.slane %v2159, 4
    %v2161 = vrot.slane %v1947, 6
    %v2162 = vsel %vm2150, %v2160, %v2161
    %v2163 = vrot.slane %v2153, 4
    %v2164 = vrot.slane %v1948, 6
    %v2165 = vsel %vm2150, %v2163, %v2164
    %v2166 = vrot.slane %v2157, 4
    %v2167 = vrot.slane %v1949, 6
    %v2168 = vsel %vm2150, %v2166, %v2167
    %v2169 = vrot.slane %v2161, 4
    %v2170 = vrot.slane %v1890, 6
    %v2171 = vsel %vm2150, %v2169, %v2170
    %v2172 = vrot.slane %v2164, 4
    %v2173 = vrot.slane %v1951, 6
    %v2174 = vsel %vm2150, %v2172, %v2173
    %v2175 = vrot.slane %v2167, 4
    %v2176 = vrot.slane %v1953, 6
    %v2177 = vsel %vm2150, %v2175, %v2176
    %v2178 = vrot.slane %v2170, 4
    %v2179 = vrot.slane %v1954, 6
    %v2180 = vsel %vm2150, %v2178, %v2179
    %v2181 = vrot.slane %v2173, 4
    %v2182 = vrot.slane %v1955, 6
    %v2183 = vsel %vm2150, %v2181, %v2182
    %v2184 = vrot.slane %v2176, 4
    %v2185 = vrot.slane %v1956, 6
    %v2186 = vsel %vm2150, %v2184, %v2185
    %v2187 = vrot.slane %v2179, 4
    %v2188 = vrot.slane %v1895, 6
    %v2189 = vsel %vm2150, %v2187, %v2188
    %v2190 = vrot.slane %v2182, 4
    %v2191 = vrot.slane %v2185, 4
    %v2192 = vrot.slane %v2188, 4
    %v2193 = vrot.slane %v1958, 6
    %v2194 = vrot.slane %v2193, 4
    %v2195 = vrot.slane %v1962, 6
    %v2196 = vsel %vm2150, %v2194, %v2195
    %v2197 = vrot.slane %v1960, 6
    %v2198 = vrot.slane %v2197, 4
    %v2199 = vrot.slane %v1963, 6
    %v2200 = vsel %vm2150, %v2198, %v2199
    %v2201 = vrot.slane %v1961, 6
    %v2202 = vrot.slane %v2201, 4
    %v2203 = vrot.slane %v1900, 6
    %v2204 = vsel %vm2150, %v2202, %v2203
    %v2205 = vrot.slane %v2195, 4
    %v2206 = vrot.slane %v1965, 6
    %v2207 = vsel %vm2150, %v2205, %v2206
    %v2208 = vrot.slane %v2199, 4
    %v2209 = vrot.slane %v1967, 6
    %v2210 = vsel %vm2150, %v2208, %v2209
    %v2211 = vrot.slane %v2203, 4
    %v2212 = vrot.slane %v1968, 6
    %v2213 = vsel %vm2150, %v2211, %v2212
    %v2214 = vrot.slane %v2206, 4
    %v2215 = vrot.slane %v1969, 6
    %v2216 = vsel %vm2150, %v2214, %v2215
    %v2217 = vrot.slane %v2209, 4
    %v2218 = vrot.slane %v1970, 6
    %v2219 = vsel %vm2150, %v2217, %v2218
    %v2220 = vrot.slane %v2212, 4
    %v2221 = vrot.slane %v1905, 6
    %v2222 = vsel %vm2150, %v2220, %v2221
    %v2223 = vrot.slane %v2215, 4
    %v2224 = vrot.slane %v1972, 6
    %v2225 = vsel %vm2150, %v2223, %v2224
    %v2226 = vrot.slane %v2218, 4
    %v2227 = vrot.slane %v1974, 6
    %v2228 = vsel %vm2150, %v2226, %v2227
    %v2229 = vrot.slane %v2221, 4
    %v2230 = vrot.slane %v1975, 6
    %v2231 = vsel %vm2150, %v2229, %v2230
    %v2232 = vrot.slane %v2224, 4
    %v2233 = vrot.slane %v2227, 4
    %v2234 = vrot.slane %v2230, 4
    %v2265 = vmax.f32 %v2118, %v2154
    %v2266 = vmax.f32 %v2119, %v2158
    %v2267 = vmax.f32 %v2120, %v2162
    %v2268 = vmax.f32 %v2121, %v2165
    %v2269 = vmax.f32 %v2122, %v2168
    %v2270 = vmax.f32 %v2123, %v2171
    %v2271 = vmax.f32 %v2124, %v2174
    %v2272 = vmax.f32 %v2125, %v2177
    %v2273 = vmax.f32 %v2126, %v2180
    %v2274 = vmax.f32 %v2127, %v2183
    %v2275 = vmax.f32 %v2128, %v2186
    %v2276 = vmax.f32 %v2129, %v2189
    %v2277 = vmax.f32 %v2130, %v2190
    %v2278 = vmax.f32 %v2131, %v2191
    %v2279 = vmax.f32 %v2132, %v2192
    %v2280 = vmax.f32 %v2133, %v2196
    %v2281 = vmax.f32 %v2134, %v2200
    %v2282 = vmax.f32 %v2135, %v2204
    %v2283 = vmax.f32 %v2136, %v2207
    %v2284 = vmax.f32 %v2137, %v2210
    %v2285 = vmax.f32 %v2138, %v2213
    %v2286 = vmax.f32 %v2139, %v2216
    %v2287 = vmax.f32 %v2140, %v2219
    %v2288 = vmax.f32 %v2141, %v2222
    %v2289 = vmax.f32 %v2142, %v2225
    %v2290 = vmax.f32 %v2143, %v2228
    %v2291 = vmax.f32 %v2144, %v2231
    %v2292 = vmax.f32 %v2145, %v2232
    %v2293 = vmax.f32 %v2146, %v2233
    %v2294 = vmax.f32 %v2147, %v2234
    %v2325 = vrot.slane %v2265, 2
    %v2326 = vrot.slane %v2266, 4
    %v2327 = vrot.slane %v2266, 6
    %v2328 = vrot.slane %v2267, 2
    %v2329 = vrot.slane %v2268, 2
    %v2330 = vrot.slane %v2269, 4
    %v2331 = vrot.slane %v2269, 6
    %v2332 = vrot.slane %v2270, 2
    %v2333 = vrot.slane %v2271, 2
    %v2334 = vrot.slane %v2272, 4
    %v2335 = vrot.slane %v2272, 6
    %v2336 = vrot.slane %v2273, 2
    %v2337 = vrot.slane %v2274, 2
    %v2338 = vrot.slane %v2275, 4
    %v2339 = vrot.slane %v2275, 6
    %v2340 = vrot.slane %v2276, 2
    %v2341 = vrot.slane %v2277, 2
    %v2342 = vrot.slane %v2278, 4
    %v2343 = vrot.slane %v2278, 6
    %v2344 = vrot.slane %v2279, 2
    %v2345 = vrot.slane %v2280, 2
    %v2346 = vrot.slane %v2281, 4
    %v2347 = vrot.slane %v2281, 6
    %v2348 = vrot.slane %v2282, 2
    %v2349 = vrot.slane %v2283, 2
    %v2350 = vrot.slane %v2284, 4
    %v2351 = vrot.slane %v2284, 6
    %v2352 = vrot.slane %v2285, 2
    %v2353 = vrot.slane %v2286, 2
    %v2354 = vrot.slane %v2287, 4
    %v2355 = vrot.slane %v2287, 6
    %v2356 = vrot.slane %v2288, 2
    %v2357 = vrot.slane %v2289, 2
    %v2358 = vrot.slane %v2290, 4
    %v2359 = vrot.slane %v2290, 6
    %v2360 = vrot.slane %v2291, 2
    %v2361 = vrot.slane %v2292, 2
    %v2362 = vrot.slane %v2293, 4
    %v2363 = vrot.slane %v2293, 6
    %v2364 = vrot.slane %v2294, 2
    %v2365 = vsel %vm2148, %v2265, %v2325
    %v2366 = vsel %vm2149, %v2326, %v2327
    %v2367 = vsel %vm429, %v2365, %v2366
    %v2368 = vsel %vm2148, %v2267, %v2328
    %vm2369 = vcmask 1043458
    %v2370 = vsel %vm2369, %v2265, %v2325
    %vm2371 = vcmask 1045504
    %v2372 = vsel %vm2371, %v2327, %v2326
    %vm2373 = vcmask 1045506
    %v2374 = vsel %vm2373, %v2370, %v2372
    %v2375 = vrot.slane %v2374, 2
    %v2376 = vsel %vm2369, %v2267, %v2328
    %v2377 = vrot.slane %v2376, 2
    %v2378 = vsel %vm2148, %v2268, %v2329
    %v2379 = vsel %vm2149, %v2330, %v2331
    %v2380 = vsel %vm429, %v2378, %v2379
    %v2381 = vsel %vm2148, %v2270, %v2332
    %v2382 = vsel %vm2369, %v2268, %v2329
    %v2383 = vsel %vm2371, %v2331, %v2330
    %v2384 = vsel %vm2373, %v2382, %v2383
    %v2385 = vrot.slane %v2384, 2
    %v2386 = vsel %vm2369, %v2270, %v2332
    %v2387 = vrot.slane %v2386, 2
    %v2388 = vsel %vm2148, %v2271, %v2333
    %v2389 = vsel %vm2149, %v2334, %v2335
    %v2390 = vsel %vm429, %v2388, %v2389
    %v2391 = vsel %vm2148, %v2273, %v2336
    %v2392 = vsel %vm2369, %v2271, %v2333
    %v2393 = vsel %vm2371, %v2335, %v2334
    %v2394 = vsel %vm2373, %v2392, %v2393
    %v2395 = vrot.slane %v2394, 2
    %v2396 = vsel %vm2369, %v2273, %v2336
    %v2397 = vrot.slane %v2396, 2
    %v2398 = vsel %vm2148, %v2274, %v2337
    %v2399 = vsel %vm2149, %v2338, %v2339
    %v2400 = vsel %vm429, %v2398, %v2399
    %v2401 = vsel %vm2148, %v2276, %v2340
    %v2402 = vsel %vm2369, %v2274, %v2337
    %v2403 = vsel %vm2371, %v2339, %v2338
    %v2404 = vsel %vm2373, %v2402, %v2403
    %v2405 = vrot.slane %v2404, 2
    %v2406 = vsel %vm2369, %v2276, %v2340
    %v2407 = vrot.slane %v2406, 2
    %v2408 = vsel %vm2148, %v2277, %v2341
    %v2409 = vsel %vm2149, %v2342, %v2343
    %v2410 = vsel %vm429, %v2408, %v2409
    %v2411 = vsel %vm2148, %v2279, %v2344
    %v2412 = vsel %vm2148, %v2280, %v2345
    %v2413 = vsel %vm2149, %v2346, %v2347
    %v2414 = vsel %vm429, %v2412, %v2413
    %v2415 = vsel %vm2148, %v2282, %v2348
    %v2416 = vsel %vm2369, %v2280, %v2345
    %v2417 = vsel %vm2371, %v2347, %v2346
    %v2418 = vsel %vm2373, %v2416, %v2417
    %v2419 = vrot.slane %v2418, 2
    %v2420 = vsel %vm2369, %v2282, %v2348
    %v2421 = vrot.slane %v2420, 2
    %v2422 = vsel %vm2148, %v2283, %v2349
    %v2423 = vsel %vm2149, %v2350, %v2351
    %v2424 = vsel %vm429, %v2422, %v2423
    %v2425 = vsel %vm2148, %v2285, %v2352
    %v2426 = vsel %vm2369, %v2283, %v2349
    %v2427 = vsel %vm2371, %v2351, %v2350
    %v2428 = vsel %vm2373, %v2426, %v2427
    %v2429 = vrot.slane %v2428, 2
    %v2430 = vsel %vm2369, %v2285, %v2352
    %v2431 = vrot.slane %v2430, 2
    %v2432 = vsel %vm2148, %v2286, %v2353
    %v2433 = vsel %vm2149, %v2354, %v2355
    %v2434 = vsel %vm429, %v2432, %v2433
    %v2435 = vsel %vm2148, %v2288, %v2356
    %v2436 = vsel %vm2369, %v2286, %v2353
    %v2437 = vsel %vm2371, %v2355, %v2354
    %v2438 = vsel %vm2373, %v2436, %v2437
    %v2439 = vrot.slane %v2438, 2
    %v2440 = vsel %vm2369, %v2288, %v2356
    %v2441 = vrot.slane %v2440, 2
    %v2442 = vsel %vm2148, %v2289, %v2357
    %v2443 = vsel %vm2149, %v2358, %v2359
    %v2444 = vsel %vm429, %v2442, %v2443
    %v2445 = vsel %vm2148, %v2291, %v2360
    %v2446 = vsel %vm2369, %v2289, %v2357
    %v2447 = vsel %vm2371, %v2359, %v2358
    %v2448 = vsel %vm2373, %v2446, %v2447
    %v2449 = vrot.slane %v2448, 2
    %v2450 = vsel %vm2369, %v2291, %v2360
    %v2451 = vrot.slane %v2450, 2
    %v2452 = vsel %vm2148, %v2292, %v2361
    %v2453 = vsel %vm2149, %v2362, %v2363
    %v2454 = vsel %vm429, %v2452, %v2453
    %v2455 = vsel %vm2148, %v2294, %v2364
    %2492 = vrot.lane.b32.xlu0 %v2367, 96
    %v2493 = vpop.permute.xlu0 %2492
    %2494 = vrot.lane.b32.xlu0 %v2375, 96
    %v2495 = vpop.permute.xlu0 %2494
    %2496 = vrot.lane.b32.xlu0 %v2380, 96
    %v2497 = vpop.permute.xlu0 %2496
    %2498 = vrot.lane.b32.xlu0 %v2385, 96
    %v2499 = vpop.permute.xlu0 %2498
    %2500 = vrot.lane.b32.xlu0 %v2390, 96
    %v2501 = vpop.permute.xlu0 %2500
    %2502 = vrot.lane.b32.xlu0 %v2395, 96
    %v2503 = vpop.permute.xlu0 %2502
    %2504 = vrot.lane.b32.xlu0 %v2400, 96
    %v2505 = vpop.permute.xlu0 %2504
    %2506 = vrot.lane.b32.xlu0 %v2405, 96
    %v2507 = vpop.permute.xlu0 %2506
    %2508 = vrot.lane.b32.xlu0 %v2410, 96
    %v2509 = vpop.permute.xlu0 %2508
    %2510 = vrot.lane.b32.xlu0 %v2414, 96
    %v2511 = vpop.permute.xlu0 %2510
    %2512 = vrot.lane.b32.xlu0 %v2419, 96
    %v2513 = vpop.permute.xlu0 %2512
    %2514 = vrot.lane.b32.xlu0 %v2424, 96
    %v2515 = vpop.permute.xlu0 %2514
    %2516 = vrot.lane.b32.xlu0 %v2429, 96
    %v2517 = vpop.permute.xlu0 %2516
    %2518 = vrot.lane.b32.xlu0 %v2434, 96
    %v2519 = vpop.permute.xlu0 %2518
    %2520 = vrot.lane.b32.xlu0 %v2439, 96
    %v2521 = vpop.permute.xlu0 %2520
    %2522 = vrot.lane.b32.xlu0 %v2444, 96
    %v2523 = vpop.permute.xlu0 %2522
    %2524 = vrot.lane.b32.xlu0 %v2449, 96
    %v2525 = vpop.permute.xlu0 %2524
    %2526 = vrot.lane.b32.xlu0 %v2454, 96
    %v2527 = vpop.permute.xlu0 %2526
    %v2546 = vmax.f32 %v2367, %v2493
    %v2547 = vmax.f32 %v2375, %v2495
    %v2548 = vmax.f32 %v2380, %v2497
    %v2549 = vmax.f32 %v2385, %v2499
    %v2550 = vmax.f32 %v2390, %v2501
    %v2551 = vmax.f32 %v2395, %v2503
    %v2552 = vmax.f32 %v2400, %v2505
    %v2553 = vmax.f32 %v2405, %v2507
    %v2554 = vmax.f32 %v2410, %v2509
    %v2555 = vmax.f32 %v2414, %v2511
    %v2556 = vmax.f32 %v2419, %v2513
    %v2557 = vmax.f32 %v2424, %v2515
    %v2558 = vmax.f32 %v2429, %v2517
    %v2559 = vmax.f32 %v2434, %v2519
    %v2560 = vmax.f32 %v2439, %v2521
    %v2561 = vmax.f32 %v2444, %v2523
    %v2562 = vmax.f32 %v2449, %v2525
    %v2563 = vmax.f32 %v2454, %v2527
    %2564 = vrot.lane.b32.xlu0 %v2367, 64
    %v2565 = vpop.permute.xlu0 %2564
    %2566 = vrot.lane.b32.xlu0 %v2375, 64
    %v2567 = vpop.permute.xlu0 %2566
    %2568 = vrot.lane.b32.xlu0 %v2380, 64
    %v2569 = vpop.permute.xlu0 %2568
    %2570 = vrot.lane.b32.xlu0 %v2385, 64
    %v2571 = vpop.permute.xlu0 %2570
    %2572 = vrot.lane.b32.xlu0 %v2390, 64
    %v2573 = vpop.permute.xlu0 %2572
    %2574 = vrot.lane.b32.xlu0 %v2395, 64
    %v2575 = vpop.permute.xlu0 %2574
    %2576 = vrot.lane.b32.xlu0 %v2400, 64
    %v2577 = vpop.permute.xlu0 %2576
    %2578 = vrot.lane.b32.xlu0 %v2405, 64
    %v2579 = vpop.permute.xlu0 %2578
    %2580 = vrot.lane.b32.xlu0 %v2410, 64
    %v2581 = vpop.permute.xlu0 %2580
    %2582 = vrot.lane.b32.xlu0 %v2414, 64
    %v2583 = vpop.permute.xlu0 %2582
    %2584 = vrot.lane.b32.xlu0 %v2419, 64
    %v2585 = vpop.permute.xlu0 %2584
    %2586 = vrot.lane.b32.xlu0 %v2424, 64
    %v2587 = vpop.permute.xlu0 %2586
    %2588 = vrot.lane.b32.xlu0 %v2429, 64
    %v2589 = vpop.permute.xlu0 %2588
    %2590 = vrot.lane.b32.xlu0 %v2434, 64
    %v2591 = vpop.permute.xlu0 %2590
    %2592 = vrot.lane.b32.xlu0 %v2439, 64
    %v2593 = vpop.permute.xlu0 %2592
    %2594 = vrot.lane.b32.xlu0 %v2444, 64
    %v2595 = vpop.permute.xlu0 %2594
    %2596 = vrot.lane.b32.xlu0 %v2449, 64
    %v2597 = vpop.permute.xlu0 %2596
    %2598 = vrot.lane.b32.xlu0 %v2454, 64
    %v2599 = vpop.permute.xlu0 %2598
    %v2618 = vmax.f32 %v2546, %v2565
    %v2619 = vmax.f32 %v2547, %v2567
    %v2620 = vmax.f32 %v2548, %v2569
    %v2621 = vmax.f32 %v2549, %v2571
    %v2622 = vmax.f32 %v2550, %v2573
    %v2623 = vmax.f32 %v2551, %v2575
    %v2624 = vmax.f32 %v2552, %v2577
    %v2625 = vmax.f32 %v2553, %v2579
    %v2626 = vmax.f32 %v2554, %v2581
    %v2627 = vmax.f32 %v2555, %v2583
    %v2628 = vmax.f32 %v2556, %v2585
    %v2629 = vmax.f32 %v2557, %v2587
    %v2630 = vmax.f32 %v2558, %v2589
    %v2631 = vmax.f32 %v2559, %v2591
    %v2632 = vmax.f32 %v2560, %v2593
    %v2633 = vmax.f32 %v2561, %v2595
    %v2634 = vmax.f32 %v2562, %v2597
    %v2635 = vmax.f32 %v2563, %v2599
    %v2636 = vrot.slane %v2565, 2
    %v2637 = vrot.slane %v2567, 2
    %v2638 = vrot.slane %v2569, 2
    %v2639 = vrot.slane %v2571, 2
    %v2640 = vrot.slane %v2573, 2
    %v2641 = vrot.slane %v2575, 2
    %v2642 = vrot.slane %v2577, 2
    %v2643 = vrot.slane %v2579, 2
    %v2644 = vrot.slane %v2581, 2
    %v2645 = vrot.slane %v2583, 2
    %v2646 = vrot.slane %v2585, 2
    %v2647 = vrot.slane %v2587, 2
    %v2648 = vrot.slane %v2589, 2
    %v2649 = vrot.slane %v2591, 2
    %v2650 = vrot.slane %v2593, 2
    %v2651 = vrot.slane %v2595, 2
    %v2652 = vrot.slane %v2597, 2
    %v2653 = vrot.slane %v2599, 2
    %v2654 = vsel %vm95, %v2565, %v2636
    %v2655 = vsel %vm95, %v2567, %v2637
    %v2656 = vsel %vm95, %v2569, %v2638
    %v2657 = vsel %vm95, %v2571, %v2639
    %v2658 = vsel %vm95, %v2573, %v2640
    %v2659 = vsel %vm95, %v2575, %v2641
    %v2660 = vsel %vm95, %v2577, %v2642
    %v2661 = vsel %vm95, %v2579, %v2643
    %v2662 = vsel %vm95, %v2581, %v2644
    %v2663 = vsel %vm95, %v2583, %v2645
    %v2664 = vsel %vm95, %v2585, %v2646
    %v2665 = vsel %vm95, %v2587, %v2647
    %v2666 = vsel %vm95, %v2589, %v2648
    %v2667 = vsel %vm95, %v2591, %v2649
    %v2668 = vsel %vm95, %v2593, %v2650
    %v2669 = vsel %vm95, %v2595, %v2651
    %v2670 = vsel %vm95, %v2597, %v2652
    %v2671 = vsel %vm95, %v2599, %v2653
    %v2690 = vmax.f32 %v2546, %v2654
    %v2691 = vmax.f32 %v2547, %v2655
    %v2692 = vmax.f32 %v2548, %v2656
    %v2693 = vmax.f32 %v2549, %v2657
    %v2694 = vmax.f32 %v2550, %v2658
    %v2695 = vmax.f32 %v2551, %v2659
    %v2696 = vmax.f32 %v2552, %v2660
    %v2697 = vmax.f32 %v2553, %v2661
    %v2698 = vmax.f32 %v2554, %v2662
    %v2699 = vmax.f32 %v2555, %v2663
    %v2700 = vmax.f32 %v2556, %v2664
    %v2701 = vmax.f32 %v2557, %v2665
    %v2702 = vmax.f32 %v2558, %v2666
    %v2703 = vmax.f32 %v2559, %v2667
    %v2704 = vmax.f32 %v2560, %v2668
    %v2705 = vmax.f32 %v2561, %v2669
    %v2706 = vmax.f32 %v2562, %v2670
    %v2707 = vmax.f32 %v2563, %v2671
    %v2708 = vrot.slane %v2367, 2
    %v2709 = vrot.slane %v2375, 2
    %v2710 = vrot.slane %v2380, 2
    %v2711 = vrot.slane %v2385, 2
    %v2712 = vrot.slane %v2390, 2
    %v2713 = vrot.slane %v2395, 2
    %v2714 = vrot.slane %v2400, 2
    %v2715 = vrot.slane %v2405, 2
    %v2716 = vrot.slane %v2410, 2
    %v2717 = vrot.slane %v2414, 2
    %v2718 = vrot.slane %v2419, 2
    %v2719 = vrot.slane %v2424, 2
    %v2720 = vrot.slane %v2429, 2
    %v2721 = vrot.slane %v2434, 2
    %v2722 = vrot.slane %v2439, 2
    %v2723 = vrot.slane %v2444, 2
    %v2724 = vrot.slane %v2449, 2
    %v2725 = vrot.slane %v2454, 2
    %v2744 = vrot.slane %v2493, 2
    %v2745 = vrot.slane %v2495, 2
    %v2746 = vrot.slane %v2497, 2
    %v2747 = vrot.slane %v2499, 2
    %v2748 = vrot.slane %v2501, 2
    %v2749 = vrot.slane %v2503, 2
    %v2750 = vrot.slane %v2505, 2
    %v2751 = vrot.slane %v2507, 2
    %v2752 = vrot.slane %v2509, 2
    %v2753 = vrot.slane %v2511, 2
    %v2754 = vrot.slane %v2513, 2
    %v2755 = vrot.slane %v2515, 2
    %v2756 = vrot.slane %v2517, 2
    %v2757 = vrot.slane %v2519, 2
    %v2758 = vrot.slane %v2521, 2
    %v2759 = vrot.slane %v2523, 2
    %v2760 = vrot.slane %v2525, 2
    %v2761 = vrot.slane %v2527, 2
    %v2780 = vmax.f32 %v2708, %v2744
    %v2781 = vmax.f32 %v2709, %v2745
    %v2782 = vmax.f32 %v2710, %v2746
    %v2783 = vmax.f32 %v2711, %v2747
    %v2784 = vmax.f32 %v2712, %v2748
    %v2785 = vmax.f32 %v2713, %v2749
    %v2786 = vmax.f32 %v2714, %v2750
    %v2787 = vmax.f32 %v2715, %v2751
    %v2788 = vmax.f32 %v2716, %v2752
    %v2789 = vmax.f32 %v2717, %v2753
    %v2790 = vmax.f32 %v2718, %v2754
    %v2791 = vmax.f32 %v2719, %v2755
    %v2792 = vmax.f32 %v2720, %v2756
    %v2793 = vmax.f32 %v2721, %v2757
    %v2794 = vmax.f32 %v2722, %v2758
    %v2795 = vmax.f32 %v2723, %v2759
    %v2796 = vmax.f32 %v2724, %v2760
    %v2797 = vmax.f32 %v2725, %v2761
    %v2816 = vmax.f32 %v2780, %v2636
    %v2817 = vmax.f32 %v2781, %v2637
    %v2818 = vmax.f32 %v2782, %v2638
    %v2819 = vmax.f32 %v2783, %v2639
    %v2820 = vmax.f32 %v2784, %v2640
    %v2821 = vmax.f32 %v2785, %v2641
    %v2822 = vmax.f32 %v2786, %v2642
    %v2823 = vmax.f32 %v2787, %v2643
    %v2824 = vmax.f32 %v2788, %v2644
    %v2825 = vmax.f32 %v2789, %v2645
    %v2826 = vmax.f32 %v2790, %v2646
    %v2827 = vmax.f32 %v2791, %v2647
    %v2828 = vmax.f32 %v2792, %v2648
    %v2829 = vmax.f32 %v2793, %v2649
    %v2830 = vmax.f32 %v2794, %v2650
    %v2831 = vmax.f32 %v2795, %v2651
    %v2832 = vmax.f32 %v2796, %v2652
    %v2833 = vmax.f32 %v2797, %v2653
    %2834 = vrot.lane.b32.xlu0 %v2367, 32
    %v2835 = vpop.permute.xlu0 %2834
    %2836 = vrot.lane.b32.xlu0 %v2375, 32
    %v2837 = vpop.permute.xlu0 %2836
    %2838 = vrot.lane.b32.xlu0 %v2380, 32
    %v2839 = vpop.permute.xlu0 %2838
    %2840 = vrot.lane.b32.xlu0 %v2385, 32
    %v2841 = vpop.permute.xlu0 %2840
    %2842 = vrot.lane.b32.xlu0 %v2390, 32
    %v2843 = vpop.permute.xlu0 %2842
    %2844 = vrot.lane.b32.xlu0 %v2395, 32
    %v2845 = vpop.permute.xlu0 %2844
    %2846 = vrot.lane.b32.xlu0 %v2400, 32
    %v2847 = vpop.permute.xlu0 %2846
    %2848 = vrot.lane.b32.xlu0 %v2405, 32
    %v2849 = vpop.permute.xlu0 %2848
    %2850 = vrot.lane.b32.xlu0 %v2410, 32
    %v2851 = vpop.permute.xlu0 %2850
    %2852 = vrot.lane.b32.xlu0 %v2414, 32
    %v2853 = vpop.permute.xlu0 %2852
    %2854 = vrot.lane.b32.xlu0 %v2419, 32
    %v2855 = vpop.permute.xlu0 %2854
    %2856 = vrot.lane.b32.xlu0 %v2424, 32
    %v2857 = vpop.permute.xlu0 %2856
    %2858 = vrot.lane.b32.xlu0 %v2429, 32
    %v2859 = vpop.permute.xlu0 %2858
    %2860 = vrot.lane.b32.xlu0 %v2434, 32
    %v2861 = vpop.permute.xlu0 %2860
    %2862 = vrot.lane.b32.xlu0 %v2439, 32
    %v2863 = vpop.permute.xlu0 %2862
    %2864 = vrot.lane.b32.xlu0 %v2444, 32
    %v2865 = vpop.permute.xlu0 %2864
    %2866 = vrot.lane.b32.xlu0 %v2449, 32
    %v2867 = vpop.permute.xlu0 %2866
    %2868 = vrot.lane.b32.xlu0 %v2454, 32
    %v2869 = vpop.permute.xlu0 %2868
    %v2870 = vrot.slane %v2835, 2
    %v2871 = vrot.slane %v2837, 2
    %v2872 = vrot.slane %v2839, 2
    %v2873 = vrot.slane %v2841, 2
    %v2874 = vrot.slane %v2843, 2
    %v2875 = vrot.slane %v2845, 2
    %v2876 = vrot.slane %v2847, 2
    %v2877 = vrot.slane %v2849, 2
    %v2878 = vrot.slane %v2851, 2
    %v2879 = vrot.slane %v2853, 2
    %v2880 = vrot.slane %v2855, 2
    %v2881 = vrot.slane %v2857, 2
    %v2882 = vrot.slane %v2859, 2
    %v2883 = vrot.slane %v2861, 2
    %v2884 = vrot.slane %v2863, 2
    %v2885 = vrot.slane %v2865, 2
    %v2886 = vrot.slane %v2867, 2
    %v2887 = vrot.slane %v2869, 2
    %v2906 = vmax.f32 %v2636, %v2870
    %v2907 = vmax.f32 %v2637, %v2871
    %v2908 = vmax.f32 %v2638, %v2872
    %v2909 = vmax.f32 %v2639, %v2873
    %v2910 = vmax.f32 %v2640, %v2874
    %v2911 = vmax.f32 %v2641, %v2875
    %v2912 = vmax.f32 %v2642, %v2876
    %v2913 = vmax.f32 %v2643, %v2877
    %v2914 = vmax.f32 %v2644, %v2878
    %v2915 = vmax.f32 %v2645, %v2879
    %v2916 = vmax.f32 %v2646, %v2880
    %v2917 = vmax.f32 %v2647, %v2881
    %v2918 = vmax.f32 %v2648, %v2882
    %v2919 = vmax.f32 %v2649, %v2883
    %v2920 = vmax.f32 %v2650, %v2884
    %v2921 = vmax.f32 %v2651, %v2885
    %v2922 = vmax.f32 %v2652, %v2886
    %v2923 = vmax.f32 %v2653, %v2887
    %v2924 = vrot.slane %v2367, 4
    %v2925 = vrot.slane %v2375, 4
    %v2926 = vrot.slane %v2380, 4
    %v2927 = vrot.slane %v2385, 4
    %v2928 = vrot.slane %v2390, 4
    %v2929 = vrot.slane %v2395, 4
    %v2930 = vrot.slane %v2400, 4
    %v2931 = vrot.slane %v2405, 4
    %v2932 = vrot.slane %v2410, 4
    %v2933 = vrot.slane %v2414, 4
    %v2934 = vrot.slane %v2419, 4
    %v2935 = vrot.slane %v2424, 4
    %v2936 = vrot.slane %v2429, 4
    %v2937 = vrot.slane %v2434, 4
    %v2938 = vrot.slane %v2439, 4
    %v2939 = vrot.slane %v2444, 4
    %v2940 = vrot.slane %v2449, 4
    %v2941 = vrot.slane %v2454, 4
    %v2960 = vmax.f32 %v2906, %v2924
    %v2961 = vmax.f32 %v2907, %v2925
    %v2962 = vmax.f32 %v2908, %v2926
    %v2963 = vmax.f32 %v2909, %v2927
    %v2964 = vmax.f32 %v2910, %v2928
    %v2965 = vmax.f32 %v2911, %v2929
    %v2966 = vmax.f32 %v2912, %v2930
    %v2967 = vmax.f32 %v2913, %v2931
    %v2968 = vmax.f32 %v2914, %v2932
    %v2969 = vmax.f32 %v2915, %v2933
    %v2970 = vmax.f32 %v2916, %v2934
    %v2971 = vmax.f32 %v2917, %v2935
    %v2972 = vmax.f32 %v2918, %v2936
    %v2973 = vmax.f32 %v2919, %v2937
    %v2974 = vmax.f32 %v2920, %v2938
    %v2975 = vmax.f32 %v2921, %v2939
    %v2976 = vmax.f32 %v2922, %v2940
    %v2977 = vmax.f32 %v2923, %v2941
    %v2978 = vrot.slane %v2493, 4
    %v2979 = vrot.slane %v2495, 4
    %v2980 = vrot.slane %v2497, 4
    %v2981 = vrot.slane %v2499, 4
    %v2982 = vrot.slane %v2501, 4
    %v2983 = vrot.slane %v2503, 4
    %v2984 = vrot.slane %v2505, 4
    %v2985 = vrot.slane %v2507, 4
    %v2986 = vrot.slane %v2509, 4
    %v2987 = vrot.slane %v2511, 4
    %v2988 = vrot.slane %v2513, 4
    %v2989 = vrot.slane %v2515, 4
    %v2990 = vrot.slane %v2517, 4
    %v2991 = vrot.slane %v2519, 4
    %v2992 = vrot.slane %v2521, 4
    %v2993 = vrot.slane %v2523, 4
    %v2994 = vrot.slane %v2525, 4
    %v2995 = vrot.slane %v2527, 4
    %v3014 = vmax.f32 %v2924, %v2978
    %v3015 = vmax.f32 %v2925, %v2979
    %v3016 = vmax.f32 %v2926, %v2980
    %v3017 = vmax.f32 %v2927, %v2981
    %v3018 = vmax.f32 %v2928, %v2982
    %v3019 = vmax.f32 %v2929, %v2983
    %v3020 = vmax.f32 %v2930, %v2984
    %v3021 = vmax.f32 %v2931, %v2985
    %v3022 = vmax.f32 %v2932, %v2986
    %v3023 = vmax.f32 %v2933, %v2987
    %v3024 = vmax.f32 %v2934, %v2988
    %v3025 = vmax.f32 %v2935, %v2989
    %v3026 = vmax.f32 %v2936, %v2990
    %v3027 = vmax.f32 %v2937, %v2991
    %v3028 = vmax.f32 %v2938, %v2992
    %v3029 = vmax.f32 %v2939, %v2993
    %v3030 = vmax.f32 %v2940, %v2994
    %v3031 = vmax.f32 %v2941, %v2995
    %v3032 = vrot.slane %v2565, 4
    %v3033 = vrot.slane %v2567, 4
    %v3034 = vrot.slane %v2569, 4
    %v3035 = vrot.slane %v2571, 4
    %v3036 = vrot.slane %v2573, 4
    %v3037 = vrot.slane %v2575, 4
    %v3038 = vrot.slane %v2577, 4
    %v3039 = vrot.slane %v2579, 4
    %v3040 = vrot.slane %v2581, 4
    %v3041 = vrot.slane %v2583, 4
    %v3042 = vrot.slane %v2585, 4
    %v3043 = vrot.slane %v2587, 4
    %v3044 = vrot.slane %v2589, 4
    %v3045 = vrot.slane %v2591, 4
    %v3046 = vrot.slane %v2593, 4
    %v3047 = vrot.slane %v2595, 4
    %v3048 = vrot.slane %v2597, 4
    %v3049 = vrot.slane %v2599, 4
    %v3068 = vmax.f32 %v3014, %v3032
    %v3069 = vmax.f32 %v3015, %v3033
    %v3070 = vmax.f32 %v3016, %v3034
    %v3071 = vmax.f32 %v3017, %v3035
    %v3072 = vmax.f32 %v3018, %v3036
    %v3073 = vmax.f32 %v3019, %v3037
    %v3074 = vmax.f32 %v3020, %v3038
    %v3075 = vmax.f32 %v3021, %v3039
    %v3076 = vmax.f32 %v3022, %v3040
    %v3077 = vmax.f32 %v3023, %v3041
    %v3078 = vmax.f32 %v3024, %v3042
    %v3079 = vmax.f32 %v3025, %v3043
    %v3080 = vmax.f32 %v3026, %v3044
    %v3081 = vmax.f32 %v3027, %v3045
    %v3082 = vmax.f32 %v3028, %v3046
    %v3083 = vmax.f32 %v3029, %v3047
    %v3084 = vmax.f32 %v3030, %v3048
    %v3085 = vmax.f32 %v3031, %v3049
    %v3086 = vrot.slane %v2835, 4
    %v3087 = vrot.slane %v2837, 4
    %v3088 = vrot.slane %v2839, 4
    %v3089 = vrot.slane %v2841, 4
    %v3090 = vrot.slane %v2843, 4
    %v3091 = vrot.slane %v2845, 4
    %v3092 = vrot.slane %v2847, 4
    %v3093 = vrot.slane %v2849, 4
    %v3094 = vrot.slane %v2851, 4
    %v3095 = vrot.slane %v2853, 4
    %v3096 = vrot.slane %v2855, 4
    %v3097 = vrot.slane %v2857, 4
    %v3098 = vrot.slane %v2859, 4
    %v3099 = vrot.slane %v2861, 4
    %v3100 = vrot.slane %v2863, 4
    %v3101 = vrot.slane %v2865, 4
    %v3102 = vrot.slane %v2867, 4
    %v3103 = vrot.slane %v2869, 4
    %v3122 = vmax.f32 %v3032, %v3086
    %v3123 = vmax.f32 %v3033, %v3087
    %v3124 = vmax.f32 %v3034, %v3088
    %v3125 = vmax.f32 %v3035, %v3089
    %v3126 = vmax.f32 %v3036, %v3090
    %v3127 = vmax.f32 %v3037, %v3091
    %v3128 = vmax.f32 %v3038, %v3092
    %v3129 = vmax.f32 %v3039, %v3093
    %v3130 = vmax.f32 %v3040, %v3094
    %v3131 = vmax.f32 %v3041, %v3095
    %v3132 = vmax.f32 %v3042, %v3096
    %v3133 = vmax.f32 %v3043, %v3097
    %v3134 = vmax.f32 %v3044, %v3098
    %v3135 = vmax.f32 %v3045, %v3099
    %v3136 = vmax.f32 %v3046, %v3100
    %v3137 = vmax.f32 %v3047, %v3101
    %v3138 = vmax.f32 %v3048, %v3102
    %v3139 = vmax.f32 %v3049, %v3103
    %v3140 = vrot.slane %v2367, 6
    %v3141 = vrot.slane %v2375, 6
    %v3142 = vrot.slane %v2380, 6
    %v3143 = vrot.slane %v2385, 6
    %v3144 = vrot.slane %v2390, 6
    %v3145 = vrot.slane %v2395, 6
    %v3146 = vrot.slane %v2400, 6
    %v3147 = vrot.slane %v2405, 6
    %v3148 = vrot.slane %v2410, 6
    %v3149 = vrot.slane %v2414, 6
    %v3150 = vrot.slane %v2419, 6
    %v3151 = vrot.slane %v2424, 6
    %v3152 = vrot.slane %v2429, 6
    %v3153 = vrot.slane %v2434, 6
    %v3154 = vrot.slane %v2439, 6
    %v3155 = vrot.slane %v2444, 6
    %v3156 = vrot.slane %v2449, 6
    %v3157 = vrot.slane %v2454, 6
    %v3176 = vmax.f32 %v3122, %v3140
    %v3177 = vmax.f32 %v3123, %v3141
    %v3178 = vmax.f32 %v3124, %v3142
    %v3179 = vmax.f32 %v3125, %v3143
    %v3180 = vmax.f32 %v3126, %v3144
    %v3181 = vmax.f32 %v3127, %v3145
    %v3182 = vmax.f32 %v3128, %v3146
    %v3183 = vmax.f32 %v3129, %v3147
    %v3184 = vmax.f32 %v3130, %v3148
    %v3185 = vmax.f32 %v3131, %v3149
    %v3186 = vmax.f32 %v3132, %v3150
    %v3187 = vmax.f32 %v3133, %v3151
    %v3188 = vmax.f32 %v3134, %v3152
    %v3189 = vmax.f32 %v3135, %v3153
    %v3190 = vmax.f32 %v3136, %v3154
    %v3191 = vmax.f32 %v3137, %v3155
    %v3192 = vmax.f32 %v3138, %v3156
    %v3193 = vmax.f32 %v3139, %v3157
    %v3194 = vrot.slane %v2493, 6
    %v3195 = vrot.slane %v2495, 6
    %v3196 = vrot.slane %v2497, 6
    %v3197 = vrot.slane %v2499, 6
    %v3198 = vrot.slane %v2501, 6
    %v3199 = vrot.slane %v2503, 6
    %v3200 = vrot.slane %v2505, 6
    %v3201 = vrot.slane %v2507, 6
    %v3202 = vrot.slane %v2509, 6
    %v3203 = vrot.slane %v2511, 6
    %v3204 = vrot.slane %v2513, 6
    %v3205 = vrot.slane %v2515, 6
    %v3206 = vrot.slane %v2517, 6
    %v3207 = vrot.slane %v2519, 6
    %v3208 = vrot.slane %v2521, 6
    %v3209 = vrot.slane %v2523, 6
    %v3210 = vrot.slane %v2525, 6
    %v3211 = vrot.slane %v2527, 6
    %v3230 = vmax.f32 %v3140, %v3194
    %v3231 = vmax.f32 %v3141, %v3195
    %v3232 = vmax.f32 %v3142, %v3196
    %v3233 = vmax.f32 %v3143, %v3197
    %v3234 = vmax.f32 %v3144, %v3198
    %v3235 = vmax.f32 %v3145, %v3199
    %v3236 = vmax.f32 %v3146, %v3200
    %v3237 = vmax.f32 %v3147, %v3201
    %v3238 = vmax.f32 %v3148, %v3202
    %v3239 = vmax.f32 %v3149, %v3203
    %v3240 = vmax.f32 %v3150, %v3204
    %v3241 = vmax.f32 %v3151, %v3205
    %v3242 = vmax.f32 %v3152, %v3206
    %v3243 = vmax.f32 %v3153, %v3207
    %v3244 = vmax.f32 %v3154, %v3208
    %v3245 = vmax.f32 %v3155, %v3209
    %v3246 = vmax.f32 %v3156, %v3210
    %v3247 = vmax.f32 %v3157, %v3211
    %v3248 = vrot.slane %v2565, 6
    %v3249 = vrot.slane %v2567, 6
    %v3250 = vrot.slane %v2569, 6
    %v3251 = vrot.slane %v2571, 6
    %v3252 = vrot.slane %v2573, 6
    %v3253 = vrot.slane %v2575, 6
    %v3254 = vrot.slane %v2577, 6
    %v3255 = vrot.slane %v2579, 6
    %v3256 = vrot.slane %v2581, 6
    %v3257 = vrot.slane %v2583, 6
    %v3258 = vrot.slane %v2585, 6
    %v3259 = vrot.slane %v2587, 6
    %v3260 = vrot.slane %v2589, 6
    %v3261 = vrot.slane %v2591, 6
    %v3262 = vrot.slane %v2593, 6
    %v3263 = vrot.slane %v2595, 6
    %v3264 = vrot.slane %v2597, 6
    %v3265 = vrot.slane %v2599, 6
    %v3284 = vmax.f32 %v3230, %v3248
    %v3285 = vmax.f32 %v3231, %v3249
    %v3286 = vmax.f32 %v3232, %v3250
    %v3287 = vmax.f32 %v3233, %v3251
    %v3288 = vmax.f32 %v3234, %v3252
    %v3289 = vmax.f32 %v3235, %v3253
    %v3290 = vmax.f32 %v3236, %v3254
    %v3291 = vmax.f32 %v3237, %v3255
    %v3292 = vmax.f32 %v3238, %v3256
    %v3293 = vmax.f32 %v3239, %v3257
    %v3294 = vmax.f32 %v3240, %v3258
    %v3295 = vmax.f32 %v3241, %v3259
    %v3296 = vmax.f32 %v3242, %v3260
    %v3297 = vmax.f32 %v3243, %v3261
    %v3298 = vmax.f32 %v3244, %v3262
    %v3299 = vmax.f32 %v3245, %v3263
    %v3300 = vmax.f32 %v3246, %v3264
    %v3301 = vmax.f32 %v3247, %v3265
    %v3302 = vrot.slane %v2835, 6
    %v3303 = vrot.slane %v2837, 6
    %v3304 = vrot.slane %v2839, 6
    %v3305 = vrot.slane %v2841, 6
    %v3306 = vrot.slane %v2843, 6
    %v3307 = vrot.slane %v2845, 6
    %v3308 = vrot.slane %v2847, 6
    %v3309 = vrot.slane %v2849, 6
    %v3310 = vrot.slane %v2851, 6
    %v3311 = vrot.slane %v2853, 6
    %v3312 = vrot.slane %v2855, 6
    %v3313 = vrot.slane %v2857, 6
    %v3314 = vrot.slane %v2859, 6
    %v3315 = vrot.slane %v2861, 6
    %v3316 = vrot.slane %v2863, 6
    %v3317 = vrot.slane %v2865, 6
    %v3318 = vrot.slane %v2867, 6
    %v3319 = vrot.slane %v2869, 6
    %v3338 = vmax.f32 %v3248, %v3302
    %v3339 = vmax.f32 %v3249, %v3303
    %v3340 = vmax.f32 %v3250, %v3304
    %v3341 = vmax.f32 %v3251, %v3305
    %v3342 = vmax.f32 %v3252, %v3306
    %v3343 = vmax.f32 %v3253, %v3307
    %v3344 = vmax.f32 %v3254, %v3308
    %v3345 = vmax.f32 %v3255, %v3309
    %v3346 = vmax.f32 %v3256, %v3310
    %v3347 = vmax.f32 %v3257, %v3311
    %v3348 = vmax.f32 %v3258, %v3312
    %v3349 = vmax.f32 %v3259, %v3313
    %v3350 = vmax.f32 %v3260, %v3314
    %v3351 = vmax.f32 %v3261, %v3315
    %v3352 = vmax.f32 %v3262, %v3316
    %v3353 = vmax.f32 %v3263, %v3317
    %v3354 = vmax.f32 %v3264, %v3318
    %v3355 = vmax.f32 %v3265, %v3319
    %v3356 = vmax.f32 %v3338, %v2368
    %v3357 = vmax.f32 %v3339, %v2377
    %v3358 = vmax.f32 %v3340, %v2381
    %v3359 = vmax.f32 %v3341, %v2387
    %v3360 = vmax.f32 %v3342, %v2391
    %v3361 = vmax.f32 %v3343, %v2397
    %v3362 = vmax.f32 %v3344, %v2401
    %v3363 = vmax.f32 %v3345, %v2407
    %v3364 = vmax.f32 %v3346, %v2411
    %v3365 = vmax.f32 %v3347, %v2415
    %v3366 = vmax.f32 %v3348, %v2421
    %v3367 = vmax.f32 %v3349, %v2425
    %v3368 = vmax.f32 %v3350, %v2431
    %v3369 = vmax.f32 %v3351, %v2435
    %v3370 = vmax.f32 %v3352, %v2441
    %v3371 = vmax.f32 %v3353, %v2445
    %v3372 = vmax.f32 %v3354, %v2451
    %v3373 = vmax.f32 %v3355, %v2455
    %3374 = vrot.lane.b32.xlu0 %v2368, 96
    %v3375 = vpop.permute.xlu0 %3374
    %3376 = vrot.lane.b32.xlu0 %v2377, 96
    %v3377 = vpop.permute.xlu0 %3376
    %3378 = vrot.lane.b32.xlu0 %v2381, 96
    %v3379 = vpop.permute.xlu0 %3378
    %3380 = vrot.lane.b32.xlu0 %v2387, 96
    %v3381 = vpop.permute.xlu0 %3380
    %3382 = vrot.lane.b32.xlu0 %v2391, 96
    %v3383 = vpop.permute.xlu0 %3382
    %3384 = vrot.lane.b32.xlu0 %v2397, 96
    %v3385 = vpop.permute.xlu0 %3384
    %3386 = vrot.lane.b32.xlu0 %v2401, 96
    %v3387 = vpop.permute.xlu0 %3386
    %3388 = vrot.lane.b32.xlu0 %v2407, 96
    %v3389 = vpop.permute.xlu0 %3388
    %3390 = vrot.lane.b32.xlu0 %v2411, 96
    %v3391 = vpop.permute.xlu0 %3390
    %3392 = vrot.lane.b32.xlu0 %v2415, 96
    %v3393 = vpop.permute.xlu0 %3392
    %3394 = vrot.lane.b32.xlu0 %v2421, 96
    %v3395 = vpop.permute.xlu0 %3394
    %3396 = vrot.lane.b32.xlu0 %v2425, 96
    %v3397 = vpop.permute.xlu0 %3396
    %3398 = vrot.lane.b32.xlu0 %v2431, 96
    %v3399 = vpop.permute.xlu0 %3398
    %3400 = vrot.lane.b32.xlu0 %v2435, 96
    %v3401 = vpop.permute.xlu0 %3400
    %3402 = vrot.lane.b32.xlu0 %v2441, 96
    %v3403 = vpop.permute.xlu0 %3402
    %3404 = vrot.lane.b32.xlu0 %v2445, 96
    %v3405 = vpop.permute.xlu0 %3404
    %3406 = vrot.lane.b32.xlu0 %v2451, 96
    %v3407 = vpop.permute.xlu0 %3406
    %3408 = vrot.lane.b32.xlu0 %v2455, 96
    %v3409 = vpop.permute.xlu0 %3408
    %v3428 = vmax.f32 %v2368, %v3375
    %v3429 = vmax.f32 %v2377, %v3377
    %v3430 = vmax.f32 %v2381, %v3379
    %v3431 = vmax.f32 %v2387, %v3381
    %v3432 = vmax.f32 %v2391, %v3383
    %v3433 = vmax.f32 %v2397, %v3385
    %v3434 = vmax.f32 %v2401, %v3387
    %v3435 = vmax.f32 %v2407, %v3389
    %v3436 = vmax.f32 %v2411, %v3391
    %v3437 = vmax.f32 %v2415, %v3393
    %v3438 = vmax.f32 %v2421, %v3395
    %v3439 = vmax.f32 %v2425, %v3397
    %v3440 = vmax.f32 %v2431, %v3399
    %v3441 = vmax.f32 %v2435, %v3401
    %v3442 = vmax.f32 %v2441, %v3403
    %v3443 = vmax.f32 %v2445, %v3405
    %v3444 = vmax.f32 %v2451, %v3407
    %v3445 = vmax.f32 %v2455, %v3409
    %3446 = vrot.lane.b32.xlu0 %v2368, 64
    %v3447 = vpop.permute.xlu0 %3446
    %3448 = vrot.lane.b32.xlu0 %v2377, 64
    %v3449 = vpop.permute.xlu0 %3448
    %3450 = vrot.lane.b32.xlu0 %v2381, 64
    %v3451 = vpop.permute.xlu0 %3450
    %3452 = vrot.lane.b32.xlu0 %v2387, 64
    %v3453 = vpop.permute.xlu0 %3452
    %3454 = vrot.lane.b32.xlu0 %v2391, 64
    %v3455 = vpop.permute.xlu0 %3454
    %3456 = vrot.lane.b32.xlu0 %v2397, 64
    %v3457 = vpop.permute.xlu0 %3456
    %3458 = vrot.lane.b32.xlu0 %v2401, 64
    %v3459 = vpop.permute.xlu0 %3458
    %3460 = vrot.lane.b32.xlu0 %v2407, 64
    %v3461 = vpop.permute.xlu0 %3460
    %3462 = vrot.lane.b32.xlu0 %v2411, 64
    %v3463 = vpop.permute.xlu0 %3462
    %3464 = vrot.lane.b32.xlu0 %v2415, 64
    %v3465 = vpop.permute.xlu0 %3464
    %3466 = vrot.lane.b32.xlu0 %v2421, 64
    %v3467 = vpop.permute.xlu0 %3466
    %3468 = vrot.lane.b32.xlu0 %v2425, 64
    %v3469 = vpop.permute.xlu0 %3468
    %3470 = vrot.lane.b32.xlu0 %v2431, 64
    %v3471 = vpop.permute.xlu0 %3470
    %3472 = vrot.lane.b32.xlu0 %v2435, 64
    %v3473 = vpop.permute.xlu0 %3472
    %3474 = vrot.lane.b32.xlu0 %v2441, 64
    %v3475 = vpop.permute.xlu0 %3474
    %3476 = vrot.lane.b32.xlu0 %v2445, 64
    %v3477 = vpop.permute.xlu0 %3476
    %3478 = vrot.lane.b32.xlu0 %v2451, 64
    %v3479 = vpop.permute.xlu0 %3478
    %3480 = vrot.lane.b32.xlu0 %v2455, 64
    %v3481 = vpop.permute.xlu0 %3480
    %v3500 = vmax.f32 %v3428, %v3447
    %v3501 = vmax.f32 %v3429, %v3449
    %v3502 = vmax.f32 %v3430, %v3451
    %v3503 = vmax.f32 %v3431, %v3453
    %v3504 = vmax.f32 %v3432, %v3455
    %v3505 = vmax.f32 %v3433, %v3457
    %v3506 = vmax.f32 %v3434, %v3459
    %v3507 = vmax.f32 %v3435, %v3461
    %v3508 = vmax.f32 %v3436, %v3463
    %v3509 = vmax.f32 %v3437, %v3465
    %v3510 = vmax.f32 %v3438, %v3467
    %v3511 = vmax.f32 %v3439, %v3469
    %v3512 = vmax.f32 %v3440, %v3471
    %v3513 = vmax.f32 %v3441, %v3473
    %v3514 = vmax.f32 %v3442, %v3475
    %v3515 = vmax.f32 %v3443, %v3477
    %v3516 = vmax.f32 %v3444, %v3479
    %v3517 = vmax.f32 %v3445, %v3481
    %3536 = vrot.lane.b32.xlu0 %v2690, 64
    %v3537 = vpop.permute.xlu0 %3536
    %3538 = vrot.lane.b32.xlu0 %v2691, 64
    %v3539 = vpop.permute.xlu0 %3538
    %3540 = vrot.lane.b32.xlu0 %v2692, 64
    %v3541 = vpop.permute.xlu0 %3540
    %3542 = vrot.lane.b32.xlu0 %v2693, 64
    %v3543 = vpop.permute.xlu0 %3542
    %3544 = vrot.lane.b32.xlu0 %v2694, 64
    %v3545 = vpop.permute.xlu0 %3544
    %3546 = vrot.lane.b32.xlu0 %v2695, 64
    %v3547 = vpop.permute.xlu0 %3546
    %3548 = vrot.lane.b32.xlu0 %v2696, 64
    %v3549 = vpop.permute.xlu0 %3548
    %3550 = vrot.lane.b32.xlu0 %v2697, 64
    %v3551 = vpop.permute.xlu0 %3550
    %3552 = vrot.lane.b32.xlu0 %v2698, 64
    %v3553 = vpop.permute.xlu0 %3552
    %3554 = vrot.lane.b32.xlu0 %v2699, 64
    %v3555 = vpop.permute.xlu0 %3554
    %3556 = vrot.lane.b32.xlu0 %v2700, 64
    %v3557 = vpop.permute.xlu0 %3556
    %3558 = vrot.lane.b32.xlu0 %v2701, 64
    %v3559 = vpop.permute.xlu0 %3558
    %3560 = vrot.lane.b32.xlu0 %v2702, 64
    %v3561 = vpop.permute.xlu0 %3560
    %3562 = vrot.lane.b32.xlu0 %v2703, 64
    %v3563 = vpop.permute.xlu0 %3562
    %3564 = vrot.lane.b32.xlu0 %v2704, 64
    %v3565 = vpop.permute.xlu0 %3564
    %3566 = vrot.lane.b32.xlu0 %v2705, 64
    %v3567 = vpop.permute.xlu0 %3566
    %3568 = vrot.lane.b32.xlu0 %v2706, 64
    %v3569 = vpop.permute.xlu0 %3568
    %3570 = vrot.lane.b32.xlu0 %v2707, 64
    %v3571 = vpop.permute.xlu0 %3570
    %v3716 = vperm.slane %v2618, 0
    %v3717 = vperm.slane %v2619, 0
    %v3718 = vperm.slane %v2620, 0
    %v3719 = vperm.slane %v2621, 0
    %v3720 = vperm.slane %v2622, 0
    %v3721 = vperm.slane %v2623, 0
    %v3722 = vperm.slane %v2624, 0
    %v3723 = vperm.slane %v2625, 0
    %v3724 = vperm.slane %v2626, 0
    %v3725 = vperm.slane %v3537, 0
    %v3726 = vperm.slane %v3539, 0
    %v3727 = vperm.slane %v3541, 0
    %v3728 = vperm.slane %v3543, 0
    %v3729 = vperm.slane %v3545, 0
    %v3730 = vperm.slane %v3547, 0
    %v3731 = vperm.slane %v3549, 0
    %v3732 = vperm.slane %v3551, 0
    %v3733 = vperm.slane %v3553, 0
    %v3734 = vperm.slane %v2816, 0
    %v3735 = vperm.slane %v2817, 0
    %v3736 = vperm.slane %v2818, 0
    %v3737 = vperm.slane %v2819, 0
    %v3738 = vperm.slane %v2820, 0
    %v3739 = vperm.slane %v2821, 0
    %v3740 = vperm.slane %v2822, 0
    %v3741 = vperm.slane %v2823, 0
    %v3742 = vperm.slane %v2824, 0
    %v3743 = vperm.slane %v2960, 0
    %v3744 = vperm.slane %v2961, 0
    %v3745 = vperm.slane %v2962, 0
    %v3746 = vperm.slane %v2963, 0
    %v3747 = vperm.slane %v2964, 0
    %v3748 = vperm.slane %v2965, 0
    %v3749 = vperm.slane %v2966, 0
    %v3750 = vperm.slane %v2967, 0
    %v3751 = vperm.slane %v2968, 0
    %v3752 = vperm.slane %v3068, 0
    %v3753 = vperm.slane %v3069, 0
    %v3754 = vperm.slane %v3070, 0
    %v3755 = vperm.slane %v3071, 0
    %v3756 = vperm.slane %v3072, 0
    %v3757 = vperm.slane %v3073, 0
    %v3758 = vperm.slane %v3074, 0
    %v3759 = vperm.slane %v3075, 0
    %v3760 = vperm.slane %v3076, 0
    %v3761 = vperm.slane %v3176, 0
    %v3762 = vperm.slane %v3177, 0
    %v3763 = vperm.slane %v3178, 0
    %v3764 = vperm.slane %v3179, 0
    %v3765 = vperm.slane %v3180, 0
    %v3766 = vperm.slane %v3181, 0
    %v3767 = vperm.slane %v3182, 0
    %v3768 = vperm.slane %v3183, 0
    %v3769 = vperm.slane %v3184, 0
    %v3770 = vperm.slane %v3284, 0
    %v3771 = vperm.slane %v3285, 0
    %v3772 = vperm.slane %v3286, 0
    %v3773 = vperm.slane %v3287, 0
    %v3774 = vperm.slane %v3288, 0
    %v3775 = vperm.slane %v3289, 0
    %v3776 = vperm.slane %v3290, 0
    %v3777 = vperm.slane %v3291, 0
    %v3778 = vperm.slane %v3292, 0
    %v3779 = vperm.slane %v3356, 0
    %v3780 = vperm.slane %v3357, 0
    %v3781 = vperm.slane %v3358, 0
    %v3782 = vperm.slane %v3359, 0
    %v3783 = vperm.slane %v3360, 0
    %v3784 = vperm.slane %v3361, 0
    %v3785 = vperm.slane %v3362, 0
    %v3786 = vperm.slane %v3363, 0
    %v3787 = vperm.slane %v3364, 0
    %v3788 = vperm.slane %v3500, 0
    %v3789 = vperm.slane %v3501, 0
    %v3790 = vperm.slane %v3502, 0
    %v3791 = vperm.slane %v3503, 0
    %v3792 = vperm.slane %v3504, 0
    %v3793 = vperm.slane %v3505, 0
    %v3794 = vperm.slane %v3506, 0
    %v3795 = vperm.slane %v3507, 0
    %v3796 = vperm.slane %v3508, 0
    %v3797 = vperm.slane %v2627, 0
    %v3798 = vperm.slane %v2628, 0
    %v3799 = vperm.slane %v2629, 0
    %v3800 = vperm.slane %v2630, 0
    %v3801 = vperm.slane %v2631, 0
    %v3802 = vperm.slane %v2632, 0
    %v3803 = vperm.slane %v2633, 0
    %v3804 = vperm.slane %v2634, 0
    %v3805 = vperm.slane %v2635, 0
    %v3806 = vperm.slane %v3555, 0
    %v3807 = vperm.slane %v3557, 0
    %v3808 = vperm.slane %v3559, 0
    %v3809 = vperm.slane %v3561, 0
    %v3810 = vperm.slane %v3563, 0
    %v3811 = vperm.slane %v3565, 0
    %v3812 = vperm.slane %v3567, 0
    %v3813 = vperm.slane %v3569, 0
    %v3814 = vperm.slane %v3571, 0
    %v3815 = vperm.slane %v2825, 0
    %v3816 = vperm.slane %v2826, 0
    %v3817 = vperm.slane %v2827, 0
    %v3818 = vperm.slane %v2828, 0
    %v3819 = vperm.slane %v2829, 0
    %v3820 = vperm.slane %v2830, 0
    %v3821 = vperm.slane %v2831, 0
    %v3822 = vperm.slane %v2832, 0
    %v3823 = vperm.slane %v2833, 0
    %v3824 = vperm.slane %v2969, 0
    %v3825 = vperm.slane %v2970, 0
    %v3826 = vperm.slane %v2971, 0
    %v3827 = vperm.slane %v2972, 0
    %v3828 = vperm.slane %v2973, 0
    %v3829 = vperm.slane %v2974, 0
    %v3830 = vperm.slane %v2975, 0
    %v3831 = vperm.slane %v2976, 0
    %v3832 = vperm.slane %v2977, 0
    %v3833 = vperm.slane %v3077, 0
    %v3834 = vperm.slane %v3078, 0
    %v3835 = vperm.slane %v3079, 0
    %v3836 = vperm.slane %v3080, 0
    %v3837 = vperm.slane %v3081, 0
    %v3838 = vperm.slane %v3082, 0
    %v3839 = vperm.slane %v3083, 0
    %v3840 = vperm.slane %v3084, 0
    %v3841 = vperm.slane %v3085, 0
    %v3842 = vperm.slane %v3185, 0
    %v3843 = vperm.slane %v3186, 0
    %v3844 = vperm.slane %v3187, 0
    %v3845 = vperm.slane %v3188, 0
    %v3846 = vperm.slane %v3189, 0
    %v3847 = vperm.slane %v3190, 0
    %v3848 = vperm.slane %v3191, 0
    %v3849 = vperm.slane %v3192, 0
    %v3850 = vperm.slane %v3193, 0
    %v3851 = vperm.slane %v3293, 0
    %v3852 = vperm.slane %v3294, 0
    %v3853 = vperm.slane %v3295, 0
    %v3854 = vperm.slane %v3296, 0
    %v3855 = vperm.slane %v3297, 0
    %v3856 = vperm.slane %v3298, 0
    %v3857 = vperm.slane %v3299, 0
    %v3858 = vperm.slane %v3300, 0
    %v3859 = vperm.slane %v3301, 0
    %v3860 = vperm.slane %v3365, 0
    %v3861 = vperm.slane %v3366, 0
    %v3862 = vperm.slane %v3367, 0
    %v3863 = vperm.slane %v3368, 0
    %v3864 = vperm.slane %v3369, 0
    %v3865 = vperm.slane %v3370, 0
    %v3866 = vperm.slane %v3371, 0
    %v3867 = vperm.slane %v3372, 0
    %v3868 = vperm.slane %v3373, 0
    %v3869 = vperm.slane %v3509, 0
    %v3870 = vperm.slane %v3510, 0
    %v3871 = vperm.slane %v3511, 0
    %v3872 = vperm.slane %v3512, 0
    %v3873 = vperm.slane %v3513, 0
    %v3874 = vperm.slane %v3514, 0
    %v3875 = vperm.slane %v3515, 0
    %v3876 = vperm.slane %v3516, 0
    %v3877 = vperm.slane %v3517, 0
    %vm3878 = vcmask 1041409
    %v3879 = vsel %vm3878, %v3717, %v3716
    %vm3880 = vcmask 1042434
    %v3881 = vsel %vm3880, %v3718, %v3879
    %vm3882 = vcmask 1043459
    %v3883 = vsel %vm3882, %v3719, %v3881
    %vm3884 = vcmask 1044484
    %v3885 = vsel %vm3884, %v3720, %v3883
    %vm3886 = vcmask 1045509
    %v3887 = vsel %vm3886, %v3721, %v3885
    %vm3888 = vcmask 1046534
    %v3889 = vsel %vm3888, %v3722, %v3887
    %vm3890 = vcmask 1047559
    %v3891 = vsel %vm3890, %v3723, %v3889
    %v3892 = vsel %vm3878, %v3726, %v3725
    %v3893 = vsel %vm3880, %v3727, %v3892
    %v3894 = vsel %vm3882, %v3728, %v3893
    %v3895 = vsel %vm3884, %v3729, %v3894
    %v3896 = vsel %vm3886, %v3730, %v3895
    %v3897 = vsel %vm3888, %v3731, %v3896
    %v3898 = vsel %vm3890, %v3732, %v3897
    %v3899 = vsel %vm3878, %v3735, %v3734
    %v3900 = vsel %vm3880, %v3736, %v3899
    %v3901 = vsel %vm3882, %v3737, %v3900
    %v3902 = vsel %vm3884, %v3738, %v3901
    %v3903 = vsel %vm3886, %v3739, %v3902
    %v3904 = vsel %vm3888, %v3740, %v3903
    %v3905 = vsel %vm3890, %v3741, %v3904
    %v3906 = vsel %vm3878, %v3744, %v3743
    %v3907 = vsel %vm3880, %v3745, %v3906
    %v3908 = vsel %vm3882, %v3746, %v3907
    %v3909 = vsel %vm3884, %v3747, %v3908
    %v3910 = vsel %vm3886, %v3748, %v3909
    %v3911 = vsel %vm3888, %v3749, %v3910
    %v3912 = vsel %vm3890, %v3750, %v3911
    %v3913 = vsel %vm3878, %v3753, %v3752
    %v3914 = vsel %vm3880, %v3754, %v3913
    %v3915 = vsel %vm3882, %v3755, %v3914
    %v3916 = vsel %vm3884, %v3756, %v3915
    %v3917 = vsel %vm3886, %v3757, %v3916
    %v3918 = vsel %vm3888, %v3758, %v3917
    %v3919 = vsel %vm3890, %v3759, %v3918
    %v3920 = vsel %vm3878, %v3762, %v3761
    %v3921 = vsel %vm3880, %v3763, %v3920
    %v3922 = vsel %vm3882, %v3764, %v3921
    %v3923 = vsel %vm3884, %v3765, %v3922
    %v3924 = vsel %vm3886, %v3766, %v3923
    %v3925 = vsel %vm3888, %v3767, %v3924
    %v3926 = vsel %vm3890, %v3768, %v3925
    %v3927 = vsel %vm3878, %v3771, %v3770
    %v3928 = vsel %vm3880, %v3772, %v3927
    %v3929 = vsel %vm3882, %v3773, %v3928
    %v3930 = vsel %vm3884, %v3774, %v3929
    %v3931 = vsel %vm3886, %v3775, %v3930
    %v3932 = vsel %vm3888, %v3776, %v3931
    %v3933 = vsel %vm3890, %v3777, %v3932
    %v3934 = vsel %vm3878, %v3780, %v3779
    %v3935 = vsel %vm3880, %v3781, %v3934
    %v3936 = vsel %vm3882, %v3782, %v3935
    %v3937 = vsel %vm3884, %v3783, %v3936
    %v3938 = vsel %vm3886, %v3784, %v3937
    %v3939 = vsel %vm3888, %v3785, %v3938
    %v3940 = vsel %vm3890, %v3786, %v3939
    %v3941 = vsel %vm3878, %v3789, %v3788
    %v3942 = vsel %vm3880, %v3790, %v3941
    %v3943 = vsel %vm3882, %v3791, %v3942
    %v3944 = vsel %vm3884, %v3792, %v3943
    %v3945 = vsel %vm3886, %v3793, %v3944
    %v3946 = vsel %vm3888, %v3794, %v3945
    %v3947 = vsel %vm3890, %v3795, %v3946
    %v3948 = vsel %vm3878, %v3798, %v3797
    %v3949 = vsel %vm3880, %v3799, %v3948
    %v3950 = vsel %vm3882, %v3800, %v3949
    %v3951 = vsel %vm3884, %v3801, %v3950
    %v3952 = vsel %vm3886, %v3802, %v3951
    %v3953 = vsel %vm3888, %v3803, %v3952
    %v3954 = vsel %vm3890, %v3804, %v3953
    %v3955 = vsel %vm3878, %v3807, %v3806
    %v3956 = vsel %vm3880, %v3808, %v3955
    %v3957 = vsel %vm3882, %v3809, %v3956
    %v3958 = vsel %vm3884, %v3810, %v3957
    %v3959 = vsel %vm3886, %v3811, %v3958
    %v3960 = vsel %vm3888, %v3812, %v3959
    %v3961 = vsel %vm3890, %v3813, %v3960
    %v3962 = vsel %vm3878, %v3816, %v3815
    %v3963 = vsel %vm3880, %v3817, %v3962
    %v3964 = vsel %vm3882, %v3818, %v3963
    %v3965 = vsel %vm3884, %v3819, %v3964
    %v3966 = vsel %vm3886, %v3820, %v3965
    %v3967 = vsel %vm3888, %v3821, %v3966
    %v3968 = vsel %vm3890, %v3822, %v3967
    %v3969 = vsel %vm3878, %v3825, %v3824
    %v3970 = vsel %vm3880, %v3826, %v3969
    %v3971 = vsel %vm3882, %v3827, %v3970
    %v3972 = vsel %vm3884, %v3828, %v3971
    %v3973 = vsel %vm3886, %v3829, %v3972
    %v3974 = vsel %vm3888, %v3830, %v3973
    %v3975 = vsel %vm3890, %v3831, %v3974
    %v3976 = vsel %vm3878, %v3834, %v3833
    %v3977 = vsel %vm3880, %v3835, %v3976
    %v3978 = vsel %vm3882, %v3836, %v3977
    %v3979 = vsel %vm3884, %v3837, %v3978
    %v3980 = vsel %vm3886, %v3838, %v3979
    %v3981 = vsel %vm3888, %v3839, %v3980
    %v3982 = vsel %vm3890, %v3840, %v3981
    %v3983 = vsel %vm3878, %v3843, %v3842
    %v3984 = vsel %vm3880, %v3844, %v3983
    %v3985 = vsel %vm3882, %v3845, %v3984
    %v3986 = vsel %vm3884, %v3846, %v3985
    %v3987 = vsel %vm3886, %v3847, %v3986
    %v3988 = vsel %vm3888, %v3848, %v3987
    %v3989 = vsel %vm3890, %v3849, %v3988
    %v3990 = vsel %vm3878, %v3852, %v3851
    %v3991 = vsel %vm3880, %v3853, %v3990
    %v3992 = vsel %vm3882, %v3854, %v3991
    %v3993 = vsel %vm3884, %v3855, %v3992
    %v3994 = vsel %vm3886, %v3856, %v3993
    %v3995 = vsel %vm3888, %v3857, %v3994
    %v3996 = vsel %vm3890, %v3858, %v3995
    %v3997 = vsel %vm3878, %v3861, %v3860
    %v3998 = vsel %vm3880, %v3862, %v3997
    %v3999 = vsel %vm3882, %v3863, %v3998
    %v4000 = vsel %vm3884, %v3864, %v3999
    %v4001 = vsel %vm3886, %v3865, %v4000
    %v4002 = vsel %vm3888, %v3866, %v4001
    %v4003 = vsel %vm3890, %v3867, %v4002
    %v4004 = vsel %vm3878, %v3870, %v3869
    %v4005 = vsel %vm3880, %v3871, %v4004
    %v4006 = vsel %vm3882, %v3872, %v4005
    %v4007 = vsel %vm3884, %v3873, %v4006
    %v4008 = vsel %vm3886, %v3874, %v4007
    %v4009 = vsel %vm3888, %v3875, %v4008
    %v4010 = vsel %vm3890, %v3876, %v4009
    %s4047 = scalar_lea.vmem [#allocation2], 16
    %4048 = vst.msk [vmem:[%s4047 + $0x1] sm:$0xff] %vm49, %v3891
    %vm4049 = vcmask 253952
    %4050 = vst.msk [vmem:[%s4047 + $0x9] sm:$0x1] %vm4049, %v3724
    %4051 = vst.msk [vmem:[%s4047 + $0x11] sm:$0xff] %vm49, %v3898
    %4052 = vst.msk [vmem:[%s4047 + $0x19] sm:$0x1] %vm4049, %v3733
    %4053 = vst.msk [vmem:[%s4047 + $0x21] sm:$0xff] %vm49, %v3905
    %4054 = vst.msk [vmem:[%s4047 + $0x29] sm:$0x1] %vm4049, %v3742
    %4055 = vst.msk [vmem:[%s4047 + $0x31] sm:$0xff] %vm49, %v3912
    %4056 = vst.msk [vmem:[%s4047 + $0x39] sm:$0x1] %vm4049, %v3751
    %4057 = vst.msk [vmem:[%s4047 + $0x41] sm:$0xff] %vm49, %v3919
    %4058 = vst.msk [vmem:[%s4047 + $0x49] sm:$0x1] %vm4049, %v3760
    %4059 = vst.msk [vmem:[%s4047 + $0x51] sm:$0xff] %vm49, %v3926
    %4060 = vst.msk [vmem:[%s4047 + $0x59] sm:$0x1] %vm4049, %v3769
    %4061 = vst.msk [vmem:[%s4047 + $0x61] sm:$0xff] %vm49, %v3933
    %4062 = vst.msk [vmem:[%s4047 + $0x69] sm:$0x1] %vm4049, %v3778
    %4063 = vst.msk [vmem:[%s4047 + $0x71] sm:$0xff] %vm49, %v3940
    %4064 = vst.msk [vmem:[%s4047 + $0x79] sm:$0x1] %vm4049, %v3787
    %4065 = vst.msk [vmem:[%s4047 + $0x81] sm:$0xff] %vm49, %v3947
    %4066 = vst.msk [vmem:[%s4047 + $0x89] sm:$0x1] %vm4049, %v3796
    %4067 = vst.msk [vmem:[%s4047 + $0xb1] sm:$0xff] %vm49, %v3954
    %4068 = vst.msk [vmem:[%s4047 + $0xb9] sm:$0x1] %vm4049, %v3805
    %4069 = vst.msk [vmem:[%s4047 + $0xc1] sm:$0xff] %vm49, %v3961
    %4070 = vst.msk [vmem:[%s4047 + $0xc9] sm:$0x1] %vm4049, %v3814
    %4071 = vst.msk [vmem:[%s4047 + $0xd1] sm:$0xff] %vm49, %v3968
    %4072 = vst.msk [vmem:[%s4047 + $0xd9] sm:$0x1] %vm4049, %v3823
    %4073 = vst.msk [vmem:[%s4047 + $0xe1] sm:$0xff] %vm49, %v3975
    %4074 = vst.msk [vmem:[%s4047 + $0xe9] sm:$0x1] %vm4049, %v3832
    %4075 = vst.msk [vmem:[%s4047 + $0xf1] sm:$0xff] %vm49, %v3982
    %4076 = vst.msk [vmem:[%s4047 + $0xf9] sm:$0x1] %vm4049, %v3841
    %4077 = vst.msk [vmem:[%s4047 + $0x101] sm:$0xff] %vm49, %v3989
    %4078 = vst.msk [vmem:[%s4047 + $0x109] sm:$0x1] %vm4049, %v3850
    %4079 = vst.msk [vmem:[%s4047 + $0x111] sm:$0xff] %vm49, %v3996
    %4080 = vst.msk [vmem:[%s4047 + $0x119] sm:$0x1] %vm4049, %v3859
    %4081 = vst.msk [vmem:[%s4047 + $0x121] sm:$0xff] %vm49, %v4003
    %4082 = vst.msk [vmem:[%s4047 + $0x129] sm:$0x1] %vm4049, %v3868
    %4083 = vst.msk [vmem:[%s4047 + $0x131] sm:$0xff] %vm49, %v4010
    %4084 = vst.msk [vmem:[%s4047 + $0x139] sm:$0x1] %vm4049, %v3877
    %v4085 = vld [vmem:[#allocation2] sm:$0xff]
    %v4086 = vld [vmem:[#allocation2 + $0x8] sm:$0x1]
    %v4087 = vld [vmem:[#allocation2 + $0x10] sm:$0xff]
    %v4088 = vld [vmem:[#allocation2 + $0x18] sm:$0x1]
    %v4089 = vld [vmem:[#allocation2 + $0x20] sm:$0xff]
    %v4090 = vld [vmem:[#allocation2 + $0x28] sm:$0x1]
    %v4091 = vld [vmem:[#allocation2 + $0x30] sm:$0xff]
    %v4092 = vld [vmem:[#allocation2 + $0x38] sm:$0x1]
    %v4093 = vld [vmem:[#allocation2 + $0x40] sm:$0xff]
    %v4094 = vld [vmem:[#allocation2 + $0x48] sm:$0x1]
    %v4095 = vld [vmem:[#allocation2 + $0x50] sm:$0xff]
    %v4096 = vld [vmem:[#allocation2 + $0x58] sm:$0x1]
    %v4097 = vld [vmem:[#allocation2 + $0x60] sm:$0xff]
    %v4098 = vld [vmem:[#allocation2 + $0x68] sm:$0x1]
    %v4099 = vld [vmem:[#allocation2 + $0x70] sm:$0xff]
    %v4100 = vld [vmem:[#allocation2 + $0x78] sm:$0x1]
    %v4101 = vld [vmem:[#allocation2 + $0x80] sm:$0xff]
    %v4102 = vld [vmem:[#allocation2 + $0x88] sm:$0x1]
    %v4103 = vld [vmem:[#allocation2 + $0xb0] sm:$0xff]
    %v4104 = vld [vmem:[#allocation2 + $0xb8] sm:$0x1]
    %v4105 = vld [vmem:[#allocation2 + $0xc0] sm:$0xff]
    %v4106 = vld [vmem:[#allocation2 + $0xc8] sm:$0x1]
    %v4107 = vld [vmem:[#allocation2 + $0xd0] sm:$0xff]
    %v4108 = vld [vmem:[#allocation2 + $0xd8] sm:$0x1]
    %v4109 = vld [vmem:[#allocation2 + $0xe0] sm:$0xff]
    %v4110 = vld [vmem:[#allocation2 + $0xe8] sm:$0x1]
    %v4111 = vld [vmem:[#allocation2 + $0xf0] sm:$0xff]
    %v4112 = vld [vmem:[#allocation2 + $0xf8] sm:$0x1]
    %v4113 = vld [vmem:[#allocation2 + $0x100] sm:$0xff]
    %v4114 = vld [vmem:[#allocation2 + $0x108] sm:$0x1]
    %v4115 = vld [vmem:[#allocation2 + $0x110] sm:$0xff]
    %v4116 = vld [vmem:[#allocation2 + $0x118] sm:$0x1]
    %v4117 = vld [vmem:[#allocation2 + $0x120] sm:$0xff]
    %v4118 = vld [vmem:[#allocation2 + $0x128] sm:$0x1]
    %v4119 = vld [vmem:[#allocation2 + $0x130] sm:$0xff]
    %v4120 = vld [vmem:[#allocation2 + $0x138] sm:$0x1]
    %v4121 = vld [vmem:[%s2] sm:$0x1]
    %v4122 = vperm.slane %v4121, 0
    %v4123 = vmul.f32 %v4085, %v4122
    %v4124 = vmul.f32 %v4086, %v4122
    %v4125 = vmul.f32 %v4087, %v4122
    %v4126 = vmul.f32 %v4088, %v4122
    %v4127 = vmul.f32 %v4089, %v4122
    %v4128 = vmul.f32 %v4090, %v4122
    %v4129 = vmul.f32 %v4091, %v4122
    %v4130 = vmul.f32 %v4092, %v4122
    %v4131 = vmul.f32 %v4093, %v4122
    %v4132 = vmul.f32 %v4094, %v4122
    %v4133 = vmul.f32 %v4095, %v4122
    %v4134 = vmul.f32 %v4096, %v4122
    %v4135 = vmul.f32 %v4097, %v4122
    %v4136 = vmul.f32 %v4098, %v4122
    %v4137 = vmul.f32 %v4099, %v4122
    %v4138 = vmul.f32 %v4100, %v4122
    %v4139 = vmul.f32 %v4101, %v4122
    %v4140 = vmul.f32 %v4102, %v4122
    %v4141 = vmul.f32 %v4103, %v4122
    %v4142 = vmul.f32 %v4104, %v4122
    %v4143 = vmul.f32 %v4105, %v4122
    %v4144 = vmul.f32 %v4106, %v4122
    %v4145 = vmul.f32 %v4107, %v4122
    %v4146 = vmul.f32 %v4108, %v4122
    %v4147 = vmul.f32 %v4109, %v4122
    %v4148 = vmul.f32 %v4110, %v4122
    %v4149 = vmul.f32 %v4111, %v4122
    %v4150 = vmul.f32 %v4112, %v4122
    %v4151 = vmul.f32 %v4113, %v4122
    %v4152 = vmul.f32 %v4114, %v4122
    %v4153 = vmul.f32 %v4115, %v4122
    %v4154 = vmul.f32 %v4116, %v4122
    %v4155 = vmul.f32 %v4117, %v4122
    %v4156 = vmul.f32 %v4118, %v4122
    %v4157 = vmul.f32 %v4119, %v4122
    %v4158 = vmul.f32 %v4120, %v4122
    %v4159 = vadd.f32 %v4123, 0.0
    %v4160 = vadd.f32 %v4124, 0.0
    %v4161 = vadd.f32 %v4125, 0.0
    %v4162 = vadd.f32 %v4126, 0.0
    %v4163 = vadd.f32 %v4127, 0.0
    %v4164 = vadd.f32 %v4128, 0.0
    %v4165 = vadd.f32 %v4129, 0.0
    %v4166 = vadd.f32 %v4130, 0.0
    %v4167 = vadd.f32 %v4131, 0.0
    %v4168 = vadd.f32 %v4132, 0.0
    %v4169 = vadd.f32 %v4133, 0.0
    %v4170 = vadd.f32 %v4134, 0.0
    %v4171 = vadd.f32 %v4135, 0.0
    %v4172 = vadd.f32 %v4136, 0.0
    %v4173 = vadd.f32 %v4137, 0.0
    %v4174 = vadd.f32 %v4138, 0.0
    %v4175 = vadd.f32 %v4139, 0.0
    %v4176 = vadd.f32 %v4140, 0.0
    %v4177 = vadd.f32 %v4141, 0.0
    %v4178 = vadd.f32 %v4142, 0.0
    %v4179 = vadd.f32 %v4143, 0.0
    %v4180 = vadd.f32 %v4144, 0.0
    %v4181 = vadd.f32 %v4145, 0.0
    %v4182 = vadd.f32 %v4146, 0.0
    %v4183 = vadd.f32 %v4147, 0.0
    %v4184 = vadd.f32 %v4148, 0.0
    %v4185 = vadd.f32 %v4149, 0.0
    %v4186 = vadd.f32 %v4150, 0.0
    %v4187 = vadd.f32 %v4151, 0.0
    %v4188 = vadd.f32 %v4152, 0.0
    %v4189 = vadd.f32 %v4153, 0.0
    %v4190 = vadd.f32 %v4154, 0.0
    %v4191 = vadd.f32 %v4155, 0.0
    %v4192 = vadd.f32 %v4156, 0.0
    %v4193 = vadd.f32 %v4157, 0.0
    %v4194 = vadd.f32 %v4158, 0.0
    %v4195 = vld [vmem:[#allocation2 + $0x1] sm:$0xff]
    %v4196 = vld [vmem:[#allocation2 + $0x9] sm:$0x1]
    %v4197 = vld [vmem:[#allocation2 + $0x11] sm:$0xff]
    %v4198 = vld [vmem:[#allocation2 + $0x19] sm:$0x1]
    %v4199 = vld [vmem:[#allocation2 + $0x21] sm:$0xff]
    %v4200 = vld [vmem:[#allocation2 + $0x29] sm:$0x1]
    %v4201 = vld [vmem:[#allocation2 + $0x31] sm:$0xff]
    %v4202 = vld [vmem:[#allocation2 + $0x39] sm:$0x1]
    %v4203 = vld [vmem:[#allocation2 + $0x41] sm:$0xff]
    %v4204 = vld [vmem:[#allocation2 + $0x49] sm:$0x1]
    %v4205 = vld [vmem:[#allocation2 + $0x51] sm:$0xff]
    %v4206 = vld [vmem:[#allocation2 + $0x59] sm:$0x1]
    %v4207 = vld [vmem:[#allocation2 + $0x61] sm:$0xff]
    %v4208 = vld [vmem:[#allocation2 + $0x69] sm:$0x1]
    %v4209 = vld [vmem:[#allocation2 + $0x71] sm:$0xff]
    %v4210 = vld [vmem:[#allocation2 + $0x79] sm:$0x1]
    %v4211 = vld [vmem:[#allocation2 + $0x81] sm:$0xff]
    %v4212 = vld [vmem:[#allocation2 + $0x89] sm:$0x1]
    %v4213 = vld [vmem:[#allocation2 + $0xb1] sm:$0xff]
    %v4214 = vld [vmem:[#allocation2 + $0xb9] sm:$0x1]
    %v4215 = vld [vmem:[#allocation2 + $0xc1] sm:$0xff]
    %v4216 = vld [vmem:[#allocation2 + $0xc9] sm:$0x1]
    %v4217 = vld [vmem:[#allocation2 + $0xd1] sm:$0xff]
    %v4218 = vld [vmem:[#allocation2 + $0xd9] sm:$0x1]
    %v4219 = vld [vmem:[#allocation2 + $0xe1] sm:$0xff]
    %v4220 = vld [vmem:[#allocation2 + $0xe9] sm:$0x1]
    %v4221 = vld [vmem:[#allocation2 + $0xf1] sm:$0xff]
    %v4222 = vld [vmem:[#allocation2 + $0xf9] sm:$0x1]
    %v4223 = vld [vmem:[#allocation2 + $0x101] sm:$0xff]
    %v4224 = vld [vmem:[#allocation2 + $0x109] sm:$0x1]
    %v4225 = vld [vmem:[#allocation2 + $0x111] sm:$0xff]
    %v4226 = vld [vmem:[#allocation2 + $0x119] sm:$0x1]
    %v4227 = vld [vmem:[#allocation2 + $0x121] sm:$0xff]
    %v4228 = vld [vmem:[#allocation2 + $0x129] sm:$0x1]
    %v4229 = vld [vmem:[#allocation2 + $0x131] sm:$0xff]
    %v4230 = vld [vmem:[#allocation2 + $0x139] sm:$0x1]
    %v4231 = vld [vmem:[%s2 + $0x1] sm:$0x1]
    %v4232 = vperm.slane %v4231, 0
    %v4233 = vmul.f32 %v4195, %v4232
    %v4234 = vmul.f32 %v4196, %v4232
    %v4235 = vmul.f32 %v4197, %v4232
    %v4236 = vmul.f32 %v4198, %v4232
    %v4237 = vmul.f32 %v4199, %v4232
    %v4238 = vmul.f32 %v4200, %v4232
    %v4239 = vmul.f32 %v4201, %v4232
    %v4240 = vmul.f32 %v4202, %v4232
    %v4241 = vmul.f32 %v4203, %v4232
    %v4242 = vmul.f32 %v4204, %v4232
    %v4243 = vmul.f32 %v4205, %v4232
    %v4244 = vmul.f32 %v4206, %v4232
    %v4245 = vmul.f32 %v4207, %v4232
    %v4246 = vmul.f32 %v4208, %v4232
    %v4247 = vmul.f32 %v4209, %v4232
    %v4248 = vmul.f32 %v4210, %v4232
    %v4249 = vmul.f32 %v4211, %v4232
    %v4250 = vmul.f32 %v4212, %v4232
    %v4251 = vmul.f32 %v4213, %v4232
    %v4252 = vmul.f32 %v4214, %v4232
    %v4253 = vmul.f32 %v4215, %v4232
    %v4254 = vmul.f32 %v4216, %v4232
    %v4255 = vmul.f32 %v4217, %v4232
    %v4256 = vmul.f32 %v4218, %v4232
    %v4257 = vmul.f32 %v4219, %v4232
    %v4258 = vmul.f32 %v4220, %v4232
    %v4259 = vmul.f32 %v4221, %v4232
    %v4260 = vmul.f32 %v4222, %v4232
    %v4261 = vmul.f32 %v4223, %v4232
    %v4262 = vmul.f32 %v4224, %v4232
    %v4263 = vmul.f32 %v4225, %v4232
    %v4264 = vmul.f32 %v4226, %v4232
    %v4265 = vmul.f32 %v4227, %v4232
    %v4266 = vmul.f32 %v4228, %v4232
    %v4267 = vmul.f32 %v4229, %v4232
    %v4268 = vmul.f32 %v4230, %v4232
    %v4269 = vadd.f32 %v4159, %v4233
    %v4270 = vadd.f32 %v4160, %v4234
    %v4271 = vadd.f32 %v4161, %v4235
    %v4272 = vadd.f32 %v4162, %v4236
    %v4273 = vadd.f32 %v4163, %v4237
    %v4274 = vadd.f32 %v4164, %v4238
    %v4275 = vadd.f32 %v4165, %v4239
    %v4276 = vadd.f32 %v4166, %v4240
    %v4277 = vadd.f32 %v4167, %v4241
    %v4278 = vadd.f32 %v4168, %v4242
    %v4279 = vadd.f32 %v4169, %v4243
    %v4280 = vadd.f32 %v4170, %v4244
    %v4281 = vadd.f32 %v4171, %v4245
    %v4282 = vadd.f32 %v4172, %v4246
    %v4283 = vadd.f32 %v4173, %v4247
    %v4284 = vadd.f32 %v4174, %v4248
    %v4285 = vadd.f32 %v4175, %v4249
    %v4286 = vadd.f32 %v4176, %v4250
    %v4287 = vadd.f32 %v4177, %v4251
    %v4288 = vadd.f32 %v4178, %v4252
    %v4289 = vadd.f32 %v4179, %v4253
    %v4290 = vadd.f32 %v4180, %v4254
    %v4291 = vadd.f32 %v4181, %v4255
    %v4292 = vadd.f32 %v4182, %v4256
    %v4293 = vadd.f32 %v4183, %v4257
    %v4294 = vadd.f32 %v4184, %v4258
    %v4295 = vadd.f32 %v4185, %v4259
    %v4296 = vadd.f32 %v4186, %v4260
    %v4297 = vadd.f32 %v4187, %v4261
    %v4298 = vadd.f32 %v4188, %v4262
    %v4299 = vadd.f32 %v4189, %v4263
    %v4300 = vadd.f32 %v4190, %v4264
    %v4301 = vadd.f32 %v4191, %v4265
    %v4302 = vadd.f32 %v4192, %v4266
    %v4303 = vadd.f32 %v4193, %v4267
    %v4304 = vadd.f32 %v4194, %v4268
    %v4305 = vld [vmem:[#allocation2 + $0x2] sm:$0xff]
    %v4306 = vld [vmem:[#allocation2 + $0xa] sm:$0x1]
    %v4307 = vld [vmem:[#allocation2 + $0x12] sm:$0xff]
    %v4308 = vld [vmem:[#allocation2 + $0x1a] sm:$0x1]
    %v4309 = vld [vmem:[#allocation2 + $0x22] sm:$0xff]
    %v4310 = vld [vmem:[#allocation2 + $0x2a] sm:$0x1]
    %v4311 = vld [vmem:[#allocation2 + $0x32] sm:$0xff]
    %v4312 = vld [vmem:[#allocation2 + $0x3a] sm:$0x1]
    %v4313 = vld [vmem:[#allocation2 + $0x42] sm:$0xff]
    %v4314 = vld [vmem:[#allocation2 + $0x4a] sm:$0x1]
    %v4315 = vld [vmem:[#allocation2 + $0x52] sm:$0xff]
    %v4316 = vld [vmem:[#allocation2 + $0x5a] sm:$0x1]
    %v4317 = vld [vmem:[#allocation2 + $0x62] sm:$0xff]
    %v4318 = vld [vmem:[#allocation2 + $0x6a] sm:$0x1]
    %v4319 = vld [vmem:[#allocation2 + $0x72] sm:$0xff]
    %v4320 = vld [vmem:[#allocation2 + $0x7a] sm:$0x1]
    %v4321 = vld [vmem:[#allocation2 + $0x82] sm:$0xff]
    %v4322 = vld [vmem:[#allocation2 + $0x8a] sm:$0x1]
    %v4323 = vld [vmem:[#allocation2 + $0xb2] sm:$0xff]
    %v4324 = vld [vmem:[#allocation2 + $0xba] sm:$0x1]
    %v4325 = vld [vmem:[#allocation2 + $0xc2] sm:$0xff]
    %v4326 = vld [vmem:[#allocation2 + $0xca] sm:$0x1]
    %v4327 = vld [vmem:[#allocation2 + $0xd2] sm:$0xff]
    %v4328 = vld [vmem:[#allocation2 + $0xda] sm:$0x1]
    %v4329 = vld [vmem:[#allocation2 + $0xe2] sm:$0xff]
    %v4330 = vld [vmem:[#allocation2 + $0xea] sm:$0x1]
    %v4331 = vld [vmem:[#allocation2 + $0xf2] sm:$0xff]
    %v4332 = vld [vmem:[#allocation2 + $0xfa] sm:$0x1]
    %v4333 = vld [vmem:[#allocation2 + $0x102] sm:$0xff]
    %v4334 = vld [vmem:[#allocation2 + $0x10a] sm:$0x1]
    %v4335 = vld [vmem:[#allocation2 + $0x112] sm:$0xff]
    %v4336 = vld [vmem:[#allocation2 + $0x11a] sm:$0x1]
    %v4337 = vld [vmem:[#allocation2 + $0x122] sm:$0xff]
    %v4338 = vld [vmem:[#allocation2 + $0x12a] sm:$0x1]
    %v4339 = vld [vmem:[#allocation2 + $0x132] sm:$0xff]
    %v4340 = vld [vmem:[#allocation2 + $0x13a] sm:$0x1]
    %v4341 = vld [vmem:[%s2 + $0x2] sm:$0x1]
    %v4342 = vperm.slane %v4341, 0
    %v4343 = vmul.f32 %v4305, %v4342
    %v4344 = vmul.f32 %v4306, %v4342
    %v4345 = vmul.f32 %v4307, %v4342
    %v4346 = vmul.f32 %v4308, %v4342
    %v4347 = vmul.f32 %v4309, %v4342
    %v4348 = vmul.f32 %v4310, %v4342
    %v4349 = vmul.f32 %v4311, %v4342
    %v4350 = vmul.f32 %v4312, %v4342
    %v4351 = vmul.f32 %v4313, %v4342
    %v4352 = vmul.f32 %v4314, %v4342
    %v4353 = vmul.f32 %v4315, %v4342
    %v4354 = vmul.f32 %v4316, %v4342
    %v4355 = vmul.f32 %v4317, %v4342
    %v4356 = vmul.f32 %v4318, %v4342
    %v4357 = vmul.f32 %v4319, %v4342
    %v4358 = vmul.f32 %v4320, %v4342
    %v4359 = vmul.f32 %v4321, %v4342
    %v4360 = vmul.f32 %v4322, %v4342
    %v4361 = vmul.f32 %v4323, %v4342
    %v4362 = vmul.f32 %v4324, %v4342
    %v4363 = vmul.f32 %v4325, %v4342
    %v4364 = vmul.f32 %v4326, %v4342
    %v4365 = vmul.f32 %v4327, %v4342
    %v4366 = vmul.f32 %v4328, %v4342
    %v4367 = vmul.f32 %v4329, %v4342
    %v4368 = vmul.f32 %v4330, %v4342
    %v4369 = vmul.f32 %v4331, %v4342
    %v4370 = vmul.f32 %v4332, %v4342
    %v4371 = vmul.f32 %v4333, %v4342
    %v4372 = vmul.f32 %v4334, %v4342
    %v4373 = vmul.f32 %v4335, %v4342
    %v4374 = vmul.f32 %v4336, %v4342
    %v4375 = vmul.f32 %v4337, %v4342
    %v4376 = vmul.f32 %v4338, %v4342
    %v4377 = vmul.f32 %v4339, %v4342
    %v4378 = vmul.f32 %v4340, %v4342
    %v4379 = vadd.f32 %v4269, %v4343
    %v4380 = vadd.f32 %v4270, %v4344
    %v4381 = vadd.f32 %v4271, %v4345
    %v4382 = vadd.f32 %v4272, %v4346
    %v4383 = vadd.f32 %v4273, %v4347
    %v4384 = vadd.f32 %v4274, %v4348
    %v4385 = vadd.f32 %v4275, %v4349
    %v4386 = vadd.f32 %v4276, %v4350
    %v4387 = vadd.f32 %v4277, %v4351
    %v4388 = vadd.f32 %v4278, %v4352
    %v4389 = vadd.f32 %v4279, %v4353
    %v4390 = vadd.f32 %v4280, %v4354
    %v4391 = vadd.f32 %v4281, %v4355
    %v4392 = vadd.f32 %v4282, %v4356
    %v4393 = vadd.f32 %v4283, %v4357
    %v4394 = vadd.f32 %v4284, %v4358
    %v4395 = vadd.f32 %v4285, %v4359
    %v4396 = vadd.f32 %v4286, %v4360
    %v4397 = vadd.f32 %v4287, %v4361
    %v4398 = vadd.f32 %v4288, %v4362
    %v4399 = vadd.f32 %v4289, %v4363
    %v4400 = vadd.f32 %v4290, %v4364
    %v4401 = vadd.f32 %v4291, %v4365
    %v4402 = vadd.f32 %v4292, %v4366
    %v4403 = vadd.f32 %v4293, %v4367
    %v4404 = vadd.f32 %v4294, %v4368
    %v4405 = vadd.f32 %v4295, %v4369
    %v4406 = vadd.f32 %v4296, %v4370
    %v4407 = vadd.f32 %v4297, %v4371
    %v4408 = vadd.f32 %v4298, %v4372
    %v4409 = vadd.f32 %v4299, %v4373
    %v4410 = vadd.f32 %v4300, %v4374
    %v4411 = vadd.f32 %v4301, %v4375
    %v4412 = vadd.f32 %v4302, %v4376
    %v4413 = vadd.f32 %v4303, %v4377
    %v4414 = vadd.f32 %v4304, %v4378
    %v4415 = vld [vmem:[%s4047] sm:$0xff]
    %v4416 = vld [vmem:[%s4047 + $0x8] sm:$0x1]
    %v4417 = vld [vmem:[%s4047 + $0x10] sm:$0xff]
    %v4418 = vld [vmem:[%s4047 + $0x18] sm:$0x1]
    %v4419 = vld [vmem:[%s4047 + $0x20] sm:$0xff]
    %v4420 = vld [vmem:[%s4047 + $0x28] sm:$0x1]
    %v4421 = vld [vmem:[%s4047 + $0x30] sm:$0xff]
    %v4422 = vld [vmem:[%s4047 + $0x38] sm:$0x1]
    %v4423 = vld [vmem:[%s4047 + $0x40] sm:$0xff]
    %v4424 = vld [vmem:[%s4047 + $0x48] sm:$0x1]
    %v4425 = vld [vmem:[%s4047 + $0x50] sm:$0xff]
    %v4426 = vld [vmem:[%s4047 + $0x58] sm:$0x1]
    %v4427 = vld [vmem:[%s4047 + $0x60] sm:$0xff]
    %v4428 = vld [vmem:[%s4047 + $0x68] sm:$0x1]
    %v4429 = vld [vmem:[%s4047 + $0x70] sm:$0xff]
    %v4430 = vld [vmem:[%s4047 + $0x78] sm:$0x1]
    %v4431 = vld [vmem:[%s4047 + $0x80] sm:$0xff]
    %v4432 = vld [vmem:[%s4047 + $0x88] sm:$0x1]
    %v4433 = vld [vmem:[%s4047 + $0xb0] sm:$0xff]
    %v4434 = vld [vmem:[%s4047 + $0xb8] sm:$0x1]
    %v4435 = vld [vmem:[%s4047 + $0xc0] sm:$0xff]
    %v4436 = vld [vmem:[%s4047 + $0xc8] sm:$0x1]
    %v4437 = vld [vmem:[%s4047 + $0xd0] sm:$0xff]
    %v4438 = vld [vmem:[%s4047 + $0xd8] sm:$0x1]
    %v4439 = vld [vmem:[%s4047 + $0xe0] sm:$0xff]
    %v4440 = vld [vmem:[%s4047 + $0xe8] sm:$0x1]
    %v4441 = vld [vmem:[%s4047 + $0xf0] sm:$0xff]
    %v4442 = vld [vmem:[%s4047 + $0xf8] sm:$0x1]
    %v4443 = vld [vmem:[%s4047 + $0x100] sm:$0xff]
    %v4444 = vld [vmem:[%s4047 + $0x108] sm:$0x1]
    %v4445 = vld [vmem:[%s4047 + $0x110] sm:$0xff]
    %v4446 = vld [vmem:[%s4047 + $0x118] sm:$0x1]
    %v4447 = vld [vmem:[%s4047 + $0x120] sm:$0xff]
    %v4448 = vld [vmem:[%s4047 + $0x128] sm:$0x1]
    %v4449 = vld [vmem:[%s4047 + $0x130] sm:$0xff]
    %v4450 = vld [vmem:[%s4047 + $0x138] sm:$0x1]
    %v4451 = vld [vmem:[%s2 + $0x3] sm:$0x1]
    %v4452 = vperm.slane %v4451, 0
    %v4453 = vmul.f32 %v4415, %v4452
    %v4454 = vmul.f32 %v4416, %v4452
    %v4455 = vmul.f32 %v4417, %v4452
    %v4456 = vmul.f32 %v4418, %v4452
    %v4457 = vmul.f32 %v4419, %v4452
    %v4458 = vmul.f32 %v4420, %v4452
    %v4459 = vmul.f32 %v4421, %v4452
    %v4460 = vmul.f32 %v4422, %v4452
    %v4461 = vmul.f32 %v4423, %v4452
    %v4462 = vmul.f32 %v4424, %v4452
    %v4463 = vmul.f32 %v4425, %v4452
    %v4464 = vmul.f32 %v4426, %v4452
    %v4465 = vmul.f32 %v4427, %v4452
    %v4466 = vmul.f32 %v4428, %v4452
    %v4467 = vmul.f32 %v4429, %v4452
    %v4468 = vmul.f32 %v4430, %v4452
    %v4469 = vmul.f32 %v4431, %v4452
    %v4470 = vmul.f32 %v4432, %v4452
    %v4471 = vmul.f32 %v4433, %v4452
    %v4472 = vmul.f32 %v4434, %v4452
    %v4473 = vmul.f32 %v4435, %v4452
    %v4474 = vmul.f32 %v4436, %v4452
    %v4475 = vmul.f32 %v4437, %v4452
    %v4476 = vmul.f32 %v4438, %v4452
    %v4477 = vmul.f32 %v4439, %v4452
    %v4478 = vmul.f32 %v4440, %v4452
    %v4479 = vmul.f32 %v4441, %v4452
    %v4480 = vmul.f32 %v4442, %v4452
    %v4481 = vmul.f32 %v4443, %v4452
    %v4482 = vmul.f32 %v4444, %v4452
    %v4483 = vmul.f32 %v4445, %v4452
    %v4484 = vmul.f32 %v4446, %v4452
    %v4485 = vmul.f32 %v4447, %v4452
    %v4486 = vmul.f32 %v4448, %v4452
    %v4487 = vmul.f32 %v4449, %v4452
    %v4488 = vmul.f32 %v4450, %v4452
    %v4489 = vadd.f32 %v4379, %v4453
    %v4490 = vadd.f32 %v4380, %v4454
    %v4491 = vadd.f32 %v4381, %v4455
    %v4492 = vadd.f32 %v4382, %v4456
    %v4493 = vadd.f32 %v4383, %v4457
    %v4494 = vadd.f32 %v4384, %v4458
    %v4495 = vadd.f32 %v4385, %v4459
    %v4496 = vadd.f32 %v4386, %v4460
    %v4497 = vadd.f32 %v4387, %v4461
    %v4498 = vadd.f32 %v4388, %v4462
    %v4499 = vadd.f32 %v4389, %v4463
    %v4500 = vadd.f32 %v4390, %v4464
    %v4501 = vadd.f32 %v4391, %v4465
    %v4502 = vadd.f32 %v4392, %v4466
    %v4503 = vadd.f32 %v4393, %v4467
    %v4504 = vadd.f32 %v4394, %v4468
    %v4505 = vadd.f32 %v4395, %v4469
    %v4506 = vadd.f32 %v4396, %v4470
    %v4507 = vadd.f32 %v4397, %v4471
    %v4508 = vadd.f32 %v4398, %v4472
    %v4509 = vadd.f32 %v4399, %v4473
    %v4510 = vadd.f32 %v4400, %v4474
    %v4511 = vadd.f32 %v4401, %v4475
    %v4512 = vadd.f32 %v4402, %v4476
    %v4513 = vadd.f32 %v4403, %v4477
    %v4514 = vadd.f32 %v4404, %v4478
    %v4515 = vadd.f32 %v4405, %v4479
    %v4516 = vadd.f32 %v4406, %v4480
    %v4517 = vadd.f32 %v4407, %v4481
    %v4518 = vadd.f32 %v4408, %v4482
    %v4519 = vadd.f32 %v4409, %v4483
    %v4520 = vadd.f32 %v4410, %v4484
    %v4521 = vadd.f32 %v4411, %v4485
    %v4522 = vadd.f32 %v4412, %v4486
    %v4523 = vadd.f32 %v4413, %v4487
    %v4524 = vadd.f32 %v4414, %v4488
    %v4525 = vld [vmem:[%s4047 + $0x1] sm:$0xff]
    %v4526 = vld [vmem:[%s4047 + $0x9] sm:$0x1]
    %v4527 = vld [vmem:[%s4047 + $0x11] sm:$0xff]
    %v4528 = vld [vmem:[%s4047 + $0x19] sm:$0x1]
    %v4529 = vld [vmem:[%s4047 + $0x21] sm:$0xff]
    %v4530 = vld [vmem:[%s4047 + $0x29] sm:$0x1]
    %v4531 = vld [vmem:[%s4047 + $0x31] sm:$0xff]
    %v4532 = vld [vmem:[%s4047 + $0x39] sm:$0x1]
    %v4533 = vld [vmem:[%s4047 + $0x41] sm:$0xff]
    %v4534 = vld [vmem:[%s4047 + $0x49] sm:$0x1]
    %v4535 = vld [vmem:[%s4047 + $0x51] sm:$0xff]
    %v4536 = vld [vmem:[%s4047 + $0x59] sm:$0x1]
    %v4537 = vld [vmem:[%s4047 + $0x61] sm:$0xff]
    %v4538 = vld [vmem:[%s4047 + $0x69] sm:$0x1]
    %v4539 = vld [vmem:[%s4047 + $0x71] sm:$0xff]
    %v4540 = vld [vmem:[%s4047 + $0x79] sm:$0x1]
    %v4541 = vld [vmem:[%s4047 + $0x81] sm:$0xff]
    %v4542 = vld [vmem:[%s4047 + $0x89] sm:$0x1]
    %v4543 = vld [vmem:[%s4047 + $0xb1] sm:$0xff]
    %v4544 = vld [vmem:[%s4047 + $0xb9] sm:$0x1]
    %v4545 = vld [vmem:[%s4047 + $0xc1] sm:$0xff]
    %v4546 = vld [vmem:[%s4047 + $0xc9] sm:$0x1]
    %v4547 = vld [vmem:[%s4047 + $0xd1] sm:$0xff]
    %v4548 = vld [vmem:[%s4047 + $0xd9] sm:$0x1]
    %v4549 = vld [vmem:[%s4047 + $0xe1] sm:$0xff]
    %v4550 = vld [vmem:[%s4047 + $0xe9] sm:$0x1]
    %v4551 = vld [vmem:[%s4047 + $0xf1] sm:$0xff]
    %v4552 = vld [vmem:[%s4047 + $0xf9] sm:$0x1]
    %v4553 = vld [vmem:[%s4047 + $0x101] sm:$0xff]
    %v4554 = vld [vmem:[%s4047 + $0x109] sm:$0x1]
    %v4555 = vld [vmem:[%s4047 + $0x111] sm:$0xff]
    %v4556 = vld [vmem:[%s4047 + $0x119] sm:$0x1]
    %v4557 = vld [vmem:[%s4047 + $0x121] sm:$0xff]
    %v4558 = vld [vmem:[%s4047 + $0x129] sm:$0x1]
    %v4559 = vld [vmem:[%s4047 + $0x131] sm:$0xff]
    %v4560 = vld [vmem:[%s4047 + $0x139] sm:$0x1]
    %v4561 = vld [vmem:[%s2 + $0x4] sm:$0x1]
    %v4562 = vperm.slane %v4561, 0
    %v4563 = vmul.f32 %v4525, %v4562
    %v4564 = vmul.f32 %v4526, %v4562
    %v4565 = vmul.f32 %v4527, %v4562
    %v4566 = vmul.f32 %v4528, %v4562
    %v4567 = vmul.f32 %v4529, %v4562
    %v4568 = vmul.f32 %v4530, %v4562
    %v4569 = vmul.f32 %v4531, %v4562
    %v4570 = vmul.f32 %v4532, %v4562
    %v4571 = vmul.f32 %v4533, %v4562
    %v4572 = vmul.f32 %v4534, %v4562
    %v4573 = vmul.f32 %v4535, %v4562
    %v4574 = vmul.f32 %v4536, %v4562
    %v4575 = vmul.f32 %v4537, %v4562
    %v4576 = vmul.f32 %v4538, %v4562
    %v4577 = vmul.f32 %v4539, %v4562
    %v4578 = vmul.f32 %v4540, %v4562
    %v4579 = vmul.f32 %v4541, %v4562
    %v4580 = vmul.f32 %v4542, %v4562
    %v4581 = vmul.f32 %v4543, %v4562
    %v4582 = vmul.f32 %v4544, %v4562
    %v4583 = vmul.f32 %v4545, %v4562
    %v4584 = vmul.f32 %v4546, %v4562
    %v4585 = vmul.f32 %v4547, %v4562
    %v4586 = vmul.f32 %v4548, %v4562
    %v4587 = vmul.f32 %v4549, %v4562
    %v4588 = vmul.f32 %v4550, %v4562
    %v4589 = vmul.f32 %v4551, %v4562
    %v4590 = vmul.f32 %v4552, %v4562
    %v4591 = vmul.f32 %v4553, %v4562
    %v4592 = vmul.f32 %v4554, %v4562
    %v4593 = vmul.f32 %v4555, %v4562
    %v4594 = vmul.f32 %v4556, %v4562
    %v4595 = vmul.f32 %v4557, %v4562
    %v4596 = vmul.f32 %v4558, %v4562
    %v4597 = vmul.f32 %v4559, %v4562
    %v4598 = vmul.f32 %v4560, %v4562
    %v4599 = vadd.f32 %v4489, %v4563
    %v4600 = vadd.f32 %v4490, %v4564
    %v4601 = vadd.f32 %v4491, %v4565
    %v4602 = vadd.f32 %v4492, %v4566
    %v4603 = vadd.f32 %v4493, %v4567
    %v4604 = vadd.f32 %v4494, %v4568
    %v4605 = vadd.f32 %v4495, %v4569
    %v4606 = vadd.f32 %v4496, %v4570
    %v4607 = vadd.f32 %v4497, %v4571
    %v4608 = vadd.f32 %v4498, %v4572
    %v4609 = vadd.f32 %v4499, %v4573
    %v4610 = vadd.f32 %v4500, %v4574
    %v4611 = vadd.f32 %v4501, %v4575
    %v4612 = vadd.f32 %v4502, %v4576
    %v4613 = vadd.f32 %v4503, %v4577
    %v4614 = vadd.f32 %v4504, %v4578
    %v4615 = vadd.f32 %v4505, %v4579
    %v4616 = vadd.f32 %v4506, %v4580
    %v4617 = vadd.f32 %v4507, %v4581
    %v4618 = vadd.f32 %v4508, %v4582
    %v4619 = vadd.f32 %v4509, %v4583
    %v4620 = vadd.f32 %v4510, %v4584
    %v4621 = vadd.f32 %v4511, %v4585
    %v4622 = vadd.f32 %v4512, %v4586
    %v4623 = vadd.f32 %v4513, %v4587
    %v4624 = vadd.f32 %v4514, %v4588
    %v4625 = vadd.f32 %v4515, %v4589
    %v4626 = vadd.f32 %v4516, %v4590
    %v4627 = vadd.f32 %v4517, %v4591
    %v4628 = vadd.f32 %v4518, %v4592
    %v4629 = vadd.f32 %v4519, %v4593
    %v4630 = vadd.f32 %v4520, %v4594
    %v4631 = vadd.f32 %v4521, %v4595
    %v4632 = vadd.f32 %v4522, %v4596
    %v4633 = vadd.f32 %v4523, %v4597
    %v4634 = vadd.f32 %v4524, %v4598
    %v4635 = vld [vmem:[%s4047 + $0x2] sm:$0xff]
    %v4636 = vld [vmem:[%s4047 + $0xa] sm:$0x1]
    %v4637 = vld [vmem:[%s4047 + $0x12] sm:$0xff]
    %v4638 = vld [vmem:[%s4047 + $0x1a] sm:$0x1]
    %v4639 = vld [vmem:[%s4047 + $0x22] sm:$0xff]
    %v4640 = vld [vmem:[%s4047 + $0x2a] sm:$0x1]
    %v4641 = vld [vmem:[%s4047 + $0x32] sm:$0xff]
    %v4642 = vld [vmem:[%s4047 + $0x3a] sm:$0x1]
    %v4643 = vld [vmem:[%s4047 + $0x42] sm:$0xff]
    %v4644 = vld [vmem:[%s4047 + $0x4a] sm:$0x1]
    %v4645 = vld [vmem:[%s4047 + $0x52] sm:$0xff]
    %v4646 = vld [vmem:[%s4047 + $0x5a] sm:$0x1]
    %v4647 = vld [vmem:[%s4047 + $0x62] sm:$0xff]
    %v4648 = vld [vmem:[%s4047 + $0x6a] sm:$0x1]
    %v4649 = vld [vmem:[%s4047 + $0x72] sm:$0xff]
    %v4650 = vld [vmem:[%s4047 + $0x7a] sm:$0x1]
    %v4651 = vld [vmem:[%s4047 + $0x82] sm:$0xff]
    %v4652 = vld [vmem:[%s4047 + $0x8a] sm:$0x1]
    %v4653 = vld [vmem:[%s4047 + $0xb2] sm:$0xff]
    %v4654 = vld [vmem:[%s4047 + $0xba] sm:$0x1]
    %v4655 = vld [vmem:[%s4047 + $0xc2] sm:$0xff]
    %v4656 = vld [vmem:[%s4047 + $0xca] sm:$0x1]
    %v4657 = vld [vmem:[%s4047 + $0xd2] sm:$0xff]
    %v4658 = vld [vmem:[%s4047 + $0xda] sm:$0x1]
    %v4659 = vld [vmem:[%s4047 + $0xe2] sm:$0xff]
    %v4660 = vld [vmem:[%s4047 + $0xea] sm:$0x1]
    %v4661 = vld [vmem:[%s4047 + $0xf2] sm:$0xff]
    %v4662 = vld [vmem:[%s4047 + $0xfa] sm:$0x1]
    %v4663 = vld [vmem:[%s4047 + $0x102] sm:$0xff]
    %v4664 = vld [vmem:[%s4047 + $0x10a] sm:$0x1]
    %v4665 = vld [vmem:[%s4047 + $0x112] sm:$0xff]
    %v4666 = vld [vmem:[%s4047 + $0x11a] sm:$0x1]
    %v4667 = vld [vmem:[%s4047 + $0x122] sm:$0xff]
    %v4668 = vld [vmem:[%s4047 + $0x12a] sm:$0x1]
    %v4669 = vld [vmem:[%s4047 + $0x132] sm:$0xff]
    %v4670 = vld [vmem:[%s4047 + $0x13a] sm:$0x1]
    %v4671 = vld [vmem:[%s2 + $0x5] sm:$0x1]
    %v4672 = vperm.slane %v4671, 0
    %v4673 = vmul.f32 %v4635, %v4672
    %v4674 = vmul.f32 %v4636, %v4672
    %v4675 = vmul.f32 %v4637, %v4672
    %v4676 = vmul.f32 %v4638, %v4672
    %v4677 = vmul.f32 %v4639, %v4672
    %v4678 = vmul.f32 %v4640, %v4672
    %v4679 = vmul.f32 %v4641, %v4672
    %v4680 = vmul.f32 %v4642, %v4672
    %v4681 = vmul.f32 %v4643, %v4672
    %v4682 = vmul.f32 %v4644, %v4672
    %v4683 = vmul.f32 %v4645, %v4672
    %v4684 = vmul.f32 %v4646, %v4672
    %v4685 = vmul.f32 %v4647, %v4672
    %v4686 = vmul.f32 %v4648, %v4672
    %v4687 = vmul.f32 %v4649, %v4672
    %v4688 = vmul.f32 %v4650, %v4672
    %v4689 = vmul.f32 %v4651, %v4672
    %v4690 = vmul.f32 %v4652, %v4672
    %v4691 = vmul.f32 %v4653, %v4672
    %v4692 = vmul.f32 %v4654, %v4672
    %v4693 = vmul.f32 %v4655, %v4672
    %v4694 = vmul.f32 %v4656, %v4672
    %v4695 = vmul.f32 %v4657, %v4672
    %v4696 = vmul.f32 %v4658, %v4672
    %v4697 = vmul.f32 %v4659, %v4672
    %v4698 = vmul.f32 %v4660, %v4672
    %v4699 = vmul.f32 %v4661, %v4672
    %v4700 = vmul.f32 %v4662, %v4672
    %v4701 = vmul.f32 %v4663, %v4672
    %v4702 = vmul.f32 %v4664, %v4672
    %v4703 = vmul.f32 %v4665, %v4672
    %v4704 = vmul.f32 %v4666, %v4672
    %v4705 = vmul.f32 %v4667, %v4672
    %v4706 = vmul.f32 %v4668, %v4672
    %v4707 = vmul.f32 %v4669, %v4672
    %v4708 = vmul.f32 %v4670, %v4672
    %v4709 = vadd.f32 %v4599, %v4673
    %v4710 = vadd.f32 %v4600, %v4674
    %v4711 = vadd.f32 %v4601, %v4675
    %v4712 = vadd.f32 %v4602, %v4676
    %v4713 = vadd.f32 %v4603, %v4677
    %v4714 = vadd.f32 %v4604, %v4678
    %v4715 = vadd.f32 %v4605, %v4679
    %v4716 = vadd.f32 %v4606, %v4680
    %v4717 = vadd.f32 %v4607, %v4681
    %v4718 = vadd.f32 %v4608, %v4682
    %v4719 = vadd.f32 %v4609, %v4683
    %v4720 = vadd.f32 %v4610, %v4684
    %v4721 = vadd.f32 %v4611, %v4685
    %v4722 = vadd.f32 %v4612, %v4686
    %v4723 = vadd.f32 %v4613, %v4687
    %v4724 = vadd.f32 %v4614, %v4688
    %v4725 = vadd.f32 %v4615, %v4689
    %v4726 = vadd.f32 %v4616, %v4690
    %v4727 = vadd.f32 %v4617, %v4691
    %v4728 = vadd.f32 %v4618, %v4692
    %v4729 = vadd.f32 %v4619, %v4693
    %v4730 = vadd.f32 %v4620, %v4694
    %v4731 = vadd.f32 %v4621, %v4695
    %v4732 = vadd.f32 %v4622, %v4696
    %v4733 = vadd.f32 %v4623, %v4697
    %v4734 = vadd.f32 %v4624, %v4698
    %v4735 = vadd.f32 %v4625, %v4699
    %v4736 = vadd.f32 %v4626, %v4700
    %v4737 = vadd.f32 %v4627, %v4701
    %v4738 = vadd.f32 %v4628, %v4702
    %v4739 = vadd.f32 %v4629, %v4703
    %v4740 = vadd.f32 %v4630, %v4704
    %v4741 = vadd.f32 %v4631, %v4705
    %v4742 = vadd.f32 %v4632, %v4706
    %v4743 = vadd.f32 %v4633, %v4707
    %v4744 = vadd.f32 %v4634, %v4708
    %s4745 = scalar_lea.vmem [#allocation2], 32
    %v4746 = vld [vmem:[%s4745] sm:$0xff]
    %v4747 = vld [vmem:[%s4745 + $0x8] sm:$0x1]
    %v4748 = vld [vmem:[%s4745 + $0x10] sm:$0xff]
    %v4749 = vld [vmem:[%s4745 + $0x18] sm:$0x1]
    %v4750 = vld [vmem:[%s4745 + $0x20] sm:$0xff]
    %v4751 = vld [vmem:[%s4745 + $0x28] sm:$0x1]
    %v4752 = vld [vmem:[%s4745 + $0x30] sm:$0xff]
    %v4753 = vld [vmem:[%s4745 + $0x38] sm:$0x1]
    %v4754 = vld [vmem:[%s4745 + $0x40] sm:$0xff]
    %v4755 = vld [vmem:[%s4745 + $0x48] sm:$0x1]
    %v4756 = vld [vmem:[%s4745 + $0x50] sm:$0xff]
    %v4757 = vld [vmem:[%s4745 + $0x58] sm:$0x1]
    %v4758 = vld [vmem:[%s4745 + $0x60] sm:$0xff]
    %v4759 = vld [vmem:[%s4745 + $0x68] sm:$0x1]
    %v4760 = vld [vmem:[%s4745 + $0x70] sm:$0xff]
    %v4761 = vld [vmem:[%s4745 + $0x78] sm:$0x1]
    %v4762 = vld [vmem:[%s4745 + $0x80] sm:$0xff]
    %v4763 = vld [vmem:[%s4745 + $0x88] sm:$0x1]
    %v4764 = vld [vmem:[%s4745 + $0xb0] sm:$0xff]
    %v4765 = vld [vmem:[%s4745 + $0xb8] sm:$0x1]
    %v4766 = vld [vmem:[%s4745 + $0xc0] sm:$0xff]
    %v4767 = vld [vmem:[%s4745 + $0xc8] sm:$0x1]
    %v4768 = vld [vmem:[%s4745 + $0xd0] sm:$0xff]
    %v4769 = vld [vmem:[%s4745 + $0xd8] sm:$0x1]
    %v4770 = vld [vmem:[%s4745 + $0xe0] sm:$0xff]
    %v4771 = vld [vmem:[%s4745 + $0xe8] sm:$0x1]
    %v4772 = vld [vmem:[%s4745 + $0xf0] sm:$0xff]
    %v4773 = vld [vmem:[%s4745 + $0xf8] sm:$0x1]
    %v4774 = vld [vmem:[%s4745 + $0x100] sm:$0xff]
    %v4775 = vld [vmem:[%s4745 + $0x108] sm:$0x1]
    %v4776 = vld [vmem:[%s4745 + $0x110] sm:$0xff]
    %v4777 = vld [vmem:[%s4745 + $0x118] sm:$0x1]
    %v4778 = vld [vmem:[%s4745 + $0x120] sm:$0xff]
    %v4779 = vld [vmem:[%s4745 + $0x128] sm:$0x1]
    %v4780 = vld [vmem:[%s4745 + $0x130] sm:$0xff]
    %v4781 = vld [vmem:[%s4745 + $0x138] sm:$0x1]
    %v4782 = vld [vmem:[%s2 + $0x6] sm:$0x1]
    %v4783 = vperm.slane %v4782, 0
    %v4784 = vmul.f32 %v4746, %v4783
    %v4785 = vmul.f32 %v4747, %v4783
    %v4786 = vmul.f32 %v4748, %v4783
    %v4787 = vmul.f32 %v4749, %v4783
    %v4788 = vmul.f32 %v4750, %v4783
    %v4789 = vmul.f32 %v4751, %v4783
    %v4790 = vmul.f32 %v4752, %v4783
    %v4791 = vmul.f32 %v4753, %v4783
    %v4792 = vmul.f32 %v4754, %v4783
    %v4793 = vmul.f32 %v4755, %v4783
    %v4794 = vmul.f32 %v4756, %v4783
    %v4795 = vmul.f32 %v4757, %v4783
    %v4796 = vmul.f32 %v4758, %v4783
    %v4797 = vmul.f32 %v4759, %v4783
    %v4798 = vmul.f32 %v4760, %v4783
    %v4799 = vmul.f32 %v4761, %v4783
    %v4800 = vmul.f32 %v4762, %v4783
    %v4801 = vmul.f32 %v4763, %v4783
    %v4802 = vmul.f32 %v4764, %v4783
    %v4803 = vmul.f32 %v4765, %v4783
    %v4804 = vmul.f32 %v4766, %v4783
    %v4805 = vmul.f32 %v4767, %v4783
    %v4806 = vmul.f32 %v4768, %v4783
    %v4807 = vmul.f32 %v4769, %v4783
    %v4808 = vmul.f32 %v4770, %v4783
    %v4809 = vmul.f32 %v4771, %v4783
    %v4810 = vmul.f32 %v4772, %v4783
    %v4811 = vmul.f32 %v4773, %v4783
    %v4812 = vmul.f32 %v4774, %v4783
    %v4813 = vmul.f32 %v4775, %v4783
    %v4814 = vmul.f32 %v4776, %v4783
    %v4815 = vmul.f32 %v4777, %v4783
    %v4816 = vmul.f32 %v4778, %v4783
    %v4817 = vmul.f32 %v4779, %v4783
    %v4818 = vmul.f32 %v4780, %v4783
    %v4819 = vmul.f32 %v4781, %v4783
    %v4820 = vadd.f32 %v4709, %v4784
    %v4821 = vadd.f32 %v4710, %v4785
    %v4822 = vadd.f32 %v4711, %v4786
    %v4823 = vadd.f32 %v4712, %v4787
    %v4824 = vadd.f32 %v4713, %v4788
    %v4825 = vadd.f32 %v4714, %v4789
    %v4826 = vadd.f32 %v4715, %v4790
    %v4827 = vadd.f32 %v4716, %v4791
    %v4828 = vadd.f32 %v4717, %v4792
    %v4829 = vadd.f32 %v4718, %v4793
    %v4830 = vadd.f32 %v4719, %v4794
    %v4831 = vadd.f32 %v4720, %v4795
    %v4832 = vadd.f32 %v4721, %v4796
    %v4833 = vadd.f32 %v4722, %v4797
    %v4834 = vadd.f32 %v4723, %v4798
    %v4835 = vadd.f32 %v4724, %v4799
    %v4836 = vadd.f32 %v4725, %v4800
    %v4837 = vadd.f32 %v4726, %v4801
    %v4838 = vadd.f32 %v4727, %v4802
    %v4839 = vadd.f32 %v4728, %v4803
    %v4840 = vadd.f32 %v4729, %v4804
    %v4841 = vadd.f32 %v4730, %v4805
    %v4842 = vadd.f32 %v4731, %v4806
    %v4843 = vadd.f32 %v4732, %v4807
    %v4844 = vadd.f32 %v4733, %v4808
    %v4845 = vadd.f32 %v4734, %v4809
    %v4846 = vadd.f32 %v4735, %v4810
    %v4847 = vadd.f32 %v4736, %v4811
    %v4848 = vadd.f32 %v4737, %v4812
    %v4849 = vadd.f32 %v4738, %v4813
    %v4850 = vadd.f32 %v4739, %v4814
    %v4851 = vadd.f32 %v4740, %v4815
    %v4852 = vadd.f32 %v4741, %v4816
    %v4853 = vadd.f32 %v4742, %v4817
    %v4854 = vadd.f32 %v4743, %v4818
    %v4855 = vadd.f32 %v4744, %v4819
    %v4856 = vld [vmem:[%s4745 + $0x1] sm:$0xff]
    %v4857 = vld [vmem:[%s4745 + $0x9] sm:$0x1]
    %v4858 = vld [vmem:[%s4745 + $0x11] sm:$0xff]
    %v4859 = vld [vmem:[%s4745 + $0x19] sm:$0x1]
    %v4860 = vld [vmem:[%s4745 + $0x21] sm:$0xff]
    %v4861 = vld [vmem:[%s4745 + $0x29] sm:$0x1]
    %v4862 = vld [vmem:[%s4745 + $0x31] sm:$0xff]
    %v4863 = vld [vmem:[%s4745 + $0x39] sm:$0x1]
    %v4864 = vld [vmem:[%s4745 + $0x41] sm:$0xff]
    %v4865 = vld [vmem:[%s4745 + $0x49] sm:$0x1]
    %v4866 = vld [vmem:[%s4745 + $0x51] sm:$0xff]
    %v4867 = vld [vmem:[%s4745 + $0x59] sm:$0x1]
    %v4868 = vld [vmem:[%s4745 + $0x61] sm:$0xff]
    %v4869 = vld [vmem:[%s4745 + $0x69] sm:$0x1]
    %v4870 = vld [vmem:[%s4745 + $0x71] sm:$0xff]
    %v4871 = vld [vmem:[%s4745 + $0x79] sm:$0x1]
    %v4872 = vld [vmem:[%s4745 + $0x81] sm:$0xff]
    %v4873 = vld [vmem:[%s4745 + $0x89] sm:$0x1]
    %v4874 = vld [vmem:[%s4745 + $0xb1] sm:$0xff]
    %v4875 = vld [vmem:[%s4745 + $0xb9] sm:$0x1]
    %v4876 = vld [vmem:[%s4745 + $0xc1] sm:$0xff]
    %v4877 = vld [vmem:[%s4745 + $0xc9] sm:$0x1]
    %v4878 = vld [vmem:[%s4745 + $0xd1] sm:$0xff]
    %v4879 = vld [vmem:[%s4745 + $0xd9] sm:$0x1]
    %v4880 = vld [vmem:[%s4745 + $0xe1] sm:$0xff]
    %v4881 = vld [vmem:[%s4745 + $0xe9] sm:$0x1]
    %v4882 = vld [vmem:[%s4745 + $0xf1] sm:$0xff]
    %v4883 = vld [vmem:[%s4745 + $0xf9] sm:$0x1]
    %v4884 = vld [vmem:[%s4745 + $0x101] sm:$0xff]
    %v4885 = vld [vmem:[%s4745 + $0x109] sm:$0x1]
    %v4886 = vld [vmem:[%s4745 + $0x111] sm:$0xff]
    %v4887 = vld [vmem:[%s4745 + $0x119] sm:$0x1]
    %v4888 = vld [vmem:[%s4745 + $0x121] sm:$0xff]
    %v4889 = vld [vmem:[%s4745 + $0x129] sm:$0x1]
    %v4890 = vld [vmem:[%s4745 + $0x131] sm:$0xff]
    %v4891 = vld [vmem:[%s4745 + $0x139] sm:$0x1]
    %v4892 = vld [vmem:[%s2 + $0x7] sm:$0x1]
    %v4893 = vperm.slane %v4892, 0
    %v4894 = vmul.f32 %v4856, %v4893
    %v4895 = vmul.f32 %v4857, %v4893
    %v4896 = vmul.f32 %v4858, %v4893
    %v4897 = vmul.f32 %v4859, %v4893
    %v4898 = vmul.f32 %v4860, %v4893
    %v4899 = vmul.f32 %v4861, %v4893
    %v4900 = vmul.f32 %v4862, %v4893
    %v4901 = vmul.f32 %v4863, %v4893
    %v4902 = vmul.f32 %v4864, %v4893
    %v4903 = vmul.f32 %v4865, %v4893
    %v4904 = vmul.f32 %v4866, %v4893
    %v4905 = vmul.f32 %v4867, %v4893
    %v4906 = vmul.f32 %v4868, %v4893
    %v4907 = vmul.f32 %v4869, %v4893
    %v4908 = vmul.f32 %v4870, %v4893
    %v4909 = vmul.f32 %v4871, %v4893
    %v4910 = vmul.f32 %v4872, %v4893
    %v4911 = vmul.f32 %v4873, %v4893
    %v4912 = vmul.f32 %v4874, %v4893
    %v4913 = vmul.f32 %v4875, %v4893
    %v4914 = vmul.f32 %v4876, %v4893
    %v4915 = vmul.f32 %v4877, %v4893
    %v4916 = vmul.f32 %v4878, %v4893
    %v4917 = vmul.f32 %v4879, %v4893
    %v4918 = vmul.f32 %v4880, %v4893
    %v4919 = vmul.f32 %v4881, %v4893
    %v4920 = vmul.f32 %v4882, %v4893
    %v4921 = vmul.f32 %v4883, %v4893
    %v4922 = vmul.f32 %v4884, %v4893
    %v4923 = vmul.f32 %v4885, %v4893
    %v4924 = vmul.f32 %v4886, %v4893
    %v4925 = vmul.f32 %v4887, %v4893
    %v4926 = vmul.f32 %v4888, %v4893
    %v4927 = vmul.f32 %v4889, %v4893
    %v4928 = vmul.f32 %v4890, %v4893
    %v4929 = vmul.f32 %v4891, %v4893
    %v4930 = vadd.f32 %v4820, %v4894
    %v4931 = vadd.f32 %v4821, %v4895
    %v4932 = vadd.f32 %v4822, %v4896
    %v4933 = vadd.f32 %v4823, %v4897
    %v4934 = vadd.f32 %v4824, %v4898
    %v4935 = vadd.f32 %v4825, %v4899
    %v4936 = vadd.f32 %v4826, %v4900
    %v4937 = vadd.f32 %v4827, %v4901
    %v4938 = vadd.f32 %v4828, %v4902
    %v4939 = vadd.f32 %v4829, %v4903
    %v4940 = vadd.f32 %v4830, %v4904
    %v4941 = vadd.f32 %v4831, %v4905
    %v4942 = vadd.f32 %v4832, %v4906
    %v4943 = vadd.f32 %v4833, %v4907
    %v4944 = vadd.f32 %v4834, %v4908
    %v4945 = vadd.f32 %v4835, %v4909
    %v4946 = vadd.f32 %v4836, %v4910
    %v4947 = vadd.f32 %v4837, %v4911
    %v4948 = vadd.f32 %v4838, %v4912
    %v4949 = vadd.f32 %v4839, %v4913
    %v4950 = vadd.f32 %v4840, %v4914
    %v4951 = vadd.f32 %v4841, %v4915
    %v4952 = vadd.f32 %v4842, %v4916
    %v4953 = vadd.f32 %v4843, %v4917
    %v4954 = vadd.f32 %v4844, %v4918
    %v4955 = vadd.f32 %v4845, %v4919
    %v4956 = vadd.f32 %v4846, %v4920
    %v4957 = vadd.f32 %v4847, %v4921
    %v4958 = vadd.f32 %v4848, %v4922
    %v4959 = vadd.f32 %v4849, %v4923
    %v4960 = vadd.f32 %v4850, %v4924
    %v4961 = vadd.f32 %v4851, %v4925
    %v4962 = vadd.f32 %v4852, %v4926
    %v4963 = vadd.f32 %v4853, %v4927
    %v4964 = vadd.f32 %v4854, %v4928
    %v4965 = vadd.f32 %v4855, %v4929
    %v4966 = vld [vmem:[%s4745 + $0x2] sm:$0xff]
    %v4967 = vld [vmem:[%s4745 + $0xa] sm:$0x1]
    %v4968 = vld [vmem:[%s4745 + $0x12] sm:$0xff]
    %v4969 = vld [vmem:[%s4745 + $0x1a] sm:$0x1]
    %v4970 = vld [vmem:[%s4745 + $0x22] sm:$0xff]
    %v4971 = vld [vmem:[%s4745 + $0x2a] sm:$0x1]
    %v4972 = vld [vmem:[%s4745 + $0x32] sm:$0xff]
    %v4973 = vld [vmem:[%s4745 + $0x3a] sm:$0x1]
    %v4974 = vld [vmem:[%s4745 + $0x42] sm:$0xff]
    %v4975 = vld [vmem:[%s4745 + $0x4a] sm:$0x1]
    %v4976 = vld [vmem:[%s4745 + $0x52] sm:$0xff]
    %v4977 = vld [vmem:[%s4745 + $0x5a] sm:$0x1]
    %v4978 = vld [vmem:[%s4745 + $0x62] sm:$0xff]
    %v4979 = vld [vmem:[%s4745 + $0x6a] sm:$0x1]
    %v4980 = vld [vmem:[%s4745 + $0x72] sm:$0xff]
    %v4981 = vld [vmem:[%s4745 + $0x7a] sm:$0x1]
    %v4982 = vld [vmem:[%s4745 + $0x82] sm:$0xff]
    %v4983 = vld [vmem:[%s4745 + $0x8a] sm:$0x1]
    %v4984 = vld [vmem:[%s4745 + $0xb2] sm:$0xff]
    %v4985 = vld [vmem:[%s4745 + $0xba] sm:$0x1]
    %v4986 = vld [vmem:[%s4745 + $0xc2] sm:$0xff]
    %v4987 = vld [vmem:[%s4745 + $0xca] sm:$0x1]
    %v4988 = vld [vmem:[%s4745 + $0xd2] sm:$0xff]
    %v4989 = vld [vmem:[%s4745 + $0xda] sm:$0x1]
    %v4990 = vld [vmem:[%s4745 + $0xe2] sm:$0xff]
    %v4991 = vld [vmem:[%s4745 + $0xea] sm:$0x1]
    %v4992 = vld [vmem:[%s4745 + $0xf2] sm:$0xff]
    %v4993 = vld [vmem:[%s4745 + $0xfa] sm:$0x1]
    %v4994 = vld [vmem:[%s4745 + $0x102] sm:$0xff]
    %v4995 = vld [vmem:[%s4745 + $0x10a] sm:$0x1]
    %v4996 = vld [vmem:[%s4745 + $0x112] sm:$0xff]
    %v4997 = vld [vmem:[%s4745 + $0x11a] sm:$0x1]
    %v4998 = vld [vmem:[%s4745 + $0x122] sm:$0xff]
    %v4999 = vld [vmem:[%s4745 + $0x12a] sm:$0x1]
    %v5000 = vld [vmem:[%s4745 + $0x132] sm:$0xff]
    %v5001 = vld [vmem:[%s4745 + $0x13a] sm:$0x1]
    %v5002 = vld [vmem:[%s2 + $0x8] sm:$0x1]
    %v5003 = vperm.slane %v5002, 0
    %v5004 = vmul.f32 %v4966, %v5003
    %v5005 = vmul.f32 %v4967, %v5003
    %v5006 = vmul.f32 %v4968, %v5003
    %v5007 = vmul.f32 %v4969, %v5003
    %v5008 = vmul.f32 %v4970, %v5003
    %v5009 = vmul.f32 %v4971, %v5003
    %v5010 = vmul.f32 %v4972, %v5003
    %v5011 = vmul.f32 %v4973, %v5003
    %v5012 = vmul.f32 %v4974, %v5003
    %v5013 = vmul.f32 %v4975, %v5003
    %v5014 = vmul.f32 %v4976, %v5003
    %v5015 = vmul.f32 %v4977, %v5003
    %v5016 = vmul.f32 %v4978, %v5003
    %v5017 = vmul.f32 %v4979, %v5003
    %v5018 = vmul.f32 %v4980, %v5003
    %v5019 = vmul.f32 %v4981, %v5003
    %v5020 = vmul.f32 %v4982, %v5003
    %v5021 = vmul.f32 %v4983, %v5003
    %v5022 = vmul.f32 %v4984, %v5003
    %v5023 = vmul.f32 %v4985, %v5003
    %v5024 = vmul.f32 %v4986, %v5003
    %v5025 = vmul.f32 %v4987, %v5003
    %v5026 = vmul.f32 %v4988, %v5003
    %v5027 = vmul.f32 %v4989, %v5003
    %v5028 = vmul.f32 %v4990, %v5003
    %v5029 = vmul.f32 %v4991, %v5003
    %v5030 = vmul.f32 %v4992, %v5003
    %v5031 = vmul.f32 %v4993, %v5003
    %v5032 = vmul.f32 %v4994, %v5003
    %v5033 = vmul.f32 %v4995, %v5003
    %v5034 = vmul.f32 %v4996, %v5003
    %v5035 = vmul.f32 %v4997, %v5003
    %v5036 = vmul.f32 %v4998, %v5003
    %v5037 = vmul.f32 %v4999, %v5003
    %v5038 = vmul.f32 %v5000, %v5003
    %v5039 = vmul.f32 %v5001, %v5003
    %v5040 = vadd.f32 %v4930, %v5004
    %v5041 = vadd.f32 %v4931, %v5005
    %v5042 = vadd.f32 %v4932, %v5006
    %v5043 = vadd.f32 %v4933, %v5007
    %v5044 = vadd.f32 %v4934, %v5008
    %v5045 = vadd.f32 %v4935, %v5009
    %v5046 = vadd.f32 %v4936, %v5010
    %v5047 = vadd.f32 %v4937, %v5011
    %v5048 = vadd.f32 %v4938, %v5012
    %v5049 = vadd.f32 %v4939, %v5013
    %v5050 = vadd.f32 %v4940, %v5014
    %v5051 = vadd.f32 %v4941, %v5015
    %v5052 = vadd.f32 %v4942, %v5016
    %v5053 = vadd.f32 %v4943, %v5017
    %v5054 = vadd.f32 %v4944, %v5018
    %v5055 = vadd.f32 %v4945, %v5019
    %v5056 = vadd.f32 %v4946, %v5020
    %v5057 = vadd.f32 %v4947, %v5021
    %v5058 = vadd.f32 %v4948, %v5022
    %v5059 = vadd.f32 %v4949, %v5023
    %v5060 = vadd.f32 %v4950, %v5024
    %v5061 = vadd.f32 %v4951, %v5025
    %v5062 = vadd.f32 %v4952, %v5026
    %v5063 = vadd.f32 %v4953, %v5027
    %v5064 = vadd.f32 %v4954, %v5028
    %v5065 = vadd.f32 %v4955, %v5029
    %v5066 = vadd.f32 %v4956, %v5030
    %v5067 = vadd.f32 %v4957, %v5031
    %v5068 = vadd.f32 %v4958, %v5032
    %v5069 = vadd.f32 %v4959, %v5033
    %v5070 = vadd.f32 %v4960, %v5034
    %v5071 = vadd.f32 %v4961, %v5035
    %v5072 = vadd.f32 %v4962, %v5036
    %v5073 = vadd.f32 %v4963, %v5037
    %v5074 = vadd.f32 %v4964, %v5038
    %v5075 = vadd.f32 %v4965, %v5039
    %v5076 = vld [vmem:[%s3] sm:$0x1]
    %v5078 = vperm.slane %v5076, 0
    %v5080 = vadd.f32 %v5040, %v5078
    %v5081 = vadd.f32 %v5041, %v5078
    %v5082 = vadd.f32 %v5042, %v5078
    %v5083 = vadd.f32 %v5043, %v5078
    %v5084 = vadd.f32 %v5044, %v5078
    %v5085 = vadd.f32 %v5045, %v5078
    %v5086 = vadd.f32 %v5046, %v5078
    %v5087 = vadd.f32 %v5047, %v5078
    %v5088 = vadd.f32 %v5048, %v5078
    %v5089 = vadd.f32 %v5049, %v5078
    %v5090 = vadd.f32 %v5050, %v5078
    %v5091 = vadd.f32 %v5051, %v5078
    %v5092 = vadd.f32 %v5052, %v5078
    %v5093 = vadd.f32 %v5053, %v5078
    %v5094 = vadd.f32 %v5054, %v5078
    %v5095 = vadd.f32 %v5055, %v5078
    %v5096 = vadd.f32 %v5056, %v5078
    %v5097 = vadd.f32 %v5057, %v5078
    %v5098 = vadd.f32 %v5058, %v5078
    %v5099 = vadd.f32 %v5059, %v5078
    %v5100 = vadd.f32 %v5060, %v5078
    %v5101 = vadd.f32 %v5061, %v5078
    %v5102 = vadd.f32 %v5062, %v5078
    %v5103 = vadd.f32 %v5063, %v5078
    %v5104 = vadd.f32 %v5064, %v5078
    %v5105 = vadd.f32 %v5065, %v5078
    %v5106 = vadd.f32 %v5066, %v5078
    %v5107 = vadd.f32 %v5067, %v5078
    %v5108 = vadd.f32 %v5068, %v5078
    %v5109 = vadd.f32 %v5069, %v5078
    %v5110 = vadd.f32 %v5070, %v5078
    %v5111 = vadd.f32 %v5071, %v5078
    %v5112 = vadd.f32 %v5072, %v5078
    %v5113 = vadd.f32 %v5073, %v5078
    %v5114 = vadd.f32 %v5074, %v5078
    %v5115 = vadd.f32 %v5075, %v5078
    %v5116 = vmax.f32 %v5080, 0.0
    %v5117 = vmax.f32 %v5081, 0.0
    %v5118 = vmax.f32 %v5082, 0.0
    %v5119 = vmax.f32 %v5083, 0.0
    %v5120 = vmax.f32 %v5084, 0.0
    %v5121 = vmax.f32 %v5085, 0.0
    %v5122 = vmax.f32 %v5086, 0.0
    %v5123 = vmax.f32 %v5087, 0.0
    %v5124 = vmax.f32 %v5088, 0.0
    %v5125 = vmax.f32 %v5089, 0.0
    %v5126 = vmax.f32 %v5090, 0.0
    %v5127 = vmax.f32 %v5091, 0.0
    %v5128 = vmax.f32 %v5092, 0.0
    %v5129 = vmax.f32 %v5093, 0.0
    %v5130 = vmax.f32 %v5094, 0.0
    %v5131 = vmax.f32 %v5095, 0.0
    %v5132 = vmax.f32 %v5096, 0.0
    %v5133 = vmax.f32 %v5097, 0.0
    %v5134 = vmax.f32 %v5098, 0.0
    %v5135 = vmax.f32 %v5099, 0.0
    %v5136 = vmax.f32 %v5100, 0.0
    %v5137 = vmax.f32 %v5101, 0.0
    %v5138 = vmax.f32 %v5102, 0.0
    %v5139 = vmax.f32 %v5103, 0.0
    %v5140 = vmax.f32 %v5104, 0.0
    %v5141 = vmax.f32 %v5105, 0.0
    %v5142 = vmax.f32 %v5106, 0.0
    %v5143 = vmax.f32 %v5107, 0.0
    %v5144 = vmax.f32 %v5108, 0.0
    %v5145 = vmax.f32 %v5109, 0.0
    %v5146 = vmax.f32 %v5110, 0.0
    %v5147 = vmax.f32 %v5111, 0.0
    %v5148 = vmax.f32 %v5112, 0.0
    %v5149 = vmax.f32 %v5113, 0.0
    %v5150 = vmax.f32 %v5114, 0.0
    %v5151 = vmax.f32 %v5115, 0.0
    %v5188 = vrot.slane %v5116, 1
    %v5189 = vrot.slane %v5116, 2
    %v5190 = vrot.slane %v5116, 3
    %v5191 = vrot.slane %v5116, 4
    %v5192 = vrot.slane %v5116, 5
    %v5193 = vrot.slane %v5116, 6
    %v5194 = vrot.slane %v5116, 7
    %v5195 = vrot.slane %v5118, 1
    %v5196 = vrot.slane %v5118, 2
    %v5197 = vrot.slane %v5118, 3
    %v5198 = vrot.slane %v5118, 4
    %v5199 = vrot.slane %v5118, 5
    %v5200 = vrot.slane %v5118, 6
    %v5201 = vrot.slane %v5118, 7
    %v5202 = vrot.slane %v5120, 1
    %v5203 = vrot.slane %v5120, 2
    %v5204 = vrot.slane %v5120, 3
    %v5205 = vrot.slane %v5120, 4
    %v5206 = vrot.slane %v5120, 5
    %v5207 = vrot.slane %v5120, 6
    %v5208 = vrot.slane %v5120, 7
    %v5209 = vrot.slane %v5122, 1
    %v5210 = vrot.slane %v5122, 2
    %v5211 = vrot.slane %v5122, 3
    %v5212 = vrot.slane %v5122, 4
    %v5213 = vrot.slane %v5122, 5
    %v5214 = vrot.slane %v5122, 6
    %v5215 = vrot.slane %v5122, 7
    %v5216 = vrot.slane %v5124, 1
    %v5217 = vrot.slane %v5124, 2
    %v5218 = vrot.slane %v5124, 3
    %v5219 = vrot.slane %v5124, 4
    %v5220 = vrot.slane %v5124, 5
    %v5221 = vrot.slane %v5124, 6
    %v5222 = vrot.slane %v5124, 7
    %v5223 = vrot.slane %v5126, 1
    %v5224 = vrot.slane %v5126, 2
    %v5225 = vrot.slane %v5126, 3
    %v5226 = vrot.slane %v5126, 4
    %v5227 = vrot.slane %v5126, 5
    %v5228 = vrot.slane %v5126, 6
    %v5229 = vrot.slane %v5126, 7
    %v5230 = vrot.slane %v5128, 1
    %v5231 = vrot.slane %v5128, 2
    %v5232 = vrot.slane %v5128, 3
    %v5233 = vrot.slane %v5128, 4
    %v5234 = vrot.slane %v5128, 5
    %v5235 = vrot.slane %v5128, 6
    %v5236 = vrot.slane %v5128, 7
    %v5237 = vrot.slane %v5130, 1
    %v5238 = vrot.slane %v5130, 2
    %v5239 = vrot.slane %v5130, 3
    %v5240 = vrot.slane %v5130, 4
    %v5241 = vrot.slane %v5130, 5
    %v5242 = vrot.slane %v5130, 6
    %v5243 = vrot.slane %v5130, 7
    %v5244 = vrot.slane %v5132, 1
    %v5245 = vrot.slane %v5132, 2
    %v5246 = vrot.slane %v5132, 3
    %v5247 = vrot.slane %v5132, 4
    %v5248 = vrot.slane %v5132, 5
    %v5249 = vrot.slane %v5132, 6
    %v5250 = vrot.slane %v5132, 7
    %v5251 = vrot.slane %v5134, 1
    %v5252 = vrot.slane %v5134, 2
    %v5253 = vrot.slane %v5134, 3
    %v5254 = vrot.slane %v5134, 4
    %v5255 = vrot.slane %v5134, 5
    %v5256 = vrot.slane %v5134, 6
    %v5257 = vrot.slane %v5134, 7
    %v5258 = vrot.slane %v5136, 1
    %v5259 = vrot.slane %v5136, 2
    %v5260 = vrot.slane %v5136, 3
    %v5261 = vrot.slane %v5136, 4
    %v5262 = vrot.slane %v5136, 5
    %v5263 = vrot.slane %v5136, 6
    %v5264 = vrot.slane %v5136, 7
    %v5265 = vrot.slane %v5138, 1
    %v5266 = vrot.slane %v5138, 2
    %v5267 = vrot.slane %v5138, 3
    %v5268 = vrot.slane %v5138, 4
    %v5269 = vrot.slane %v5138, 5
    %v5270 = vrot.slane %v5138, 6
    %v5271 = vrot.slane %v5138, 7
    %v5272 = vrot.slane %v5140, 1
    %v5273 = vrot.slane %v5140, 2
    %v5274 = vrot.slane %v5140, 3
    %v5275 = vrot.slane %v5140, 4
    %v5276 = vrot.slane %v5140, 5
    %v5277 = vrot.slane %v5140, 6
    %v5278 = vrot.slane %v5140, 7
    %v5279 = vrot.slane %v5142, 1
    %v5280 = vrot.slane %v5142, 2
    %v5281 = vrot.slane %v5142, 3
    %v5282 = vrot.slane %v5142, 4
    %v5283 = vrot.slane %v5142, 5
    %v5284 = vrot.slane %v5142, 6
    %v5285 = vrot.slane %v5142, 7
    %v5286 = vrot.slane %v5144, 1
    %v5287 = vrot.slane %v5144, 2
    %v5288 = vrot.slane %v5144, 3
    %v5289 = vrot.slane %v5144, 4
    %v5290 = vrot.slane %v5144, 5
    %v5291 = vrot.slane %v5144, 6
    %v5292 = vrot.slane %v5144, 7
    %v5293 = vrot.slane %v5146, 1
    %v5294 = vrot.slane %v5146, 2
    %v5295 = vrot.slane %v5146, 3
    %v5296 = vrot.slane %v5146, 4
    %v5297 = vrot.slane %v5146, 5
    %v5298 = vrot.slane %v5146, 6
    %v5299 = vrot.slane %v5146, 7
    %v5300 = vrot.slane %v5148, 1
    %v5301 = vrot.slane %v5148, 2
    %v5302 = vrot.slane %v5148, 3
    %v5303 = vrot.slane %v5148, 4
    %v5304 = vrot.slane %v5148, 5
    %v5305 = vrot.slane %v5148, 6
    %v5306 = vrot.slane %v5148, 7
    %v5307 = vrot.slane %v5150, 1
    %v5308 = vrot.slane %v5150, 2
    %v5309 = vrot.slane %v5150, 3
    %v5310 = vrot.slane %v5150, 4
    %v5311 = vrot.slane %v5150, 5
    %v5312 = vrot.slane %v5150, 6
    %v5313 = vrot.slane %v5150, 7
    %5314 = vst [vmem:[#allocation1] ss:$9 sm:$0xff] %v5116
    %s5315 = scalar_lea.vmem [#allocation1], 1
    %5316 = vst [vmem:[%s5315] ss:$9 sm:$0xff] %v5188
    %s5317 = scalar_lea.vmem [#allocation1], 2
    %5318 = vst [vmem:[%s5317] ss:$9 sm:$0xff] %v5189
    %s5319 = scalar_lea.vmem [#allocation1], 3
    %5320 = vst [vmem:[%s5319] ss:$9 sm:$0xff] %v5190
    %s5321 = scalar_lea.vmem [#allocation1], 4
    %5322 = vst [vmem:[%s5321] ss:$9 sm:$0xff] %v5191
    %s5323 = scalar_lea.vmem [#allocation1], 5
    %5324 = vst [vmem:[%s5323] ss:$9 sm:$0xff] %v5192
    %s5325 = scalar_lea.vmem [#allocation1], 6
    %5326 = vst [vmem:[%s5325] ss:$9 sm:$0xff] %v5193
    %s5327 = scalar_lea.vmem [#allocation1], 7
    %5328 = vst [vmem:[%s5327] ss:$9 sm:$0xff] %v5194
    %v5329 = vld [vmem:[#allocation1] sm:$0xff]
    %5330 = vst [vmem:[#allocation1] ss:$9 sm:$0xff] %v5117
    %5331 = vst [vmem:[%s5315] ss:$9 sm:$0xff] %v5118
    %5332 = vst [vmem:[%s5317] ss:$9 sm:$0xff] %v5195
    %5333 = vst [vmem:[%s5319] ss:$9 sm:$0xff] %v5196
    %5334 = vst [vmem:[%s5321] ss:$9 sm:$0xff] %v5197
    %5335 = vst [vmem:[%s5323] ss:$9 sm:$0xff] %v5198
    %5336 = vst [vmem:[%s5325] ss:$9 sm:$0xff] %v5199
    %5337 = vst [vmem:[%s5327] ss:$9 sm:$0xff] %v5200
    %v5338 = vld [vmem:[#allocation1] sm:$0xff]
    %5339 = vst [vmem:[#allocation1] ss:$9 sm:$0xff] %v5201
    %5340 = vst [vmem:[%s5315] ss:$9 sm:$0xff] %v5119
    %5341 = vst [vmem:[%s5317] ss:$9 sm:$0xff] %v5120
    %5342 = vst [vmem:[%s5319] ss:$9 sm:$0xff] %v5202
    %5343 = vst [vmem:[%s5321] ss:$9 sm:$0xff] %v5203
    %5344 = vst [vmem:[%s5323] ss:$9 sm:$0xff] %v5204
    %5345 = vst [vmem:[%s5325] ss:$9 sm:$0xff] %v5205
    %5346 = vst [vmem:[%s5327] ss:$9 sm:$0xff] %v5206
    %v5347 = vld [vmem:[#allocation1] sm:$0xff]
    %5348 = vst [vmem:[#allocation1] ss:$9 sm:$0xff] %v5207
    %5349 = vst [vmem:[%s5315] ss:$9 sm:$0xff] %v5208
    %5350 = vst [vmem:[%s5317] ss:$9 sm:$0xff] %v5121
    %5351 = vst [vmem:[%s5319] ss:$9 sm:$0xff] %v5122
    %5352 = vst [vmem:[%s5321] ss:$9 sm:$0xff] %v5209
    %5353 = vst [vmem:[%s5323] ss:$9 sm:$0xff] %v5210
    %5354 = vst [vmem:[%s5325] ss:$9 sm:$0xff] %v5211
    %5355 = vst [vmem:[%s5327] ss:$9 sm:$0xff] %v5212
    %v5356 = vld [vmem:[#allocation1] sm:$0xff]
    %5357 = vst [vmem:[#allocation1] ss:$9 sm:$0xff] %v5213
    %5358 = vst [vmem:[%s5315] ss:$9 sm:$0xff] %v5214
    %5359 = vst [vmem:[%s5317] ss:$9 sm:$0xff] %v5215
    %5360 = vst [vmem:[%s5319] ss:$9 sm:$0xff] %v5123
    %5361 = vst [vmem:[%s5321] ss:$9 sm:$0xff] %v5124
    %5362 = vst [vmem:[%s5323] ss:$9 sm:$0xff] %v5216
    %5363 = vst [vmem:[%s5325] ss:$9 sm:$0xff] %v5217
    %5364 = vst [vmem:[%s5327] ss:$9 sm:$0xff] %v5218
    %v5365 = vld [vmem:[#allocation1] sm:$0xff]
    %5366 = vst [vmem:[#allocation1] ss:$9 sm:$0xff] %v5219
    %5367 = vst [vmem:[%s5315] ss:$9 sm:$0xff] %v5220
    %5368 = vst [vmem:[%s5317] ss:$9 sm:$0xff] %v5221
    %5369 = vst [vmem:[%s5319] ss:$9 sm:$0xff] %v5222
    %5370 = vst [vmem:[%s5321] ss:$9 sm:$0xff] %v5125
    %5371 = vst [vmem:[%s5323] ss:$9 sm:$0xff] %v5126
    %5372 = vst [vmem:[%s5325] ss:$9 sm:$0xff] %v5223
    %5373 = vst [vmem:[%s5327] ss:$9 sm:$0xff] %v5224
    %v5374 = vld [vmem:[#allocation1] sm:$0xff]
    %5375 = vst [vmem:[#allocation1] ss:$9 sm:$0xff] %v5225
    %5376 = vst [vmem:[%s5315] ss:$9 sm:$0xff] %v5226
    %5377 = vst [vmem:[%s5317] ss:$9 sm:$0xff] %v5227
    %5378 = vst [vmem:[%s5319] ss:$9 sm:$0xff] %v5228
    %5379 = vst [vmem:[%s5321] ss:$9 sm:$0xff] %v5229
    %5380 = vst [vmem:[%s5323] ss:$9 sm:$0xff] %v5127
    %5381 = vst [vmem:[%s5325] ss:$9 sm:$0xff] %v5128
    %5382 = vst [vmem:[%s5327] ss:$9 sm:$0xff] %v5230
    %v5383 = vld [vmem:[#allocation1] sm:$0xff]
    %5384 = vst [vmem:[#allocation1] ss:$9 sm:$0xff] %v5231
    %5385 = vst [vmem:[%s5315] ss:$9 sm:$0xff] %v5232
    %5386 = vst [vmem:[%s5317] ss:$9 sm:$0xff] %v5233
    %5387 = vst [vmem:[%s5319] ss:$9 sm:$0xff] %v5234
    %5388 = vst [vmem:[%s5321] ss:$9 sm:$0xff] %v5235
    %5389 = vst [vmem:[%s5323] ss:$9 sm:$0xff] %v5236
    %5390 = vst [vmem:[%s5325] ss:$9 sm:$0xff] %v5129
    %5391 = vst [vmem:[%s5327] ss:$9 sm:$0xff] %v5130
    %v5392 = vld [vmem:[#allocation1] sm:$0xff]
    %5393 = vst [vmem:[#allocation1] ss:$9 sm:$0xff] %v5237
    %5394 = vst [vmem:[%s5315] ss:$9 sm:$0xff] %v5238
    %5395 = vst [vmem:[%s5317] ss:$9 sm:$0xff] %v5239
    %5396 = vst [vmem:[%s5319] ss:$9 sm:$0xff] %v5240
    %5397 = vst [vmem:[%s5321] ss:$9 sm:$0xff] %v5241
    %5398 = vst [vmem:[%s5323] ss:$9 sm:$0xff] %v5242
    %5399 = vst [vmem:[%s5325] ss:$9 sm:$0xff] %v5243
    %5400 = vst [vmem:[%s5327] ss:$9 sm:$0xff] %v5131
    %v5401 = vld [vmem:[#allocation1] sm:$0xff]
    %5402 = vst [vmem:[#allocation1] ss:$9 sm:$0xff] %v5132
    %5403 = vst [vmem:[%s5315] ss:$9 sm:$0xff] %v5244
    %5404 = vst [vmem:[%s5317] ss:$9 sm:$0xff] %v5245
    %5405 = vst [vmem:[%s5319] ss:$9 sm:$0xff] %v5246
    %5406 = vst [vmem:[%s5321] ss:$9 sm:$0xff] %v5247
    %5407 = vst [vmem:[%s5323] ss:$9 sm:$0xff] %v5248
    %5408 = vst [vmem:[%s5325] ss:$9 sm:$0xff] %v5249
    %5409 = vst [vmem:[%s5327] ss:$9 sm:$0xff] %v5250
    %v5410 = vld [vmem:[#allocation1] sm:$0xff]
    %5411 = vst [vmem:[#allocation1] ss:$9 sm:$0xff] %v5133
    %5412 = vst [vmem:[%s5315] ss:$9 sm:$0xff] %v5134
    %5413 = vst [vmem:[%s5317] ss:$9 sm:$0xff] %v5251
    %5414 = vst [vmem:[%s5319] ss:$9 sm:$0xff] %v5252
    %5415 = vst [vmem:[%s5321] ss:$9 sm:$0xff] %v5253
    %5416 = vst [vmem:[%s5323] ss:$9 sm:$0xff] %v5254
    %5417 = vst [vmem:[%s5325] ss:$9 sm:$0xff] %v5255
    %5418 = vst [vmem:[%s5327] ss:$9 sm:$0xff] %v5256
    %v5419 = vld [vmem:[#allocation1] sm:$0xff]
    %5420 = vst [vmem:[#allocation1] ss:$9 sm:$0xff] %v5257
    %5421 = vst [vmem:[%s5315] ss:$9 sm:$0xff] %v5135
    %5422 = vst [vmem:[%s5317] ss:$9 sm:$0xff] %v5136
    %5423 = vst [vmem:[%s5319] ss:$9 sm:$0xff] %v5258
    %5424 = vst [vmem:[%s5321] ss:$9 sm:$0xff] %v5259
    %5425 = vst [vmem:[%s5323] ss:$9 sm:$0xff] %v5260
    %5426 = vst [vmem:[%s5325] ss:$9 sm:$0xff] %v5261
    %5427 = vst [vmem:[%s5327] ss:$9 sm:$0xff] %v5262
    %v5428 = vld [vmem:[#allocation1] sm:$0xff]
    %5429 = vst [vmem:[#allocation1] ss:$9 sm:$0xff] %v5263
    %5430 = vst [vmem:[%s5315] ss:$9 sm:$0xff] %v5264
    %5431 = vst [vmem:[%s5317] ss:$9 sm:$0xff] %v5137
    %5432 = vst [vmem:[%s5319] ss:$9 sm:$0xff] %v5138
    %5433 = vst [vmem:[%s5321] ss:$9 sm:$0xff] %v5265
    %5434 = vst [vmem:[%s5323] ss:$9 sm:$0xff] %v5266
    %5435 = vst [vmem:[%s5325] ss:$9 sm:$0xff] %v5267
    %5436 = vst [vmem:[%s5327] ss:$9 sm:$0xff] %v5268
    %v5437 = vld [vmem:[#allocation1] sm:$0xff]
    %5438 = vst [vmem:[#allocation1] ss:$9 sm:$0xff] %v5269
    %5439 = vst [vmem:[%s5315] ss:$9 sm:$0xff] %v5270
    %5440 = vst [vmem:[%s5317] ss:$9 sm:$0xff] %v5271
    %5441 = vst [vmem:[%s5319] ss:$9 sm:$0xff] %v5139
    %5442 = vst [vmem:[%s5321] ss:$9 sm:$0xff] %v5140
    %5443 = vst [vmem:[%s5323] ss:$9 sm:$0xff] %v5272
    %5444 = vst [vmem:[%s5325] ss:$9 sm:$0xff] %v5273
    %5445 = vst [vmem:[%s5327] ss:$9 sm:$0xff] %v5274
    %v5446 = vld [vmem:[#allocation1] sm:$0xff]
    %5447 = vst [vmem:[#allocation1] ss:$9 sm:$0xff] %v5275
    %5448 = vst [vmem:[%s5315] ss:$9 sm:$0xff] %v5276
    %5449 = vst [vmem:[%s5317] ss:$9 sm:$0xff] %v5277
    %5450 = vst [vmem:[%s5319] ss:$9 sm:$0xff] %v5278
    %5451 = vst [vmem:[%s5321] ss:$9 sm:$0xff] %v5141
    %5452 = vst [vmem:[%s5323] ss:$9 sm:$0xff] %v5142
    %5453 = vst [vmem:[%s5325] ss:$9 sm:$0xff] %v5279
    %5454 = vst [vmem:[%s5327] ss:$9 sm:$0xff] %v5280
    %v5455 = vld [vmem:[#allocation1] sm:$0xff]
    %5456 = vst [vmem:[#allocation1] ss:$9 sm:$0xff] %v5281
    %5457 = vst [vmem:[%s5315] ss:$9 sm:$0xff] %v5282
    %5458 = vst [vmem:[%s5317] ss:$9 sm:$0xff] %v5283
    %5459 = vst [vmem:[%s5319] ss:$9 sm:$0xff] %v5284
    %5460 = vst [vmem:[%s5321] ss:$9 sm:$0xff] %v5285
    %5461 = vst [vmem:[%s5323] ss:$9 sm:$0xff] %v5143
    %5462 = vst [vmem:[%s5325] ss:$9 sm:$0xff] %v5144
    %5463 = vst [vmem:[%s5327] ss:$9 sm:$0xff] %v5286
    %v5464 = vld [vmem:[#allocation1] sm:$0xff]
    %5465 = vst [vmem:[#allocation1] ss:$9 sm:$0xff] %v5287
    %5466 = vst [vmem:[%s5315] ss:$9 sm:$0xff] %v5288
    %5467 = vst [vmem:[%s5317] ss:$9 sm:$0xff] %v5289
    %5468 = vst [vmem:[%s5319] ss:$9 sm:$0xff] %v5290
    %5469 = vst [vmem:[%s5321] ss:$9 sm:$0xff] %v5291
    %5470 = vst [vmem:[%s5323] ss:$9 sm:$0xff] %v5292
    %5471 = vst [vmem:[%s5325] ss:$9 sm:$0xff] %v5145
    %5472 = vst [vmem:[%s5327] ss:$9 sm:$0xff] %v5146
    %v5473 = vld [vmem:[#allocation1] sm:$0xff]
    %5474 = vst [vmem:[#allocation1] ss:$9 sm:$0xff] %v5293
    %5475 = vst [vmem:[%s5315] ss:$9 sm:$0xff] %v5294
    %5476 = vst [vmem:[%s5317] ss:$9 sm:$0xff] %v5295
    %5477 = vst [vmem:[%s5319] ss:$9 sm:$0xff] %v5296
    %5478 = vst [vmem:[%s5321] ss:$9 sm:$0xff] %v5297
    %5479 = vst [vmem:[%s5323] ss:$9 sm:$0xff] %v5298
    %5480 = vst [vmem:[%s5325] ss:$9 sm:$0xff] %v5299
    %5481 = vst [vmem:[%s5327] ss:$9 sm:$0xff] %v5147
    %v5482 = vld [vmem:[#allocation1] sm:$0xff]
    %5483 = vst [vmem:[#allocation1] ss:$9 sm:$0xff] %v5148
    %5484 = vst [vmem:[%s5315] ss:$9 sm:$0xff] %v5300
    %5485 = vst [vmem:[%s5317] ss:$9 sm:$0xff] %v5301
    %5486 = vst [vmem:[%s5319] ss:$9 sm:$0xff] %v5302
    %5487 = vst [vmem:[%s5321] ss:$9 sm:$0xff] %v5303
    %5488 = vst [vmem:[%s5323] ss:$9 sm:$0xff] %v5304
    %5489 = vst [vmem:[%s5325] ss:$9 sm:$0xff] %v5305
    %5490 = vst [vmem:[%s5327] ss:$9 sm:$0xff] %v5306
    %v5491 = vld [vmem:[#allocation1] sm:$0xff]
    %5492 = vst [vmem:[#allocation1] ss:$9 sm:$0xff] %v5149
    %5493 = vst [vmem:[%s5315] ss:$9 sm:$0xff] %v5150
    %5494 = vst [vmem:[%s5317] ss:$9 sm:$0xff] %v5307
    %5495 = vst [vmem:[%s5319] ss:$9 sm:$0xff] %v5308
    %5496 = vst [vmem:[%s5321] ss:$9 sm:$0xff] %v5309
    %5497 = vst [vmem:[%s5323] ss:$9 sm:$0xff] %v5310
    %5498 = vst [vmem:[%s5325] ss:$9 sm:$0xff] %v5311
    %5499 = vst [vmem:[%s5327] ss:$9 sm:$0xff] %v5312
    %v5500 = vld [vmem:[#allocation1] sm:$0xff]
    %5501 = vst [vmem:[#allocation1] ss:$9 sm:$0xff] %v5313
    %5502 = vst [vmem:[%s5315] ss:$9 sm:$0xff] %v5151
    %v5503 = vld [vmem:[#allocation1] sm:$0xff]
    %v5525 = vpack.c.bf16 %v5338, %v5329
    %v5526 = vpack.c.bf16 %v5356, %v5347
    %v5527 = vpack.c.bf16 %v5374, %v5365
    %v5528 = vpack.c.bf16 %v5392, %v5383
    %v5529 = vpack.c.bf16 %v5410, %v5401
    %v5530 = vpack.c.bf16 %v5428, %v5419
    %v5531 = vpack.c.bf16 %v5446, %v5437
    %v5532 = vpack.c.bf16 %v5464, %v5455
    %v5533 = vpack.c.bf16 %v5482, %v5473
    %v5534 = vpack.c.bf16 %v5500, %v5491
    %v5535 = vpack.c.bf16 %v5503, %v5503
    %v5536 = vld [vmem:[%s4] sm:$0xf]
    %v5537 = vld [vmem:[%s4 + $0x4] sm:$0xf]
    %v5538 = vld [vmem:[%s4 + $0x8] sm:$0xf]
    %v5539 = vld [vmem:[%s4 + $0xc] sm:$0xf]
    %v5540 = vld [vmem:[%s5] sm:$0x1]
    %v5542 = vperm.slane %v5540, 0
    %v5548 = vunpack.c.l.b16 %v5536
    %v5549 = vunpack.c.l.b16 %v5537
    %v5550 = vunpack.c.l.b16 %v5538
    %v5551 = vunpack.c.l.b16 %v5539
    %v5552 = vpack.c.b16 %v5549, %v5548
    %v5553 = vpack.c.b16 %v5551, %v5550
    %v5557 = vsel %vm49, %v5525, 0
    %v5560 = vsel %vm49, %v5526, 0
    %v5563 = vsel %vm49, %v5527, 0
    %v5566 = vsel %vm49, %v5528, 0
    %v5569 = vsel %vm49, %v5529, 0
    %v5572 = vsel %vm49, %v5530, 0
    %v5575 = vsel %vm49, %v5531, 0
    %v5578 = vsel %vm49, %v5532, 0
    %v5581 = vsel %vm49, %v5533, 0
    %v5584 = vsel %vm49, %v5534, 0
    %v5587 = vsel %vm49, %v5535, 0
    %5589 = vmatpush.bf16.msra.mxu0 0
    %5590 = vmatpush.bf16.msra.mxu0 0
    %5591 = vmatpush.bf16.msra.mxu0 0
    %5592 = vmatpush.bf16.msra.mxu0 0
    %5593 = vmatpush.bf16.msra.mxu0 0
    %5594 = vmatpush.bf16.msra.mxu0 0
    %5595 = vmatpush.bf16.msra.mxu0 %v5553
    %5596 = vmatpush.bf16.msra.mxu0 %v5552
    %5597 = vmatmul.bf16.gmra.mxu0 %v5557
    %v5598 = vpop.f32.mrf.mxu0
    %v5599 = vadd.f32 %v5542, %v5598
    %v5600 = vpop.f32.mrf.mxu0
    %v5601 = vadd.f32 %v5542, %v5600
    %5602 = vmatmul.bf16.gmra.mxu0 %v5560
    %v5603 = vpop.f32.mrf.mxu0
    %v5604 = vadd.f32 %v5542, %v5603
    %v5605 = vpop.f32.mrf.mxu0
    %v5606 = vadd.f32 %v5542, %v5605
    %5607 = vmatmul.bf16.gmra.mxu0 %v5563
    %v5608 = vpop.f32.mrf.mxu0
    %v5609 = vadd.f32 %v5542, %v5608
    %v5610 = vpop.f32.mrf.mxu0
    %v5611 = vadd.f32 %v5542, %v5610
    %5612 = vmatmul.bf16.gmra.mxu0 %v5566
    %v5613 = vpop.f32.mrf.mxu0
    %v5614 = vadd.f32 %v5542, %v5613
    %v5615 = vpop.f32.mrf.mxu0
    %v5616 = vadd.f32 %v5542, %v5615
    %5617 = vmatmul.bf16.gmra.mxu0 %v5569
    %v5618 = vpop.f32.mrf.mxu0
    %v5619 = vadd.f32 %v5542, %v5618
    %v5620 = vpop.f32.mrf.mxu0
    %v5621 = vadd.f32 %v5542, %v5620
    %5622 = vmatmul.bf16.gmra.mxu0 %v5572
    %v5623 = vpop.f32.mrf.mxu0
    %v5624 = vadd.f32 %v5542, %v5623
    %v5625 = vpop.f32.mrf.mxu0
    %v5626 = vadd.f32 %v5542, %v5625
    %5627 = vmatmul.bf16.gmra.mxu0 %v5575
    %v5628 = vpop.f32.mrf.mxu0
    %v5629 = vadd.f32 %v5542, %v5628
    %v5630 = vpop.f32.mrf.mxu0
    %v5631 = vadd.f32 %v5542, %v5630
    %5632 = vmatmul.bf16.gmra.mxu0 %v5578
    %v5633 = vpop.f32.mrf.mxu0
    %v5634 = vadd.f32 %v5542, %v5633
    %v5635 = vpop.f32.mrf.mxu0
    %v5636 = vadd.f32 %v5542, %v5635
    %5637 = vmatmul.bf16.gmra.mxu0 %v5581
    %v5638 = vpop.f32.mrf.mxu0
    %v5639 = vadd.f32 %v5542, %v5638
    %v5640 = vpop.f32.mrf.mxu0
    %v5641 = vadd.f32 %v5542, %v5640
    %5642 = vmatmul.bf16.gmra.mxu0 %v5584
    %v5643 = vpop.f32.mrf.mxu0
    %v5644 = vadd.f32 %v5542, %v5643
    %v5645 = vpop.f32.mrf.mxu0
    %v5646 = vadd.f32 %v5542, %v5645
    %5647 = vmatmul.bf16.gmra.mxu0 %v5587
    %v5648 = vpop.f32.mrf.mxu0
    %v5649 = vadd.f32 %v5542, %v5648
    %v5650 = vpop.f32.mrf.mxu0
    %5651 = vdwg.mxu0
    %v5652 = vmax.f32 %v5599, 0.0
    %v5653 = vmax.f32 %v5601, 0.0
    %v5654 = vmax.f32 %v5604, 0.0
    %v5655 = vmax.f32 %v5606, 0.0
    %v5656 = vmax.f32 %v5609, 0.0
    %v5657 = vmax.f32 %v5611, 0.0
    %v5658 = vmax.f32 %v5614, 0.0
    %v5659 = vmax.f32 %v5616, 0.0
    %v5660 = vmax.f32 %v5619, 0.0
    %v5661 = vmax.f32 %v5621, 0.0
    %v5662 = vmax.f32 %v5624, 0.0
    %v5663 = vmax.f32 %v5626, 0.0
    %v5664 = vmax.f32 %v5629, 0.0
    %v5665 = vmax.f32 %v5631, 0.0
    %v5666 = vmax.f32 %v5634, 0.0
    %v5667 = vmax.f32 %v5636, 0.0
    %v5668 = vmax.f32 %v5639, 0.0
    %v5669 = vmax.f32 %v5641, 0.0
    %v5670 = vmax.f32 %v5644, 0.0
    %v5671 = vmax.f32 %v5646, 0.0
    %v5672 = vmax.f32 %v5649, 0.0
    %v5694 = vrot.slane %v5652, 1
    %v5695 = vrot.slane %v5652, 2
    %v5696 = vrot.slane %v5652, 3
    %v5697 = vrot.slane %v5652, 4
    %v5698 = vrot.slane %v5652, 5
    %v5699 = vrot.slane %v5652, 6
    %v5700 = vrot.slane %v5652, 7
    %v5701 = vrot.slane %v5653, 1
    %v5702 = vrot.slane %v5653, 2
    %v5703 = vrot.slane %v5653, 3
    %v5704 = vrot.slane %v5653, 4
    %v5705 = vrot.slane %v5653, 5
    %v5706 = vrot.slane %v5653, 6
    %v5707 = vrot.slane %v5653, 7
    %v5708 = vrot.slane %v5654, 1
    %v5709 = vrot.slane %v5654, 2
    %v5710 = vrot.slane %v5654, 3
    %v5711 = vrot.slane %v5654, 4
    %v5712 = vrot.slane %v5654, 5
    %v5713 = vrot.slane %v5654, 6
    %v5714 = vrot.slane %v5654, 7
    %v5715 = vrot.slane %v5655, 1
    %v5716 = vrot.slane %v5655, 2
    %v5717 = vrot.slane %v5655, 3
    %v5718 = vrot.slane %v5655, 4
    %v5719 = vrot.slane %v5655, 5
    %v5720 = vrot.slane %v5655, 6
    %v5721 = vrot.slane %v5655, 7
    %v5722 = vrot.slane %v5656, 1
    %v5723 = vrot.slane %v5656, 2
    %v5724 = vrot.slane %v5656, 3
    %v5725 = vrot.slane %v5656, 4
    %v5726 = vrot.slane %v5656, 5
    %v5727 = vrot.slane %v5656, 6
    %v5728 = vrot.slane %v5656, 7
    %v5729 = vrot.slane %v5657, 1
    %v5730 = vrot.slane %v5657, 2
    %v5731 = vrot.slane %v5657, 3
    %v5732 = vrot.slane %v5657, 4
    %v5733 = vrot.slane %v5657, 5
    %v5734 = vrot.slane %v5657, 6
    %v5735 = vrot.slane %v5657, 7
    %v5736 = vrot.slane %v5658, 1
    %v5737 = vrot.slane %v5658, 2
    %v5738 = vrot.slane %v5658, 3
    %v5739 = vrot.slane %v5658, 4
    %v5740 = vrot.slane %v5658, 5
    %v5741 = vrot.slane %v5658, 6
    %v5742 = vrot.slane %v5658, 7
    %v5743 = vrot.slane %v5659, 1
    %v5744 = vrot.slane %v5659, 2
    %v5745 = vrot.slane %v5659, 3
    %v5746 = vrot.slane %v5659, 4
    %v5747 = vrot.slane %v5659, 5
    %v5748 = vrot.slane %v5659, 6
    %v5749 = vrot.slane %v5659, 7
    %v5750 = vrot.slane %v5660, 1
    %v5751 = vrot.slane %v5660, 2
    %v5752 = vrot.slane %v5660, 3
    %v5753 = vrot.slane %v5660, 4
    %v5754 = vrot.slane %v5660, 5
    %v5755 = vrot.slane %v5660, 6
    %v5756 = vrot.slane %v5660, 7
    %v5757 = vrot.slane %v5661, 1
    %v5758 = vrot.slane %v5661, 2
    %v5759 = vrot.slane %v5661, 3
    %v5760 = vrot.slane %v5661, 4
    %v5761 = vrot.slane %v5661, 5
    %v5762 = vrot.slane %v5661, 6
    %v5763 = vrot.slane %v5661, 7
    %v5764 = vrot.slane %v5662, 1
    %v5765 = vrot.slane %v5662, 2
    %v5766 = vrot.slane %v5662, 3
    %v5767 = vrot.slane %v5662, 4
    %v5768 = vrot.slane %v5662, 5
    %v5769 = vrot.slane %v5662, 6
    %v5770 = vrot.slane %v5662, 7
    %v5771 = vrot.slane %v5663, 1
    %v5772 = vrot.slane %v5663, 2
    %v5773 = vrot.slane %v5663, 3
    %v5774 = vrot.slane %v5663, 4
    %v5775 = vrot.slane %v5663, 5
    %v5776 = vrot.slane %v5663, 6
    %v5777 = vrot.slane %v5663, 7
    %v5778 = vrot.slane %v5664, 1
    %v5779 = vrot.slane %v5664, 2
    %v5780 = vrot.slane %v5664, 3
    %v5781 = vrot.slane %v5664, 4
    %v5782 = vrot.slane %v5664, 5
    %v5783 = vrot.slane %v5664, 6
    %v5784 = vrot.slane %v5664, 7
    %v5785 = vrot.slane %v5665, 1
    %v5786 = vrot.slane %v5665, 2
    %v5787 = vrot.slane %v5665, 3
    %v5788 = vrot.slane %v5665, 4
    %v5789 = vrot.slane %v5665, 5
    %v5790 = vrot.slane %v5665, 6
    %v5791 = vrot.slane %v5665, 7
    %v5792 = vrot.slane %v5666, 1
    %v5793 = vrot.slane %v5666, 2
    %v5794 = vrot.slane %v5666, 3
    %v5795 = vrot.slane %v5666, 4
    %v5796 = vrot.slane %v5666, 5
    %v5797 = vrot.slane %v5666, 6
    %v5798 = vrot.slane %v5666, 7
    %v5799 = vrot.slane %v5667, 1
    %v5800 = vrot.slane %v5667, 2
    %v5801 = vrot.slane %v5667, 3
    %v5802 = vrot.slane %v5667, 4
    %v5803 = vrot.slane %v5667, 5
    %v5804 = vrot.slane %v5667, 6
    %v5805 = vrot.slane %v5667, 7
    %v5806 = vrot.slane %v5668, 1
    %v5807 = vrot.slane %v5668, 2
    %v5808 = vrot.slane %v5668, 3
    %v5809 = vrot.slane %v5668, 4
    %v5810 = vrot.slane %v5668, 5
    %v5811 = vrot.slane %v5668, 6
    %v5812 = vrot.slane %v5668, 7
    %v5813 = vrot.slane %v5669, 1
    %v5814 = vrot.slane %v5669, 2
    %v5815 = vrot.slane %v5669, 3
    %v5816 = vrot.slane %v5669, 4
    %v5817 = vrot.slane %v5669, 5
    %v5818 = vrot.slane %v5669, 6
    %v5819 = vrot.slane %v5669, 7
    %v5820 = vrot.slane %v5670, 1
    %v5821 = vrot.slane %v5670, 2
    %v5822 = vrot.slane %v5670, 3
    %v5823 = vrot.slane %v5670, 4
    %v5824 = vrot.slane %v5670, 5
    %v5825 = vrot.slane %v5670, 6
    %v5826 = vrot.slane %v5670, 7
    %v5827 = vrot.slane %v5671, 1
    %v5828 = vrot.slane %v5671, 2
    %v5829 = vrot.slane %v5671, 3
    %v5830 = vrot.slane %v5671, 4
    %v5831 = vrot.slane %v5671, 5
    %v5832 = vrot.slane %v5671, 6
    %v5833 = vrot.slane %v5671, 7
    %v5834 = vrot.slane %v5672, 1
    %5835 = vst [vmem:[#allocation1] ss:$9 sm:$0xff] %v5652
    %s5836 = scalar_lea.vmem [#allocation1], 1
    %5837 = vst [vmem:[%s5836] ss:$9 sm:$0xff] %v5694
    %s5838 = scalar_lea.vmem [#allocation1], 2
    %5839 = vst [vmem:[%s5838] ss:$9 sm:$0xff] %v5695
    %s5840 = scalar_lea.vmem [#allocation1], 3
    %5841 = vst [vmem:[%s5840] ss:$9 sm:$0xff] %v5696
    %s5842 = scalar_lea.vmem [#allocation1], 4
    %5843 = vst [vmem:[%s5842] ss:$9 sm:$0xff] %v5697
    %s5844 = scalar_lea.vmem [#allocation1], 5
    %5845 = vst [vmem:[%s5844] ss:$9 sm:$0xff] %v5698
    %s5846 = scalar_lea.vmem [#allocation1], 6
    %5847 = vst [vmem:[%s5846] ss:$9 sm:$0xff] %v5699
    %s5848 = scalar_lea.vmem [#allocation1], 7
    %5849 = vst [vmem:[%s5848] ss:$9 sm:$0xff] %v5700
    %v5850 = vld [vmem:[#allocation1] sm:$0xff]
    %5851 = vst [vmem:[#allocation1] ss:$9 sm:$0xff] %v5653
    %v5852 = vld [vmem:[#allocation1] sm:$0xff]
    %5853 = vst [vmem:[#allocation1] ss:$9 sm:$0xff] %v5701
    %5854 = vst [vmem:[%s5836] ss:$9 sm:$0xff] %v5702
    %5855 = vst [vmem:[%s5838] ss:$9 sm:$0xff] %v5703
    %5856 = vst [vmem:[%s5840] ss:$9 sm:$0xff] %v5704
    %5857 = vst [vmem:[%s5842] ss:$9 sm:$0xff] %v5705
    %5858 = vst [vmem:[%s5844] ss:$9 sm:$0xff] %v5706
    %5859 = vst [vmem:[%s5846] ss:$9 sm:$0xff] %v5707
    %5860 = vst [vmem:[%s5848] ss:$9 sm:$0xff] %v5654
    %v5861 = vld [vmem:[#allocation1] sm:$0xff]
    %5862 = vst [vmem:[#allocation1] ss:$9 sm:$0xff] %v5708
    %v5863 = vld [vmem:[#allocation1] sm:$0xff]
    %5864 = vst [vmem:[#allocation1] ss:$9 sm:$0xff] %v5709
    %5865 = vst [vmem:[%s5836] ss:$9 sm:$0xff] %v5710
    %5866 = vst [vmem:[%s5838] ss:$9 sm:$0xff] %v5711
    %5867 = vst [vmem:[%s5840] ss:$9 sm:$0xff] %v5712
    %5868 = vst [vmem:[%s5842] ss:$9 sm:$0xff] %v5713
    %5869 = vst [vmem:[%s5844] ss:$9 sm:$0xff] %v5714
    %5870 = vst [vmem:[%s5846] ss:$9 sm:$0xff] %v5655
    %5871 = vst [vmem:[%s5848] ss:$9 sm:$0xff] %v5715
    %v5872 = vld [vmem:[#allocation1] sm:$0xff]
    %5873 = vst [vmem:[#allocation1] ss:$9 sm:$0xff] %v5716
    %v5874 = vld [vmem:[#allocation1] sm:$0xff]
    %5875 = vst [vmem:[#allocation1] ss:$9 sm:$0xff] %v5717
    %5876 = vst [vmem:[%s5836] ss:$9 sm:$0xff] %v5718
    %5877 = vst [vmem:[%s5838] ss:$9 sm:$0xff] %v5719
    %5878 = vst [vmem:[%s5840] ss:$9 sm:$0xff] %v5720
    %5879 = vst [vmem:[%s5842] ss:$9 sm:$0xff] %v5721
    %5880 = vst [vmem:[%s5844] ss:$9 sm:$0xff] %v5656
    %5881 = vst [vmem:[%s5846] ss:$9 sm:$0xff] %v5722
    %5882 = vst [vmem:[%s5848] ss:$9 sm:$0xff] %v5723
    %v5883 = vld [vmem:[#allocation1] sm:$0xff]
    %5884 = vst [vmem:[#allocation1] ss:$9 sm:$0xff] %v5724
    %v5885 = vld [vmem:[#allocation1] sm:$0xff]
    %5886 = vst [vmem:[#allocation1] ss:$9 sm:$0xff] %v5725
    %5887 = vst [vmem:[%s5836] ss:$9 sm:$0xff] %v5726
    %5888 = vst [vmem:[%s5838] ss:$9 sm:$0xff] %v5727
    %5889 = vst [vmem:[%s5840] ss:$9 sm:$0xff] %v5728
    %5890 = vst [vmem:[%s5842] ss:$9 sm:$0xff] %v5657
    %5891 = vst [vmem:[%s5844] ss:$9 sm:$0xff] %v5729
    %5892 = vst [vmem:[%s5846] ss:$9 sm:$0xff] %v5730
    %5893 = vst [vmem:[%s5848] ss:$9 sm:$0xff] %v5731
    %v5894 = vld [vmem:[#allocation1] sm:$0xff]
    %5895 = vst [vmem:[#allocation1] ss:$9 sm:$0xff] %v5732
    %v5896 = vld [vmem:[#allocation1] sm:$0xff]
    %5897 = vst [vmem:[#allocation1] ss:$9 sm:$0xff] %v5733
    %5898 = vst [vmem:[%s5836] ss:$9 sm:$0xff] %v5734
    %5899 = vst [vmem:[%s5838] ss:$9 sm:$0xff] %v5735
    %5900 = vst [vmem:[%s5840] ss:$9 sm:$0xff] %v5658
    %5901 = vst [vmem:[%s5842] ss:$9 sm:$0xff] %v5736
    %5902 = vst [vmem:[%s5844] ss:$9 sm:$0xff] %v5737
    %5903 = vst [vmem:[%s5846] ss:$9 sm:$0xff] %v5738
    %5904 = vst [vmem:[%s5848] ss:$9 sm:$0xff] %v5739
    %v5905 = vld [vmem:[#allocation1] sm:$0xff]
    %5906 = vst [vmem:[#allocation1] ss:$9 sm:$0xff] %v5740
    %v5907 = vld [vmem:[#allocation1] sm:$0xff]
    %5908 = vst [vmem:[#allocation1] ss:$9 sm:$0xff] %v5741
    %5909 = vst [vmem:[%s5836] ss:$9 sm:$0xff] %v5742
    %5910 = vst [vmem:[%s5838] ss:$9 sm:$0xff] %v5659
    %5911 = vst [vmem:[%s5840] ss:$9 sm:$0xff] %v5743
    %5912 = vst [vmem:[%s5842] ss:$9 sm:$0xff] %v5744
    %5913 = vst [vmem:[%s5844] ss:$9 sm:$0xff] %v5745
    %5914 = vst [vmem:[%s5846] ss:$9 sm:$0xff] %v5746
    %5915 = vst [vmem:[%s5848] ss:$9 sm:$0xff] %v5747
    %v5916 = vld [vmem:[#allocation1] sm:$0xff]
    %5917 = vst [vmem:[#allocation1] ss:$9 sm:$0xff] %v5748
    %v5918 = vld [vmem:[#allocation1] sm:$0xff]
    %5919 = vst [vmem:[#allocation1] ss:$9 sm:$0xff] %v5749
    %5920 = vst [vmem:[%s5836] ss:$9 sm:$0xff] %v5660
    %5921 = vst [vmem:[%s5838] ss:$9 sm:$0xff] %v5750
    %5922 = vst [vmem:[%s5840] ss:$9 sm:$0xff] %v5751
    %5923 = vst [vmem:[%s5842] ss:$9 sm:$0xff] %v5752
    %5924 = vst [vmem:[%s5844] ss:$9 sm:$0xff] %v5753
    %5925 = vst [vmem:[%s5846] ss:$9 sm:$0xff] %v5754
    %5926 = vst [vmem:[%s5848] ss:$9 sm:$0xff] %v5755
    %v5927 = vld [vmem:[#allocation1] sm:$0xff]
    %5928 = vst [vmem:[#allocation1] ss:$9 sm:$0xff] %v5756
    %v5929 = vld [vmem:[#allocation1] sm:$0xff]
    %5930 = vst [vmem:[#allocation1] ss:$9 sm:$0xff] %v5661
    %5931 = vst [vmem:[%s5836] ss:$9 sm:$0xff] %v5757
    %5932 = vst [vmem:[%s5838] ss:$9 sm:$0xff] %v5758
    %5933 = vst [vmem:[%s5840] ss:$9 sm:$0xff] %v5759
    %5934 = vst [vmem:[%s5842] ss:$9 sm:$0xff] %v5760
    %5935 = vst [vmem:[%s5844] ss:$9 sm:$0xff] %v5761
    %5936 = vst [vmem:[%s5846] ss:$9 sm:$0xff] %v5762
    %5937 = vst [vmem:[%s5848] ss:$9 sm:$0xff] %v5763
    %v5938 = vld [vmem:[#allocation1] sm:$0xff]
    %5939 = vst [vmem:[#allocation1] ss:$9 sm:$0xff] %v5662
    %v5940 = vld [vmem:[#allocation1] sm:$0xff]
    %5941 = vst [vmem:[#allocation1] ss:$9 sm:$0xff] %v5764
    %5942 = vst [vmem:[%s5836] ss:$9 sm:$0xff] %v5765
    %5943 = vst [vmem:[%s5838] ss:$9 sm:$0xff] %v5766
    %5944 = vst [vmem:[%s5840] ss:$9 sm:$0xff] %v5767
    %5945 = vst [vmem:[%s5842] ss:$9 sm:$0xff] %v5768
    %5946 = vst [vmem:[%s5844] ss:$9 sm:$0xff] %v5769
    %5947 = vst [vmem:[%s5846] ss:$9 sm:$0xff] %v5770
    %5948 = vst [vmem:[%s5848] ss:$9 sm:$0xff] %v5663
    %v5949 = vld [vmem:[#allocation1] sm:$0xff]
    %5950 = vst [vmem:[#allocation1] ss:$9 sm:$0xff] %v5771
    %v5951 = vld [vmem:[#allocation1] sm:$0xff]
    %5952 = vst [vmem:[#allocation1] ss:$9 sm:$0xff] %v5772
    %5953 = vst [vmem:[%s5836] ss:$9 sm:$0xff] %v5773
    %5954 = vst [vmem:[%s5838] ss:$9 sm:$0xff] %v5774
    %5955 = vst [vmem:[%s5840] ss:$9 sm:$0xff] %v5775
    %5956 = vst [vmem:[%s5842] ss:$9 sm:$0xff] %v5776
    %5957 = vst [vmem:[%s5844] ss:$9 sm:$0xff] %v5777
    %5958 = vst [vmem:[%s5846] ss:$9 sm:$0xff] %v5664
    %5959 = vst [vmem:[%s5848] ss:$9 sm:$0xff] %v5778
    %v5960 = vld [vmem:[#allocation1] sm:$0xff]
    %5961 = vst [vmem:[#allocation1] ss:$9 sm:$0xff] %v5779
    %v5962 = vld [vmem:[#allocation1] sm:$0xff]
    %5963 = vst [vmem:[#allocation1] ss:$9 sm:$0xff] %v5780
    %5964 = vst [vmem:[%s5836] ss:$9 sm:$0xff] %v5781
    %5965 = vst [vmem:[%s5838] ss:$9 sm:$0xff] %v5782
    %5966 = vst [vmem:[%s5840] ss:$9 sm:$0xff] %v5783
    %5967 = vst [vmem:[%s5842] ss:$9 sm:$0xff] %v5784
    %5968 = vst [vmem:[%s5844] ss:$9 sm:$0xff] %v5665
    %5969 = vst [vmem:[%s5846] ss:$9 sm:$0xff] %v5785
    %5970 = vst [vmem:[%s5848] ss:$9 sm:$0xff] %v5786
    %v5971 = vld [vmem:[#allocation1] sm:$0xff]
    %5972 = vst [vmem:[#allocation1] ss:$9 sm:$0xff] %v5787
    %v5973 = vld [vmem:[#allocation1] sm:$0xff]
    %5974 = vst [vmem:[#allocation1] ss:$9 sm:$0xff] %v5788
    %5975 = vst [vmem:[%s5836] ss:$9 sm:$0xff] %v5789
    %5976 = vst [vmem:[%s5838] ss:$9 sm:$0xff] %v5790
    %5977 = vst [vmem:[%s5840] ss:$9 sm:$0xff] %v5791
    %5978 = vst [vmem:[%s5842] ss:$9 sm:$0xff] %v5666
    %5979 = vst [vmem:[%s5844] ss:$9 sm:$0xff] %v5792
    %5980 = vst [vmem:[%s5846] ss:$9 sm:$0xff] %v5793
    %5981 = vst [vmem:[%s5848] ss:$9 sm:$0xff] %v5794
    %v5982 = vld [vmem:[#allocation1] sm:$0xff]
    %5983 = vst [vmem:[#allocation1] ss:$9 sm:$0xff] %v5795
    %v5984 = vld [vmem:[#allocation1] sm:$0xff]
    %5985 = vst [vmem:[#allocation1] ss:$9 sm:$0xff] %v5796
    %5986 = vst [vmem:[%s5836] ss:$9 sm:$0xff] %v5797
    %5987 = vst [vmem:[%s5838] ss:$9 sm:$0xff] %v5798
    %5988 = vst [vmem:[%s5840] ss:$9 sm:$0xff] %v5667
    %5989 = vst [vmem:[%s5842] ss:$9 sm:$0xff] %v5799
    %5990 = vst [vmem:[%s5844] ss:$9 sm:$0xff] %v5800
    %5991 = vst [vmem:[%s5846] ss:$9 sm:$0xff] %v5801
    %5992 = vst [vmem:[%s5848] ss:$9 sm:$0xff] %v5802
    %v5993 = vld [vmem:[#allocation1] sm:$0xff]
    %5994 = vst [vmem:[#allocation1] ss:$9 sm:$0xff] %v5803
    %v5995 = vld [vmem:[#allocation1] sm:$0xff]
    %5996 = vst [vmem:[#allocation1] ss:$9 sm:$0xff] %v5804
    %5997 = vst [vmem:[%s5836] ss:$9 sm:$0xff] %v5805
    %5998 = vst [vmem:[%s5838] ss:$9 sm:$0xff] %v5668
    %5999 = vst [vmem:[%s5840] ss:$9 sm:$0xff] %v5806
    %6000 = vst [vmem:[%s5842] ss:$9 sm:$0xff] %v5807
    %6001 = vst [vmem:[%s5844] ss:$9 sm:$0xff] %v5808
    %6002 = vst [vmem:[%s5846] ss:$9 sm:$0xff] %v5809
    %6003 = vst [vmem:[%s5848] ss:$9 sm:$0xff] %v5810
    %v6004 = vld [vmem:[#allocation1] sm:$0xff]
    %6005 = vst [vmem:[#allocation1] ss:$9 sm:$0xff] %v5811
    %v6006 = vld [vmem:[#allocation1] sm:$0xff]
    %6007 = vst [vmem:[#allocation1] ss:$9 sm:$0xff] %v5812
    %6008 = vst [vmem:[%s5836] ss:$9 sm:$0xff] %v5669
    %6009 = vst [vmem:[%s5838] ss:$9 sm:$0xff] %v5813
    %6010 = vst [vmem:[%s5840] ss:$9 sm:$0xff] %v5814
    %6011 = vst [vmem:[%s5842] ss:$9 sm:$0xff] %v5815
    %6012 = vst [vmem:[%s5844] ss:$9 sm:$0xff] %v5816
    %6013 = vst [vmem:[%s5846] ss:$9 sm:$0xff] %v5817
    %6014 = vst [vmem:[%s5848] ss:$9 sm:$0xff] %v5818
    %v6015 = vld [vmem:[#allocation1] sm:$0xff]
    %6016 = vst [vmem:[#allocation1] ss:$9 sm:$0xff] %v5819
    %v6017 = vld [vmem:[#allocation1] sm:$0xff]
    %6018 = vst [vmem:[#allocation1] ss:$9 sm:$0xff] %v5670
    %6019 = vst [vmem:[%s5836] ss:$9 sm:$0xff] %v5820
    %6020 = vst [vmem:[%s5838] ss:$9 sm:$0xff] %v5821
    %6021 = vst [vmem:[%s5840] ss:$9 sm:$0xff] %v5822
    %6022 = vst [vmem:[%s5842] ss:$9 sm:$0xff] %v5823
    %6023 = vst [vmem:[%s5844] ss:$9 sm:$0xff] %v5824
    %6024 = vst [vmem:[%s5846] ss:$9 sm:$0xff] %v5825
    %6025 = vst [vmem:[%s5848] ss:$9 sm:$0xff] %v5826
    %v6026 = vld [vmem:[#allocation1] sm:$0xff]
    %6027 = vst [vmem:[#allocation1] ss:$9 sm:$0xff] %v5671
    %v6028 = vld [vmem:[#allocation1] sm:$0xff]
    %6029 = vst [vmem:[#allocation1] ss:$9 sm:$0xff] %v5827
    %6030 = vst [vmem:[%s5836] ss:$9 sm:$0xff] %v5828
    %6031 = vst [vmem:[%s5838] ss:$9 sm:$0xff] %v5829
    %6032 = vst [vmem:[%s5840] ss:$9 sm:$0xff] %v5830
    %6033 = vst [vmem:[%s5842] ss:$9 sm:$0xff] %v5831
    %6034 = vst [vmem:[%s5844] ss:$9 sm:$0xff] %v5832
    %6035 = vst [vmem:[%s5846] ss:$9 sm:$0xff] %v5833
    %6036 = vst [vmem:[%s5848] ss:$9 sm:$0xff] %v5672
    %v6037 = vld [vmem:[#allocation1] sm:$0xff]
    %6038 = vst [vmem:[#allocation1] ss:$9 sm:$0xff] %v5834
    %v6039 = vld [vmem:[#allocation1] sm:$0xff]
    %s6076 = scalar_lea.vmem [#allocation3], 16
    %6077 = vst.msk [vmem:[%s6076 + $0x1] sm:$0xff] %vm95, %v5850
    %vm6078 = vcmask 516096
    %6079 = vst.msk [vmem:[%s6076 + $0x9] sm:$0x1] %vm6078, %v5852
    %6080 = vst.msk [vmem:[%s6076 + $0x11] sm:$0xff] %vm95, %v5861
    %6081 = vst.msk [vmem:[%s6076 + $0x19] sm:$0x1] %vm6078, %v5863
    %6082 = vst.msk [vmem:[%s6076 + $0x21] sm:$0xff] %vm95, %v5872
    %6083 = vst.msk [vmem:[%s6076 + $0x29] sm:$0x1] %vm6078, %v5874
    %6084 = vst.msk [vmem:[%s6076 + $0x31] sm:$0xff] %vm95, %v5883
    %6085 = vst.msk [vmem:[%s6076 + $0x39] sm:$0x1] %vm6078, %v5885
    %6086 = vst.msk [vmem:[%s6076 + $0x41] sm:$0xff] %vm95, %v5894
    %6087 = vst.msk [vmem:[%s6076 + $0x49] sm:$0x1] %vm6078, %v5896
    %6088 = vst.msk [vmem:[%s6076 + $0x51] sm:$0xff] %vm95, %v5905
    %6089 = vst.msk [vmem:[%s6076 + $0x59] sm:$0x1] %vm6078, %v5907
    %6090 = vst.msk [vmem:[%s6076 + $0x61] sm:$0xff] %vm95, %v5916
    %6091 = vst.msk [vmem:[%s6076 + $0x69] sm:$0x1] %vm6078, %v5918
    %6092 = vst.msk [vmem:[%s6076 + $0x71] sm:$0xff] %vm95, %v5927
    %6093 = vst.msk [vmem:[%s6076 + $0x79] sm:$0x1] %vm6078, %v5929
    %6094 = vst.msk [vmem:[%s6076 + $0x81] sm:$0xff] %vm95, %v5938
    %6095 = vst.msk [vmem:[%s6076 + $0x89] sm:$0x1] %vm6078, %v5940
    %6096 = vst.msk [vmem:[%s6076 + $0xb1] sm:$0xff] %vm95, %v5949
    %6097 = vst.msk [vmem:[%s6076 + $0xb9] sm:$0x1] %vm6078, %v5951
    %6098 = vst.msk [vmem:[%s6076 + $0xc1] sm:$0xff] %vm95, %v5960
    %6099 = vst.msk [vmem:[%s6076 + $0xc9] sm:$0x1] %vm6078, %v5962
    %6100 = vst.msk [vmem:[%s6076 + $0xd1] sm:$0xff] %vm95, %v5971
    %6101 = vst.msk [vmem:[%s6076 + $0xd9] sm:$0x1] %vm6078, %v5973
    %6102 = vst.msk [vmem:[%s6076 + $0xe1] sm:$0xff] %vm95, %v5982
    %6103 = vst.msk [vmem:[%s6076 + $0xe9] sm:$0x1] %vm6078, %v5984
    %6104 = vst.msk [vmem:[%s6076 + $0xf1] sm:$0xff] %vm95, %v5993
    %6105 = vst.msk [vmem:[%s6076 + $0xf9] sm:$0x1] %vm6078, %v5995
    %6106 = vst.msk [vmem:[%s6076 + $0x101] sm:$0xff] %vm95, %v6004
    %6107 = vst.msk [vmem:[%s6076 + $0x109] sm:$0x1] %vm6078, %v6006
    %6108 = vst.msk [vmem:[%s6076 + $0x111] sm:$0xff] %vm95, %v6015
    %6109 = vst.msk [vmem:[%s6076 + $0x119] sm:$0x1] %vm6078, %v6017
    %6110 = vst.msk [vmem:[%s6076 + $0x121] sm:$0xff] %vm95, %v6026
    %6111 = vst.msk [vmem:[%s6076 + $0x129] sm:$0x1] %vm6078, %v6028
    %6112 = vst.msk [vmem:[%s6076 + $0x131] sm:$0xff] %vm95, %v6037
    %6113 = vst.msk [vmem:[%s6076 + $0x139] sm:$0x1] %vm6078, %v6039
    %v6114 = vld [vmem:[#allocation3] sm:$0xff]
    %v6115 = vld [vmem:[#allocation3 + $0x8] sm:$0x1]
    %v6116 = vld [vmem:[#allocation3 + $0x20] sm:$0xff]
    %v6117 = vld [vmem:[#allocation3 + $0x28] sm:$0x1]
    %v6118 = vld [vmem:[#allocation3 + $0x40] sm:$0xff]
    %v6119 = vld [vmem:[#allocation3 + $0x48] sm:$0x1]
    %v6120 = vld [vmem:[#allocation3 + $0x60] sm:$0xff]
    %v6121 = vld [vmem:[#allocation3 + $0x68] sm:$0x1]
    %v6122 = vld [vmem:[#allocation3 + $0x80] sm:$0xff]
    %v6123 = vld [vmem:[#allocation3 + $0x88] sm:$0x1]
    %v6124 = vld [vmem:[#allocation3 + $0xb0] sm:$0xff]
    %v6125 = vld [vmem:[#allocation3 + $0xb8] sm:$0x1]
    %v6126 = vld [vmem:[#allocation3 + $0xd0] sm:$0xff]
    %v6127 = vld [vmem:[#allocation3 + $0xd8] sm:$0x1]
    %v6128 = vld [vmem:[#allocation3 + $0xf0] sm:$0xff]
    %v6129 = vld [vmem:[#allocation3 + $0xf8] sm:$0x1]
    %v6130 = vld [vmem:[#allocation3 + $0x110] sm:$0xff]
    %v6131 = vld [vmem:[#allocation3 + $0x118] sm:$0x1]
    %v6132 = vld [vmem:[#allocation3 + $0x130] sm:$0xff]
    %v6133 = vld [vmem:[#allocation3 + $0x138] sm:$0x1]
    %v6134 = vld [vmem:[%s6] sm:$0x1]
    %v6135 = vperm.slane %v6134, 0
    %v6136 = vmul.f32 %v6114, %v6135
    %v6137 = vmul.f32 %v6115, %v6135
    %v6138 = vmul.f32 %v6116, %v6135
    %v6139 = vmul.f32 %v6117, %v6135
    %v6140 = vmul.f32 %v6118, %v6135
    %v6141 = vmul.f32 %v6119, %v6135
    %v6142 = vmul.f32 %v6120, %v6135
    %v6143 = vmul.f32 %v6121, %v6135
    %v6144 = vmul.f32 %v6122, %v6135
    %v6145 = vmul.f32 %v6123, %v6135
    %v6146 = vmul.f32 %v6124, %v6135
    %v6147 = vmul.f32 %v6125, %v6135
    %v6148 = vmul.f32 %v6126, %v6135
    %v6149 = vmul.f32 %v6127, %v6135
    %v6150 = vmul.f32 %v6128, %v6135
    %v6151 = vmul.f32 %v6129, %v6135
    %v6152 = vmul.f32 %v6130, %v6135
    %v6153 = vmul.f32 %v6131, %v6135
    %v6154 = vmul.f32 %v6132, %v6135
    %v6155 = vmul.f32 %v6133, %v6135
    %v6156 = vadd.f32 %v6136, 0.0
    %v6157 = vadd.f32 %v6137, 0.0
    %v6158 = vadd.f32 %v6138, 0.0
    %v6159 = vadd.f32 %v6139, 0.0
    %v6160 = vadd.f32 %v6140, 0.0
    %v6161 = vadd.f32 %v6141, 0.0
    %v6162 = vadd.f32 %v6142, 0.0
    %v6163 = vadd.f32 %v6143, 0.0
    %v6164 = vadd.f32 %v6144, 0.0
    %v6165 = vadd.f32 %v6145, 0.0
    %v6166 = vadd.f32 %v6146, 0.0
    %v6167 = vadd.f32 %v6147, 0.0
    %v6168 = vadd.f32 %v6148, 0.0
    %v6169 = vadd.f32 %v6149, 0.0
    %v6170 = vadd.f32 %v6150, 0.0
    %v6171 = vadd.f32 %v6151, 0.0
    %v6172 = vadd.f32 %v6152, 0.0
    %v6173 = vadd.f32 %v6153, 0.0
    %v6174 = vadd.f32 %v6154, 0.0
    %v6175 = vadd.f32 %v6155, 0.0
    %v6176 = vld [vmem:[#allocation3 + $0x1] sm:$0xff]
    %v6177 = vld [vmem:[#allocation3 + $0x9] sm:$0x1]
    %v6178 = vld [vmem:[#allocation3 + $0x21] sm:$0xff]
    %v6179 = vld [vmem:[#allocation3 + $0x29] sm:$0x1]
    %v6180 = vld [vmem:[#allocation3 + $0x41] sm:$0xff]
    %v6181 = vld [vmem:[#allocation3 + $0x49] sm:$0x1]
    %v6182 = vld [vmem:[#allocation3 + $0x61] sm:$0xff]
    %v6183 = vld [vmem:[#allocation3 + $0x69] sm:$0x1]
    %v6184 = vld [vmem:[#allocation3 + $0x81] sm:$0xff]
    %v6185 = vld [vmem:[#allocation3 + $0x89] sm:$0x1]
    %v6186 = vld [vmem:[#allocation3 + $0xb1] sm:$0xff]
    %v6187 = vld [vmem:[#allocation3 + $0xb9] sm:$0x1]
    %v6188 = vld [vmem:[#allocation3 + $0xd1] sm:$0xff]
    %v6189 = vld [vmem:[#allocation3 + $0xd9] sm:$0x1]
    %v6190 = vld [vmem:[#allocation3 + $0xf1] sm:$0xff]
    %v6191 = vld [vmem:[#allocation3 + $0xf9] sm:$0x1]
    %v6192 = vld [vmem:[#allocation3 + $0x111] sm:$0xff]
    %v6193 = vld [vmem:[#allocation3 + $0x119] sm:$0x1]
    %v6194 = vld [vmem:[#allocation3 + $0x131] sm:$0xff]
    %v6195 = vld [vmem:[#allocation3 + $0x139] sm:$0x1]
    %v6196 = vld [vmem:[%s6 + $0x1] sm:$0x1]
    %v6197 = vperm.slane %v6196, 0
    %v6198 = vmul.f32 %v6176, %v6197
    %v6199 = vmul.f32 %v6177, %v6197
    %v6200 = vmul.f32 %v6178, %v6197
    %v6201 = vmul.f32 %v6179, %v6197
    %v6202 = vmul.f32 %v6180, %v6197
    %v6203 = vmul.f32 %v6181, %v6197
    %v6204 = vmul.f32 %v6182, %v6197
    %v6205 = vmul.f32 %v6183, %v6197
    %v6206 = vmul.f32 %v6184, %v6197
    %v6207 = vmul.f32 %v6185, %v6197
    %v6208 = vmul.f32 %v6186, %v6197
    %v6209 = vmul.f32 %v6187, %v6197
    %v6210 = vmul.f32 %v6188, %v6197
    %v6211 = vmul.f32 %v6189, %v6197
    %v6212 = vmul.f32 %v6190, %v6197
    %v6213 = vmul.f32 %v6191, %v6197
    %v6214 = vmul.f32 %v6192, %v6197
    %v6215 = vmul.f32 %v6193, %v6197
    %v6216 = vmul.f32 %v6194, %v6197
    %v6217 = vmul.f32 %v6195, %v6197
    %v6218 = vadd.f32 %v6156, %v6198
    %v6219 = vadd.f32 %v6157, %v6199
    %v6220 = vadd.f32 %v6158, %v6200
    %v6221 = vadd.f32 %v6159, %v6201
    %v6222 = vadd.f32 %v6160, %v6202
    %v6223 = vadd.f32 %v6161, %v6203
    %v6224 = vadd.f32 %v6162, %v6204
    %v6225 = vadd.f32 %v6163, %v6205
    %v6226 = vadd.f32 %v6164, %v6206
    %v6227 = vadd.f32 %v6165, %v6207
    %v6228 = vadd.f32 %v6166, %v6208
    %v6229 = vadd.f32 %v6167, %v6209
    %v6230 = vadd.f32 %v6168, %v6210
    %v6231 = vadd.f32 %v6169, %v6211
    %v6232 = vadd.f32 %v6170, %v6212
    %v6233 = vadd.f32 %v6171, %v6213
    %v6234 = vadd.f32 %v6172, %v6214
    %v6235 = vadd.f32 %v6173, %v6215
    %v6236 = vadd.f32 %v6174, %v6216
    %v6237 = vadd.f32 %v6175, %v6217
    %v6238 = vld [vmem:[#allocation3 + $0x2] sm:$0xff]
    %v6239 = vld [vmem:[#allocation3 + $0xa] sm:$0x1]
    %v6240 = vld [vmem:[#allocation3 + $0x22] sm:$0xff]
    %v6241 = vld [vmem:[#allocation3 + $0x2a] sm:$0x1]
    %v6242 = vld [vmem:[#allocation3 + $0x42] sm:$0xff]
    %v6243 = vld [vmem:[#allocation3 + $0x4a] sm:$0x1]
    %v6244 = vld [vmem:[#allocation3 + $0x62] sm:$0xff]
    %v6245 = vld [vmem:[#allocation3 + $0x6a] sm:$0x1]
    %v6246 = vld [vmem:[#allocation3 + $0x82] sm:$0xff]
    %v6247 = vld [vmem:[#allocation3 + $0x8a] sm:$0x1]
    %v6248 = vld [vmem:[#allocation3 + $0xb2] sm:$0xff]
    %v6249 = vld [vmem:[#allocation3 + $0xba] sm:$0x1]
    %v6250 = vld [vmem:[#allocation3 + $0xd2] sm:$0xff]
    %v6251 = vld [vmem:[#allocation3 + $0xda] sm:$0x1]
    %v6252 = vld [vmem:[#allocation3 + $0xf2] sm:$0xff]
    %v6253 = vld [vmem:[#allocation3 + $0xfa] sm:$0x1]
    %v6254 = vld [vmem:[#allocation3 + $0x112] sm:$0xff]
    %v6255 = vld [vmem:[#allocation3 + $0x11a] sm:$0x1]
    %v6256 = vld [vmem:[#allocation3 + $0x132] sm:$0xff]
    %v6257 = vld [vmem:[#allocation3 + $0x13a] sm:$0x1]
    %v6258 = vld [vmem:[%s6 + $0x2] sm:$0x1]
    %v6259 = vperm.slane %v6258, 0
    %v6260 = vmul.f32 %v6238, %v6259
    %v6261 = vmul.f32 %v6239, %v6259
    %v6262 = vmul.f32 %v6240, %v6259
    %v6263 = vmul.f32 %v6241, %v6259
    %v6264 = vmul.f32 %v6242, %v6259
    %v6265 = vmul.f32 %v6243, %v6259
    %v6266 = vmul.f32 %v6244, %v6259
    %v6267 = vmul.f32 %v6245, %v6259
    %v6268 = vmul.f32 %v6246, %v6259
    %v6269 = vmul.f32 %v6247, %v6259
    %v6270 = vmul.f32 %v6248, %v6259
    %v6271 = vmul.f32 %v6249, %v6259
    %v6272 = vmul.f32 %v6250, %v6259
    %v6273 = vmul.f32 %v6251, %v6259
    %v6274 = vmul.f32 %v6252, %v6259
    %v6275 = vmul.f32 %v6253, %v6259
    %v6276 = vmul.f32 %v6254, %v6259
    %v6277 = vmul.f32 %v6255, %v6259
    %v6278 = vmul.f32 %v6256, %v6259
    %v6279 = vmul.f32 %v6257, %v6259
    %v6280 = vadd.f32 %v6218, %v6260
    %v6281 = vadd.f32 %v6219, %v6261
    %v6282 = vadd.f32 %v6220, %v6262
    %v6283 = vadd.f32 %v6221, %v6263
    %v6284 = vadd.f32 %v6222, %v6264
    %v6285 = vadd.f32 %v6223, %v6265
    %v6286 = vadd.f32 %v6224, %v6266
    %v6287 = vadd.f32 %v6225, %v6267
    %v6288 = vadd.f32 %v6226, %v6268
    %v6289 = vadd.f32 %v6227, %v6269
    %v6290 = vadd.f32 %v6228, %v6270
    %v6291 = vadd.f32 %v6229, %v6271
    %v6292 = vadd.f32 %v6230, %v6272
    %v6293 = vadd.f32 %v6231, %v6273
    %v6294 = vadd.f32 %v6232, %v6274
    %v6295 = vadd.f32 %v6233, %v6275
    %v6296 = vadd.f32 %v6234, %v6276
    %v6297 = vadd.f32 %v6235, %v6277
    %v6298 = vadd.f32 %v6236, %v6278
    %v6299 = vadd.f32 %v6237, %v6279
    %v6300 = vld [vmem:[%s6076] sm:$0xff]
    %v6301 = vld [vmem:[%s6076 + $0x8] sm:$0x1]
    %v6302 = vld [vmem:[%s6076 + $0x20] sm:$0xff]
    %v6303 = vld [vmem:[%s6076 + $0x28] sm:$0x1]
    %v6304 = vld [vmem:[%s6076 + $0x40] sm:$0xff]
    %v6305 = vld [vmem:[%s6076 + $0x48] sm:$0x1]
    %v6306 = vld [vmem:[%s6076 + $0x60] sm:$0xff]
    %v6307 = vld [vmem:[%s6076 + $0x68] sm:$0x1]
    %v6308 = vld [vmem:[%s6076 + $0x80] sm:$0xff]
    %v6309 = vld [vmem:[%s6076 + $0x88] sm:$0x1]
    %v6310 = vld [vmem:[%s6076 + $0xb0] sm:$0xff]
    %v6311 = vld [vmem:[%s6076 + $0xb8] sm:$0x1]
    %v6312 = vld [vmem:[%s6076 + $0xd0] sm:$0xff]
    %v6313 = vld [vmem:[%s6076 + $0xd8] sm:$0x1]
    %v6314 = vld [vmem:[%s6076 + $0xf0] sm:$0xff]
    %v6315 = vld [vmem:[%s6076 + $0xf8] sm:$0x1]
    %v6316 = vld [vmem:[%s6076 + $0x110] sm:$0xff]
    %v6317 = vld [vmem:[%s6076 + $0x118] sm:$0x1]
    %v6318 = vld [vmem:[%s6076 + $0x130] sm:$0xff]
    %v6319 = vld [vmem:[%s6076 + $0x138] sm:$0x1]
    %v6320 = vld [vmem:[%s6 + $0x3] sm:$0x1]
    %v6321 = vperm.slane %v6320, 0
    %v6322 = vmul.f32 %v6300, %v6321
    %v6323 = vmul.f32 %v6301, %v6321
    %v6324 = vmul.f32 %v6302, %v6321
    %v6325 = vmul.f32 %v6303, %v6321
    %v6326 = vmul.f32 %v6304, %v6321
    %v6327 = vmul.f32 %v6305, %v6321
    %v6328 = vmul.f32 %v6306, %v6321
    %v6329 = vmul.f32 %v6307, %v6321
    %v6330 = vmul.f32 %v6308, %v6321
    %v6331 = vmul.f32 %v6309, %v6321
    %v6332 = vmul.f32 %v6310, %v6321
    %v6333 = vmul.f32 %v6311, %v6321
    %v6334 = vmul.f32 %v6312, %v6321
    %v6335 = vmul.f32 %v6313, %v6321
    %v6336 = vmul.f32 %v6314, %v6321
    %v6337 = vmul.f32 %v6315, %v6321
    %v6338 = vmul.f32 %v6316, %v6321
    %v6339 = vmul.f32 %v6317, %v6321
    %v6340 = vmul.f32 %v6318, %v6321
    %v6341 = vmul.f32 %v6319, %v6321
    %v6342 = vadd.f32 %v6280, %v6322
    %v6343 = vadd.f32 %v6281, %v6323
    %v6344 = vadd.f32 %v6282, %v6324
    %v6345 = vadd.f32 %v6283, %v6325
    %v6346 = vadd.f32 %v6284, %v6326
    %v6347 = vadd.f32 %v6285, %v6327
    %v6348 = vadd.f32 %v6286, %v6328
    %v6349 = vadd.f32 %v6287, %v6329
    %v6350 = vadd.f32 %v6288, %v6330
    %v6351 = vadd.f32 %v6289, %v6331
    %v6352 = vadd.f32 %v6290, %v6332
    %v6353 = vadd.f32 %v6291, %v6333
    %v6354 = vadd.f32 %v6292, %v6334
    %v6355 = vadd.f32 %v6293, %v6335
    %v6356 = vadd.f32 %v6294, %v6336
    %v6357 = vadd.f32 %v6295, %v6337
    %v6358 = vadd.f32 %v6296, %v6338
    %v6359 = vadd.f32 %v6297, %v6339
    %v6360 = vadd.f32 %v6298, %v6340
    %v6361 = vadd.f32 %v6299, %v6341
    %v6362 = vld [vmem:[%s6076 + $0x1] sm:$0xff]
    %v6363 = vld [vmem:[%s6076 + $0x9] sm:$0x1]
    %v6364 = vld [vmem:[%s6076 + $0x21] sm:$0xff]
    %v6365 = vld [vmem:[%s6076 + $0x29] sm:$0x1]
    %v6366 = vld [vmem:[%s6076 + $0x41] sm:$0xff]
    %v6367 = vld [vmem:[%s6076 + $0x49] sm:$0x1]
    %v6368 = vld [vmem:[%s6076 + $0x61] sm:$0xff]
    %v6369 = vld [vmem:[%s6076 + $0x69] sm:$0x1]
    %v6370 = vld [vmem:[%s6076 + $0x81] sm:$0xff]
    %v6371 = vld [vmem:[%s6076 + $0x89] sm:$0x1]
    %v6372 = vld [vmem:[%s6076 + $0xb1] sm:$0xff]
    %v6373 = vld [vmem:[%s6076 + $0xb9] sm:$0x1]
    %v6374 = vld [vmem:[%s6076 + $0xd1] sm:$0xff]
    %v6375 = vld [vmem:[%s6076 + $0xd9] sm:$0x1]
    %v6376 = vld [vmem:[%s6076 + $0xf1] sm:$0xff]
    %v6377 = vld [vmem:[%s6076 + $0xf9] sm:$0x1]
    %v6378 = vld [vmem:[%s6076 + $0x111] sm:$0xff]
    %v6379 = vld [vmem:[%s6076 + $0x119] sm:$0x1]
    %v6380 = vld [vmem:[%s6076 + $0x131] sm:$0xff]
    %v6381 = vld [vmem:[%s6076 + $0x139] sm:$0x1]
    %v6382 = vld [vmem:[%s6 + $0x4] sm:$0x1]
    %v6383 = vperm.slane %v6382, 0
    %v6384 = vmul.f32 %v6362, %v6383
    %v6385 = vmul.f32 %v6363, %v6383
    %v6386 = vmul.f32 %v6364, %v6383
    %v6387 = vmul.f32 %v6365, %v6383
    %v6388 = vmul.f32 %v6366, %v6383
    %v6389 = vmul.f32 %v6367, %v6383
    %v6390 = vmul.f32 %v6368, %v6383
    %v6391 = vmul.f32 %v6369, %v6383
    %v6392 = vmul.f32 %v6370, %v6383
    %v6393 = vmul.f32 %v6371, %v6383
    %v6394 = vmul.f32 %v6372, %v6383
    %v6395 = vmul.f32 %v6373, %v6383
    %v6396 = vmul.f32 %v6374, %v6383
    %v6397 = vmul.f32 %v6375, %v6383
    %v6398 = vmul.f32 %v6376, %v6383
    %v6399 = vmul.f32 %v6377, %v6383
    %v6400 = vmul.f32 %v6378, %v6383
    %v6401 = vmul.f32 %v6379, %v6383
    %v6402 = vmul.f32 %v6380, %v6383
    %v6403 = vmul.f32 %v6381, %v6383
    %v6404 = vadd.f32 %v6342, %v6384
    %v6405 = vadd.f32 %v6343, %v6385
    %v6406 = vadd.f32 %v6344, %v6386
    %v6407 = vadd.f32 %v6345, %v6387
    %v6408 = vadd.f32 %v6346, %v6388
    %v6409 = vadd.f32 %v6347, %v6389
    %v6410 = vadd.f32 %v6348, %v6390
    %v6411 = vadd.f32 %v6349, %v6391
    %v6412 = vadd.f32 %v6350, %v6392
    %v6413 = vadd.f32 %v6351, %v6393
    %v6414 = vadd.f32 %v6352, %v6394
    %v6415 = vadd.f32 %v6353, %v6395
    %v6416 = vadd.f32 %v6354, %v6396
    %v6417 = vadd.f32 %v6355, %v6397
    %v6418 = vadd.f32 %v6356, %v6398
    %v6419 = vadd.f32 %v6357, %v6399
    %v6420 = vadd.f32 %v6358, %v6400
    %v6421 = vadd.f32 %v6359, %v6401
    %v6422 = vadd.f32 %v6360, %v6402
    %v6423 = vadd.f32 %v6361, %v6403
    %v6424 = vld [vmem:[%s6076 + $0x2] sm:$0xff]
    %v6425 = vld [vmem:[%s6076 + $0xa] sm:$0x1]
    %v6426 = vld [vmem:[%s6076 + $0x22] sm:$0xff]
    %v6427 = vld [vmem:[%s6076 + $0x2a] sm:$0x1]
    %v6428 = vld [vmem:[%s6076 + $0x42] sm:$0xff]
    %v6429 = vld [vmem:[%s6076 + $0x4a] sm:$0x1]
    %v6430 = vld [vmem:[%s6076 + $0x62] sm:$0xff]
    %v6431 = vld [vmem:[%s6076 + $0x6a] sm:$0x1]
    %v6432 = vld [vmem:[%s6076 + $0x82] sm:$0xff]
    %v6433 = vld [vmem:[%s6076 + $0x8a] sm:$0x1]
    %v6434 = vld [vmem:[%s6076 + $0xb2] sm:$0xff]
    %v6435 = vld [vmem:[%s6076 + $0xba] sm:$0x1]
    %v6436 = vld [vmem:[%s6076 + $0xd2] sm:$0xff]
    %v6437 = vld [vmem:[%s6076 + $0xda] sm:$0x1]
    %v6438 = vld [vmem:[%s6076 + $0xf2] sm:$0xff]
    %v6439 = vld [vmem:[%s6076 + $0xfa] sm:$0x1]
    %v6440 = vld [vmem:[%s6076 + $0x112] sm:$0xff]
    %v6441 = vld [vmem:[%s6076 + $0x11a] sm:$0x1]
    %v6442 = vld [vmem:[%s6076 + $0x132] sm:$0xff]
    %v6443 = vld [vmem:[%s6076 + $0x13a] sm:$0x1]
    %v6444 = vld [vmem:[%s6 + $0x5] sm:$0x1]
    %v6445 = vperm.slane %v6444, 0
    %v6446 = vmul.f32 %v6424, %v6445
    %v6447 = vmul.f32 %v6425, %v6445
    %v6448 = vmul.f32 %v6426, %v6445
    %v6449 = vmul.f32 %v6427, %v6445
    %v6450 = vmul.f32 %v6428, %v6445
    %v6451 = vmul.f32 %v6429, %v6445
    %v6452 = vmul.f32 %v6430, %v6445
    %v6453 = vmul.f32 %v6431, %v6445
    %v6454 = vmul.f32 %v6432, %v6445
    %v6455 = vmul.f32 %v6433, %v6445
    %v6456 = vmul.f32 %v6434, %v6445
    %v6457 = vmul.f32 %v6435, %v6445
    %v6458 = vmul.f32 %v6436, %v6445
    %v6459 = vmul.f32 %v6437, %v6445
    %v6460 = vmul.f32 %v6438, %v6445
    %v6461 = vmul.f32 %v6439, %v6445
    %v6462 = vmul.f32 %v6440, %v6445
    %v6463 = vmul.f32 %v6441, %v6445
    %v6464 = vmul.f32 %v6442, %v6445
    %v6465 = vmul.f32 %v6443, %v6445
    %v6466 = vadd.f32 %v6404, %v6446
    %v6467 = vadd.f32 %v6405, %v6447
    %v6468 = vadd.f32 %v6406, %v6448
    %v6469 = vadd.f32 %v6407, %v6449
    %v6470 = vadd.f32 %v6408, %v6450
    %v6471 = vadd.f32 %v6409, %v6451
    %v6472 = vadd.f32 %v6410, %v6452
    %v6473 = vadd.f32 %v6411, %v6453
    %v6474 = vadd.f32 %v6412, %v6454
    %v6475 = vadd.f32 %v6413, %v6455
    %v6476 = vadd.f32 %v6414, %v6456
    %v6477 = vadd.f32 %v6415, %v6457
    %v6478 = vadd.f32 %v6416, %v6458
    %v6479 = vadd.f32 %v6417, %v6459
    %v6480 = vadd.f32 %v6418, %v6460
    %v6481 = vadd.f32 %v6419, %v6461
    %v6482 = vadd.f32 %v6420, %v6462
    %v6483 = vadd.f32 %v6421, %v6463
    %v6484 = vadd.f32 %v6422, %v6464
    %v6485 = vadd.f32 %v6423, %v6465
    %s6486 = scalar_lea.vmem [#allocation3], 32
    %v6487 = vld [vmem:[%s6486] sm:$0xff]
    %v6488 = vld [vmem:[%s6486 + $0x8] sm:$0x1]
    %v6489 = vld [vmem:[%s6486 + $0x20] sm:$0xff]
    %v6490 = vld [vmem:[%s6486 + $0x28] sm:$0x1]
    %v6491 = vld [vmem:[%s6486 + $0x40] sm:$0xff]
    %v6492 = vld [vmem:[%s6486 + $0x48] sm:$0x1]
    %v6493 = vld [vmem:[%s6486 + $0x60] sm:$0xff]
    %v6494 = vld [vmem:[%s6486 + $0x68] sm:$0x1]
    %v6495 = vld [vmem:[%s6486 + $0x80] sm:$0xff]
    %v6496 = vld [vmem:[%s6486 + $0x88] sm:$0x1]
    %v6497 = vld [vmem:[%s6486 + $0xb0] sm:$0xff]
    %v6498 = vld [vmem:[%s6486 + $0xb8] sm:$0x1]
    %v6499 = vld [vmem:[%s6486 + $0xd0] sm:$0xff]
    %v6500 = vld [vmem:[%s6486 + $0xd8] sm:$0x1]
    %v6501 = vld [vmem:[%s6486 + $0xf0] sm:$0xff]
    %v6502 = vld [vmem:[%s6486 + $0xf8] sm:$0x1]
    %v6503 = vld [vmem:[%s6486 + $0x110] sm:$0xff]
    %v6504 = vld [vmem:[%s6486 + $0x118] sm:$0x1]
    %v6505 = vld [vmem:[%s6486 + $0x130] sm:$0xff]
    %v6506 = vld [vmem:[%s6486 + $0x138] sm:$0x1]
    %v6507 = vld [vmem:[%s6 + $0x6] sm:$0x1]
    %v6508 = vperm.slane %v6507, 0
    %v6509 = vmul.f32 %v6487, %v6508
    %v6510 = vmul.f32 %v6488, %v6508
    %v6511 = vmul.f32 %v6489, %v6508
    %v6512 = vmul.f32 %v6490, %v6508
    %v6513 = vmul.f32 %v6491, %v6508
    %v6514 = vmul.f32 %v6492, %v6508
    %v6515 = vmul.f32 %v6493, %v6508
    %v6516 = vmul.f32 %v6494, %v6508
    %v6517 = vmul.f32 %v6495, %v6508
    %v6518 = vmul.f32 %v6496, %v6508
    %v6519 = vmul.f32 %v6497, %v6508
    %v6520 = vmul.f32 %v6498, %v6508
    %v6521 = vmul.f32 %v6499, %v6508
    %v6522 = vmul.f32 %v6500, %v6508
    %v6523 = vmul.f32 %v6501, %v6508
    %v6524 = vmul.f32 %v6502, %v6508
    %v6525 = vmul.f32 %v6503, %v6508
    %v6526 = vmul.f32 %v6504, %v6508
    %v6527 = vmul.f32 %v6505, %v6508
    %v6528 = vmul.f32 %v6506, %v6508
    %v6529 = vadd.f32 %v6466, %v6509
    %v6530 = vadd.f32 %v6467, %v6510
    %v6531 = vadd.f32 %v6468, %v6511
    %v6532 = vadd.f32 %v6469, %v6512
    %v6533 = vadd.f32 %v6470, %v6513
    %v6534 = vadd.f32 %v6471, %v6514
    %v6535 = vadd.f32 %v6472, %v6515
    %v6536 = vadd.f32 %v6473, %v6516
    %v6537 = vadd.f32 %v6474, %v6517
    %v6538 = vadd.f32 %v6475, %v6518
    %v6539 = vadd.f32 %v6476, %v6519
    %v6540 = vadd.f32 %v6477, %v6520
    %v6541 = vadd.f32 %v6478, %v6521
    %v6542 = vadd.f32 %v6479, %v6522
    %v6543 = vadd.f32 %v6480, %v6523
    %v6544 = vadd.f32 %v6481, %v6524
    %v6545 = vadd.f32 %v6482, %v6525
    %v6546 = vadd.f32 %v6483, %v6526
    %v6547 = vadd.f32 %v6484, %v6527
    %v6548 = vadd.f32 %v6485, %v6528
    %v6549 = vld [vmem:[%s6486 + $0x1] sm:$0xff]
    %v6550 = vld [vmem:[%s6486 + $0x9] sm:$0x1]
    %v6551 = vld [vmem:[%s6486 + $0x21] sm:$0xff]
    %v6552 = vld [vmem:[%s6486 + $0x29] sm:$0x1]
    %v6553 = vld [vmem:[%s6486 + $0x41] sm:$0xff]
    %v6554 = vld [vmem:[%s6486 + $0x49] sm:$0x1]
    %v6555 = vld [vmem:[%s6486 + $0x61] sm:$0xff]
    %v6556 = vld [vmem:[%s6486 + $0x69] sm:$0x1]
    %v6557 = vld [vmem:[%s6486 + $0x81] sm:$0xff]
    %v6558 = vld [vmem:[%s6486 + $0x89] sm:$0x1]
    %v6559 = vld [vmem:[%s6486 + $0xb1] sm:$0xff]
    %v6560 = vld [vmem:[%s6486 + $0xb9] sm:$0x1]
    %v6561 = vld [vmem:[%s6486 + $0xd1] sm:$0xff]
    %v6562 = vld [vmem:[%s6486 + $0xd9] sm:$0x1]
    %v6563 = vld [vmem:[%s6486 + $0xf1] sm:$0xff]
    %v6564 = vld [vmem:[%s6486 + $0xf9] sm:$0x1]
    %v6565 = vld [vmem:[%s6486 + $0x111] sm:$0xff]
    %v6566 = vld [vmem:[%s6486 + $0x119] sm:$0x1]
    %v6567 = vld [vmem:[%s6486 + $0x131] sm:$0xff]
    %v6568 = vld [vmem:[%s6486 + $0x139] sm:$0x1]
    %v6569 = vld [vmem:[%s6 + $0x7] sm:$0x1]
    %v6570 = vperm.slane %v6569, 0
    %v6571 = vmul.f32 %v6549, %v6570
    %v6572 = vmul.f32 %v6550, %v6570
    %v6573 = vmul.f32 %v6551, %v6570
    %v6574 = vmul.f32 %v6552, %v6570
    %v6575 = vmul.f32 %v6553, %v6570
    %v6576 = vmul.f32 %v6554, %v6570
    %v6577 = vmul.f32 %v6555, %v6570
    %v6578 = vmul.f32 %v6556, %v6570
    %v6579 = vmul.f32 %v6557, %v6570
    %v6580 = vmul.f32 %v6558, %v6570
    %v6581 = vmul.f32 %v6559, %v6570
    %v6582 = vmul.f32 %v6560, %v6570
    %v6583 = vmul.f32 %v6561, %v6570
    %v6584 = vmul.f32 %v6562, %v6570
    %v6585 = vmul.f32 %v6563, %v6570
    %v6586 = vmul.f32 %v6564, %v6570
    %v6587 = vmul.f32 %v6565, %v6570
    %v6588 = vmul.f32 %v6566, %v6570
    %v6589 = vmul.f32 %v6567, %v6570
    %v6590 = vmul.f32 %v6568, %v6570
    %v6591 = vadd.f32 %v6529, %v6571
    %v6592 = vadd.f32 %v6530, %v6572
    %v6593 = vadd.f32 %v6531, %v6573
    %v6594 = vadd.f32 %v6532, %v6574
    %v6595 = vadd.f32 %v6533, %v6575
    %v6596 = vadd.f32 %v6534, %v6576
    %v6597 = vadd.f32 %v6535, %v6577
    %v6598 = vadd.f32 %v6536, %v6578
    %v6599 = vadd.f32 %v6537, %v6579
    %v6600 = vadd.f32 %v6538, %v6580
    %v6601 = vadd.f32 %v6539, %v6581
    %v6602 = vadd.f32 %v6540, %v6582
    %v6603 = vadd.f32 %v6541, %v6583
    %v6604 = vadd.f32 %v6542, %v6584
    %v6605 = vadd.f32 %v6543, %v6585
    %v6606 = vadd.f32 %v6544, %v6586
    %v6607 = vadd.f32 %v6545, %v6587
    %v6608 = vadd.f32 %v6546, %v6588
    %v6609 = vadd.f32 %v6547, %v6589
    %v6610 = vadd.f32 %v6548, %v6590
    %v6611 = vld [vmem:[%s6486 + $0x2] sm:$0xff]
    %v6612 = vld [vmem:[%s6486 + $0xa] sm:$0x1]
    %v6613 = vld [vmem:[%s6486 + $0x22] sm:$0xff]
    %v6614 = vld [vmem:[%s6486 + $0x2a] sm:$0x1]
    %v6615 = vld [vmem:[%s6486 + $0x42] sm:$0xff]
    %v6616 = vld [vmem:[%s6486 + $0x4a] sm:$0x1]
    %v6617 = vld [vmem:[%s6486 + $0x62] sm:$0xff]
    %v6618 = vld [vmem:[%s6486 + $0x6a] sm:$0x1]
    %v6619 = vld [vmem:[%s6486 + $0x82] sm:$0xff]
    %v6620 = vld [vmem:[%s6486 + $0x8a] sm:$0x1]
    %v6621 = vld [vmem:[%s6486 + $0xb2] sm:$0xff]
    %v6622 = vld [vmem:[%s6486 + $0xba] sm:$0x1]
    %v6623 = vld [vmem:[%s6486 + $0xd2] sm:$0xff]
    %v6624 = vld [vmem:[%s6486 + $0xda] sm:$0x1]
    %v6625 = vld [vmem:[%s6486 + $0xf2] sm:$0xff]
    %v6626 = vld [vmem:[%s6486 + $0xfa] sm:$0x1]
    %v6627 = vld [vmem:[%s6486 + $0x112] sm:$0xff]
    %v6628 = vld [vmem:[%s6486 + $0x11a] sm:$0x1]
    %v6629 = vld [vmem:[%s6486 + $0x132] sm:$0xff]
    %v6630 = vld [vmem:[%s6486 + $0x13a] sm:$0x1]
    %v6631 = vld [vmem:[%s6 + $0x8] sm:$0x1]
    %v6632 = vperm.slane %v6631, 0
    %v6633 = vmul.f32 %v6611, %v6632
    %v6634 = vmul.f32 %v6612, %v6632
    %v6635 = vmul.f32 %v6613, %v6632
    %v6636 = vmul.f32 %v6614, %v6632
    %v6637 = vmul.f32 %v6615, %v6632
    %v6638 = vmul.f32 %v6616, %v6632
    %v6639 = vmul.f32 %v6617, %v6632
    %v6640 = vmul.f32 %v6618, %v6632
    %v6641 = vmul.f32 %v6619, %v6632
    %v6642 = vmul.f32 %v6620, %v6632
    %v6643 = vmul.f32 %v6621, %v6632
    %v6644 = vmul.f32 %v6622, %v6632
    %v6645 = vmul.f32 %v6623, %v6632
    %v6646 = vmul.f32 %v6624, %v6632
    %v6647 = vmul.f32 %v6625, %v6632
    %v6648 = vmul.f32 %v6626, %v6632
    %v6649 = vmul.f32 %v6627, %v6632
    %v6650 = vmul.f32 %v6628, %v6632
    %v6651 = vmul.f32 %v6629, %v6632
    %v6652 = vmul.f32 %v6630, %v6632
    %v6653 = vadd.f32 %v6591, %v6633
    %v6654 = vadd.f32 %v6592, %v6634
    %v6655 = vadd.f32 %v6593, %v6635
    %v6656 = vadd.f32 %v6594, %v6636
    %v6657 = vadd.f32 %v6595, %v6637
    %v6658 = vadd.f32 %v6596, %v6638
    %v6659 = vadd.f32 %v6597, %v6639
    %v6660 = vadd.f32 %v6598, %v6640
    %v6661 = vadd.f32 %v6599, %v6641
    %v6662 = vadd.f32 %v6600, %v6642
    %v6663 = vadd.f32 %v6601, %v6643
    %v6664 = vadd.f32 %v6602, %v6644
    %v6665 = vadd.f32 %v6603, %v6645
    %v6666 = vadd.f32 %v6604, %v6646
    %v6667 = vadd.f32 %v6605, %v6647
    %v6668 = vadd.f32 %v6606, %v6648
    %v6669 = vadd.f32 %v6607, %v6649
    %v6670 = vadd.f32 %v6608, %v6650
    %v6671 = vadd.f32 %v6609, %v6651
    %v6672 = vadd.f32 %v6610, %v6652
    %v6673 = vld [vmem:[%s7] sm:$0x1]
    %v6675 = vperm.slane %v6673, 0
    %v6677 = vadd.f32 %v6653, %v6675
    %v6678 = vadd.f32 %v6654, %v6675
    %v6679 = vadd.f32 %v6655, %v6675
    %v6680 = vadd.f32 %v6656, %v6675
    %v6681 = vadd.f32 %v6657, %v6675
    %v6682 = vadd.f32 %v6658, %v6675
    %v6683 = vadd.f32 %v6659, %v6675
    %v6684 = vadd.f32 %v6660, %v6675
    %v6685 = vadd.f32 %v6661, %v6675
    %v6686 = vadd.f32 %v6662, %v6675
    %v6687 = vadd.f32 %v6663, %v6675
    %v6688 = vadd.f32 %v6664, %v6675
    %v6689 = vadd.f32 %v6665, %v6675
    %v6690 = vadd.f32 %v6666, %v6675
    %v6691 = vadd.f32 %v6667, %v6675
    %v6692 = vadd.f32 %v6668, %v6675
    %v6693 = vadd.f32 %v6669, %v6675
    %v6694 = vadd.f32 %v6670, %v6675
    %v6695 = vadd.f32 %v6671, %v6675
    %v6696 = vadd.f32 %v6672, %v6675
    %v6697 = vmax.f32 %v6677, 0.0
    %v6698 = vmax.f32 %v6678, 0.0
    %v6699 = vmax.f32 %v6679, 0.0
    %v6700 = vmax.f32 %v6680, 0.0
    %v6701 = vmax.f32 %v6681, 0.0
    %v6702 = vmax.f32 %v6682, 0.0
    %v6703 = vmax.f32 %v6683, 0.0
    %v6704 = vmax.f32 %v6684, 0.0
    %v6705 = vmax.f32 %v6685, 0.0
    %v6706 = vmax.f32 %v6686, 0.0
    %v6707 = vmax.f32 %v6687, 0.0
    %v6708 = vmax.f32 %v6688, 0.0
    %v6709 = vmax.f32 %v6689, 0.0
    %v6710 = vmax.f32 %v6690, 0.0
    %v6711 = vmax.f32 %v6691, 0.0
    %v6712 = vmax.f32 %v6692, 0.0
    %v6713 = vmax.f32 %v6693, 0.0
    %v6714 = vmax.f32 %v6694, 0.0
    %v6715 = vmax.f32 %v6695, 0.0
    %v6716 = vmax.f32 %v6696, 0.0
    %v6727 = vrot.slane %v6697, 1
    %v6728 = vrot.slane %v6699, 1
    %v6729 = vrot.slane %v6701, 1
    %v6730 = vrot.slane %v6703, 1
    %v6731 = vrot.slane %v6705, 1
    %v6732 = vrot.slane %v6707, 1
    %v6733 = vrot.slane %v6709, 1
    %v6734 = vrot.slane %v6711, 1
    %v6735 = vrot.slane %v6713, 1
    %v6736 = vrot.slane %v6715, 1
    %v6747 = vrot.slane %v6697, 2
    %v6748 = vrot.slane %v6699, 2
    %v6749 = vrot.slane %v6701, 2
    %v6750 = vrot.slane %v6703, 2
    %v6751 = vrot.slane %v6705, 2
    %v6752 = vrot.slane %v6707, 2
    %v6753 = vrot.slane %v6709, 2
    %v6754 = vrot.slane %v6711, 2
    %v6755 = vrot.slane %v6713, 2
    %v6756 = vrot.slane %v6715, 2
    %v6767 = vrot.slane %v6697, 3
    %v6768 = vrot.slane %v6699, 3
    %v6769 = vrot.slane %v6701, 3
    %v6770 = vrot.slane %v6703, 3
    %v6771 = vrot.slane %v6705, 3
    %v6772 = vrot.slane %v6707, 3
    %v6773 = vrot.slane %v6709, 3
    %v6774 = vrot.slane %v6711, 3
    %v6775 = vrot.slane %v6713, 3
    %v6776 = vrot.slane %v6715, 3
    %v6797 = vrot.slane %v6698, 4
    %v6798 = vrot.slane %v6700, 4
    %v6799 = vrot.slane %v6702, 4
    %v6800 = vrot.slane %v6704, 4
    %v6801 = vrot.slane %v6706, 4
    %v6802 = vrot.slane %v6708, 4
    %v6803 = vrot.slane %v6710, 4
    %v6804 = vrot.slane %v6712, 4
    %v6805 = vrot.slane %v6714, 4
    %v6806 = vrot.slane %v6716, 4
    %vm6817 = vcmask 1040384
    %v6818 = vsel %vm6817, %v6697, %v6727
    %v6819 = vsel %vm6817, %v6699, %v6728
    %v6820 = vsel %vm6817, %v6701, %v6729
    %v6821 = vsel %vm6817, %v6703, %v6730
    %v6822 = vsel %vm6817, %v6705, %v6731
    %v6823 = vsel %vm6817, %v6707, %v6732
    %v6824 = vsel %vm6817, %v6709, %v6733
    %v6825 = vsel %vm6817, %v6711, %v6734
    %v6826 = vsel %vm6817, %v6713, %v6735
    %v6827 = vsel %vm6817, %v6715, %v6736
    %v6828 = vsel %vm2148, %v6818, %v6747
    %v6829 = vsel %vm2148, %v6819, %v6748
    %v6830 = vsel %vm2148, %v6820, %v6749
    %v6831 = vsel %vm2148, %v6821, %v6750
    %v6832 = vsel %vm2148, %v6822, %v6751
    %v6833 = vsel %vm2148, %v6823, %v6752
    %v6834 = vsel %vm2148, %v6824, %v6753
    %v6835 = vsel %vm2148, %v6825, %v6754
    %v6836 = vsel %vm2148, %v6826, %v6755
    %v6837 = vsel %vm2148, %v6827, %v6756
    %v6838 = vsel %vm2001, %v6828, %v6767
    %v6839 = vsel %vm2001, %v6829, %v6768
    %v6840 = vsel %vm2001, %v6830, %v6769
    %v6841 = vsel %vm2001, %v6831, %v6770
    %v6842 = vsel %vm2001, %v6832, %v6771
    %v6843 = vsel %vm2001, %v6833, %v6772
    %v6844 = vsel %vm2001, %v6834, %v6773
    %v6845 = vsel %vm2001, %v6835, %v6774
    %v6846 = vsel %vm2001, %v6836, %v6775
    %v6847 = vsel %vm2001, %v6837, %v6776
    %v6848 = vsel %vm429, %v6838, %v6797
    %v6849 = vsel %vm429, %v6839, %v6798
    %v6850 = vsel %vm429, %v6840, %v6799
    %v6851 = vsel %vm429, %v6841, %v6800
    %v6852 = vsel %vm429, %v6842, %v6801
    %v6853 = vsel %vm429, %v6843, %v6802
    %v6854 = vsel %vm429, %v6844, %v6803
    %v6855 = vsel %vm429, %v6845, %v6804
    %v6856 = vsel %vm429, %v6846, %v6805
    %v6857 = vsel %vm429, %v6847, %v6806
    %v6868 = vrot.slane %v6848, 1
    %v6869 = vrot.slane %v6848, 2
    %v6870 = vrot.slane %v6848, 3
    %v6871 = vrot.slane %v6848, 4
    %v6872 = vrot.slane %v6849, 1
    %v6873 = vrot.slane %v6849, 2
    %v6874 = vrot.slane %v6849, 3
    %v6875 = vrot.slane %v6849, 4
    %v6876 = vrot.slane %v6850, 1
    %v6877 = vrot.slane %v6850, 2
    %v6878 = vrot.slane %v6850, 3
    %v6879 = vrot.slane %v6850, 4
    %v6880 = vrot.slane %v6851, 1
    %v6881 = vrot.slane %v6851, 2
    %v6882 = vrot.slane %v6851, 3
    %v6883 = vrot.slane %v6851, 4
    %v6884 = vrot.slane %v6852, 1
    %v6885 = vrot.slane %v6852, 2
    %v6886 = vrot.slane %v6852, 3
    %v6887 = vrot.slane %v6852, 4
    %v6888 = vrot.slane %v6853, 1
    %v6889 = vrot.slane %v6853, 2
    %v6890 = vrot.slane %v6853, 3
    %v6891 = vrot.slane %v6853, 4
    %v6892 = vrot.slane %v6854, 1
    %v6893 = vrot.slane %v6854, 2
    %v6894 = vrot.slane %v6854, 3
    %v6895 = vrot.slane %v6854, 4
    %v6896 = vrot.slane %v6855, 1
    %v6897 = vrot.slane %v6855, 2
    %v6898 = vrot.slane %v6855, 3
    %v6899 = vrot.slane %v6855, 4
    %v6900 = vrot.slane %v6856, 1
    %v6901 = vrot.slane %v6856, 2
    %v6902 = vrot.slane %v6856, 3
    %v6903 = vrot.slane %v6856, 4
    %v6904 = vrot.slane %v6857, 1
    %v6905 = vrot.slane %v6857, 2
    %v6906 = vrot.slane %v6857, 3
    %v6907 = vrot.slane %v6857, 4
    %6908 = vst [vmem:[#allocation1] ss:$9 sm:$0xff] %v6848
    %s6909 = scalar_lea.vmem [#allocation1], 1
    %6910 = vst [vmem:[%s6909] ss:$9 sm:$0xff] %v6868
    %s6911 = scalar_lea.vmem [#allocation1], 2
    %6912 = vst [vmem:[%s6911] ss:$9 sm:$0xff] %v6869
    %s6913 = scalar_lea.vmem [#allocation1], 3
    %6914 = vst [vmem:[%s6913] ss:$9 sm:$0xff] %v6870
    %s6915 = scalar_lea.vmem [#allocation1], 4
    %6916 = vst [vmem:[%s6915] ss:$9 sm:$0xff] %v6871
    %s6917 = scalar_lea.vmem [#allocation1], 5
    %6918 = vst [vmem:[%s6917] ss:$9 sm:$0xff] %v6849
    %s6919 = scalar_lea.vmem [#allocation1], 6
    %6920 = vst [vmem:[%s6919] ss:$9 sm:$0xff] %v6872
    %s6921 = scalar_lea.vmem [#allocation1], 7
    %6922 = vst [vmem:[%s6921] ss:$9 sm:$0xff] %v6873
    %v6923 = vld [vmem:[#allocation1] sm:$0xff]
    %6924 = vst [vmem:[#allocation1] ss:$9 sm:$0xff] %v6874
    %6925 = vst [vmem:[%s6909] ss:$9 sm:$0xff] %v6875
    %6926 = vst [vmem:[%s6911] ss:$9 sm:$0xff] %v6850
    %6927 = vst [vmem:[%s6913] ss:$9 sm:$0xff] %v6876
    %6928 = vst [vmem:[%s6915] ss:$9 sm:$0xff] %v6877
    %6929 = vst [vmem:[%s6917] ss:$9 sm:$0xff] %v6878
    %6930 = vst [vmem:[%s6919] ss:$9 sm:$0xff] %v6879
    %6931 = vst [vmem:[%s6921] ss:$9 sm:$0xff] %v6851
    %v6932 = vld [vmem:[#allocation1] sm:$0xff]
    %6933 = vst [vmem:[#allocation1] ss:$9 sm:$0xff] %v6880
    %6934 = vst [vmem:[%s6909] ss:$9 sm:$0xff] %v6881
    %6935 = vst [vmem:[%s6911] ss:$9 sm:$0xff] %v6882
    %6936 = vst [vmem:[%s6913] ss:$9 sm:$0xff] %v6883
    %6937 = vst [vmem:[%s6915] ss:$9 sm:$0xff] %v6852
    %6938 = vst [vmem:[%s6917] ss:$9 sm:$0xff] %v6884
    %6939 = vst [vmem:[%s6919] ss:$9 sm:$0xff] %v6885
    %6940 = vst [vmem:[%s6921] ss:$9 sm:$0xff] %v6886
    %v6941 = vld [vmem:[#allocation1] sm:$0xff]
    %6942 = vst [vmem:[#allocation1] ss:$9 sm:$0xff] %v6887
    %6943 = vst [vmem:[%s6909] ss:$9 sm:$0xff] %v6853
    %6944 = vst [vmem:[%s6911] ss:$9 sm:$0xff] %v6888
    %6945 = vst [vmem:[%s6913] ss:$9 sm:$0xff] %v6889
    %6946 = vst [vmem:[%s6915] ss:$9 sm:$0xff] %v6890
    %6947 = vst [vmem:[%s6917] ss:$9 sm:$0xff] %v6891
    %6948 = vst [vmem:[%s6919] ss:$9 sm:$0xff] %v6854
    %6949 = vst [vmem:[%s6921] ss:$9 sm:$0xff] %v6892
    %v6950 = vld [vmem:[#allocation1] sm:$0xff]
    %6951 = vst [vmem:[#allocation1] ss:$9 sm:$0xff] %v6893
    %6952 = vst [vmem:[%s6909] ss:$9 sm:$0xff] %v6894
    %6953 = vst [vmem:[%s6911] ss:$9 sm:$0xff] %v6895
    %6954 = vst [vmem:[%s6913] ss:$9 sm:$0xff] %v6855
    %6955 = vst [vmem:[%s6915] ss:$9 sm:$0xff] %v6896
    %6956 = vst [vmem:[%s6917] ss:$9 sm:$0xff] %v6897
    %6957 = vst [vmem:[%s6919] ss:$9 sm:$0xff] %v6898
    %6958 = vst [vmem:[%s6921] ss:$9 sm:$0xff] %v6899
    %v6959 = vld [vmem:[#allocation1] sm:$0xff]
    %6960 = vst [vmem:[#allocation1] ss:$9 sm:$0xff] %v6856
    %6961 = vst [vmem:[%s6909] ss:$9 sm:$0xff] %v6900
    %6962 = vst [vmem:[%s6911] ss:$9 sm:$0xff] %v6901
    %6963 = vst [vmem:[%s6913] ss:$9 sm:$0xff] %v6902
    %6964 = vst [vmem:[%s6915] ss:$9 sm:$0xff] %v6903
    %6965 = vst [vmem:[%s6917] ss:$9 sm:$0xff] %v6857
    %6966 = vst [vmem:[%s6919] ss:$9 sm:$0xff] %v6904
    %6967 = vst [vmem:[%s6921] ss:$9 sm:$0xff] %v6905
    %v6968 = vld [vmem:[#allocation1] sm:$0xff]
    %6969 = vst [vmem:[#allocation1] ss:$9 sm:$0xff] %v6906
    %6970 = vst [vmem:[%s6909] ss:$9 sm:$0xff] %v6907
    %v6971 = vld [vmem:[#allocation1] sm:$0xff]
    %v6979 = vpack.c.bf16 %v6932, %v6923
    %v6980 = vpack.c.bf16 %v6950, %v6941
    %v6981 = vpack.c.bf16 %v6968, %v6959
    %v6982 = vpack.c.bf16 %v6971, %v6971
    %v6983 = vld [vmem:[%s8] sm:$0xf]
    %v6984 = vld [vmem:[%s8 + $0x4] sm:$0xf]
    %v6985 = vld [vmem:[%s8 + $0x8] sm:$0xf]
    %v6986 = vld [vmem:[%s8 + $0xc] sm:$0xf]
    %v6987 = vld [vmem:[%s8 + $0x10] sm:$0xf]
    %v6988 = vld [vmem:[%s8 + $0x14] sm:$0xf]
    %v6989 = vld [vmem:[%s8 + $0x18] sm:$0xf]
    %v6990 = vld [vmem:[%s8 + $0x1c] sm:$0xf]
    %v6991 = vld [vmem:[%s9] sm:$0x1]
    %v6993 = vperm.slane %v6991, 0
    %v7003 = vunpack.c.l.b16 %v6983
    %v7004 = vunpack.c.l.b16 %v6984
    %v7005 = vunpack.c.l.b16 %v6985
    %v7006 = vunpack.c.l.b16 %v6986
    %v7007 = vunpack.c.l.b16 %v6987
    %v7008 = vunpack.c.l.b16 %v6988
    %v7009 = vunpack.c.l.b16 %v6989
    %v7010 = vunpack.c.l.b16 %v6990
    %v7011 = vpack.c.b16 %v7004, %v7003
    %v7012 = vpack.c.b16 %v7006, %v7005
    %v7013 = vpack.c.b16 %v7008, %v7007
    %v7014 = vpack.c.b16 %v7010, %v7009
    %v7020 = vsel %vm95, %v6979, 0
    %v7023 = vsel %vm95, %v6980, 0
    %v7026 = vsel %vm95, %v6981, 0
    %v7029 = vsel %vm95, %v6982, 0
    %7031 = vmatpush.bf16.msra.mxu0 0
    %7032 = vmatpush.bf16.msra.mxu0 0
    %7033 = vmatpush.bf16.msra.mxu0 0
    %7034 = vmatpush.bf16.msra.mxu0 0
    %7035 = vmatpush.bf16.msra.mxu0 %v7014
    %7036 = vmatpush.bf16.msra.mxu0 %v7013
    %7037 = vmatpush.bf16.msra.mxu0 %v7012
    %7038 = vmatpush.bf16.msra.mxu0 %v7011
    %7039 = vmatmul.bf16.gmra.mxu0 %v7020
    %v7040 = vpop.f32.mrf.mxu0
    %v7041 = vadd.f32 %v6993, %v7040
    %v7042 = vpop.f32.mrf.mxu0
    %v7043 = vadd.f32 %v6993, %v7042
    %7044 = vmatmul.bf16.gmra.mxu0 %v7023
    %v7045 = vpop.f32.mrf.mxu0
    %v7046 = vadd.f32 %v6993, %v7045
    %v7047 = vpop.f32.mrf.mxu0
    %v7048 = vadd.f32 %v6993, %v7047
    %7049 = vmatmul.bf16.gmra.mxu0 %v7026
    %v7050 = vpop.f32.mrf.mxu0
    %v7051 = vadd.f32 %v6993, %v7050
    %v7052 = vpop.f32.mrf.mxu0
    %v7053 = vadd.f32 %v6993, %v7052
    %7054 = vmatmul.bf16.gmra.mxu0 %v7029
    %v7055 = vpop.f32.mrf.mxu0
    %v7056 = vadd.f32 %v6993, %v7055
    %v7057 = vpop.f32.mrf.mxu0
    %7058 = vdwg.mxu0
    %v7059 = vmax.f32 %v7041, 0.0
    %v7060 = vmax.f32 %v7043, 0.0
    %v7061 = vmax.f32 %v7046, 0.0
    %v7062 = vmax.f32 %v7048, 0.0
    %v7063 = vmax.f32 %v7051, 0.0
    %v7064 = vmax.f32 %v7053, 0.0
    %v7065 = vmax.f32 %v7056, 0.0
    %v7073 = vrot.slane %v7059, 1
    %v7074 = vrot.slane %v7059, 2
    %v7075 = vrot.slane %v7059, 3
    %v7076 = vrot.slane %v7059, 4
    %v7077 = vrot.slane %v7059, 5
    %v7078 = vrot.slane %v7059, 6
    %v7079 = vrot.slane %v7059, 7
    %v7080 = vrot.slane %v7060, 1
    %v7081 = vrot.slane %v7060, 2
    %v7082 = vrot.slane %v7060, 3
    %v7083 = vrot.slane %v7060, 4
    %v7084 = vrot.slane %v7060, 5
    %v7085 = vrot.slane %v7060, 6
    %v7086 = vrot.slane %v7060, 7
    %v7087 = vrot.slane %v7061, 1
    %v7088 = vrot.slane %v7061, 2
    %v7089 = vrot.slane %v7061, 3
    %v7090 = vrot.slane %v7061, 4
    %v7091 = vrot.slane %v7061, 5
    %v7092 = vrot.slane %v7061, 6
    %v7093 = vrot.slane %v7061, 7
    %v7094 = vrot.slane %v7062, 1
    %v7095 = vrot.slane %v7062, 2
    %v7096 = vrot.slane %v7062, 3
    %v7097 = vrot.slane %v7062, 4
    %v7098 = vrot.slane %v7062, 5
    %v7099 = vrot.slane %v7062, 6
    %v7100 = vrot.slane %v7062, 7
    %v7101 = vrot.slane %v7063, 1
    %v7102 = vrot.slane %v7063, 2
    %v7103 = vrot.slane %v7063, 3
    %v7104 = vrot.slane %v7063, 4
    %v7105 = vrot.slane %v7063, 5
    %v7106 = vrot.slane %v7063, 6
    %v7107 = vrot.slane %v7063, 7
    %v7108 = vrot.slane %v7064, 1
    %v7109 = vrot.slane %v7064, 2
    %v7110 = vrot.slane %v7064, 3
    %v7111 = vrot.slane %v7064, 4
    %v7112 = vrot.slane %v7064, 5
    %v7113 = vrot.slane %v7064, 6
    %v7114 = vrot.slane %v7064, 7
    %v7115 = vrot.slane %v7065, 1
    %7116 = vst [vmem:[#allocation1] ss:$9 sm:$0xff] %v7059
    %s7117 = scalar_lea.vmem [#allocation1], 1
    %7118 = vst [vmem:[%s7117] ss:$9 sm:$0xff] %v7073
    %s7119 = scalar_lea.vmem [#allocation1], 2
    %7120 = vst [vmem:[%s7119] ss:$9 sm:$0xff] %v7074
    %s7121 = scalar_lea.vmem [#allocation1], 3
    %7122 = vst [vmem:[%s7121] ss:$9 sm:$0xff] %v7075
    %s7123 = scalar_lea.vmem [#allocation1], 4
    %7124 = vst [vmem:[%s7123] ss:$9 sm:$0xff] %v7076
    %v7125 = vld [vmem:[#allocation1] sm:$0xff]
    %7126 = vst [vmem:[#allocation1] ss:$9 sm:$0xff] %v7077
    %7127 = vst [vmem:[%s7117] ss:$9 sm:$0xff] %v7078
    %7128 = vst [vmem:[%s7119] ss:$9 sm:$0xff] %v7079
    %7129 = vst [vmem:[%s7121] ss:$9 sm:$0xff] %v7060
    %7130 = vst [vmem:[%s7123] ss:$9 sm:$0xff] %v7080
    %v7131 = vld [vmem:[#allocation1] sm:$0xff]
    %7132 = vst [vmem:[#allocation1] ss:$9 sm:$0xff] %v7081
    %7133 = vst [vmem:[%s7117] ss:$9 sm:$0xff] %v7082
    %7134 = vst [vmem:[%s7119] ss:$9 sm:$0xff] %v7083
    %7135 = vst [vmem:[%s7121] ss:$9 sm:$0xff] %v7084
    %7136 = vst [vmem:[%s7123] ss:$9 sm:$0xff] %v7085
    %v7137 = vld [vmem:[#allocation1] sm:$0xff]
    %7138 = vst [vmem:[#allocation1] ss:$9 sm:$0xff] %v7086
    %7139 = vst [vmem:[%s7117] ss:$9 sm:$0xff] %v7061
    %7140 = vst [vmem:[%s7119] ss:$9 sm:$0xff] %v7087
    %7141 = vst [vmem:[%s7121] ss:$9 sm:$0xff] %v7088
    %7142 = vst [vmem:[%s7123] ss:$9 sm:$0xff] %v7089
    %v7143 = vld [vmem:[#allocation1] sm:$0xff]
    %7144 = vst [vmem:[#allocation1] ss:$9 sm:$0xff] %v7090
    %7145 = vst [vmem:[%s7117] ss:$9 sm:$0xff] %v7091
    %7146 = vst [vmem:[%s7119] ss:$9 sm:$0xff] %v7092
    %7147 = vst [vmem:[%s7121] ss:$9 sm:$0xff] %v7093
    %7148 = vst [vmem:[%s7123] ss:$9 sm:$0xff] %v7062
    %v7149 = vld [vmem:[#allocation1] sm:$0xff]
    %7150 = vst [vmem:[#allocation1] ss:$9 sm:$0xff] %v7094
    %7151 = vst [vmem:[%s7117] ss:$9 sm:$0xff] %v7095
    %7152 = vst [vmem:[%s7119] ss:$9 sm:$0xff] %v7096
    %7153 = vst [vmem:[%s7121] ss:$9 sm:$0xff] %v7097
    %7154 = vst [vmem:[%s7123] ss:$9 sm:$0xff] %v7098
    %v7155 = vld [vmem:[#allocation1] sm:$0xff]
    %7156 = vst [vmem:[#allocation1] ss:$9 sm:$0xff] %v7099
    %7157 = vst [vmem:[%s7117] ss:$9 sm:$0xff] %v7100
    %7158 = vst [vmem:[%s7119] ss:$9 sm:$0xff] %v7063
    %7159 = vst [vmem:[%s7121] ss:$9 sm:$0xff] %v7101
    %7160 = vst [vmem:[%s7123] ss:$9 sm:$0xff] %v7102
    %v7161 = vld [vmem:[#allocation1] sm:$0xff]
    %7162 = vst [vmem:[#allocation1] ss:$9 sm:$0xff] %v7103
    %7163 = vst [vmem:[%s7117] ss:$9 sm:$0xff] %v7104
    %7164 = vst [vmem:[%s7119] ss:$9 sm:$0xff] %v7105
    %7165 = vst [vmem:[%s7121] ss:$9 sm:$0xff] %v7106
    %7166 = vst [vmem:[%s7123] ss:$9 sm:$0xff] %v7107
    %v7167 = vld [vmem:[#allocation1] sm:$0xff]
    %7168 = vst [vmem:[#allocation1] ss:$9 sm:$0xff] %v7064
    %7169 = vst [vmem:[%s7117] ss:$9 sm:$0xff] %v7108
    %7170 = vst [vmem:[%s7119] ss:$9 sm:$0xff] %v7109
    %7171 = vst [vmem:[%s7121] ss:$9 sm:$0xff] %v7110
    %7172 = vst [vmem:[%s7123] ss:$9 sm:$0xff] %v7111
    %v7173 = vld [vmem:[#allocation1] sm:$0xff]
    %7174 = vst [vmem:[#allocation1] ss:$9 sm:$0xff] %v7112
    %7175 = vst [vmem:[%s7117] ss:$9 sm:$0xff] %v7113
    %7176 = vst [vmem:[%s7119] ss:$9 sm:$0xff] %v7114
    %7177 = vst [vmem:[%s7121] ss:$9 sm:$0xff] %v7065
    %7178 = vst [vmem:[%s7123] ss:$9 sm:$0xff] %v7115
    %v7179 = vld [vmem:[#allocation1] sm:$0xff]
    %s7190 = scalar_lea.vmem [#allocation4], 8
    %7191 = vst [vmem:[%s7190 + $0x1] sm:$0x1f] %v7125
    %7192 = vst [vmem:[%s7190 + $0x9] sm:$0x1f] %v7131
    %7193 = vst [vmem:[%s7190 + $0x11] sm:$0x1f] %v7137
    %7194 = vst [vmem:[%s7190 + $0x19] sm:$0x1f] %v7143
    %7195 = vst [vmem:[%s7190 + $0x21] sm:$0x1f] %v7149
    %7196 = vst [vmem:[%s7190 + $0x39] sm:$0x1f] %v7155
    %7197 = vst [vmem:[%s7190 + $0x41] sm:$0x1f] %v7161
    %7198 = vst [vmem:[%s7190 + $0x49] sm:$0x1f] %v7167
    %7199 = vst [vmem:[%s7190 + $0x51] sm:$0x1f] %v7173
    %7200 = vst [vmem:[%s7190 + $0x59] sm:$0x1f] %v7179
    %v7201 = vld [vmem:[#allocation4] sm:$0x1f]
    %v7202 = vld [vmem:[#allocation4 + $0x8] sm:$0x1f]
    %v7203 = vld [vmem:[#allocation4 + $0x10] sm:$0x1f]
    %v7204 = vld [vmem:[#allocation4 + $0x18] sm:$0x1f]
    %v7205 = vld [vmem:[#allocation4 + $0x20] sm:$0x1f]
    %v7206 = vld [vmem:[#allocation4 + $0x38] sm:$0x1f]
    %v7207 = vld [vmem:[#allocation4 + $0x40] sm:$0x1f]
    %v7208 = vld [vmem:[#allocation4 + $0x48] sm:$0x1f]
    %v7209 = vld [vmem:[#allocation4 + $0x50] sm:$0x1f]
    %v7210 = vld [vmem:[#allocation4 + $0x58] sm:$0x1f]
    %v7211 = vld [vmem:[%s10] sm:$0x1]
    %v7212 = vperm.slane %v7211, 0
    %v7213 = vmul.f32 %v7201, %v7212
    %v7214 = vmul.f32 %v7202, %v7212
    %v7215 = vmul.f32 %v7203, %v7212
    %v7216 = vmul.f32 %v7204, %v7212
    %v7217 = vmul.f32 %v7205, %v7212
    %v7218 = vmul.f32 %v7206, %v7212
    %v7219 = vmul.f32 %v7207, %v7212
    %v7220 = vmul.f32 %v7208, %v7212
    %v7221 = vmul.f32 %v7209, %v7212
    %v7222 = vmul.f32 %v7210, %v7212
    %v7223 = vadd.f32 %v7213, 0.0
    %v7224 = vadd.f32 %v7214, 0.0
    %v7225 = vadd.f32 %v7215, 0.0
    %v7226 = vadd.f32 %v7216, 0.0
    %v7227 = vadd.f32 %v7217, 0.0
    %v7228 = vadd.f32 %v7218, 0.0
    %v7229 = vadd.f32 %v7219, 0.0
    %v7230 = vadd.f32 %v7220, 0.0
    %v7231 = vadd.f32 %v7221, 0.0
    %v7232 = vadd.f32 %v7222, 0.0
    %v7233 = vld [vmem:[#allocation4 + $0x1] sm:$0x1f]
    %v7234 = vld [vmem:[#allocation4 + $0x9] sm:$0x1f]
    %v7235 = vld [vmem:[#allocation4 + $0x11] sm:$0x1f]
    %v7236 = vld [vmem:[#allocation4 + $0x19] sm:$0x1f]
    %v7237 = vld [vmem:[#allocation4 + $0x21] sm:$0x1f]
    %v7238 = vld [vmem:[#allocation4 + $0x39] sm:$0x1f]
    %v7239 = vld [vmem:[#allocation4 + $0x41] sm:$0x1f]
    %v7240 = vld [vmem:[#allocation4 + $0x49] sm:$0x1f]
    %v7241 = vld [vmem:[#allocation4 + $0x51] sm:$0x1f]
    %v7242 = vld [vmem:[#allocation4 + $0x59] sm:$0x1f]
    %v7243 = vld [vmem:[%s10 + $0x1] sm:$0x1]
    %v7244 = vperm.slane %v7243, 0
    %v7245 = vmul.f32 %v7233, %v7244
    %v7246 = vmul.f32 %v7234, %v7244
    %v7247 = vmul.f32 %v7235, %v7244
    %v7248 = vmul.f32 %v7236, %v7244
    %v7249 = vmul.f32 %v7237, %v7244
    %v7250 = vmul.f32 %v7238, %v7244
    %v7251 = vmul.f32 %v7239, %v7244
    %v7252 = vmul.f32 %v7240, %v7244
    %v7253 = vmul.f32 %v7241, %v7244
    %v7254 = vmul.f32 %v7242, %v7244
    %v7255 = vadd.f32 %v7223, %v7245
    %v7256 = vadd.f32 %v7224, %v7246
    %v7257 = vadd.f32 %v7225, %v7247
    %v7258 = vadd.f32 %v7226, %v7248
    %v7259 = vadd.f32 %v7227, %v7249
    %v7260 = vadd.f32 %v7228, %v7250
    %v7261 = vadd.f32 %v7229, %v7251
    %v7262 = vadd.f32 %v7230, %v7252
    %v7263 = vadd.f32 %v7231, %v7253
    %v7264 = vadd.f32 %v7232, %v7254
    %v7265 = vld [vmem:[#allocation4 + $0x2] sm:$0x1f]
    %v7266 = vld [vmem:[#allocation4 + $0xa] sm:$0x1f]
    %v7267 = vld [vmem:[#allocation4 + $0x12] sm:$0x1f]
    %v7268 = vld [vmem:[#allocation4 + $0x1a] sm:$0x1f]
    %v7269 = vld [vmem:[#allocation4 + $0x22] sm:$0x1f]
    %v7270 = vld [vmem:[#allocation4 + $0x3a] sm:$0x1f]
    %v7271 = vld [vmem:[#allocation4 + $0x42] sm:$0x1f]
    %v7272 = vld [vmem:[#allocation4 + $0x4a] sm:$0x1f]
    %v7273 = vld [vmem:[#allocation4 + $0x52] sm:$0x1f]
    %v7274 = vld [vmem:[#allocation4 + $0x5a] sm:$0x1f]
    %v7275 = vld [vmem:[%s10 + $0x2] sm:$0x1]
    %v7276 = vperm.slane %v7275, 0
    %v7277 = vmul.f32 %v7265, %v7276
    %v7278 = vmul.f32 %v7266, %v7276
    %v7279 = vmul.f32 %v7267, %v7276
    %v7280 = vmul.f32 %v7268, %v7276
    %v7281 = vmul.f32 %v7269, %v7276
    %v7282 = vmul.f32 %v7270, %v7276
    %v7283 = vmul.f32 %v7271, %v7276
    %v7284 = vmul.f32 %v7272, %v7276
    %v7285 = vmul.f32 %v7273, %v7276
    %v7286 = vmul.f32 %v7274, %v7276
    %v7287 = vadd.f32 %v7255, %v7277
    %v7288 = vadd.f32 %v7256, %v7278
    %v7289 = vadd.f32 %v7257, %v7279
    %v7290 = vadd.f32 %v7258, %v7280
    %v7291 = vadd.f32 %v7259, %v7281
    %v7292 = vadd.f32 %v7260, %v7282
    %v7293 = vadd.f32 %v7261, %v7283
    %v7294 = vadd.f32 %v7262, %v7284
    %v7295 = vadd.f32 %v7263, %v7285
    %v7296 = vadd.f32 %v7264, %v7286
    %v7297 = vld [vmem:[%s7190] sm:$0x1f]
    %v7298 = vld [vmem:[%s7190 + $0x8] sm:$0x1f]
    %v7299 = vld [vmem:[%s7190 + $0x10] sm:$0x1f]
    %v7300 = vld [vmem:[%s7190 + $0x18] sm:$0x1f]
    %v7301 = vld [vmem:[%s7190 + $0x20] sm:$0x1f]
    %v7302 = vld [vmem:[%s7190 + $0x38] sm:$0x1f]
    %v7303 = vld [vmem:[%s7190 + $0x40] sm:$0x1f]
    %v7304 = vld [vmem:[%s7190 + $0x48] sm:$0x1f]
    %v7305 = vld [vmem:[%s7190 + $0x50] sm:$0x1f]
    %v7306 = vld [vmem:[%s7190 + $0x58] sm:$0x1f]
    %v7307 = vld [vmem:[%s10 + $0x3] sm:$0x1]
    %v7308 = vperm.slane %v7307, 0
    %v7309 = vmul.f32 %v7297, %v7308
    %v7310 = vmul.f32 %v7298, %v7308
    %v7311 = vmul.f32 %v7299, %v7308
    %v7312 = vmul.f32 %v7300, %v7308
    %v7313 = vmul.f32 %v7301, %v7308
    %v7314 = vmul.f32 %v7302, %v7308
    %v7315 = vmul.f32 %v7303, %v7308
    %v7316 = vmul.f32 %v7304, %v7308
    %v7317 = vmul.f32 %v7305, %v7308
    %v7318 = vmul.f32 %v7306, %v7308
    %v7319 = vadd.f32 %v7287, %v7309
    %v7320 = vadd.f32 %v7288, %v7310
    %v7321 = vadd.f32 %v7289, %v7311
    %v7322 = vadd.f32 %v7290, %v7312
    %v7323 = vadd.f32 %v7291, %v7313
    %v7324 = vadd.f32 %v7292, %v7314
    %v7325 = vadd.f32 %v7293, %v7315
    %v7326 = vadd.f32 %v7294, %v7316
    %v7327 = vadd.f32 %v7295, %v7317
    %v7328 = vadd.f32 %v7296, %v7318
    %v7329 = vld [vmem:[%s7190 + $0x1] sm:$0x1f]
    %v7330 = vld [vmem:[%s7190 + $0x9] sm:$0x1f]
    %v7331 = vld [vmem:[%s7190 + $0x11] sm:$0x1f]
    %v7332 = vld [vmem:[%s7190 + $0x19] sm:$0x1f]
    %v7333 = vld [vmem:[%s7190 + $0x21] sm:$0x1f]
    %v7334 = vld [vmem:[%s7190 + $0x39] sm:$0x1f]
    %v7335 = vld [vmem:[%s7190 + $0x41] sm:$0x1f]
    %v7336 = vld [vmem:[%s7190 + $0x49] sm:$0x1f]
    %v7337 = vld [vmem:[%s7190 + $0x51] sm:$0x1f]
    %v7338 = vld [vmem:[%s7190 + $0x59] sm:$0x1f]
    %v7339 = vld [vmem:[%s10 + $0x4] sm:$0x1]
    %v7340 = vperm.slane %v7339, 0
    %v7341 = vmul.f32 %v7329, %v7340
    %v7342 = vmul.f32 %v7330, %v7340
    %v7343 = vmul.f32 %v7331, %v7340
    %v7344 = vmul.f32 %v7332, %v7340
    %v7345 = vmul.f32 %v7333, %v7340
    %v7346 = vmul.f32 %v7334, %v7340
    %v7347 = vmul.f32 %v7335, %v7340
    %v7348 = vmul.f32 %v7336, %v7340
    %v7349 = vmul.f32 %v7337, %v7340
    %v7350 = vmul.f32 %v7338, %v7340
    %v7351 = vadd.f32 %v7319, %v7341
    %v7352 = vadd.f32 %v7320, %v7342
    %v7353 = vadd.f32 %v7321, %v7343
    %v7354 = vadd.f32 %v7322, %v7344
    %v7355 = vadd.f32 %v7323, %v7345
    %v7356 = vadd.f32 %v7324, %v7346
    %v7357 = vadd.f32 %v7325, %v7347
    %v7358 = vadd.f32 %v7326, %v7348
    %v7359 = vadd.f32 %v7327, %v7349
    %v7360 = vadd.f32 %v7328, %v7350
    %v7361 = vld [vmem:[%s7190 + $0x2] sm:$0x1f]
    %v7362 = vld [vmem:[%s7190 + $0xa] sm:$0x1f]
    %v7363 = vld [vmem:[%s7190 + $0x12] sm:$0x1f]
    %v7364 = vld [vmem:[%s7190 + $0x1a] sm:$0x1f]
    %v7365 = vld [vmem:[%s7190 + $0x22] sm:$0x1f]
    %v7366 = vld [vmem:[%s7190 + $0x3a] sm:$0x1f]
    %v7367 = vld [vmem:[%s7190 + $0x42] sm:$0x1f]
    %v7368 = vld [vmem:[%s7190 + $0x4a] sm:$0x1f]
    %v7369 = vld [vmem:[%s7190 + $0x52] sm:$0x1f]
    %v7370 = vld [vmem:[%s7190 + $0x5a] sm:$0x1f]
    %v7371 = vld [vmem:[%s10 + $0x5] sm:$0x1]
    %v7372 = vperm.slane %v7371, 0
    %v7373 = vmul.f32 %v7361, %v7372
    %v7374 = vmul.f32 %v7362, %v7372
    %v7375 = vmul.f32 %v7363, %v7372
    %v7376 = vmul.f32 %v7364, %v7372
    %v7377 = vmul.f32 %v7365, %v7372
    %v7378 = vmul.f32 %v7366, %v7372
    %v7379 = vmul.f32 %v7367, %v7372
    %v7380 = vmul.f32 %v7368, %v7372
    %v7381 = vmul.f32 %v7369, %v7372
    %v7382 = vmul.f32 %v7370, %v7372
    %v7383 = vadd.f32 %v7351, %v7373
    %v7384 = vadd.f32 %v7352, %v7374
    %v7385 = vadd.f32 %v7353, %v7375
    %v7386 = vadd.f32 %v7354, %v7376
    %v7387 = vadd.f32 %v7355, %v7377
    %v7388 = vadd.f32 %v7356, %v7378
    %v7389 = vadd.f32 %v7357, %v7379
    %v7390 = vadd.f32 %v7358, %v7380
    %v7391 = vadd.f32 %v7359, %v7381
    %v7392 = vadd.f32 %v7360, %v7382
    %s7393 = scalar_lea.vmem [#allocation4], 16
    %v7394 = vld [vmem:[%s7393] sm:$0x1f]
    %v7395 = vld [vmem:[%s7393 + $0x8] sm:$0x1f]
    %v7396 = vld [vmem:[%s7393 + $0x10] sm:$0x1f]
    %v7397 = vld [vmem:[%s7393 + $0x18] sm:$0x1f]
    %v7398 = vld [vmem:[%s7393 + $0x20] sm:$0x1f]
    %v7399 = vld [vmem:[%s7393 + $0x38] sm:$0x1f]
    %v7400 = vld [vmem:[%s7393 + $0x40] sm:$0x1f]
    %v7401 = vld [vmem:[%s7393 + $0x48] sm:$0x1f]
    %v7402 = vld [vmem:[%s7393 + $0x50] sm:$0x1f]
    %v7403 = vld [vmem:[%s7393 + $0x58] sm:$0x1f]
    %v7404 = vld [vmem:[%s10 + $0x6] sm:$0x1]
    %v7405 = vperm.slane %v7404, 0
    %v7406 = vmul.f32 %v7394, %v7405
    %v7407 = vmul.f32 %v7395, %v7405
    %v7408 = vmul.f32 %v7396, %v7405
    %v7409 = vmul.f32 %v7397, %v7405
    %v7410 = vmul.f32 %v7398, %v7405
    %v7411 = vmul.f32 %v7399, %v7405
    %v7412 = vmul.f32 %v7400, %v7405
    %v7413 = vmul.f32 %v7401, %v7405
    %v7414 = vmul.f32 %v7402, %v7405
    %v7415 = vmul.f32 %v7403, %v7405
    %v7416 = vadd.f32 %v7383, %v7406
    %v7417 = vadd.f32 %v7384, %v7407
    %v7418 = vadd.f32 %v7385, %v7408
    %v7419 = vadd.f32 %v7386, %v7409
    %v7420 = vadd.f32 %v7387, %v7410
    %v7421 = vadd.f32 %v7388, %v7411
    %v7422 = vadd.f32 %v7389, %v7412
    %v7423 = vadd.f32 %v7390, %v7413
    %v7424 = vadd.f32 %v7391, %v7414
    %v7425 = vadd.f32 %v7392, %v7415
    %v7426 = vld [vmem:[%s7393 + $0x1] sm:$0x1f]
    %v7427 = vld [vmem:[%s7393 + $0x9] sm:$0x1f]
    %v7428 = vld [vmem:[%s7393 + $0x11] sm:$0x1f]
    %v7429 = vld [vmem:[%s7393 + $0x19] sm:$0x1f]
    %v7430 = vld [vmem:[%s7393 + $0x21] sm:$0x1f]
    %v7431 = vld [vmem:[%s7393 + $0x39] sm:$0x1f]
    %v7432 = vld [vmem:[%s7393 + $0x41] sm:$0x1f]
    %v7433 = vld [vmem:[%s7393 + $0x49] sm:$0x1f]
    %v7434 = vld [vmem:[%s7393 + $0x51] sm:$0x1f]
    %v7435 = vld [vmem:[%s7393 + $0x59] sm:$0x1f]
    %v7436 = vld [vmem:[%s10 + $0x7] sm:$0x1]
    %v7437 = vperm.slane %v7436, 0
    %v7438 = vmul.f32 %v7426, %v7437
    %v7439 = vmul.f32 %v7427, %v7437
    %v7440 = vmul.f32 %v7428, %v7437
    %v7441 = vmul.f32 %v7429, %v7437
    %v7442 = vmul.f32 %v7430, %v7437
    %v7443 = vmul.f32 %v7431, %v7437
    %v7444 = vmul.f32 %v7432, %v7437
    %v7445 = vmul.f32 %v7433, %v7437
    %v7446 = vmul.f32 %v7434, %v7437
    %v7447 = vmul.f32 %v7435, %v7437
    %v7448 = vadd.f32 %v7416, %v7438
    %v7449 = vadd.f32 %v7417, %v7439
    %v7450 = vadd.f32 %v7418, %v7440
    %v7451 = vadd.f32 %v7419, %v7441
    %v7452 = vadd.f32 %v7420, %v7442
    %v7453 = vadd.f32 %v7421, %v7443
    %v7454 = vadd.f32 %v7422, %v7444
    %v7455 = vadd.f32 %v7423, %v7445
    %v7456 = vadd.f32 %v7424, %v7446
    %v7457 = vadd.f32 %v7425, %v7447
    %v7458 = vld [vmem:[%s7393 + $0x2] sm:$0x1f]
    %v7459 = vld [vmem:[%s7393 + $0xa] sm:$0x1f]
    %v7460 = vld [vmem:[%s7393 + $0x12] sm:$0x1f]
    %v7461 = vld [vmem:[%s7393 + $0x1a] sm:$0x1f]
    %v7462 = vld [vmem:[%s7393 + $0x22] sm:$0x1f]
    %v7463 = vld [vmem:[%s7393 + $0x3a] sm:$0x1f]
    %v7464 = vld [vmem:[%s7393 + $0x42] sm:$0x1f]
    %v7465 = vld [vmem:[%s7393 + $0x4a] sm:$0x1f]
    %v7466 = vld [vmem:[%s7393 + $0x52] sm:$0x1f]
    %v7467 = vld [vmem:[%s7393 + $0x5a] sm:$0x1f]
    %v7468 = vld [vmem:[%s10 + $0x8] sm:$0x1]
    %v7469 = vperm.slane %v7468, 0
    %v7470 = vmul.f32 %v7458, %v7469
    %v7471 = vmul.f32 %v7459, %v7469
    %v7472 = vmul.f32 %v7460, %v7469
    %v7473 = vmul.f32 %v7461, %v7469
    %v7474 = vmul.f32 %v7462, %v7469
    %v7475 = vmul.f32 %v7463, %v7469
    %v7476 = vmul.f32 %v7464, %v7469
    %v7477 = vmul.f32 %v7465, %v7469
    %v7478 = vmul.f32 %v7466, %v7469
    %v7479 = vmul.f32 %v7467, %v7469
    %v7480 = vadd.f32 %v7448, %v7470
    %v7481 = vadd.f32 %v7449, %v7471
    %v7482 = vadd.f32 %v7450, %v7472
    %v7483 = vadd.f32 %v7451, %v7473
    %v7484 = vadd.f32 %v7452, %v7474
    %v7485 = vadd.f32 %v7453, %v7475
    %v7486 = vadd.f32 %v7454, %v7476
    %v7487 = vadd.f32 %v7455, %v7477
    %v7488 = vadd.f32 %v7456, %v7478
    %v7489 = vadd.f32 %v7457, %v7479
    %v7490 = vld [vmem:[%s11] sm:$0x1]
    %v7492 = vperm.slane %v7490, 0
    %v7494 = vadd.f32 %v7480, %v7492
    %v7495 = vadd.f32 %v7481, %v7492
    %v7496 = vadd.f32 %v7482, %v7492
    %v7497 = vadd.f32 %v7483, %v7492
    %v7498 = vadd.f32 %v7484, %v7492
    %v7499 = vadd.f32 %v7485, %v7492
    %v7500 = vadd.f32 %v7486, %v7492
    %v7501 = vadd.f32 %v7487, %v7492
    %v7502 = vadd.f32 %v7488, %v7492
    %v7503 = vadd.f32 %v7489, %v7492
    %v7504 = vmax.f32 %v7494, 0.0
    %v7505 = vmax.f32 %v7495, 0.0
    %v7506 = vmax.f32 %v7496, 0.0
    %v7507 = vmax.f32 %v7497, 0.0
    %v7508 = vmax.f32 %v7498, 0.0
    %v7509 = vmax.f32 %v7499, 0.0
    %v7510 = vmax.f32 %v7500, 0.0
    %v7511 = vmax.f32 %v7501, 0.0
    %v7512 = vmax.f32 %v7502, 0.0
    %v7513 = vmax.f32 %v7503, 0.0
    %v7524 = vrot.slane %v7504, 1
    %v7525 = vrot.slane %v7504, 2
    %v7526 = vrot.slane %v7504, 3
    %v7527 = vrot.slane %v7504, 4
    %v7528 = vrot.slane %v7505, 1
    %v7529 = vrot.slane %v7505, 2
    %v7530 = vrot.slane %v7505, 3
    %v7531 = vrot.slane %v7505, 4
    %v7532 = vrot.slane %v7506, 1
    %v7533 = vrot.slane %v7506, 2
    %v7534 = vrot.slane %v7506, 3
    %v7535 = vrot.slane %v7506, 4
    %v7536 = vrot.slane %v7507, 1
    %v7537 = vrot.slane %v7507, 2
    %v7538 = vrot.slane %v7507, 3
    %v7539 = vrot.slane %v7507, 4
    %v7540 = vrot.slane %v7508, 1
    %v7541 = vrot.slane %v7508, 2
    %v7542 = vrot.slane %v7508, 3
    %v7543 = vrot.slane %v7508, 4
    %v7544 = vrot.slane %v7509, 1
    %v7545 = vrot.slane %v7509, 2
    %v7546 = vrot.slane %v7509, 3
    %v7547 = vrot.slane %v7509, 4
    %v7548 = vrot.slane %v7510, 1
    %v7549 = vrot.slane %v7510, 2
    %v7550 = vrot.slane %v7510, 3
    %v7551 = vrot.slane %v7510, 4
    %v7552 = vrot.slane %v7511, 1
    %v7553 = vrot.slane %v7511, 2
    %v7554 = vrot.slane %v7511, 3
    %v7555 = vrot.slane %v7511, 4
    %v7556 = vrot.slane %v7512, 1
    %v7557 = vrot.slane %v7512, 2
    %v7558 = vrot.slane %v7512, 3
    %v7559 = vrot.slane %v7512, 4
    %v7560 = vrot.slane %v7513, 1
    %v7561 = vrot.slane %v7513, 2
    %v7562 = vrot.slane %v7513, 3
    %v7563 = vrot.slane %v7513, 4
    %7564 = vst [vmem:[#allocation1] ss:$9 sm:$0xff] %v7504
    %s7565 = scalar_lea.vmem [#allocation1], 1
    %7566 = vst [vmem:[%s7565] ss:$9 sm:$0xff] %v7524
    %s7567 = scalar_lea.vmem [#allocation1], 2
    %7568 = vst [vmem:[%s7567] ss:$9 sm:$0xff] %v7525
    %s7569 = scalar_lea.vmem [#allocation1], 3
    %7570 = vst [vmem:[%s7569] ss:$9 sm:$0xff] %v7526
    %s7571 = scalar_lea.vmem [#allocation1], 4
    %7572 = vst [vmem:[%s7571] ss:$9 sm:$0xff] %v7527
    %s7573 = scalar_lea.vmem [#allocation1], 5
    %7574 = vst [vmem:[%s7573] ss:$9 sm:$0xff] %v7505
    %s7575 = scalar_lea.vmem [#allocation1], 6
    %7576 = vst [vmem:[%s7575] ss:$9 sm:$0xff] %v7528
    %s7577 = scalar_lea.vmem [#allocation1], 7
    %7578 = vst [vmem:[%s7577] ss:$9 sm:$0xff] %v7529
    %v7579 = vld [vmem:[#allocation1] sm:$0xff]
    %7580 = vst [vmem:[#allocation1] ss:$9 sm:$0xff] %v7530
    %7581 = vst [vmem:[%s7565] ss:$9 sm:$0xff] %v7531
    %7582 = vst [vmem:[%s7567] ss:$9 sm:$0xff] %v7506
    %7583 = vst [vmem:[%s7569] ss:$9 sm:$0xff] %v7532
    %7584 = vst [vmem:[%s7571] ss:$9 sm:$0xff] %v7533
    %7585 = vst [vmem:[%s7573] ss:$9 sm:$0xff] %v7534
    %7586 = vst [vmem:[%s7575] ss:$9 sm:$0xff] %v7535
    %7587 = vst [vmem:[%s7577] ss:$9 sm:$0xff] %v7507
    %v7588 = vld [vmem:[#allocation1] sm:$0xff]
    %7589 = vst [vmem:[#allocation1] ss:$9 sm:$0xff] %v7536
    %7590 = vst [vmem:[%s7565] ss:$9 sm:$0xff] %v7537
    %7591 = vst [vmem:[%s7567] ss:$9 sm:$0xff] %v7538
    %7592 = vst [vmem:[%s7569] ss:$9 sm:$0xff] %v7539
    %7593 = vst [vmem:[%s7571] ss:$9 sm:$0xff] %v7508
    %7594 = vst [vmem:[%s7573] ss:$9 sm:$0xff] %v7540
    %7595 = vst [vmem:[%s7575] ss:$9 sm:$0xff] %v7541
    %7596 = vst [vmem:[%s7577] ss:$9 sm:$0xff] %v7542
    %v7597 = vld [vmem:[#allocation1] sm:$0xff]
    %7598 = vst [vmem:[#allocation1] ss:$9 sm:$0xff] %v7543
    %7599 = vst [vmem:[%s7565] ss:$9 sm:$0xff] %v7509
    %7600 = vst [vmem:[%s7567] ss:$9 sm:$0xff] %v7544
    %7601 = vst [vmem:[%s7569] ss:$9 sm:$0xff] %v7545
    %7602 = vst [vmem:[%s7571] ss:$9 sm:$0xff] %v7546
    %7603 = vst [vmem:[%s7573] ss:$9 sm:$0xff] %v7547
    %7604 = vst [vmem:[%s7575] ss:$9 sm:$0xff] %v7510
    %7605 = vst [vmem:[%s7577] ss:$9 sm:$0xff] %v7548
    %v7606 = vld [vmem:[#allocation1] sm:$0xff]
    %7607 = vst [vmem:[#allocation1] ss:$9 sm:$0xff] %v7549
    %7608 = vst [vmem:[%s7565] ss:$9 sm:$0xff] %v7550
    %7609 = vst [vmem:[%s7567] ss:$9 sm:$0xff] %v7551
    %7610 = vst [vmem:[%s7569] ss:$9 sm:$0xff] %v7511
    %7611 = vst [vmem:[%s7571] ss:$9 sm:$0xff] %v7552
    %7612 = vst [vmem:[%s7573] ss:$9 sm:$0xff] %v7553
    %7613 = vst [vmem:[%s7575] ss:$9 sm:$0xff] %v7554
    %7614 = vst [vmem:[%s7577] ss:$9 sm:$0xff] %v7555
    %v7615 = vld [vmem:[#allocation1] sm:$0xff]
    %7616 = vst [vmem:[#allocation1] ss:$9 sm:$0xff] %v7512
    %7617 = vst [vmem:[%s7565] ss:$9 sm:$0xff] %v7556
    %7618 = vst [vmem:[%s7567] ss:$9 sm:$0xff] %v7557
    %7619 = vst [vmem:[%s7569] ss:$9 sm:$0xff] %v7558
    %7620 = vst [vmem:[%s7571] ss:$9 sm:$0xff] %v7559
    %7621 = vst [vmem:[%s7573] ss:$9 sm:$0xff] %v7513
    %7622 = vst [vmem:[%s7575] ss:$9 sm:$0xff] %v7560
    %7623 = vst [vmem:[%s7577] ss:$9 sm:$0xff] %v7561
    %v7624 = vld [vmem:[#allocation1] sm:$0xff]
    %7625 = vst [vmem:[#allocation1] ss:$9 sm:$0xff] %v7562
    %7626 = vst [vmem:[%s7565] ss:$9 sm:$0xff] %v7563
    %v7627 = vld [vmem:[#allocation1] sm:$0xff]
    %v7635 = vpack.c.bf16 %v7588, %v7579
    %v7636 = vpack.c.bf16 %v7606, %v7597
    %v7637 = vpack.c.bf16 %v7624, %v7615
    %v7638 = vpack.c.bf16 %v7627, %v7627
    %v7639 = vld [vmem:[%s12] sm:$0xf]
    %v7640 = vld [vmem:[%s12 + $0x4] sm:$0xf]
    %v7641 = vld [vmem:[%s12 + $0x8] sm:$0xf]
    %v7642 = vld [vmem:[%s12 + $0xc] sm:$0xf]
    %v7643 = vld [vmem:[%s12 + $0x10] sm:$0xf]
    %v7644 = vld [vmem:[%s12 + $0x14] sm:$0xf]
    %v7645 = vld [vmem:[%s12 + $0x18] sm:$0xf]
    %v7646 = vld [vmem:[%s12 + $0x1c] sm:$0xf]
    %v7647 = vld [vmem:[%s12 + $0x20] sm:$0xf]
    %v7648 = vld [vmem:[%s12 + $0x24] sm:$0xf]
    %v7649 = vld [vmem:[%s12 + $0x28] sm:$0xf]
    %v7650 = vld [vmem:[%s12 + $0x2c] sm:$0xf]
    %v7651 = vld [vmem:[%s12 + $0x30] sm:$0xf]
    %v7652 = vld [vmem:[%s12 + $0x34] sm:$0xf]
    %v7653 = vld [vmem:[%s12 + $0x38] sm:$0xf]
    %v7654 = vld [vmem:[%s12 + $0x3c] sm:$0xf]
    %v7655 = vld [vmem:[%s13] sm:$0x1]
    %v7657 = vperm.slane %v7655, 0
    %v7675 = vunpack.c.l.b16 %v7639
    %v7676 = vunpack.c.l.b16 %v7640
    %v7677 = vunpack.c.l.b16 %v7641
    %v7678 = vunpack.c.l.b16 %v7642
    %v7679 = vunpack.c.l.b16 %v7643
    %v7680 = vunpack.c.l.b16 %v7644
    %v7681 = vunpack.c.l.b16 %v7645
    %v7682 = vunpack.c.l.b16 %v7646
    %v7683 = vunpack.c.l.b16 %v7647
    %v7684 = vunpack.c.l.b16 %v7648
    %v7685 = vunpack.c.l.b16 %v7649
    %v7686 = vunpack.c.l.b16 %v7650
    %v7687 = vunpack.c.l.b16 %v7651
    %v7688 = vunpack.c.l.b16 %v7652
    %v7689 = vunpack.c.l.b16 %v7653
    %v7690 = vunpack.c.l.b16 %v7654
    %v7691 = vpack.c.b16 %v7676, %v7675
    %v7692 = vpack.c.b16 %v7678, %v7677
    %v7693 = vpack.c.b16 %v7680, %v7679
    %v7694 = vpack.c.b16 %v7682, %v7681
    %v7695 = vpack.c.b16 %v7684, %v7683
    %v7696 = vpack.c.b16 %v7686, %v7685
    %v7697 = vpack.c.b16 %v7688, %v7687
    %v7698 = vpack.c.b16 %v7690, %v7689
    %7707 = vmatpush.bf16.msra.mxu0 %v7698
    %7708 = vmatpush.bf16.msra.mxu0 %v7697
    %7709 = vmatpush.bf16.msra.mxu0 %v7696
    %7710 = vmatpush.bf16.msra.mxu0 %v7695
    %7711 = vmatpush.bf16.msra.mxu0 %v7694
    %7712 = vmatpush.bf16.msra.mxu0 %v7693
    %7713 = vmatpush.bf16.msra.mxu0 %v7692
    %7714 = vmatpush.bf16.msra.mxu0 %v7691
    %7715 = vmatmul.bf16.gmra.mxu0 %v7635
    %v7716 = vpop.f32.mrf.mxu0
    %v7717 = vadd.f32 %v7657, %v7716
    %v7718 = vpop.f32.mrf.mxu0
    %v7719 = vadd.f32 %v7657, %v7718
    %7720 = vmatmul.bf16.gmra.mxu0 %v7636
    %v7721 = vpop.f32.mrf.mxu0
    %v7722 = vadd.f32 %v7657, %v7721
    %v7723 = vpop.f32.mrf.mxu0
    %v7724 = vadd.f32 %v7657, %v7723
    %7725 = vmatmul.bf16.gmra.mxu0 %v7637
    %v7726 = vpop.f32.mrf.mxu0
    %v7727 = vadd.f32 %v7657, %v7726
    %v7728 = vpop.f32.mrf.mxu0
    %v7729 = vadd.f32 %v7657, %v7728
    %7730 = vmatmul.bf16.gmra.mxu0 %v7638
    %v7731 = vpop.f32.mrf.mxu0
    %v7732 = vadd.f32 %v7657, %v7731
    %v7733 = vpop.f32.mrf.mxu0
    %7734 = vdwg.mxu0
    %v7735 = vmax.f32 %v7717, 0.0
    %v7736 = vmax.f32 %v7719, 0.0
    %v7737 = vmax.f32 %v7722, 0.0
    %v7738 = vmax.f32 %v7724, 0.0
    %v7739 = vmax.f32 %v7727, 0.0
    %v7740 = vmax.f32 %v7729, 0.0
    %v7741 = vmax.f32 %v7732, 0.0
    %v7749 = vrot.slane %v7735, 1
    %v7750 = vrot.slane %v7735, 2
    %v7751 = vrot.slane %v7735, 3
    %v7752 = vrot.slane %v7735, 4
    %v7753 = vrot.slane %v7735, 5
    %v7754 = vrot.slane %v7735, 6
    %v7755 = vrot.slane %v7735, 7
    %v7756 = vrot.slane %v7736, 1
    %v7757 = vrot.slane %v7736, 2
    %v7758 = vrot.slane %v7736, 3
    %v7759 = vrot.slane %v7736, 4
    %v7760 = vrot.slane %v7736, 5
    %v7761 = vrot.slane %v7736, 6
    %v7762 = vrot.slane %v7736, 7
    %v7763 = vrot.slane %v7737, 1
    %v7764 = vrot.slane %v7737, 2
    %v7765 = vrot.slane %v7737, 3
    %v7766 = vrot.slane %v7737, 4
    %v7767 = vrot.slane %v7737, 5
    %v7768 = vrot.slane %v7737, 6
    %v7769 = vrot.slane %v7737, 7
    %v7770 = vrot.slane %v7738, 1
    %v7771 = vrot.slane %v7738, 2
    %v7772 = vrot.slane %v7738, 3
    %v7773 = vrot.slane %v7738, 4
    %v7774 = vrot.slane %v7738, 5
    %v7775 = vrot.slane %v7738, 6
    %v7776 = vrot.slane %v7738, 7
    %v7777 = vrot.slane %v7739, 1
    %v7778 = vrot.slane %v7739, 2
    %v7779 = vrot.slane %v7739, 3
    %v7780 = vrot.slane %v7739, 4
    %v7781 = vrot.slane %v7739, 5
    %v7782 = vrot.slane %v7739, 6
    %v7783 = vrot.slane %v7739, 7
    %v7784 = vrot.slane %v7740, 1
    %v7785 = vrot.slane %v7740, 2
    %v7786 = vrot.slane %v7740, 3
    %v7787 = vrot.slane %v7740, 4
    %v7788 = vrot.slane %v7740, 5
    %v7789 = vrot.slane %v7740, 6
    %v7790 = vrot.slane %v7740, 7
    %v7791 = vrot.slane %v7741, 1
    %7792 = vst [vmem:[#allocation1] ss:$9 sm:$0xff] %v7735
    %s7793 = scalar_lea.vmem [#allocation1], 1
    %7794 = vst [vmem:[%s7793] ss:$9 sm:$0xff] %v7749
    %s7795 = scalar_lea.vmem [#allocation1], 2
    %7796 = vst [vmem:[%s7795] ss:$9 sm:$0xff] %v7750
    %s7797 = scalar_lea.vmem [#allocation1], 3
    %7798 = vst [vmem:[%s7797] ss:$9 sm:$0xff] %v7751
    %s7799 = scalar_lea.vmem [#allocation1], 4
    %7800 = vst [vmem:[%s7799] ss:$9 sm:$0xff] %v7752
    %s7801 = scalar_lea.vmem [#allocation1], 5
    %7802 = vst [vmem:[%s7801] ss:$9 sm:$0xff] %v7753
    %s7803 = scalar_lea.vmem [#allocation1], 6
    %7804 = vst [vmem:[%s7803] ss:$9 sm:$0xff] %v7754
    %s7805 = scalar_lea.vmem [#allocation1], 7
    %7806 = vst [vmem:[%s7805] ss:$9 sm:$0xff] %v7755
    %v7807 = vld [vmem:[#allocation1] sm:$0xff]
    %7808 = vst [vmem:[#allocation1] ss:$9 sm:$0xff] %v7736
    %7809 = vst [vmem:[%s7793] ss:$9 sm:$0xff] %v7756
    %7810 = vst [vmem:[%s7795] ss:$9 sm:$0xff] %v7757
    %7811 = vst [vmem:[%s7797] ss:$9 sm:$0xff] %v7758
    %7812 = vst [vmem:[%s7799] ss:$9 sm:$0xff] %v7759
    %7813 = vst [vmem:[%s7801] ss:$9 sm:$0xff] %v7760
    %7814 = vst [vmem:[%s7803] ss:$9 sm:$0xff] %v7761
    %7815 = vst [vmem:[%s7805] ss:$9 sm:$0xff] %v7762
    %v7816 = vld [vmem:[#allocation1] sm:$0xff]
    %7817 = vst [vmem:[#allocation1] ss:$9 sm:$0xff] %v7737
    %7818 = vst [vmem:[%s7793] ss:$9 sm:$0xff] %v7763
    %7819 = vst [vmem:[%s7795] ss:$9 sm:$0xff] %v7764
    %7820 = vst [vmem:[%s7797] ss:$9 sm:$0xff] %v7765
    %7821 = vst [vmem:[%s7799] ss:$9 sm:$0xff] %v7766
    %7822 = vst [vmem:[%s7801] ss:$9 sm:$0xff] %v7767
    %7823 = vst [vmem:[%s7803] ss:$9 sm:$0xff] %v7768
    %7824 = vst [vmem:[%s7805] ss:$9 sm:$0xff] %v7769
    %v7825 = vld [vmem:[#allocation1] sm:$0xff]
    %7826 = vst [vmem:[#allocation1] ss:$9 sm:$0xff] %v7738
    %v7827 = vld [vmem:[#allocation1] sm:$0xff]
    %7828 = vst [vmem:[#allocation1] ss:$9 sm:$0xff] %v7770
    %7829 = vst [vmem:[%s7793] ss:$9 sm:$0xff] %v7771
    %7830 = vst [vmem:[%s7795] ss:$9 sm:$0xff] %v7772
    %7831 = vst [vmem:[%s7797] ss:$9 sm:$0xff] %v7773
    %7832 = vst [vmem:[%s7799] ss:$9 sm:$0xff] %v7774
    %7833 = vst [vmem:[%s7801] ss:$9 sm:$0xff] %v7775
    %7834 = vst [vmem:[%s7803] ss:$9 sm:$0xff] %v7776
    %7835 = vst [vmem:[%s7805] ss:$9 sm:$0xff] %v7739
    %v7836 = vld [vmem:[#allocation1] sm:$0xff]
    %7837 = vst [vmem:[#allocation1] ss:$9 sm:$0xff] %v7777
    %7838 = vst [vmem:[%s7793] ss:$9 sm:$0xff] %v7778
    %7839 = vst [vmem:[%s7795] ss:$9 sm:$0xff] %v7779
    %7840 = vst [vmem:[%s7797] ss:$9 sm:$0xff] %v7780
    %7841 = vst [vmem:[%s7799] ss:$9 sm:$0xff] %v7781
    %7842 = vst [vmem:[%s7801] ss:$9 sm:$0xff] %v7782
    %7843 = vst [vmem:[%s7803] ss:$9 sm:$0xff] %v7783
    %7844 = vst [vmem:[%s7805] ss:$9 sm:$0xff] %v7740
    %v7845 = vld [vmem:[#allocation1] sm:$0xff]
    %7846 = vst [vmem:[#allocation1] ss:$9 sm:$0xff] %v7784
    %7847 = vst [vmem:[%s7793] ss:$9 sm:$0xff] %v7785
    %7848 = vst [vmem:[%s7795] ss:$9 sm:$0xff] %v7786
    %7849 = vst [vmem:[%s7797] ss:$9 sm:$0xff] %v7787
    %7850 = vst [vmem:[%s7799] ss:$9 sm:$0xff] %v7788
    %7851 = vst [vmem:[%s7801] ss:$9 sm:$0xff] %v7789
    %7852 = vst [vmem:[%s7803] ss:$9 sm:$0xff] %v7790
    %7853 = vst [vmem:[%s7805] ss:$9 sm:$0xff] %v7741
    %v7854 = vld [vmem:[#allocation1] sm:$0xff]
    %7855 = vst [vmem:[#allocation1] ss:$9 sm:$0xff] %v7791
    %v7856 = vld [vmem:[#allocation1] sm:$0xff]
    %v7865 = vadd.f32 %v7807, %v7816
    %v7866 = vadd.f32 %v7865, %v7825
    %v7867 = vsel %vm6817, %v7827, 0.0
    %v7868 = vadd.f32 %v7866, %v7867
    %v7869 = vrot.slane %v7868, 4
    %v7870 = vadd.f32 %v7868, %v7869
    %v7871 = vrot.slane %v7870, 2
    %v7872 = vadd.f32 %v7870, %v7871
    %v7873 = vrot.slane %v7872, 1
    %v7874 = vadd.f32 %v7872, %v7873
    %v7875 = vadd.f32 %v7836, %v7845
    %v7876 = vadd.f32 %v7875, %v7854
    %v7877 = vsel %vm6817, %v7856, 0.0
    %v7878 = vadd.f32 %v7876, %v7877
    %v7879 = vrot.slane %v7878, 4
    %v7880 = vadd.f32 %v7878, %v7879
    %v7881 = vrot.slane %v7880, 2
    %v7882 = vadd.f32 %v7880, %v7881
    %v7883 = vrot.slane %v7882, 1
    %v7884 = vadd.f32 %v7882, %v7883
    %v7885 = vmul.f32 %v7874, 0.04
    %v7886 = vmul.f32 %v7884, 0.04
    %7887 = vst [vmem:[#allocation5] sm:$0x1] %v7885
    %7888 = vst [vmem:[#allocation5 + $0x1] sm:$0x1] %v7886
    // Predicated region
    $region58: #{backbone_forward.1} parent=1 // pred_check
      _
    $region59: #{backbone_forward.1} parent=1 // pred_check_branch
      %7890 = sbr.rel (0) target = $region61
    $region60: #{backbone_forward.1} parent=1 // pred_region
      %7892 = vsyncadd [#allocation6], 0
      %s7893 = sshll.u32 [#allocation5], 4
      %s7894 = int_to_ptr.vmem [resolvable:$true] %s7893
      %s7895 = sshll.u32 %s14, 4
      %s7896 = int_to_ptr.hbm [resolvable:$true] %s7895
      %7901 = dma.vmem_to_hbm [thread:$0]  %s7894, 32, %s7896, [#allocation6], 16, 16, 1
    $region61: #{backbone_forward.1} parent=1 // pred_fallthru
      _
    // Predicated region
    $region62: #{backbone_forward.1} parent=1 // pred_check
      _
    $region63: #{backbone_forward.1} parent=1 // pred_check_branch
      %7903 = sbr.rel (0) target = $region65
    $region64: #{backbone_forward.1} parent=1 // pred_region
      %7905 = dma.done [#allocation6], 32
    $region65: #{backbone_forward.1} parent=1 // pred_fallthru
      _
    %7906 = vsyncpa [#allocation6], 1

</llo_original>
